<compile_context>
chip_gen: v7x
topology: tpu7x:2x2x1
jax: 0.10.0
libtpu: 0.0.40
codegen_flags: <defaults>
</compile_context>

<pallas_src>
import functools

import jax
import jax.numpy as jnp
from jax.experimental import pallas as pl
from jax.experimental.pallas import tpu as pltpu

GEM_EPS = 1e-6
BN_EPS = 1e-5


def _pow_static(x, p):
    """x ** p for x > 0 with p a trace-time constant.

    Integer p -> exponentiation-by-squaring on the VPU (cheap VALU muls);
    otherwise fall back to exp(p * log(x)) on the EUP.
    """
    if float(p).is_integer() and 1 <= int(p) <= 16:
        n = int(p)
        acc = None
        base = x
        while n:
            if n & 1:
                acc = base if acc is None else acc * base
            n >>= 1
            if n:
                base = base * base
        return acc
    return jnp.exp(p * jnp.log(x))


def gem_bn_kernel(x_ref, scale_ref, shift_ref, bn_ref, *, p, inv_s):
    # x_ref:     (B, TC, TS) f32 block of the (B, C, S) feature map
    # scale_ref: (1, TC)     folded BN scale  = gamma * rsqrt(var + eps)
    # shift_ref: (1, TC)     folded BN shift  = beta - mean * scale
    # bn_ref:    (B, TC)     output; also the running sum(x^p) accumulator across S blocks
    k = pl.program_id(1)

    x = jnp.maximum(x_ref[...], GEM_EPS)            # clamp(min=1e-6)
    xp = _pow_static(x, p)                          # x ** p (VPU for integer p)
    partial = jnp.sum(xp, axis=-1)                  # reduce this spatial tile -> (B, TC)

    @pl.when(k == 0)
    def _():
        bn_ref[...] = jnp.zeros_like(bn_ref)

    bn_ref[...] += partial

    @pl.when(k == pl.num_programs(1) - 1)
    def _():
        pooled = bn_ref[...] * inv_s                        # mean over all of S
        pooled = jnp.exp(jnp.log(pooled) * (1.0 / p))       # (.) ** (1/p); pooled > 0
        bn_ref[...] = pooled * scale_ref[...] + shift_ref[...]


def cls_kernel(bn_ref, w_ref, out_ref):
    # bn_ref: (B, C) f32 ; w_ref: (C, TP) bf16 ; out_ref: (B, TP) f32
    out_ref[...] = jnp.dot(bn_ref[...].astype(w_ref.dtype), w_ref[...],
                           preferred_element_type=jnp.float32)


def _pick_tile(dim, candidates):
    for c in candidates:
        if dim % c == 0 and c <= dim:
            return c
    return dim


def classifier_forward(features_map, params, training=False):
    """features_map: (B, C, H, W) float32, NCHW like the PyTorch module."""
    B, C, H, W = features_map.shape
    S = H * W
    p = float(params["gem_p"])          # GeM power specialized at trace time (3.0 here)

    # Free reshape (no HBM transpose / extra copy): merge H*W -> S on the lane axis.
    x = features_map.reshape(B, C, S)

    # Fold BatchNorm1d (running stats) into one scale/shift pair per channel.
    scale = params["bn_gamma"] * jax.lax.rsqrt(params["bn_var"] + BN_EPS)
    shift = params["bn_beta"] - params["bn_mean"] * scale
    scale = scale.reshape(1, C).astype(jnp.float32)
    shift = shift.reshape(1, C).astype(jnp.float32)

    tc = _pick_tile(C, (512, 256, 128, 64, 32, 16, 8))   # channel tile (sublane axis)
    ts = _pick_tile(S, (512, 384, 256, 128))             # spatial tile (lane axis), else full S

    kernel = functools.partial(gem_bn_kernel, p=p, inv_s=1.0 / S)
    bn_features = pl.pallas_call(
        kernel,
        out_shape=jax.ShapeDtypeStruct((B, C), jnp.float32),
        grid_spec=pltpu.PrefetchScalarGridSpec(
            num_scalar_prefetch=0,
            grid=(C // tc, S // ts),
            in_specs=[
                pl.BlockSpec((B, tc, ts), lambda i, k: (0, i, k)),
                pl.BlockSpec((1, tc), lambda i, k: (0, i)),
                pl.BlockSpec((1, tc), lambda i, k: (0, i)),
            ],
            out_specs=pl.BlockSpec((B, tc), lambda i, k: (0, i)),
        ),
        compiler_params=pltpu.CompilerParams(
            dimension_semantics=("parallel", "arbitrary")),
    )(x, scale, shift)

    if not training:
        # Eval path of the module: return BN features only.
        # The classifier weight is never DMA'd and no matmul runs.
        return bn_features

    # Training path: also compute cls_score = bn @ W^T with a P-tiled MXU kernel.
    # TODO(synk): BatchNorm1d training-mode batch statistics not implemented; running stats used.
    P = params["classifier_w"].shape[0]
    tp = 128
    p_pad = ((P + tp - 1) // tp) * tp
    w_t = params["classifier_w"].T.astype(jnp.bfloat16)          # (C, P), bf16 halves HBM/VMEM bytes
    if p_pad != P:
        w_t = jnp.pad(w_t, ((0, 0), (0, p_pad - P)))

    cls_score = pl.pallas_call(
        cls_kernel,
        out_shape=jax.ShapeDtypeStruct((B, p_pad), jnp.float32),
        grid_spec=pltpu.PrefetchScalarGridSpec(
            num_scalar_prefetch=0,
            grid=(p_pad // tp,),
            in_specs=[
                pl.BlockSpec((B, C), lambda j: (0, 0)),
                pl.BlockSpec((C, tp), lambda j: (0, j)),
            ],
            out_specs=pl.BlockSpec((B, tp), lambda j: (0, j)),
        ),
        compiler_params=pltpu.CompilerParams(
            dimension_semantics=("parallel",)),
    )(bn_features, w_t)

    if p_pad != P:
        cls_score = cls_score[:, :P]
    return bn_features, cls_score


def init_params(key, pid_num, C=2048):
    # Mirrors the module's __init__: GeM p=3.0; BN gamma=1, beta=0, running stats 0/1;
    # classifier normal(std=0.001), no bias.
    return {
        "gem_p": 3.0,
        "bn_gamma": jnp.ones((C,), dtype=jnp.float32),
        "bn_beta": jnp.zeros((C,), dtype=jnp.float32),
        "bn_mean": jnp.zeros((C,), dtype=jnp.float32),
        "bn_var": jnp.ones((C,), dtype=jnp.float32),
        "classifier_w": 0.001 * jax.random.normal(key, (pid_num, C), dtype=jnp.float32),
    }


def reference_forward(features_map, params):
    # Pure-JAX f32 reference for correctness checking.
    p = float(params["gem_p"])
    xp = jnp.maximum(features_map, GEM_EPS) ** p
    pooled = jnp.mean(xp, axis=(2, 3)) ** (1.0 / p)                      # (B, C)
    bn = (pooled - params["bn_mean"]) * jax.lax.rsqrt(params["bn_var"] + BN_EPS)
    bn = bn * params["bn_gamma"] + params["bn_beta"]
    cls = bn @ params["classifier_w"].T
    return bn, cls


if __name__ == "__main__":
    B, C, H, W = 2, 2048, 8, 8
    pid_num = 128

    key = jax.random.PRNGKey(0)
    k_x, k_w = jax.random.split(key)
    features_map = jax.random.uniform(k_x, (B, C, H, W), dtype=jnp.float32)
    params = init_params(k_w, pid_num, C)

    # Eval path (module's inference forward): GeM + BN only, no classifier matmul.
    bn_features = classifier_forward(features_map, params, training=False)
    bn_features = jax.block_until_ready(bn_features)

    # Training path: additionally runs the bf16-weight classifier matmul kernel.
    bn_train, cls_score = classifier_forward(features_map, params, training=True)
    cls_score = jax.block_until_ready(cls_score)

    bn_ref, cls_ref = reference_forward(features_map, params)
    assert bn_features.shape == (B, C)
    assert jnp.allclose(bn_features, bn_ref, rtol=1e-4, atol=1e-4), "bn (eval) mismatch"
    assert jnp.allclose(bn_train, bn_ref, rtol=1e-4, atol=1e-4), "bn (train) mismatch"
    assert cls_score.shape == (B, pid_num)
    assert jnp.allclose(cls_score, cls_ref, rtol=2e-2, atol=2e-3), "cls mismatch (bf16 matmul)"

    print("KERNEL_OK")
</pallas_src>

<mosaic_0001>
module attributes {stable_mosaic.version = 11 : i64} {
  func.func @gem_bn_kernel(%arg0: i32, %arg1: i32, %arg2: memref<2x512x64xf32, #tpu.memory_space<vmem>>, %arg3: memref<1x512xf32, #tpu.memory_space<vmem>>, %arg4: memref<1x512xf32, #tpu.memory_space<vmem>>, %arg5: memref<2x512xf32, #tpu.memory_space<vmem>>) attributes {dimension_semantics = [#tpu.dimension_semantics<parallel>, #tpu.dimension_semantics<arbitrary>], iteration_bounds = array<i64: 4, 1>, scalar_prefetch = 0 : i64, scratch_operands = 0 : i64, tpu.core_type = #tpu.core_type<tc>, window_params = [{transform_indices = @transform_0, window_bounds = array<i64: 2, 512, 64>}, {transform_indices = @transform_1, window_bounds = array<i64: 1, 512>}, {transform_indices = @transform_2, window_bounds = array<i64: 1, 512>}, {transform_indices = @transform_3, window_bounds = array<i64: 2, 512>}]} {
    %c0 = arith.constant 0 : index
    %c0_0 = arith.constant 0 : index
    %c0_1 = arith.constant 0 : index
    %0 = vector.load %arg2[%c0, %c0_0, %c0_1] : memref<2x512x64xf32, #tpu.memory_space<vmem>>, vector<2x512x64xf32>
    %cst = arith.constant 9.99999997E-7 : f32
    %1 = vector.broadcast %cst : f32 to vector<2x512x64xf32>
    %2 = arith.maximumf %0, %1 : vector<2x512x64xf32>
    %3 = arith.mulf %2, %2 : vector<2x512x64xf32>
    %4 = arith.mulf %2, %3 : vector<2x512x64xf32>
    %cst_2 = arith.constant dense<0.000000e+00> : vector<2x512xf32>
    %5 = vector.multi_reduction <add>, %4, %cst_2 [2] : vector<2x512x64xf32> to vector<2x512xf32>
    %c0_i32 = arith.constant 0 : i32
    %6 = arith.cmpi eq, %arg1, %c0_i32 : i32
    %7 = arith.extui %6 : i1 to i32
    %c0_i32_3 = arith.constant 0 : i32
    %8 = arith.cmpi ne, %7, %c0_i32_3 : i32
    scf.if %8 {
      %cst_10 = arith.constant 0.000000e+00 : f32
      %15 = vector.broadcast %cst_10 : f32 to vector<2x512xf32>
      %c0_11 = arith.constant 0 : index
      %c0_12 = arith.constant 0 : index
      %16 = vector.load %arg5[%c0_11, %c0_12] : memref<2x512xf32, #tpu.memory_space<vmem>>, vector<2x512xf32>
      tpu.vector_store %arg5[%c0_11, %c0_12], %15 {strides = array<i32>} : memref<2x512xf32, #tpu.memory_space<vmem>>, vector<2x512xf32>,
    } else {
    }
    %c0_4 = arith.constant 0 : index
    %c0_5 = arith.constant 0 : index
    %9 = vector.load %arg5[%c0_4, %c0_5] : memref<2x512xf32, #tpu.memory_space<vmem>>, vector<2x512xf32>
    %10 = arith.addf %9, %5 : vector<2x512xf32>
    %c0_6 = arith.constant 0 : index
    %c0_7 = arith.constant 0 : index
    %11 = vector.load %arg5[%c0_6, %c0_7] : memref<2x512xf32, #tpu.memory_space<vmem>>, vector<2x512xf32>
    tpu.vector_store %arg5[%c0_6, %c0_7], %10 {strides = array<i32>} : memref<2x512xf32, #tpu.memory_space<vmem>>, vector<2x512xf32>,
    %c0_i32_8 = arith.constant 0 : i32
    %12 = arith.cmpi eq, %arg1, %c0_i32_8 : i32
    %13 = arith.extui %12 : i1 to i32
    %c0_i32_9 = arith.constant 0 : i32
    %14 = arith.cmpi ne, %13, %c0_i32_9 : i32
    scf.if %14 {
      %c0_10 = arith.constant 0 : index
      %c0_11 = arith.constant 0 : index
      %15 = vector.load %arg5[%c0_10, %c0_11] : memref<2x512xf32, #tpu.memory_space<vmem>>, vector<2x512xf32>
      %cst_12 = arith.constant 1.562500e-02 : f32
      %16 = vector.broadcast %cst_12 : f32 to vector<2x512xf32>
      %17 = arith.mulf %15, %16 : vector<2x512xf32>
      %18 = math.log %17 : vector<2x512xf32>
      %cst_13 = arith.constant 0.333333343 : f32
      %19 = vector.broadcast %cst_13 : f32 to vector<2x512xf32>
      %20 = arith.mulf %18, %19 : vector<2x512xf32>
      %21 = math.exp %20 : vector<2x512xf32>
      %c0_14 = arith.constant 0 : index
      %c0_15 = arith.constant 0 : index
      %22 = vector.load %arg3[%c0_14, %c0_15] : memref<1x512xf32, #tpu.memory_space<vmem>>, vector<1x512xf32>
      %23 = vector.broadcast %22 : vector<1x512xf32> to vector<2x512xf32>
      %24 = arith.mulf %21, %23 : vector<2x512xf32>
      %c0_16 = arith.constant 0 : index
      %c0_17 = arith.constant 0 : index
      %25 = vector.load %arg4[%c0_16, %c0_17] : memref<1x512xf32, #tpu.memory_space<vmem>>, vector<1x512xf32>
      %26 = vector.broadcast %25 : vector<1x512xf32> to vector<2x512xf32>
      %27 = arith.addf %24, %26 : vector<2x512xf32>
      %c0_18 = arith.constant 0 : index
      %c0_19 = arith.constant 0 : index
      %28 = vector.load %arg5[%c0_18, %c0_19] : memref<2x512xf32, #tpu.memory_space<vmem>>, vector<2x512xf32>
      tpu.vector_store %arg5[%c0_18, %c0_19], %27 {strides = array<i32>} : memref<2x512xf32, #tpu.memory_space<vmem>>, vector<2x512xf32>,
    } else {
    }
    return
  }
  func.func @transform_0(%arg0: i32, %arg1: i32) -> (i32, i32, i32) {
    %c0_i32 = arith.constant 0 : i32
    %c0_i32_0 = arith.constant 0 : i32
    return %c0_i32, %arg0, %arg1 : i32, i32, i32
  }
  func.func @transform_1(%arg0: i32, %arg1: i32) -> (i32, i32) {
    %c0_i32 = arith.constant 0 : i32
    %c0_i32_0 = arith.constant 0 : i32
    return %c0_i32, %arg0 : i32, i32
  }
  func.func @transform_2(%arg0: i32, %arg1: i32) -> (i32, i32) {
    %c0_i32 = arith.constant 0 : i32
    %c0_i32_0 = arith.constant 0 : i32
    return %c0_i32, %arg0 : i32, i32
  }
  func.func @transform_3(%arg0: i32, %arg1: i32) -> (i32, i32) {
    %c0_i32 = arith.constant 0 : i32
    %c0_i32_0 = arith.constant 0 : i32
    return %c0_i32, %arg0 : i32, i32
  }
}

</mosaic_0001>

<llo_original>
// kernel: tpu_custom_call.1
$region0: #{tpu_custom_call.1}
  #allocation0 [shape = 'u32[]', space=smem, size = 0x4, offset = 0x4, fixed_abs, tag = 'smem constant byte address 0x4 - core index']
  #allocation1 [shape = 'u32[144,128]{1,0:T(1,128)}', space=vmem, size = 0x12000, scoped, tag = 'internal scratch']
  %s0 = inlined_call_operand.vmem [shape: f32[2,2048,64], index: 0, kind: input, shape index: {}]
  %s1 = inlined_call_operand.vmem [shape: f32[1,2048], index: 1, kind: input, shape index: {}]
  %s2 = inlined_call_operand.vmem [shape: f32[1,2048], index: 2, kind: input, shape index: {}]
  %s3 = inlined_call_operand.hbm [shape: f32[2,2048], index: 3, kind: output, shape index: {}]
  %s4 = sld [smem:[#allocation0]]
  $region91: #{tpu_custom_call.1} parent=0
    _
  %s6 = ssub.s32 1, %s4
  %s7 = scalar_select 0, %s6, %s4
  $region1: #{tpu_custom_call.1} parent=0
    #allocation2 [shape = 'u8[1048576]{0}', space=vmem, size = 0x100000, scoped, tag = 'input window, operand 0']
    #allocation3 [shape = 'u8[8192]{0}', space=vmem, size = 0x2000, scoped, tag = 'output window, operand 0']
    #allocation4 [shape = 's32[2]{0}', space=sflag, size = 0x8, scoped, tag = 'scoped memory for tpu_custom_call.1']
    %8 = vsyncpa [#allocation4], 0
    %s9 = scalar_lea.sflag [#allocation4], 1
    %10 = vsyncpa %s9, 0
    loop: start=0, step=1, limit=6
    $region2: #{tpu_custom_call.1} parent=1 // loop_pre_header
      _
    $region3: #{tpu_custom_call.1} parent=1 // loop_header
      %s12 = sphi 0, %s16
      %p13 = scmp.ge.s32.totalorder %s12, 6
      %s19 = sphi 0, %s31
      %s20 = sphi 0, %s27
      %s21 = sphi 0, %s19
      %s22 = sphi 0, %s20
      %s23 = sphi 0, %s21
      %s24 = sphi 0, %s22
      %s36 = sphi 0, %s38
      %s39 = sphi 0, %s36
      %s40 = sphi 0, %s39
      %s56 = sphi 0, %s40
      %s62 = sphi 0, %s64
      %s65 = sphi 0, %s62
      %s66 = sphi 0, %s65
      %s82 = sphi 0, %s66
      %s88 = sphi 0, %s90
      %s91 = sphi 0, %s88
      %s92 = sphi 0, %s91
      %s108 = sphi 0, %s92
      %s114 = sphi 0, %s116
      %s117 = sphi 0, %s114
      %s118 = sphi 0, %s117
      %s134 = sphi 0, %s118
    $region4: #{tpu_custom_call.1} parent=1 // loop_header_branch
      %15 = sbr.rel (%p13) target = $region8
    $region5: #{tpu_custom_call.1} parent=1 // loop_body
      %s17 = ssub.s32 %s12, 1
      %s18 = ssub.s32 %s12, 2
      %s25 = sadd.s32 1, %s20
      %p26 = scmp.ge.s32.totalorder %s25, 1
      %s27 = scalar_select %p26, 0, %s25
      %s28 = sadd.s32 1, %s19
      %s29 = scalar_select %p26, %s28, %s19
      %p30 = scmp.ge.s32.totalorder %s29, 4
      %s31 = scalar_select %p30, 0, %s29
      %s32 = ssub.s32 %s19, %s31
      %s33 = ssub.s32 %s20, %s27
      %s34 = sor.u32 %s32, %s33
      %p35 = scmp.eq.s32.totalorder %s34, 0
      %s37 = sadd.s32 %s36, 1
      %s38 = scalar_select %p35, %s36, %s37
      %p41 = pneg %p35
      %p42 = scmp.eq.s32.totalorder %s12, 3
      %p43 = por %p41, %p42
      %p44 = scmp.ne.s32.totalorder %s36, %s39
      %p45 = scmp.eq.s32.totalorder %s12, 0
      %p46 = por %p44, %p45
      %p47 = scmp.ne.s32.totalorder %s36, %s39
      %p48 = scmp.eq.s32.totalorder %s17, 3
      %p49 = por %p47, %p48
      %p50 = scmp.ne.s32.totalorder %s39, %s40
      %p51 = scmp.eq.s32.totalorder %s17, 0
      %p52 = por %p50, %p51
      %p53 = scmp.ne.s32.totalorder %s39, %s40
      %p54 = scmp.eq.s32.totalorder %s18, 3
      %p55 = por %p53, %p54
      %p57 = scmp.ne.s32.totalorder %s40, %s56
      %p58 = scmp.eq.s32.totalorder %s18, 0
      %p59 = por %p57, %p58
      %s60 = ssub.s32 %s19, %s31
      %p61 = scmp.eq.s32.totalorder %s60, 0
      %s63 = sadd.s32 %s62, 1
      %s64 = scalar_select %p61, %s62, %s63
      %p67 = pneg %p61
      %p68 = scmp.eq.s32.totalorder %s12, 3
      %p69 = por %p67, %p68
      %p70 = scmp.ne.s32.totalorder %s62, %s65
      %p71 = scmp.eq.s32.totalorder %s12, 0
      %p72 = por %p70, %p71
      %p73 = scmp.ne.s32.totalorder %s62, %s65
      %p74 = scmp.eq.s32.totalorder %s17, 3
      %p75 = por %p73, %p74
      %p76 = scmp.ne.s32.totalorder %s65, %s66
      %p77 = scmp.eq.s32.totalorder %s17, 0
      %p78 = por %p76, %p77
      %p79 = scmp.ne.s32.totalorder %s65, %s66
      %p80 = scmp.eq.s32.totalorder %s18, 3
      %p81 = por %p79, %p80
      %p83 = scmp.ne.s32.totalorder %s66, %s82
      %p84 = scmp.eq.s32.totalorder %s18, 0
      %p85 = por %p83, %p84
      %s86 = ssub.s32 %s19, %s31
      %p87 = scmp.eq.s32.totalorder %s86, 0
      %s89 = sadd.s32 %s88, 1
      %s90 = scalar_select %p87, %s88, %s89
      %p93 = pneg %p87
      %p94 = scmp.eq.s32.totalorder %s12, 3
      %p95 = por %p93, %p94
      %p96 = scmp.ne.s32.totalorder %s88, %s91
      %p97 = scmp.eq.s32.totalorder %s12, 0
      %p98 = por %p96, %p97
      %p99 = scmp.ne.s32.totalorder %s88, %s91
      %p100 = scmp.eq.s32.totalorder %s17, 3
      %p101 = por %p99, %p100
      %p102 = scmp.ne.s32.totalorder %s91, %s92
      %p103 = scmp.eq.s32.totalorder %s17, 0
      %p104 = por %p102, %p103
      %p105 = scmp.ne.s32.totalorder %s91, %s92
      %p106 = scmp.eq.s32.totalorder %s18, 3
      %p107 = por %p105, %p106
      %p109 = scmp.ne.s32.totalorder %s92, %s108
      %p110 = scmp.eq.s32.totalorder %s18, 0
      %p111 = por %p109, %p110
      %s112 = ssub.s32 %s19, %s31
      %p113 = scmp.eq.s32.totalorder %s112, 0
      %s115 = sadd.s32 %s114, 1
      %s116 = scalar_select %p113, %s114, %s115
      %p119 = pneg %p113
      %p120 = scmp.eq.s32.totalorder %s12, 3
      %p121 = por %p119, %p120
      %p122 = scmp.ne.s32.totalorder %s114, %s117
      %p123 = scmp.eq.s32.totalorder %s12, 0
      %p124 = por %p122, %p123
      %p125 = scmp.ne.s32.totalorder %s114, %s117
      %p126 = scmp.eq.s32.totalorder %s17, 3
      %p127 = por %p125, %p126
      %p128 = scmp.ne.s32.totalorder %s117, %s118
      %p129 = scmp.eq.s32.totalorder %s17, 0
      %p130 = por %p128, %p129
      %p131 = scmp.ne.s32.totalorder %s117, %s118
      %p132 = scmp.eq.s32.totalorder %s18, 3
      %p133 = por %p131, %p132
      %p135 = scmp.ne.s32.totalorder %s118, %s134
      %p136 = scmp.eq.s32.totalorder %s18, 0
      %p137 = por %p135, %p136
      %p138 = scmp.le.s32.totalorder 1, %s12
      %p139 = scmp.lt.s32.totalorder %s12, 5
      %p140 = pnand %p138, %p139
      %p141 = pneg %p140
      // Predicated region
      $region9: #{tpu_custom_call.1} parent=5 // pred_check
        _
      $region10: #{tpu_custom_call.1} parent=5 // pred_check_branch
        %143 = sbr.rel (%p140) target = $region12
      $region11: #{tpu_custom_call.1} parent=5 // pred_region
        %s144 = ssub.s32 %s12, 1
      $region12: #{tpu_custom_call.1} parent=5 // pred_fallthru
        _
      %p145 = scmp.lt.s32.totalorder %s12, 4
      // Predicated region
      $region13: #{tpu_custom_call.1} parent=5 // pred_check
        %p146 = pneg %p145
      $region14: #{tpu_custom_call.1} parent=5 // pred_check_branch
        %148 = sbr.rel (%p146) target = $region16
      $region15: #{tpu_custom_call.1} parent=5 // pred_region
        // Predicated region
        $region17: #{tpu_custom_call.1} parent=15 // pred_check
          %p149 = pneg %p46
        $region18: #{tpu_custom_call.1} parent=15 // pred_check_branch
          %151 = sbr.rel (%p149) target = $region20
        $region19: #{tpu_custom_call.1} parent=15 // pred_region
          %s152 = sand.u32 %s36, 1
          %s153 = sand.u32 %s36, 1
          %s154 = smul.addr %s153, 1024
          %s155 = scalar_lea.vmem [#allocation2], %s154
          %s156 = smul.u32 64, %s19
          %s157 = sadd.s32 %s20, %s156
          %s158 = smul.addr %s157, 8
          %s159 = scalar_lea.vmem %s0, %s158
          // Predicated region
          $region21: #{tpu_custom_call.1} parent=19 // pred_check
            _
          $region22: #{tpu_custom_call.1} parent=19 // pred_check_branch
            %161 = sbr.rel (0) target = $region24
          $region23: #{tpu_custom_call.1} parent=19 // pred_region
            // Predicated region
            $region25: #{tpu_custom_call.1} parent=23 // pred_check
              _
            $region26: #{tpu_custom_call.1} parent=23 // pred_check_branch
              %163 = sbr.rel (0) target = $region28
            $region27: #{tpu_custom_call.1} parent=23 // pred_region
              // Predicated region
              $region40: #{tpu_custom_call.1} parent=27 // pred_check
                _
              $region41: #{tpu_custom_call.1} parent=27 // pred_check_branch
                %432 = sbr.rel (0) target = $region43
              $region42: #{tpu_custom_call.1} parent=27 // pred_region
                loop: start=0, step=1, limit=1
                $region44: #{tpu_custom_call.1} parent=42 // loop_pre_header
                  _
                $region45: #{tpu_custom_call.1} parent=42 // loop_header
                  %s434 = sphi 0, %s438
                  %p435 = scmp.ge.s32.totalorder %s434, 1
                  %s439 = sphi %s159, %s159
                  %s440 = sphi %s155, %s155
                $region46: #{tpu_custom_call.1} parent=42 // loop_header_branch
                  %437 = sbr.rel (%p435) target = $region50
                $region47: #{tpu_custom_call.1} parent=42 // loop_body
                  %v441 = vld [vmem:[%s439] sm:$0xff]
                  %442 = vst [vmem:[%s440] sm:$0xff] %v441
                  %v443 = vld [vmem:[%s439 + $0x8] sm:$0xff]
                  %444 = vst [vmem:[%s440 + $0x8] sm:$0xff] %v443
                  %v445 = vld [vmem:[%s439 + $0x10] sm:$0xff]
                  %446 = vst [vmem:[%s440 + $0x10] sm:$0xff] %v445
                  %v447 = vld [vmem:[%s439 + $0x18] sm:$0xff]
                  %448 = vst [vmem:[%s440 + $0x18] sm:$0xff] %v447
                  %v449 = vld [vmem:[%s439 + $0x20] sm:$0xff]
                  %450 = vst [vmem:[%s440 + $0x20] sm:$0xff] %v449
                  %v451 = vld [vmem:[%s439 + $0x28] sm:$0xff]
                  %452 = vst [vmem:[%s440 + $0x28] sm:$0xff] %v451
                  %v453 = vld [vmem:[%s439 + $0x30] sm:$0xff]
                  %454 = vst [vmem:[%s440 + $0x30] sm:$0xff] %v453
                  %v455 = vld [vmem:[%s439 + $0x38] sm:$0xff]
                  %456 = vst [vmem:[%s440 + $0x38] sm:$0xff] %v455
                  %v457 = vld [vmem:[%s439 + $0x40] sm:$0xff]
                  %458 = vst [vmem:[%s440 + $0x40] sm:$0xff] %v457
                  %v459 = vld [vmem:[%s439 + $0x48] sm:$0xff]
                  %460 = vst [vmem:[%s440 + $0x48] sm:$0xff] %v459
                  %v461 = vld [vmem:[%s439 + $0x50] sm:$0xff]
                  %462 = vst [vmem:[%s440 + $0x50] sm:$0xff] %v461
                  %v463 = vld [vmem:[%s439 + $0x58] sm:$0xff]
                  %464 = vst [vmem:[%s440 + $0x58] sm:$0xff] %v463
                  %v465 = vld [vmem:[%s439 + $0x60] sm:$0xff]
                  %466 = vst [vmem:[%s440 + $0x60] sm:$0xff] %v465
                  %v467 = vld [vmem:[%s439 + $0x68] sm:$0xff]
                  %468 = vst [vmem:[%s440 + $0x68] sm:$0xff] %v467
                  %v469 = vld [vmem:[%s439 + $0x70] sm:$0xff]
                  %470 = vst [vmem:[%s440 + $0x70] sm:$0xff] %v469
                  %v471 = vld [vmem:[%s439 + $0x78] sm:$0xff]
                  %472 = vst [vmem:[%s440 + $0x78] sm:$0xff] %v471
                  %v473 = vld [vmem:[%s439 + $0x80] sm:$0xff]
                  %474 = vst [vmem:[%s440 + $0x80] sm:$0xff] %v473
                  %v475 = vld [vmem:[%s439 + $0x88] sm:$0xff]
                  %476 = vst [vmem:[%s440 + $0x88] sm:$0xff] %v475
                  %v477 = vld [vmem:[%s439 + $0x90] sm:$0xff]
                  %478 = vst [vmem:[%s440 + $0x90] sm:$0xff] %v477
                  %v479 = vld [vmem:[%s439 + $0x98] sm:$0xff]
                  %480 = vst [vmem:[%s440 + $0x98] sm:$0xff] %v479
                  %v481 = vld [vmem:[%s439 + $0xa0] sm:$0xff]
                  %482 = vst [vmem:[%s440 + $0xa0] sm:$0xff] %v481
                  %v483 = vld [vmem:[%s439 + $0xa8] sm:$0xff]
                  %484 = vst [vmem:[%s440 + $0xa8] sm:$0xff] %v483
                  %v485 = vld [vmem:[%s439 + $0xb0] sm:$0xff]
                  %486 = vst [vmem:[%s440 + $0xb0] sm:$0xff] %v485
                  %v487 = vld [vmem:[%s439 + $0xb8] sm:$0xff]
                  %488 = vst [vmem:[%s440 + $0xb8] sm:$0xff] %v487
                  %v489 = vld [vmem:[%s439 + $0xc0] sm:$0xff]
                  %490 = vst [vmem:[%s440 + $0xc0] sm:$0xff] %v489
                  %v491 = vld [vmem:[%s439 + $0xc8] sm:$0xff]
                  %492 = vst [vmem:[%s440 + $0xc8] sm:$0xff] %v491
                  %v493 = vld [vmem:[%s439 + $0xd0] sm:$0xff]
                  %494 = vst [vmem:[%s440 + $0xd0] sm:$0xff] %v493
                  %v495 = vld [vmem:[%s439 + $0xd8] sm:$0xff]
                  %496 = vst [vmem:[%s440 + $0xd8] sm:$0xff] %v495
                  %v497 = vld [vmem:[%s439 + $0xe0] sm:$0xff]
                  %498 = vst [vmem:[%s440 + $0xe0] sm:$0xff] %v497
                  %v499 = vld [vmem:[%s439 + $0xe8] sm:$0xff]
                  %500 = vst [vmem:[%s440 + $0xe8] sm:$0xff] %v499
                  %v501 = vld [vmem:[%s439 + $0xf0] sm:$0xff]
                  %502 = vst [vmem:[%s440 + $0xf0] sm:$0xff] %v501
                  %v503 = vld [vmem:[%s439 + $0xf8] sm:$0xff]
                  %504 = vst [vmem:[%s440 + $0xf8] sm:$0xff] %v503
                  %v505 = vld [vmem:[%s439 + $0x100] sm:$0xff]
                  %506 = vst [vmem:[%s440 + $0x100] sm:$0xff] %v505
                  %v507 = vld [vmem:[%s439 + $0x108] sm:$0xff]
                  %508 = vst [vmem:[%s440 + $0x108] sm:$0xff] %v507
                  %v509 = vld [vmem:[%s439 + $0x110] sm:$0xff]
                  %510 = vst [vmem:[%s440 + $0x110] sm:$0xff] %v509
                  %v511 = vld [vmem:[%s439 + $0x118] sm:$0xff]
                  %512 = vst [vmem:[%s440 + $0x118] sm:$0xff] %v511
                  %v513 = vld [vmem:[%s439 + $0x120] sm:$0xff]
                  %514 = vst [vmem:[%s440 + $0x120] sm:$0xff] %v513
                  %v515 = vld [vmem:[%s439 + $0x128] sm:$0xff]
                  %516 = vst [vmem:[%s440 + $0x128] sm:$0xff] %v515
                  %v517 = vld [vmem:[%s439 + $0x130] sm:$0xff]
                  %518 = vst [vmem:[%s440 + $0x130] sm:$0xff] %v517
                  %v519 = vld [vmem:[%s439 + $0x138] sm:$0xff]
                  %520 = vst [vmem:[%s440 + $0x138] sm:$0xff] %v519
                  %v521 = vld [vmem:[%s439 + $0x140] sm:$0xff]
                  %522 = vst [vmem:[%s440 + $0x140] sm:$0xff] %v521
                  %v523 = vld [vmem:[%s439 + $0x148] sm:$0xff]
                  %524 = vst [vmem:[%s440 + $0x148] sm:$0xff] %v523
                  %v525 = vld [vmem:[%s439 + $0x150] sm:$0xff]
                  %526 = vst [vmem:[%s440 + $0x150] sm:$0xff] %v525
                  %v527 = vld [vmem:[%s439 + $0x158] sm:$0xff]
                  %528 = vst [vmem:[%s440 + $0x158] sm:$0xff] %v527
                  %v529 = vld [vmem:[%s439 + $0x160] sm:$0xff]
                  %530 = vst [vmem:[%s440 + $0x160] sm:$0xff] %v529
                  %v531 = vld [vmem:[%s439 + $0x168] sm:$0xff]
                  %532 = vst [vmem:[%s440 + $0x168] sm:$0xff] %v531
                  %v533 = vld [vmem:[%s439 + $0x170] sm:$0xff]
                  %534 = vst [vmem:[%s440 + $0x170] sm:$0xff] %v533
                  %v535 = vld [vmem:[%s439 + $0x178] sm:$0xff]
                  %536 = vst [vmem:[%s440 + $0x178] sm:$0xff] %v535
                  %v537 = vld [vmem:[%s439 + $0x180] sm:$0xff]
                  %538 = vst [vmem:[%s440 + $0x180] sm:$0xff] %v537
                  %v539 = vld [vmem:[%s439 + $0x188] sm:$0xff]
                  %540 = vst [vmem:[%s440 + $0x188] sm:$0xff] %v539
                  %v541 = vld [vmem:[%s439 + $0x190] sm:$0xff]
                  %542 = vst [vmem:[%s440 + $0x190] sm:$0xff] %v541
                  %v543 = vld [vmem:[%s439 + $0x198] sm:$0xff]
                  %544 = vst [vmem:[%s440 + $0x198] sm:$0xff] %v543
                  %v545 = vld [vmem:[%s439 + $0x1a0] sm:$0xff]
                  %546 = vst [vmem:[%s440 + $0x1a0] sm:$0xff] %v545
                  %v547 = vld [vmem:[%s439 + $0x1a8] sm:$0xff]
                  %548 = vst [vmem:[%s440 + $0x1a8] sm:$0xff] %v547
                  %v549 = vld [vmem:[%s439 + $0x1b0] sm:$0xff]
                  %550 = vst [vmem:[%s440 + $0x1b0] sm:$0xff] %v549
                  %v551 = vld [vmem:[%s439 + $0x1b8] sm:$0xff]
                  %552 = vst [vmem:[%s440 + $0x1b8] sm:$0xff] %v551
                  %v553 = vld [vmem:[%s439 + $0x1c0] sm:$0xff]
                  %554 = vst [vmem:[%s440 + $0x1c0] sm:$0xff] %v553
                  %v555 = vld [vmem:[%s439 + $0x1c8] sm:$0xff]
                  %556 = vst [vmem:[%s440 + $0x1c8] sm:$0xff] %v555
                  %v557 = vld [vmem:[%s439 + $0x1d0] sm:$0xff]
                  %558 = vst [vmem:[%s440 + $0x1d0] sm:$0xff] %v557
                  %v559 = vld [vmem:[%s439 + $0x1d8] sm:$0xff]
                  %560 = vst [vmem:[%s440 + $0x1d8] sm:$0xff] %v559
                  %v561 = vld [vmem:[%s439 + $0x1e0] sm:$0xff]
                  %562 = vst [vmem:[%s440 + $0x1e0] sm:$0xff] %v561
                  %v563 = vld [vmem:[%s439 + $0x1e8] sm:$0xff]
                  %564 = vst [vmem:[%s440 + $0x1e8] sm:$0xff] %v563
                  %v565 = vld [vmem:[%s439 + $0x1f0] sm:$0xff]
                  %566 = vst [vmem:[%s440 + $0x1f0] sm:$0xff] %v565
                  %v567 = vld [vmem:[%s439 + $0x1f8] sm:$0xff]
                  %568 = vst [vmem:[%s440 + $0x1f8] sm:$0xff] %v567
                  %v569 = vld [vmem:[%s439 + $0x800] sm:$0xff]
                  %570 = vst [vmem:[%s440 + $0x200] sm:$0xff] %v569
                  %v571 = vld [vmem:[%s439 + $0x808] sm:$0xff]
                  %572 = vst [vmem:[%s440 + $0x208] sm:$0xff] %v571
                  %v573 = vld [vmem:[%s439 + $0x810] sm:$0xff]
                  %574 = vst [vmem:[%s440 + $0x210] sm:$0xff] %v573
                  %v575 = vld [vmem:[%s439 + $0x818] sm:$0xff]
                  %576 = vst [vmem:[%s440 + $0x218] sm:$0xff] %v575
                  %v577 = vld [vmem:[%s439 + $0x820] sm:$0xff]
                  %578 = vst [vmem:[%s440 + $0x220] sm:$0xff] %v577
                  %v579 = vld [vmem:[%s439 + $0x828] sm:$0xff]
                  %580 = vst [vmem:[%s440 + $0x228] sm:$0xff] %v579
                  %v581 = vld [vmem:[%s439 + $0x830] sm:$0xff]
                  %582 = vst [vmem:[%s440 + $0x230] sm:$0xff] %v581
                  %v583 = vld [vmem:[%s439 + $0x838] sm:$0xff]
                  %584 = vst [vmem:[%s440 + $0x238] sm:$0xff] %v583
                  %v585 = vld [vmem:[%s439 + $0x840] sm:$0xff]
                  %586 = vst [vmem:[%s440 + $0x240] sm:$0xff] %v585
                  %v587 = vld [vmem:[%s439 + $0x848] sm:$0xff]
                  %588 = vst [vmem:[%s440 + $0x248] sm:$0xff] %v587
                  %v589 = vld [vmem:[%s439 + $0x850] sm:$0xff]
                  %590 = vst [vmem:[%s440 + $0x250] sm:$0xff] %v589
                  %v591 = vld [vmem:[%s439 + $0x858] sm:$0xff]
                  %592 = vst [vmem:[%s440 + $0x258] sm:$0xff] %v591
                  %v593 = vld [vmem:[%s439 + $0x860] sm:$0xff]
                  %594 = vst [vmem:[%s440 + $0x260] sm:$0xff] %v593
                  %v595 = vld [vmem:[%s439 + $0x868] sm:$0xff]
                  %596 = vst [vmem:[%s440 + $0x268] sm:$0xff] %v595
                  %v597 = vld [vmem:[%s439 + $0x870] sm:$0xff]
                  %598 = vst [vmem:[%s440 + $0x270] sm:$0xff] %v597
                  %v599 = vld [vmem:[%s439 + $0x878] sm:$0xff]
                  %600 = vst [vmem:[%s440 + $0x278] sm:$0xff] %v599
                  %v601 = vld [vmem:[%s439 + $0x880] sm:$0xff]
                  %602 = vst [vmem:[%s440 + $0x280] sm:$0xff] %v601
                  %v603 = vld [vmem:[%s439 + $0x888] sm:$0xff]
                  %604 = vst [vmem:[%s440 + $0x288] sm:$0xff] %v603
                  %v605 = vld [vmem:[%s439 + $0x890] sm:$0xff]
                  %606 = vst [vmem:[%s440 + $0x290] sm:$0xff] %v605
                  %v607 = vld [vmem:[%s439 + $0x898] sm:$0xff]
                  %608 = vst [vmem:[%s440 + $0x298] sm:$0xff] %v607
                  %v609 = vld [vmem:[%s439 + $0x8a0] sm:$0xff]
                  %610 = vst [vmem:[%s440 + $0x2a0] sm:$0xff] %v609
                  %v611 = vld [vmem:[%s439 + $0x8a8] sm:$0xff]
                  %612 = vst [vmem:[%s440 + $0x2a8] sm:$0xff] %v611
                  %v613 = vld [vmem:[%s439 + $0x8b0] sm:$0xff]
                  %614 = vst [vmem:[%s440 + $0x2b0] sm:$0xff] %v613
                  %v615 = vld [vmem:[%s439 + $0x8b8] sm:$0xff]
                  %616 = vst [vmem:[%s440 + $0x2b8] sm:$0xff] %v615
                  %v617 = vld [vmem:[%s439 + $0x8c0] sm:$0xff]
                  %618 = vst [vmem:[%s440 + $0x2c0] sm:$0xff] %v617
                  %v619 = vld [vmem:[%s439 + $0x8c8] sm:$0xff]
                  %620 = vst [vmem:[%s440 + $0x2c8] sm:$0xff] %v619
                  %v621 = vld [vmem:[%s439 + $0x8d0] sm:$0xff]
                  %622 = vst [vmem:[%s440 + $0x2d0] sm:$0xff] %v621
                  %v623 = vld [vmem:[%s439 + $0x8d8] sm:$0xff]
                  %624 = vst [vmem:[%s440 + $0x2d8] sm:$0xff] %v623
                  %v625 = vld [vmem:[%s439 + $0x8e0] sm:$0xff]
                  %626 = vst [vmem:[%s440 + $0x2e0] sm:$0xff] %v625
                  %v627 = vld [vmem:[%s439 + $0x8e8] sm:$0xff]
                  %628 = vst [vmem:[%s440 + $0x2e8] sm:$0xff] %v627
                  %v629 = vld [vmem:[%s439 + $0x8f0] sm:$0xff]
                  %630 = vst [vmem:[%s440 + $0x2f0] sm:$0xff] %v629
                  %v631 = vld [vmem:[%s439 + $0x8f8] sm:$0xff]
                  %632 = vst [vmem:[%s440 + $0x2f8] sm:$0xff] %v631
                  %v633 = vld [vmem:[%s439 + $0x900] sm:$0xff]
                  %634 = vst [vmem:[%s440 + $0x300] sm:$0xff] %v633
                  %v635 = vld [vmem:[%s439 + $0x908] sm:$0xff]
                  %636 = vst [vmem:[%s440 + $0x308] sm:$0xff] %v635
                  %v637 = vld [vmem:[%s439 + $0x910] sm:$0xff]
                  %638 = vst [vmem:[%s440 + $0x310] sm:$0xff] %v637
                  %v639 = vld [vmem:[%s439 + $0x918] sm:$0xff]
                  %640 = vst [vmem:[%s440 + $0x318] sm:$0xff] %v639
                  %v641 = vld [vmem:[%s439 + $0x920] sm:$0xff]
                  %642 = vst [vmem:[%s440 + $0x320] sm:$0xff] %v641
                  %v643 = vld [vmem:[%s439 + $0x928] sm:$0xff]
                  %644 = vst [vmem:[%s440 + $0x328] sm:$0xff] %v643
                  %v645 = vld [vmem:[%s439 + $0x930] sm:$0xff]
                  %646 = vst [vmem:[%s440 + $0x330] sm:$0xff] %v645
                  %v647 = vld [vmem:[%s439 + $0x938] sm:$0xff]
                  %648 = vst [vmem:[%s440 + $0x338] sm:$0xff] %v647
                  %v649 = vld [vmem:[%s439 + $0x940] sm:$0xff]
                  %650 = vst [vmem:[%s440 + $0x340] sm:$0xff] %v649
                  %v651 = vld [vmem:[%s439 + $0x948] sm:$0xff]
                  %652 = vst [vmem:[%s440 + $0x348] sm:$0xff] %v651
                  %v653 = vld [vmem:[%s439 + $0x950] sm:$0xff]
                  %654 = vst [vmem:[%s440 + $0x350] sm:$0xff] %v653
                  %v655 = vld [vmem:[%s439 + $0x958] sm:$0xff]
                  %656 = vst [vmem:[%s440 + $0x358] sm:$0xff] %v655
                  %v657 = vld [vmem:[%s439 + $0x960] sm:$0xff]
                  %658 = vst [vmem:[%s440 + $0x360] sm:$0xff] %v657
                  %v659 = vld [vmem:[%s439 + $0x968] sm:$0xff]
                  %660 = vst [vmem:[%s440 + $0x368] sm:$0xff] %v659
                  %v661 = vld [vmem:[%s439 + $0x970] sm:$0xff]
                  %662 = vst [vmem:[%s440 + $0x370] sm:$0xff] %v661
                  %v663 = vld [vmem:[%s439 + $0x978] sm:$0xff]
                  %664 = vst [vmem:[%s440 + $0x378] sm:$0xff] %v663
                  %v665 = vld [vmem:[%s439 + $0x980] sm:$0xff]
                  %666 = vst [vmem:[%s440 + $0x380] sm:$0xff] %v665
                  %v667 = vld [vmem:[%s439 + $0x988] sm:$0xff]
                  %668 = vst [vmem:[%s440 + $0x388] sm:$0xff] %v667
                  %v669 = vld [vmem:[%s439 + $0x990] sm:$0xff]
                  %670 = vst [vmem:[%s440 + $0x390] sm:$0xff] %v669
                  %v671 = vld [vmem:[%s439 + $0x998] sm:$0xff]
                  %672 = vst [vmem:[%s440 + $0x398] sm:$0xff] %v671
                  %v673 = vld [vmem:[%s439 + $0x9a0] sm:$0xff]
                  %674 = vst [vmem:[%s440 + $0x3a0] sm:$0xff] %v673
                  %v675 = vld [vmem:[%s439 + $0x9a8] sm:$0xff]
                  %676 = vst [vmem:[%s440 + $0x3a8] sm:$0xff] %v675
                  %v677 = vld [vmem:[%s439 + $0x9b0] sm:$0xff]
                  %678 = vst [vmem:[%s440 + $0x3b0] sm:$0xff] %v677
                  %v679 = vld [vmem:[%s439 + $0x9b8] sm:$0xff]
                  %680 = vst [vmem:[%s440 + $0x3b8] sm:$0xff] %v679
                  %v681 = vld [vmem:[%s439 + $0x9c0] sm:$0xff]
                  %682 = vst [vmem:[%s440 + $0x3c0] sm:$0xff] %v681
                  %v683 = vld [vmem:[%s439 + $0x9c8] sm:$0xff]
                  %684 = vst [vmem:[%s440 + $0x3c8] sm:$0xff] %v683
                  %v685 = vld [vmem:[%s439 + $0x9d0] sm:$0xff]
                  %686 = vst [vmem:[%s440 + $0x3d0] sm:$0xff] %v685
                  %v687 = vld [vmem:[%s439 + $0x9d8] sm:$0xff]
                  %688 = vst [vmem:[%s440 + $0x3d8] sm:$0xff] %v687
                  %v689 = vld [vmem:[%s439 + $0x9e0] sm:$0xff]
                  %690 = vst [vmem:[%s440 + $0x3e0] sm:$0xff] %v689
                  %v691 = vld [vmem:[%s439 + $0x9e8] sm:$0xff]
                  %692 = vst [vmem:[%s440 + $0x3e8] sm:$0xff] %v691
                  %v693 = vld [vmem:[%s439 + $0x9f0] sm:$0xff]
                  %694 = vst [vmem:[%s440 + $0x3f0] sm:$0xff] %v693
                  %v695 = vld [vmem:[%s439 + $0x9f8] sm:$0xff]
                  %696 = vst [vmem:[%s440 + $0x3f8] sm:$0xff] %v695
                $region48: #{tpu_custom_call.1} parent=42 // loop_footer
                  %s438 = sadd.s32 1, %s434
                $region49: #{tpu_custom_call.1} parent=42 // loop_footer_branch
                  %433 = sbr.rel target = $region45
                $region50: #{tpu_custom_call.1} parent=42 // loop_exit
                  _
              $region43: #{tpu_custom_call.1} parent=27 // pred_fallthru
                _
              // Predicated region
              $region51: #{tpu_custom_call.1} parent=27 // pred_check
                _
              $region52: #{tpu_custom_call.1} parent=27 // pred_check_branch
                %698 = sbr.rel target = $region54
              $region53: #{tpu_custom_call.1} parent=27 // pred_region
                _
              $region54: #{tpu_custom_call.1} parent=27 // pred_fallthru
                _
            $region28: #{tpu_custom_call.1} parent=23 // pred_fallthru
              _
            // Predicated region
            $region29: #{tpu_custom_call.1} parent=23 // pred_check
              _
            $region30: #{tpu_custom_call.1} parent=23 // pred_check_branch
              %165 = sbr.rel target = $region32
            $region31: #{tpu_custom_call.1} parent=23 // pred_region
              loop: start=0, step=1, limit=1
              $region33: #{tpu_custom_call.1} parent=31 // loop_pre_header
                _
              $region34: #{tpu_custom_call.1} parent=31 // loop_header
                %s168 = sphi 0, %s172
                %p169 = scmp.ge.s32.totalorder %s168, 1
                %s173 = sphi %s159, %s159
                %s174 = sphi %s155, %s155
              $region35: #{tpu_custom_call.1} parent=31 // loop_header_branch
                %171 = sbr.rel (%p169) target = $region39
              $region36: #{tpu_custom_call.1} parent=31 // loop_body
                %v175 = vld [vmem:[%s173] sm:$0xff]
                %176 = vst [vmem:[%s174] sm:$0xff] %v175
                %v177 = vld [vmem:[%s173 + $0x8] sm:$0xff]
                %178 = vst [vmem:[%s174 + $0x8] sm:$0xff] %v177
                %v179 = vld [vmem:[%s173 + $0x10] sm:$0xff]
                %180 = vst [vmem:[%s174 + $0x10] sm:$0xff] %v179
                %v181 = vld [vmem:[%s173 + $0x18] sm:$0xff]
                %182 = vst [vmem:[%s174 + $0x18] sm:$0xff] %v181
                %v183 = vld [vmem:[%s173 + $0x20] sm:$0xff]
                %184 = vst [vmem:[%s174 + $0x20] sm:$0xff] %v183
                %v185 = vld [vmem:[%s173 + $0x28] sm:$0xff]
                %186 = vst [vmem:[%s174 + $0x28] sm:$0xff] %v185
                %v187 = vld [vmem:[%s173 + $0x30] sm:$0xff]
                %188 = vst [vmem:[%s174 + $0x30] sm:$0xff] %v187
                %v189 = vld [vmem:[%s173 + $0x38] sm:$0xff]
                %190 = vst [vmem:[%s174 + $0x38] sm:$0xff] %v189
                %v191 = vld [vmem:[%s173 + $0x40] sm:$0xff]
                %192 = vst [vmem:[%s174 + $0x40] sm:$0xff] %v191
                %v193 = vld [vmem:[%s173 + $0x48] sm:$0xff]
                %194 = vst [vmem:[%s174 + $0x48] sm:$0xff] %v193
                %v195 = vld [vmem:[%s173 + $0x50] sm:$0xff]
                %196 = vst [vmem:[%s174 + $0x50] sm:$0xff] %v195
                %v197 = vld [vmem:[%s173 + $0x58] sm:$0xff]
                %198 = vst [vmem:[%s174 + $0x58] sm:$0xff] %v197
                %v199 = vld [vmem:[%s173 + $0x60] sm:$0xff]
                %200 = vst [vmem:[%s174 + $0x60] sm:$0xff] %v199
                %v201 = vld [vmem:[%s173 + $0x68] sm:$0xff]
                %202 = vst [vmem:[%s174 + $0x68] sm:$0xff] %v201
                %v203 = vld [vmem:[%s173 + $0x70] sm:$0xff]
                %204 = vst [vmem:[%s174 + $0x70] sm:$0xff] %v203
                %v205 = vld [vmem:[%s173 + $0x78] sm:$0xff]
                %206 = vst [vmem:[%s174 + $0x78] sm:$0xff] %v205
                %v207 = vld [vmem:[%s173 + $0x80] sm:$0xff]
                %208 = vst [vmem:[%s174 + $0x80] sm:$0xff] %v207
                %v209 = vld [vmem:[%s173 + $0x88] sm:$0xff]
                %210 = vst [vmem:[%s174 + $0x88] sm:$0xff] %v209
                %v211 = vld [vmem:[%s173 + $0x90] sm:$0xff]
                %212 = vst [vmem:[%s174 + $0x90] sm:$0xff] %v211
                %v213 = vld [vmem:[%s173 + $0x98] sm:$0xff]
                %214 = vst [vmem:[%s174 + $0x98] sm:$0xff] %v213
                %v215 = vld [vmem:[%s173 + $0xa0] sm:$0xff]
                %216 = vst [vmem:[%s174 + $0xa0] sm:$0xff] %v215
                %v217 = vld [vmem:[%s173 + $0xa8] sm:$0xff]
                %218 = vst [vmem:[%s174 + $0xa8] sm:$0xff] %v217
                %v219 = vld [vmem:[%s173 + $0xb0] sm:$0xff]
                %220 = vst [vmem:[%s174 + $0xb0] sm:$0xff] %v219
                %v221 = vld [vmem:[%s173 + $0xb8] sm:$0xff]
                %222 = vst [vmem:[%s174 + $0xb8] sm:$0xff] %v221
                %v223 = vld [vmem:[%s173 + $0xc0] sm:$0xff]
                %224 = vst [vmem:[%s174 + $0xc0] sm:$0xff] %v223
                %v225 = vld [vmem:[%s173 + $0xc8] sm:$0xff]
                %226 = vst [vmem:[%s174 + $0xc8] sm:$0xff] %v225
                %v227 = vld [vmem:[%s173 + $0xd0] sm:$0xff]
                %228 = vst [vmem:[%s174 + $0xd0] sm:$0xff] %v227
                %v229 = vld [vmem:[%s173 + $0xd8] sm:$0xff]
                %230 = vst [vmem:[%s174 + $0xd8] sm:$0xff] %v229
                %v231 = vld [vmem:[%s173 + $0xe0] sm:$0xff]
                %232 = vst [vmem:[%s174 + $0xe0] sm:$0xff] %v231
                %v233 = vld [vmem:[%s173 + $0xe8] sm:$0xff]
                %234 = vst [vmem:[%s174 + $0xe8] sm:$0xff] %v233
                %v235 = vld [vmem:[%s173 + $0xf0] sm:$0xff]
                %236 = vst [vmem:[%s174 + $0xf0] sm:$0xff] %v235
                %v237 = vld [vmem:[%s173 + $0xf8] sm:$0xff]
                %238 = vst [vmem:[%s174 + $0xf8] sm:$0xff] %v237
                %v239 = vld [vmem:[%s173 + $0x100] sm:$0xff]
                %240 = vst [vmem:[%s174 + $0x100] sm:$0xff] %v239
                %v241 = vld [vmem:[%s173 + $0x108] sm:$0xff]
                %242 = vst [vmem:[%s174 + $0x108] sm:$0xff] %v241
                %v243 = vld [vmem:[%s173 + $0x110] sm:$0xff]
                %244 = vst [vmem:[%s174 + $0x110] sm:$0xff] %v243
                %v245 = vld [vmem:[%s173 + $0x118] sm:$0xff]
                %246 = vst [vmem:[%s174 + $0x118] sm:$0xff] %v245
                %v247 = vld [vmem:[%s173 + $0x120] sm:$0xff]
                %248 = vst [vmem:[%s174 + $0x120] sm:$0xff] %v247
                %v249 = vld [vmem:[%s173 + $0x128] sm:$0xff]
                %250 = vst [vmem:[%s174 + $0x128] sm:$0xff] %v249
                %v251 = vld [vmem:[%s173 + $0x130] sm:$0xff]
                %252 = vst [vmem:[%s174 + $0x130] sm:$0xff] %v251
                %v253 = vld [vmem:[%s173 + $0x138] sm:$0xff]
                %254 = vst [vmem:[%s174 + $0x138] sm:$0xff] %v253
                %v255 = vld [vmem:[%s173 + $0x140] sm:$0xff]
                %256 = vst [vmem:[%s174 + $0x140] sm:$0xff] %v255
                %v257 = vld [vmem:[%s173 + $0x148] sm:$0xff]
                %258 = vst [vmem:[%s174 + $0x148] sm:$0xff] %v257
                %v259 = vld [vmem:[%s173 + $0x150] sm:$0xff]
                %260 = vst [vmem:[%s174 + $0x150] sm:$0xff] %v259
                %v261 = vld [vmem:[%s173 + $0x158] sm:$0xff]
                %262 = vst [vmem:[%s174 + $0x158] sm:$0xff] %v261
                %v263 = vld [vmem:[%s173 + $0x160] sm:$0xff]
                %264 = vst [vmem:[%s174 + $0x160] sm:$0xff] %v263
                %v265 = vld [vmem:[%s173 + $0x168] sm:$0xff]
                %266 = vst [vmem:[%s174 + $0x168] sm:$0xff] %v265
                %v267 = vld [vmem:[%s173 + $0x170] sm:$0xff]
                %268 = vst [vmem:[%s174 + $0x170] sm:$0xff] %v267
                %v269 = vld [vmem:[%s173 + $0x178] sm:$0xff]
                %270 = vst [vmem:[%s174 + $0x178] sm:$0xff] %v269
                %v271 = vld [vmem:[%s173 + $0x180] sm:$0xff]
                %272 = vst [vmem:[%s174 + $0x180] sm:$0xff] %v271
                %v273 = vld [vmem:[%s173 + $0x188] sm:$0xff]
                %274 = vst [vmem:[%s174 + $0x188] sm:$0xff] %v273
                %v275 = vld [vmem:[%s173 + $0x190] sm:$0xff]
                %276 = vst [vmem:[%s174 + $0x190] sm:$0xff] %v275
                %v277 = vld [vmem:[%s173 + $0x198] sm:$0xff]
                %278 = vst [vmem:[%s174 + $0x198] sm:$0xff] %v277
                %v279 = vld [vmem:[%s173 + $0x1a0] sm:$0xff]
                %280 = vst [vmem:[%s174 + $0x1a0] sm:$0xff] %v279
                %v281 = vld [vmem:[%s173 + $0x1a8] sm:$0xff]
                %282 = vst [vmem:[%s174 + $0x1a8] sm:$0xff] %v281
                %v283 = vld [vmem:[%s173 + $0x1b0] sm:$0xff]
                %284 = vst [vmem:[%s174 + $0x1b0] sm:$0xff] %v283
                %v285 = vld [vmem:[%s173 + $0x1b8] sm:$0xff]
                %286 = vst [vmem:[%s174 + $0x1b8] sm:$0xff] %v285
                %v287 = vld [vmem:[%s173 + $0x1c0] sm:$0xff]
                %288 = vst [vmem:[%s174 + $0x1c0] sm:$0xff] %v287
                %v289 = vld [vmem:[%s173 + $0x1c8] sm:$0xff]
                %290 = vst [vmem:[%s174 + $0x1c8] sm:$0xff] %v289
                %v291 = vld [vmem:[%s173 + $0x1d0] sm:$0xff]
                %292 = vst [vmem:[%s174 + $0x1d0] sm:$0xff] %v291
                %v293 = vld [vmem:[%s173 + $0x1d8] sm:$0xff]
                %294 = vst [vmem:[%s174 + $0x1d8] sm:$0xff] %v293
                %v295 = vld [vmem:[%s173 + $0x1e0] sm:$0xff]
                %296 = vst [vmem:[%s174 + $0x1e0] sm:$0xff] %v295
                %v297 = vld [vmem:[%s173 + $0x1e8] sm:$0xff]
                %298 = vst [vmem:[%s174 + $0x1e8] sm:$0xff] %v297
                %v299 = vld [vmem:[%s173 + $0x1f0] sm:$0xff]
                %300 = vst [vmem:[%s174 + $0x1f0] sm:$0xff] %v299
                %v301 = vld [vmem:[%s173 + $0x1f8] sm:$0xff]
                %302 = vst [vmem:[%s174 + $0x1f8] sm:$0xff] %v301
                %v303 = vld [vmem:[%s173 + $0x800] sm:$0xff]
                %304 = vst [vmem:[%s174 + $0x200] sm:$0xff] %v303
                %v305 = vld [vmem:[%s173 + $0x808] sm:$0xff]
                %306 = vst [vmem:[%s174 + $0x208] sm:$0xff] %v305
                %v307 = vld [vmem:[%s173 + $0x810] sm:$0xff]
                %308 = vst [vmem:[%s174 + $0x210] sm:$0xff] %v307
                %v309 = vld [vmem:[%s173 + $0x818] sm:$0xff]
                %310 = vst [vmem:[%s174 + $0x218] sm:$0xff] %v309
                %v311 = vld [vmem:[%s173 + $0x820] sm:$0xff]
                %312 = vst [vmem:[%s174 + $0x220] sm:$0xff] %v311
                %v313 = vld [vmem:[%s173 + $0x828] sm:$0xff]
                %314 = vst [vmem:[%s174 + $0x228] sm:$0xff] %v313
                %v315 = vld [vmem:[%s173 + $0x830] sm:$0xff]
                %316 = vst [vmem:[%s174 + $0x230] sm:$0xff] %v315
                %v317 = vld [vmem:[%s173 + $0x838] sm:$0xff]
                %318 = vst [vmem:[%s174 + $0x238] sm:$0xff] %v317
                %v319 = vld [vmem:[%s173 + $0x840] sm:$0xff]
                %320 = vst [vmem:[%s174 + $0x240] sm:$0xff] %v319
                %v321 = vld [vmem:[%s173 + $0x848] sm:$0xff]
                %322 = vst [vmem:[%s174 + $0x248] sm:$0xff] %v321
                %v323 = vld [vmem:[%s173 + $0x850] sm:$0xff]
                %324 = vst [vmem:[%s174 + $0x250] sm:$0xff] %v323
                %v325 = vld [vmem:[%s173 + $0x858] sm:$0xff]
                %326 = vst [vmem:[%s174 + $0x258] sm:$0xff] %v325
                %v327 = vld [vmem:[%s173 + $0x860] sm:$0xff]
                %328 = vst [vmem:[%s174 + $0x260] sm:$0xff] %v327
                %v329 = vld [vmem:[%s173 + $0x868] sm:$0xff]
                %330 = vst [vmem:[%s174 + $0x268] sm:$0xff] %v329
                %v331 = vld [vmem:[%s173 + $0x870] sm:$0xff]
                %332 = vst [vmem:[%s174 + $0x270] sm:$0xff] %v331
                %v333 = vld [vmem:[%s173 + $0x878] sm:$0xff]
                %334 = vst [vmem:[%s174 + $0x278] sm:$0xff] %v333
                %v335 = vld [vmem:[%s173 + $0x880] sm:$0xff]
                %336 = vst [vmem:[%s174 + $0x280] sm:$0xff] %v335
                %v337 = vld [vmem:[%s173 + $0x888] sm:$0xff]
                %338 = vst [vmem:[%s174 + $0x288] sm:$0xff] %v337
                %v339 = vld [vmem:[%s173 + $0x890] sm:$0xff]
                %340 = vst [vmem:[%s174 + $0x290] sm:$0xff] %v339
                %v341 = vld [vmem:[%s173 + $0x898] sm:$0xff]
                %342 = vst [vmem:[%s174 + $0x298] sm:$0xff] %v341
                %v343 = vld [vmem:[%s173 + $0x8a0] sm:$0xff]
                %344 = vst [vmem:[%s174 + $0x2a0] sm:$0xff] %v343
                %v345 = vld [vmem:[%s173 + $0x8a8] sm:$0xff]
                %346 = vst [vmem:[%s174 + $0x2a8] sm:$0xff] %v345
                %v347 = vld [vmem:[%s173 + $0x8b0] sm:$0xff]
                %348 = vst [vmem:[%s174 + $0x2b0] sm:$0xff] %v347
                %v349 = vld [vmem:[%s173 + $0x8b8] sm:$0xff]
                %350 = vst [vmem:[%s174 + $0x2b8] sm:$0xff] %v349
                %v351 = vld [vmem:[%s173 + $0x8c0] sm:$0xff]
                %352 = vst [vmem:[%s174 + $0x2c0] sm:$0xff] %v351
                %v353 = vld [vmem:[%s173 + $0x8c8] sm:$0xff]
                %354 = vst [vmem:[%s174 + $0x2c8] sm:$0xff] %v353
                %v355 = vld [vmem:[%s173 + $0x8d0] sm:$0xff]
                %356 = vst [vmem:[%s174 + $0x2d0] sm:$0xff] %v355
                %v357 = vld [vmem:[%s173 + $0x8d8] sm:$0xff]
                %358 = vst [vmem:[%s174 + $0x2d8] sm:$0xff] %v357
                %v359 = vld [vmem:[%s173 + $0x8e0] sm:$0xff]
                %360 = vst [vmem:[%s174 + $0x2e0] sm:$0xff] %v359
                %v361 = vld [vmem:[%s173 + $0x8e8] sm:$0xff]
                %362 = vst [vmem:[%s174 + $0x2e8] sm:$0xff] %v361
                %v363 = vld [vmem:[%s173 + $0x8f0] sm:$0xff]
                %364 = vst [vmem:[%s174 + $0x2f0] sm:$0xff] %v363
                %v365 = vld [vmem:[%s173 + $0x8f8] sm:$0xff]
                %366 = vst [vmem:[%s174 + $0x2f8] sm:$0xff] %v365
                %v367 = vld [vmem:[%s173 + $0x900] sm:$0xff]
                %368 = vst [vmem:[%s174 + $0x300] sm:$0xff] %v367
                %v369 = vld [vmem:[%s173 + $0x908] sm:$0xff]
                %370 = vst [vmem:[%s174 + $0x308] sm:$0xff] %v369
                %v371 = vld [vmem:[%s173 + $0x910] sm:$0xff]
                %372 = vst [vmem:[%s174 + $0x310] sm:$0xff] %v371
                %v373 = vld [vmem:[%s173 + $0x918] sm:$0xff]
                %374 = vst [vmem:[%s174 + $0x318] sm:$0xff] %v373
                %v375 = vld [vmem:[%s173 + $0x920] sm:$0xff]
                %376 = vst [vmem:[%s174 + $0x320] sm:$0xff] %v375
                %v377 = vld [vmem:[%s173 + $0x928] sm:$0xff]
                %378 = vst [vmem:[%s174 + $0x328] sm:$0xff] %v377
                %v379 = vld [vmem:[%s173 + $0x930] sm:$0xff]
                %380 = vst [vmem:[%s174 + $0x330] sm:$0xff] %v379
                %v381 = vld [vmem:[%s173 + $0x938] sm:$0xff]
                %382 = vst [vmem:[%s174 + $0x338] sm:$0xff] %v381
                %v383 = vld [vmem:[%s173 + $0x940] sm:$0xff]
                %384 = vst [vmem:[%s174 + $0x340] sm:$0xff] %v383
                %v385 = vld [vmem:[%s173 + $0x948] sm:$0xff]
                %386 = vst [vmem:[%s174 + $0x348] sm:$0xff] %v385
                %v387 = vld [vmem:[%s173 + $0x950] sm:$0xff]
                %388 = vst [vmem:[%s174 + $0x350] sm:$0xff] %v387
                %v389 = vld [vmem:[%s173 + $0x958] sm:$0xff]
                %390 = vst [vmem:[%s174 + $0x358] sm:$0xff] %v389
                %v391 = vld [vmem:[%s173 + $0x960] sm:$0xff]
                %392 = vst [vmem:[%s174 + $0x360] sm:$0xff] %v391
                %v393 = vld [vmem:[%s173 + $0x968] sm:$0xff]
                %394 = vst [vmem:[%s174 + $0x368] sm:$0xff] %v393
                %v395 = vld [vmem:[%s173 + $0x970] sm:$0xff]
                %396 = vst [vmem:[%s174 + $0x370] sm:$0xff] %v395
                %v397 = vld [vmem:[%s173 + $0x978] sm:$0xff]
                %398 = vst [vmem:[%s174 + $0x378] sm:$0xff] %v397
                %v399 = vld [vmem:[%s173 + $0x980] sm:$0xff]
                %400 = vst [vmem:[%s174 + $0x380] sm:$0xff] %v399
                %v401 = vld [vmem:[%s173 + $0x988] sm:$0xff]
                %402 = vst [vmem:[%s174 + $0x388] sm:$0xff] %v401
                %v403 = vld [vmem:[%s173 + $0x990] sm:$0xff]
                %404 = vst [vmem:[%s174 + $0x390] sm:$0xff] %v403
                %v405 = vld [vmem:[%s173 + $0x998] sm:$0xff]
                %406 = vst [vmem:[%s174 + $0x398] sm:$0xff] %v405
                %v407 = vld [vmem:[%s173 + $0x9a0] sm:$0xff]
                %408 = vst [vmem:[%s174 + $0x3a0] sm:$0xff] %v407
                %v409 = vld [vmem:[%s173 + $0x9a8] sm:$0xff]
                %410 = vst [vmem:[%s174 + $0x3a8] sm:$0xff] %v409
                %v411 = vld [vmem:[%s173 + $0x9b0] sm:$0xff]
                %412 = vst [vmem:[%s174 + $0x3b0] sm:$0xff] %v411
                %v413 = vld [vmem:[%s173 + $0x9b8] sm:$0xff]
                %414 = vst [vmem:[%s174 + $0x3b8] sm:$0xff] %v413
                %v415 = vld [vmem:[%s173 + $0x9c0] sm:$0xff]
                %416 = vst [vmem:[%s174 + $0x3c0] sm:$0xff] %v415
                %v417 = vld [vmem:[%s173 + $0x9c8] sm:$0xff]
                %418 = vst [vmem:[%s174 + $0x3c8] sm:$0xff] %v417
                %v419 = vld [vmem:[%s173 + $0x9d0] sm:$0xff]
                %420 = vst [vmem:[%s174 + $0x3d0] sm:$0xff] %v419
                %v421 = vld [vmem:[%s173 + $0x9d8] sm:$0xff]
                %422 = vst [vmem:[%s174 + $0x3d8] sm:$0xff] %v421
                %v423 = vld [vmem:[%s173 + $0x9e0] sm:$0xff]
                %424 = vst [vmem:[%s174 + $0x3e0] sm:$0xff] %v423
                %v425 = vld [vmem:[%s173 + $0x9e8] sm:$0xff]
                %426 = vst [vmem:[%s174 + $0x3e8] sm:$0xff] %v425
                %v427 = vld [vmem:[%s173 + $0x9f0] sm:$0xff]
                %428 = vst [vmem:[%s174 + $0x3f0] sm:$0xff] %v427
                %v429 = vld [vmem:[%s173 + $0x9f8] sm:$0xff]
                %430 = vst [vmem:[%s174 + $0x3f8] sm:$0xff] %v429
              $region37: #{tpu_custom_call.1} parent=31 // loop_footer
                %s172 = sadd.s32 1, %s168
              $region38: #{tpu_custom_call.1} parent=31 // loop_footer_branch
                %167 = sbr.rel target = $region34
              $region39: #{tpu_custom_call.1} parent=31 // loop_exit
                _
            $region32: #{tpu_custom_call.1} parent=23 // pred_fallthru
              _
          $region24: #{tpu_custom_call.1} parent=19 // pred_fallthru
            _
          %699 = vnop
        $region20: #{tpu_custom_call.1} parent=15 // pred_fallthru
          _
        // Predicated region
        $region55: #{tpu_custom_call.1} parent=15 // pred_check
          %p700 = pneg %p72
        $region56: #{tpu_custom_call.1} parent=15 // pred_check_branch
          %702 = sbr.rel (%p700) target = $region58
        $region57: #{tpu_custom_call.1} parent=15 // pred_region
          %s703 = smul.u32 4, %s19
          %p704 = scmp.lt.s32.totalorder %s703, 15
          %s705 = scalar_select %p704, %s703, 15
          %s706 = scalar_lea.vmem %s1, %s705
          %s707 = smul.u32 4, %s19
        $region58: #{tpu_custom_call.1} parent=15 // pred_fallthru
          _
        // Predicated region
        $region59: #{tpu_custom_call.1} parent=15 // pred_check
          %p708 = pneg %p98
        $region60: #{tpu_custom_call.1} parent=15 // pred_check_branch
          %710 = sbr.rel (%p708) target = $region62
        $region61: #{tpu_custom_call.1} parent=15 // pred_region
          %s711 = smul.u32 4, %s19
          %p712 = scmp.lt.s32.totalorder %s711, 15
          %s713 = scalar_select %p712, %s711, 15
          %s714 = scalar_lea.vmem %s2, %s713
          %s715 = smul.u32 4, %s19
        $region62: #{tpu_custom_call.1} parent=15 // pred_fallthru
          _
      $region16: #{tpu_custom_call.1} parent=5 // pred_fallthru
        _
      %p716 = scmp.le.s32.totalorder 1, %s12
      %p717 = scmp.lt.s32.totalorder %s12, 5
      %p718 = pnand %p716, %p717
      %p719 = pneg %p718
      // Predicated region
      $region63: #{tpu_custom_call.1} parent=5 // pred_check
        _
      $region64: #{tpu_custom_call.1} parent=5 // pred_check_branch
        %721 = sbr.rel (%p718) target = $region66
      $region65: #{tpu_custom_call.1} parent=5 // pred_region
        %s722 = ssub.s32 %s12, 1
        %s723 = sand.u32 %s39, 1
        %s724 = sand.u32 %s39, 1
        %s725 = smul.addr %s724, 1024
        %s726 = scalar_lea.vmem [#allocation2], %s725
        // Predicated region
        $region67: #{tpu_custom_call.1} parent=65 // pred_check
          %p727 = pneg %p52
        $region68: #{tpu_custom_call.1} parent=65 // pred_check_branch
          %729 = sbr.rel (%p727) target = $region70
        $region69: #{tpu_custom_call.1} parent=65 // pred_region
          _
        $region70: #{tpu_custom_call.1} parent=65 // pred_fallthru
          _
        %s730 = sand.u32 %s39, 1
        %s731 = sand.u32 %s39, 1
        %s732 = smul.addr %s731, 1024
        %s733 = scalar_lea.vmem [#allocation2], %s732
        %p734 = pneg %p52
        %p735 = pneg %p49
        %s736 = smul.u32 4, %s21
        %p737 = scmp.lt.s32.totalorder %s736, 15
        %s738 = scalar_select %p737, %s736, 15
        %s739 = scalar_lea.vmem %s1, %s738
        %p740 = pneg %p78
        %p741 = pneg %p75
        %s742 = smul.u32 4, %s21
        %p743 = scmp.lt.s32.totalorder %s742, 15
        %s744 = scalar_select %p743, %s742, 15
        %s745 = scalar_lea.vmem %s2, %s744
        %p746 = pneg %p104
        %p747 = pneg %p101
        %p748 = pneg %p130
        %p749 = pneg %p127
        %s750 = sand.u32 %s117, 1
        %s751 = scalar_lea.sflag [#allocation4], %s750
        %s752 = sand.u32 %s117, 1
        %s753 = smul.addr %s752, 8
        %s754 = scalar_lea.vmem [#allocation3], %s753
        %s755 = smul.u32 64, %s21
        %s756 = smul.u32 4, %s21
        %p757 = scmp.lt.s32.totalorder %s756, 15
        %s758 = scalar_select %p757, %s756, 15
        %s759 = scalar_lea.vmem %s1, %s758
        %s760 = smul.u32 4, %s21
        %s761 = smul.u32 4, %s21
        %p762 = scmp.lt.s32.totalorder %s761, 15
        %s763 = scalar_select %p762, %s761, 15
        %s764 = scalar_lea.vmem %s2, %s763
        %s765 = smul.u32 4, %s21
        %s766 = smul.u32 4, %s21
        %v767 = vld [vmem:[%s726] sm:$0xff]
        %v768 = vld [vmem:[%s726 + $0x8] sm:$0xff]
        %v769 = vld [vmem:[%s726 + $0x10] sm:$0xff]
        %v770 = vld [vmem:[%s726 + $0x18] sm:$0xff]
        %v771 = vld [vmem:[%s726 + $0x20] sm:$0xff]
        %v772 = vld [vmem:[%s726 + $0x28] sm:$0xff]
        %v773 = vld [vmem:[%s726 + $0x30] sm:$0xff]
        %v774 = vld [vmem:[%s726 + $0x38] sm:$0xff]
        %v775 = vld [vmem:[%s726 + $0x40] sm:$0xff]
        %v776 = vld [vmem:[%s726 + $0x48] sm:$0xff]
        %v777 = vld [vmem:[%s726 + $0x50] sm:$0xff]
        %v778 = vld [vmem:[%s726 + $0x58] sm:$0xff]
        %v779 = vld [vmem:[%s726 + $0x60] sm:$0xff]
        %v780 = vld [vmem:[%s726 + $0x68] sm:$0xff]
        %v781 = vld [vmem:[%s726 + $0x70] sm:$0xff]
        %v782 = vld [vmem:[%s726 + $0x78] sm:$0xff]
        %v783 = vld [vmem:[%s726 + $0x80] sm:$0xff]
        %v784 = vld [vmem:[%s726 + $0x88] sm:$0xff]
        %v785 = vld [vmem:[%s726 + $0x90] sm:$0xff]
        %v786 = vld [vmem:[%s726 + $0x98] sm:$0xff]
        %v787 = vld [vmem:[%s726 + $0xa0] sm:$0xff]
        %v788 = vld [vmem:[%s726 + $0xa8] sm:$0xff]
        %v789 = vld [vmem:[%s726 + $0xb0] sm:$0xff]
        %v790 = vld [vmem:[%s726 + $0xb8] sm:$0xff]
        %v791 = vld [vmem:[%s726 + $0xc0] sm:$0xff]
        %v792 = vld [vmem:[%s726 + $0xc8] sm:$0xff]
        %v793 = vld [vmem:[%s726 + $0xd0] sm:$0xff]
        %v794 = vld [vmem:[%s726 + $0xd8] sm:$0xff]
        %v795 = vld [vmem:[%s726 + $0xe0] sm:$0xff]
        %v796 = vld [vmem:[%s726 + $0xe8] sm:$0xff]
        %v797 = vld [vmem:[%s726 + $0xf0] sm:$0xff]
        %v798 = vld [vmem:[%s726 + $0xf8] sm:$0xff]
        %v799 = vld [vmem:[%s726 + $0x100] sm:$0xff]
        %v800 = vld [vmem:[%s726 + $0x108] sm:$0xff]
        %v801 = vld [vmem:[%s726 + $0x110] sm:$0xff]
        %v802 = vld [vmem:[%s726 + $0x118] sm:$0xff]
        %v803 = vld [vmem:[%s726 + $0x120] sm:$0xff]
        %v804 = vld [vmem:[%s726 + $0x128] sm:$0xff]
        %v805 = vld [vmem:[%s726 + $0x130] sm:$0xff]
        %v806 = vld [vmem:[%s726 + $0x138] sm:$0xff]
        %v807 = vld [vmem:[%s726 + $0x140] sm:$0xff]
        %v808 = vld [vmem:[%s726 + $0x148] sm:$0xff]
        %v809 = vld [vmem:[%s726 + $0x150] sm:$0xff]
        %v810 = vld [vmem:[%s726 + $0x158] sm:$0xff]
        %v811 = vld [vmem:[%s726 + $0x160] sm:$0xff]
        %v812 = vld [vmem:[%s726 + $0x168] sm:$0xff]
        %v813 = vld [vmem:[%s726 + $0x170] sm:$0xff]
        %v814 = vld [vmem:[%s726 + $0x178] sm:$0xff]
        %v815 = vld [vmem:[%s726 + $0x180] sm:$0xff]
        %v816 = vld [vmem:[%s726 + $0x188] sm:$0xff]
        %v817 = vld [vmem:[%s726 + $0x190] sm:$0xff]
        %v818 = vld [vmem:[%s726 + $0x198] sm:$0xff]
        %v819 = vld [vmem:[%s726 + $0x1a0] sm:$0xff]
        %v820 = vld [vmem:[%s726 + $0x1a8] sm:$0xff]
        %v821 = vld [vmem:[%s726 + $0x1b0] sm:$0xff]
        %v822 = vld [vmem:[%s726 + $0x1b8] sm:$0xff]
        %v823 = vld [vmem:[%s726 + $0x1c0] sm:$0xff]
        %v824 = vld [vmem:[%s726 + $0x1c8] sm:$0xff]
        %v825 = vld [vmem:[%s726 + $0x1d0] sm:$0xff]
        %v826 = vld [vmem:[%s726 + $0x1d8] sm:$0xff]
        %v827 = vld [vmem:[%s726 + $0x1e0] sm:$0xff]
        %v828 = vld [vmem:[%s726 + $0x1e8] sm:$0xff]
        %v829 = vld [vmem:[%s726 + $0x1f0] sm:$0xff]
        %v830 = vld [vmem:[%s726 + $0x1f8] sm:$0xff]
        %v831 = vld [vmem:[%s726 + $0x200] sm:$0xff]
        %v832 = vld [vmem:[%s726 + $0x208] sm:$0xff]
        %v833 = vld [vmem:[%s726 + $0x210] sm:$0xff]
        %v834 = vld [vmem:[%s726 + $0x218] sm:$0xff]
        %v835 = vld [vmem:[%s726 + $0x220] sm:$0xff]
        %v836 = vld [vmem:[%s726 + $0x228] sm:$0xff]
        %v837 = vld [vmem:[%s726 + $0x230] sm:$0xff]
        %v838 = vld [vmem:[%s726 + $0x238] sm:$0xff]
        %v839 = vld [vmem:[%s726 + $0x240] sm:$0xff]
        %v840 = vld [vmem:[%s726 + $0x248] sm:$0xff]
        %v841 = vld [vmem:[%s726 + $0x250] sm:$0xff]
        %v842 = vld [vmem:[%s726 + $0x258] sm:$0xff]
        %v843 = vld [vmem:[%s726 + $0x260] sm:$0xff]
        %v844 = vld [vmem:[%s726 + $0x268] sm:$0xff]
        %v845 = vld [vmem:[%s726 + $0x270] sm:$0xff]
        %v846 = vld [vmem:[%s726 + $0x278] sm:$0xff]
        %v847 = vld [vmem:[%s726 + $0x280] sm:$0xff]
        %v848 = vld [vmem:[%s726 + $0x288] sm:$0xff]
        %v849 = vld [vmem:[%s726 + $0x290] sm:$0xff]
        %v850 = vld [vmem:[%s726 + $0x298] sm:$0xff]
        %v851 = vld [vmem:[%s726 + $0x2a0] sm:$0xff]
        %v852 = vld [vmem:[%s726 + $0x2a8] sm:$0xff]
        %v853 = vld [vmem:[%s726 + $0x2b0] sm:$0xff]
        %v854 = vld [vmem:[%s726 + $0x2b8] sm:$0xff]
        %v855 = vld [vmem:[%s726 + $0x2c0] sm:$0xff]
        %v856 = vld [vmem:[%s726 + $0x2c8] sm:$0xff]
        %v857 = vld [vmem:[%s726 + $0x2d0] sm:$0xff]
        %v858 = vld [vmem:[%s726 + $0x2d8] sm:$0xff]
        %v859 = vld [vmem:[%s726 + $0x2e0] sm:$0xff]
        %v860 = vld [vmem:[%s726 + $0x2e8] sm:$0xff]
        %v861 = vld [vmem:[%s726 + $0x2f0] sm:$0xff]
        %v862 = vld [vmem:[%s726 + $0x2f8] sm:$0xff]
        %v863 = vld [vmem:[%s726 + $0x300] sm:$0xff]
        %v864 = vld [vmem:[%s726 + $0x308] sm:$0xff]
        %v865 = vld [vmem:[%s726 + $0x310] sm:$0xff]
        %v866 = vld [vmem:[%s726 + $0x318] sm:$0xff]
        %v867 = vld [vmem:[%s726 + $0x320] sm:$0xff]
        %v868 = vld [vmem:[%s726 + $0x328] sm:$0xff]
        %v869 = vld [vmem:[%s726 + $0x330] sm:$0xff]
        %v870 = vld [vmem:[%s726 + $0x338] sm:$0xff]
        %v871 = vld [vmem:[%s726 + $0x340] sm:$0xff]
        %v872 = vld [vmem:[%s726 + $0x348] sm:$0xff]
        %v873 = vld [vmem:[%s726 + $0x350] sm:$0xff]
        %v874 = vld [vmem:[%s726 + $0x358] sm:$0xff]
        %v875 = vld [vmem:[%s726 + $0x360] sm:$0xff]
        %v876 = vld [vmem:[%s726 + $0x368] sm:$0xff]
        %v877 = vld [vmem:[%s726 + $0x370] sm:$0xff]
        %v878 = vld [vmem:[%s726 + $0x378] sm:$0xff]
        %v879 = vld [vmem:[%s726 + $0x380] sm:$0xff]
        %v880 = vld [vmem:[%s726 + $0x388] sm:$0xff]
        %v881 = vld [vmem:[%s726 + $0x390] sm:$0xff]
        %v882 = vld [vmem:[%s726 + $0x398] sm:$0xff]
        %v883 = vld [vmem:[%s726 + $0x3a0] sm:$0xff]
        %v884 = vld [vmem:[%s726 + $0x3a8] sm:$0xff]
        %v885 = vld [vmem:[%s726 + $0x3b0] sm:$0xff]
        %v886 = vld [vmem:[%s726 + $0x3b8] sm:$0xff]
        %v887 = vld [vmem:[%s726 + $0x3c0] sm:$0xff]
        %v888 = vld [vmem:[%s726 + $0x3c8] sm:$0xff]
        %v889 = vld [vmem:[%s726 + $0x3d0] sm:$0xff]
        %v890 = vld [vmem:[%s726 + $0x3d8] sm:$0xff]
        %v891 = vld [vmem:[%s726 + $0x3e0] sm:$0xff]
        %v892 = vld [vmem:[%s726 + $0x3e8] sm:$0xff]
        %v893 = vld [vmem:[%s726 + $0x3f0] sm:$0xff]
        %v894 = vld [vmem:[%s726 + $0x3f8] sm:$0xff]
        %v895 = vmax.f32 %v767, 1e-06
        %v896 = vmax.f32 %v768, 1e-06
        %v897 = vmax.f32 %v769, 1e-06
        %v898 = vmax.f32 %v770, 1e-06
        %v899 = vmax.f32 %v771, 1e-06
        %v900 = vmax.f32 %v772, 1e-06
        %v901 = vmax.f32 %v773, 1e-06
        %v902 = vmax.f32 %v774, 1e-06
        %v903 = vmax.f32 %v775, 1e-06
        %v904 = vmax.f32 %v776, 1e-06
        %v905 = vmax.f32 %v777, 1e-06
        %v906 = vmax.f32 %v778, 1e-06
        %v907 = vmax.f32 %v779, 1e-06
        %v908 = vmax.f32 %v780, 1e-06
        %v909 = vmax.f32 %v781, 1e-06
        %v910 = vmax.f32 %v782, 1e-06
        %v911 = vmax.f32 %v783, 1e-06
        %v912 = vmax.f32 %v784, 1e-06
        %v913 = vmax.f32 %v785, 1e-06
        %v914 = vmax.f32 %v786, 1e-06
        %v915 = vmax.f32 %v787, 1e-06
        %v916 = vmax.f32 %v788, 1e-06
        %v917 = vmax.f32 %v789, 1e-06
        %v918 = vmax.f32 %v790, 1e-06
        %v919 = vmax.f32 %v791, 1e-06
        %v920 = vmax.f32 %v792, 1e-06
        %v921 = vmax.f32 %v793, 1e-06
        %v922 = vmax.f32 %v794, 1e-06
        %v923 = vmax.f32 %v795, 1e-06
        %v924 = vmax.f32 %v796, 1e-06
        %v925 = vmax.f32 %v797, 1e-06
        %v926 = vmax.f32 %v798, 1e-06
        %v927 = vmax.f32 %v799, 1e-06
        %v928 = vmax.f32 %v800, 1e-06
        %v929 = vmax.f32 %v801, 1e-06
        %v930 = vmax.f32 %v802, 1e-06
        %v931 = vmax.f32 %v803, 1e-06
        %v932 = vmax.f32 %v804, 1e-06
        %v933 = vmax.f32 %v805, 1e-06
        %v934 = vmax.f32 %v806, 1e-06
        %v935 = vmax.f32 %v807, 1e-06
        %v936 = vmax.f32 %v808, 1e-06
        %v937 = vmax.f32 %v809, 1e-06
        %v938 = vmax.f32 %v810, 1e-06
        %v939 = vmax.f32 %v811, 1e-06
        %v940 = vmax.f32 %v812, 1e-06
        %v941 = vmax.f32 %v813, 1e-06
        %v942 = vmax.f32 %v814, 1e-06
        %v943 = vmax.f32 %v815, 1e-06
        %v944 = vmax.f32 %v816, 1e-06
        %v945 = vmax.f32 %v817, 1e-06
        %v946 = vmax.f32 %v818, 1e-06
        %v947 = vmax.f32 %v819, 1e-06
        %v948 = vmax.f32 %v820, 1e-06
        %v949 = vmax.f32 %v821, 1e-06
        %v950 = vmax.f32 %v822, 1e-06
        %v951 = vmax.f32 %v823, 1e-06
        %v952 = vmax.f32 %v824, 1e-06
        %v953 = vmax.f32 %v825, 1e-06
        %v954 = vmax.f32 %v826, 1e-06
        %v955 = vmax.f32 %v827, 1e-06
        %v956 = vmax.f32 %v828, 1e-06
        %v957 = vmax.f32 %v829, 1e-06
        %v958 = vmax.f32 %v830, 1e-06
        %v959 = vmax.f32 %v831, 1e-06
        %v960 = vmax.f32 %v832, 1e-06
        %v961 = vmax.f32 %v833, 1e-06
        %v962 = vmax.f32 %v834, 1e-06
        %v963 = vmax.f32 %v835, 1e-06
        %v964 = vmax.f32 %v836, 1e-06
        %v965 = vmax.f32 %v837, 1e-06
        %v966 = vmax.f32 %v838, 1e-06
        %v967 = vmax.f32 %v839, 1e-06
        %v968 = vmax.f32 %v840, 1e-06
        %v969 = vmax.f32 %v841, 1e-06
        %v970 = vmax.f32 %v842, 1e-06
        %v971 = vmax.f32 %v843, 1e-06
        %v972 = vmax.f32 %v844, 1e-06
        %v973 = vmax.f32 %v845, 1e-06
        %v974 = vmax.f32 %v846, 1e-06
        %v975 = vmax.f32 %v847, 1e-06
        %v976 = vmax.f32 %v848, 1e-06
        %v977 = vmax.f32 %v849, 1e-06
        %v978 = vmax.f32 %v850, 1e-06
        %v979 = vmax.f32 %v851, 1e-06
        %v980 = vmax.f32 %v852, 1e-06
        %v981 = vmax.f32 %v853, 1e-06
        %v982 = vmax.f32 %v854, 1e-06
        %v983 = vmax.f32 %v855, 1e-06
        %v984 = vmax.f32 %v856, 1e-06
        %v985 = vmax.f32 %v857, 1e-06
        %v986 = vmax.f32 %v858, 1e-06
        %v987 = vmax.f32 %v859, 1e-06
        %v988 = vmax.f32 %v860, 1e-06
        %v989 = vmax.f32 %v861, 1e-06
        %v990 = vmax.f32 %v862, 1e-06
        %v991 = vmax.f32 %v863, 1e-06
        %v992 = vmax.f32 %v864, 1e-06
        %v993 = vmax.f32 %v865, 1e-06
        %v994 = vmax.f32 %v866, 1e-06
        %v995 = vmax.f32 %v867, 1e-06
        %v996 = vmax.f32 %v868, 1e-06
        %v997 = vmax.f32 %v869, 1e-06
        %v998 = vmax.f32 %v870, 1e-06
        %v999 = vmax.f32 %v871, 1e-06
        %v1000 = vmax.f32 %v872, 1e-06
        %v1001 = vmax.f32 %v873, 1e-06
        %v1002 = vmax.f32 %v874, 1e-06
        %v1003 = vmax.f32 %v875, 1e-06
        %v1004 = vmax.f32 %v876, 1e-06
        %v1005 = vmax.f32 %v877, 1e-06
        %v1006 = vmax.f32 %v878, 1e-06
        %v1007 = vmax.f32 %v879, 1e-06
        %v1008 = vmax.f32 %v880, 1e-06
        %v1009 = vmax.f32 %v881, 1e-06
        %v1010 = vmax.f32 %v882, 1e-06
        %v1011 = vmax.f32 %v883, 1e-06
        %v1012 = vmax.f32 %v884, 1e-06
        %v1013 = vmax.f32 %v885, 1e-06
        %v1014 = vmax.f32 %v886, 1e-06
        %v1015 = vmax.f32 %v887, 1e-06
        %v1016 = vmax.f32 %v888, 1e-06
        %v1017 = vmax.f32 %v889, 1e-06
        %v1018 = vmax.f32 %v890, 1e-06
        %v1019 = vmax.f32 %v891, 1e-06
        %v1020 = vmax.f32 %v892, 1e-06
        %v1021 = vmax.f32 %v893, 1e-06
        %v1022 = vmax.f32 %v894, 1e-06
        %v1023 = vmul.f32 %v895, %v895
        %v1024 = vmul.f32 %v896, %v896
        %v1025 = vmul.f32 %v897, %v897
        %v1026 = vmul.f32 %v898, %v898
        %v1027 = vmul.f32 %v899, %v899
        %v1028 = vmul.f32 %v900, %v900
        %v1029 = vmul.f32 %v901, %v901
        %v1030 = vmul.f32 %v902, %v902
        %v1031 = vmul.f32 %v903, %v903
        %v1032 = vmul.f32 %v904, %v904
        %v1033 = vmul.f32 %v905, %v905
        %v1034 = vmul.f32 %v906, %v906
        %v1035 = vmul.f32 %v907, %v907
        %v1036 = vmul.f32 %v908, %v908
        %v1037 = vmul.f32 %v909, %v909
        %v1038 = vmul.f32 %v910, %v910
        %v1039 = vmul.f32 %v911, %v911
        %v1040 = vmul.f32 %v912, %v912
        %v1041 = vmul.f32 %v913, %v913
        %v1042 = vmul.f32 %v914, %v914
        %v1043 = vmul.f32 %v915, %v915
        %v1044 = vmul.f32 %v916, %v916
        %v1045 = vmul.f32 %v917, %v917
        %v1046 = vmul.f32 %v918, %v918
        %v1047 = vmul.f32 %v919, %v919
        %v1048 = vmul.f32 %v920, %v920
        %v1049 = vmul.f32 %v921, %v921
        %v1050 = vmul.f32 %v922, %v922
        %v1051 = vmul.f32 %v923, %v923
        %v1052 = vmul.f32 %v924, %v924
        %v1053 = vmul.f32 %v925, %v925
        %v1054 = vmul.f32 %v926, %v926
        %v1055 = vmul.f32 %v927, %v927
        %v1056 = vmul.f32 %v928, %v928
        %v1057 = vmul.f32 %v929, %v929
        %v1058 = vmul.f32 %v930, %v930
        %v1059 = vmul.f32 %v931, %v931
        %v1060 = vmul.f32 %v932, %v932
        %v1061 = vmul.f32 %v933, %v933
        %v1062 = vmul.f32 %v934, %v934
        %v1063 = vmul.f32 %v935, %v935
        %v1064 = vmul.f32 %v936, %v936
        %v1065 = vmul.f32 %v937, %v937
        %v1066 = vmul.f32 %v938, %v938
        %v1067 = vmul.f32 %v939, %v939
        %v1068 = vmul.f32 %v940, %v940
        %v1069 = vmul.f32 %v941, %v941
        %v1070 = vmul.f32 %v942, %v942
        %v1071 = vmul.f32 %v943, %v943
        %v1072 = vmul.f32 %v944, %v944
        %v1073 = vmul.f32 %v945, %v945
        %v1074 = vmul.f32 %v946, %v946
        %v1075 = vmul.f32 %v947, %v947
        %v1076 = vmul.f32 %v948, %v948
        %v1077 = vmul.f32 %v949, %v949
        %v1078 = vmul.f32 %v950, %v950
        %v1079 = vmul.f32 %v951, %v951
        %v1080 = vmul.f32 %v952, %v952
        %v1081 = vmul.f32 %v953, %v953
        %v1082 = vmul.f32 %v954, %v954
        %v1083 = vmul.f32 %v955, %v955
        %v1084 = vmul.f32 %v956, %v956
        %v1085 = vmul.f32 %v957, %v957
        %v1086 = vmul.f32 %v958, %v958
        %v1087 = vmul.f32 %v959, %v959
        %v1088 = vmul.f32 %v960, %v960
        %v1089 = vmul.f32 %v961, %v961
        %v1090 = vmul.f32 %v962, %v962
        %v1091 = vmul.f32 %v963, %v963
        %v1092 = vmul.f32 %v964, %v964
        %v1093 = vmul.f32 %v965, %v965
        %v1094 = vmul.f32 %v966, %v966
        %v1095 = vmul.f32 %v967, %v967
        %v1096 = vmul.f32 %v968, %v968
        %v1097 = vmul.f32 %v969, %v969
        %v1098 = vmul.f32 %v970, %v970
        %v1099 = vmul.f32 %v971, %v971
        %v1100 = vmul.f32 %v972, %v972
        %v1101 = vmul.f32 %v973, %v973
        %v1102 = vmul.f32 %v974, %v974
        %v1103 = vmul.f32 %v975, %v975
        %v1104 = vmul.f32 %v976, %v976
        %v1105 = vmul.f32 %v977, %v977
        %v1106 = vmul.f32 %v978, %v978
        %v1107 = vmul.f32 %v979, %v979
        %v1108 = vmul.f32 %v980, %v980
        %v1109 = vmul.f32 %v981, %v981
        %v1110 = vmul.f32 %v982, %v982
        %v1111 = vmul.f32 %v983, %v983
        %v1112 = vmul.f32 %v984, %v984
        %v1113 = vmul.f32 %v985, %v985
        %v1114 = vmul.f32 %v986, %v986
        %v1115 = vmul.f32 %v987, %v987
        %v1116 = vmul.f32 %v988, %v988
        %v1117 = vmul.f32 %v989, %v989
        %v1118 = vmul.f32 %v990, %v990
        %v1119 = vmul.f32 %v991, %v991
        %v1120 = vmul.f32 %v992, %v992
        %v1121 = vmul.f32 %v993, %v993
        %v1122 = vmul.f32 %v994, %v994
        %v1123 = vmul.f32 %v995, %v995
        %v1124 = vmul.f32 %v996, %v996
        %v1125 = vmul.f32 %v997, %v997
        %v1126 = vmul.f32 %v998, %v998
        %v1127 = vmul.f32 %v999, %v999
        %v1128 = vmul.f32 %v1000, %v1000
        %v1129 = vmul.f32 %v1001, %v1001
        %v1130 = vmul.f32 %v1002, %v1002
        %v1131 = vmul.f32 %v1003, %v1003
        %v1132 = vmul.f32 %v1004, %v1004
        %v1133 = vmul.f32 %v1005, %v1005
        %v1134 = vmul.f32 %v1006, %v1006
        %v1135 = vmul.f32 %v1007, %v1007
        %v1136 = vmul.f32 %v1008, %v1008
        %v1137 = vmul.f32 %v1009, %v1009
        %v1138 = vmul.f32 %v1010, %v1010
        %v1139 = vmul.f32 %v1011, %v1011
        %v1140 = vmul.f32 %v1012, %v1012
        %v1141 = vmul.f32 %v1013, %v1013
        %v1142 = vmul.f32 %v1014, %v1014
        %v1143 = vmul.f32 %v1015, %v1015
        %v1144 = vmul.f32 %v1016, %v1016
        %v1145 = vmul.f32 %v1017, %v1017
        %v1146 = vmul.f32 %v1018, %v1018
        %v1147 = vmul.f32 %v1019, %v1019
        %v1148 = vmul.f32 %v1020, %v1020
        %v1149 = vmul.f32 %v1021, %v1021
        %v1150 = vmul.f32 %v1022, %v1022
        %v1151 = vmul.f32 %v895, %v1023
        %v1152 = vmul.f32 %v896, %v1024
        %v1153 = vmul.f32 %v897, %v1025
        %v1154 = vmul.f32 %v898, %v1026
        %v1155 = vmul.f32 %v899, %v1027
        %v1156 = vmul.f32 %v900, %v1028
        %v1157 = vmul.f32 %v901, %v1029
        %v1158 = vmul.f32 %v902, %v1030
        %v1159 = vmul.f32 %v903, %v1031
        %v1160 = vmul.f32 %v904, %v1032
        %v1161 = vmul.f32 %v905, %v1033
        %v1162 = vmul.f32 %v906, %v1034
        %v1163 = vmul.f32 %v907, %v1035
        %v1164 = vmul.f32 %v908, %v1036
        %v1165 = vmul.f32 %v909, %v1037
        %v1166 = vmul.f32 %v910, %v1038
        %v1167 = vmul.f32 %v911, %v1039
        %v1168 = vmul.f32 %v912, %v1040
        %v1169 = vmul.f32 %v913, %v1041
        %v1170 = vmul.f32 %v914, %v1042
        %v1171 = vmul.f32 %v915, %v1043
        %v1172 = vmul.f32 %v916, %v1044
        %v1173 = vmul.f32 %v917, %v1045
        %v1174 = vmul.f32 %v918, %v1046
        %v1175 = vmul.f32 %v919, %v1047
        %v1176 = vmul.f32 %v920, %v1048
        %v1177 = vmul.f32 %v921, %v1049
        %v1178 = vmul.f32 %v922, %v1050
        %v1179 = vmul.f32 %v923, %v1051
        %v1180 = vmul.f32 %v924, %v1052
        %v1181 = vmul.f32 %v925, %v1053
        %v1182 = vmul.f32 %v926, %v1054
        %v1183 = vmul.f32 %v927, %v1055
        %v1184 = vmul.f32 %v928, %v1056
        %v1185 = vmul.f32 %v929, %v1057
        %v1186 = vmul.f32 %v930, %v1058
        %v1187 = vmul.f32 %v931, %v1059
        %v1188 = vmul.f32 %v932, %v1060
        %v1189 = vmul.f32 %v933, %v1061
        %v1190 = vmul.f32 %v934, %v1062
        %v1191 = vmul.f32 %v935, %v1063
        %v1192 = vmul.f32 %v936, %v1064
        %v1193 = vmul.f32 %v937, %v1065
        %v1194 = vmul.f32 %v938, %v1066
        %v1195 = vmul.f32 %v939, %v1067
        %v1196 = vmul.f32 %v940, %v1068
        %v1197 = vmul.f32 %v941, %v1069
        %v1198 = vmul.f32 %v942, %v1070
        %v1199 = vmul.f32 %v943, %v1071
        %v1200 = vmul.f32 %v944, %v1072
        %v1201 = vmul.f32 %v945, %v1073
        %v1202 = vmul.f32 %v946, %v1074
        %v1203 = vmul.f32 %v947, %v1075
        %v1204 = vmul.f32 %v948, %v1076
        %v1205 = vmul.f32 %v949, %v1077
        %v1206 = vmul.f32 %v950, %v1078
        %v1207 = vmul.f32 %v951, %v1079
        %v1208 = vmul.f32 %v952, %v1080
        %v1209 = vmul.f32 %v953, %v1081
        %v1210 = vmul.f32 %v954, %v1082
        %v1211 = vmul.f32 %v955, %v1083
        %v1212 = vmul.f32 %v956, %v1084
        %v1213 = vmul.f32 %v957, %v1085
        %v1214 = vmul.f32 %v958, %v1086
        %v1215 = vmul.f32 %v959, %v1087
        %v1216 = vmul.f32 %v960, %v1088
        %v1217 = vmul.f32 %v961, %v1089
        %v1218 = vmul.f32 %v962, %v1090
        %v1219 = vmul.f32 %v963, %v1091
        %v1220 = vmul.f32 %v964, %v1092
        %v1221 = vmul.f32 %v965, %v1093
        %v1222 = vmul.f32 %v966, %v1094
        %v1223 = vmul.f32 %v967, %v1095
        %v1224 = vmul.f32 %v968, %v1096
        %v1225 = vmul.f32 %v969, %v1097
        %v1226 = vmul.f32 %v970, %v1098
        %v1227 = vmul.f32 %v971, %v1099
        %v1228 = vmul.f32 %v972, %v1100
        %v1229 = vmul.f32 %v973, %v1101
        %v1230 = vmul.f32 %v974, %v1102
        %v1231 = vmul.f32 %v975, %v1103
        %v1232 = vmul.f32 %v976, %v1104
        %v1233 = vmul.f32 %v977, %v1105
        %v1234 = vmul.f32 %v978, %v1106
        %v1235 = vmul.f32 %v979, %v1107
        %v1236 = vmul.f32 %v980, %v1108
        %v1237 = vmul.f32 %v981, %v1109
        %v1238 = vmul.f32 %v982, %v1110
        %v1239 = vmul.f32 %v983, %v1111
        %v1240 = vmul.f32 %v984, %v1112
        %v1241 = vmul.f32 %v985, %v1113
        %v1242 = vmul.f32 %v986, %v1114
        %v1243 = vmul.f32 %v987, %v1115
        %v1244 = vmul.f32 %v988, %v1116
        %v1245 = vmul.f32 %v989, %v1117
        %v1246 = vmul.f32 %v990, %v1118
        %v1247 = vmul.f32 %v991, %v1119
        %v1248 = vmul.f32 %v992, %v1120
        %v1249 = vmul.f32 %v993, %v1121
        %v1250 = vmul.f32 %v994, %v1122
        %v1251 = vmul.f32 %v995, %v1123
        %v1252 = vmul.f32 %v996, %v1124
        %v1253 = vmul.f32 %v997, %v1125
        %v1254 = vmul.f32 %v998, %v1126
        %v1255 = vmul.f32 %v999, %v1127
        %v1256 = vmul.f32 %v1000, %v1128
        %v1257 = vmul.f32 %v1001, %v1129
        %v1258 = vmul.f32 %v1002, %v1130
        %v1259 = vmul.f32 %v1003, %v1131
        %v1260 = vmul.f32 %v1004, %v1132
        %v1261 = vmul.f32 %v1005, %v1133
        %v1262 = vmul.f32 %v1006, %v1134
        %v1263 = vmul.f32 %v1007, %v1135
        %v1264 = vmul.f32 %v1008, %v1136
        %v1265 = vmul.f32 %v1009, %v1137
        %v1266 = vmul.f32 %v1010, %v1138
        %v1267 = vmul.f32 %v1011, %v1139
        %v1268 = vmul.f32 %v1012, %v1140
        %v1269 = vmul.f32 %v1013, %v1141
        %v1270 = vmul.f32 %v1014, %v1142
        %v1271 = vmul.f32 %v1015, %v1143
        %v1272 = vmul.f32 %v1016, %v1144
        %v1273 = vmul.f32 %v1017, %v1145
        %v1274 = vmul.f32 %v1018, %v1146
        %v1275 = vmul.f32 %v1019, %v1147
        %v1276 = vmul.f32 %v1020, %v1148
        %v1277 = vmul.f32 %v1021, %v1149
        %v1278 = vmul.f32 %v1022, %v1150
        %vm1279 = vcmask 523264
        %v1280 = vsel %vm1279, %v1151, 0.0
        %1281 = vadd.xlane.f32.xlu0 %v1280
        %v1282 = vpop.xlane.xlu0 %1281
        %v1283 = vsel %vm1279, %v1152, 0.0
        %1284 = vadd.xlane.f32.xlu0 %v1283
        %v1285 = vpop.xlane.xlu0 %1284
        %v1286 = vsel %vm1279, %v1153, 0.0
        %1287 = vadd.xlane.f32.xlu0 %v1286
        %v1288 = vpop.xlane.xlu0 %1287
        %v1289 = vsel %vm1279, %v1154, 0.0
        %1290 = vadd.xlane.f32.xlu0 %v1289
        %v1291 = vpop.xlane.xlu0 %1290
        %v1292 = vsel %vm1279, %v1155, 0.0
        %1293 = vadd.xlane.f32.xlu0 %v1292
        %v1294 = vpop.xlane.xlu0 %1293
        %v1295 = vsel %vm1279, %v1156, 0.0
        %1296 = vadd.xlane.f32.xlu0 %v1295
        %v1297 = vpop.xlane.xlu0 %1296
        %v1298 = vsel %vm1279, %v1157, 0.0
        %1299 = vadd.xlane.f32.xlu0 %v1298
        %v1300 = vpop.xlane.xlu0 %1299
        %v1301 = vsel %vm1279, %v1158, 0.0
        %1302 = vadd.xlane.f32.xlu0 %v1301
        %v1303 = vpop.xlane.xlu0 %1302
        %v1304 = vsel %vm1279, %v1159, 0.0
        %1305 = vadd.xlane.f32.xlu0 %v1304
        %v1306 = vpop.xlane.xlu0 %1305
        %v1307 = vsel %vm1279, %v1160, 0.0
        %1308 = vadd.xlane.f32.xlu0 %v1307
        %v1309 = vpop.xlane.xlu0 %1308
        %v1310 = vsel %vm1279, %v1161, 0.0
        %1311 = vadd.xlane.f32.xlu0 %v1310
        %v1312 = vpop.xlane.xlu0 %1311
        %v1313 = vsel %vm1279, %v1162, 0.0
        %1314 = vadd.xlane.f32.xlu0 %v1313
        %v1315 = vpop.xlane.xlu0 %1314
        %v1316 = vsel %vm1279, %v1163, 0.0
        %1317 = vadd.xlane.f32.xlu0 %v1316
        %v1318 = vpop.xlane.xlu0 %1317
        %v1319 = vsel %vm1279, %v1164, 0.0
        %1320 = vadd.xlane.f32.xlu0 %v1319
        %v1321 = vpop.xlane.xlu0 %1320
        %v1322 = vsel %vm1279, %v1165, 0.0
        %1323 = vadd.xlane.f32.xlu0 %v1322
        %v1324 = vpop.xlane.xlu0 %1323
        %v1325 = vsel %vm1279, %v1166, 0.0
        %1326 = vadd.xlane.f32.xlu0 %v1325
        %v1327 = vpop.xlane.xlu0 %1326
        %v1328 = vsel %vm1279, %v1167, 0.0
        %1329 = vadd.xlane.f32.xlu0 %v1328
        %v1330 = vpop.xlane.xlu0 %1329
        %v1331 = vsel %vm1279, %v1168, 0.0
        %1332 = vadd.xlane.f32.xlu0 %v1331
        %v1333 = vpop.xlane.xlu0 %1332
        %v1334 = vsel %vm1279, %v1169, 0.0
        %1335 = vadd.xlane.f32.xlu0 %v1334
        %v1336 = vpop.xlane.xlu0 %1335
        %v1337 = vsel %vm1279, %v1170, 0.0
        %1338 = vadd.xlane.f32.xlu0 %v1337
        %v1339 = vpop.xlane.xlu0 %1338
        %v1340 = vsel %vm1279, %v1171, 0.0
        %1341 = vadd.xlane.f32.xlu0 %v1340
        %v1342 = vpop.xlane.xlu0 %1341
        %v1343 = vsel %vm1279, %v1172, 0.0
        %1344 = vadd.xlane.f32.xlu0 %v1343
        %v1345 = vpop.xlane.xlu0 %1344
        %v1346 = vsel %vm1279, %v1173, 0.0
        %1347 = vadd.xlane.f32.xlu0 %v1346
        %v1348 = vpop.xlane.xlu0 %1347
        %v1349 = vsel %vm1279, %v1174, 0.0
        %1350 = vadd.xlane.f32.xlu0 %v1349
        %v1351 = vpop.xlane.xlu0 %1350
        %v1352 = vsel %vm1279, %v1175, 0.0
        %1353 = vadd.xlane.f32.xlu0 %v1352
        %v1354 = vpop.xlane.xlu0 %1353
        %v1355 = vsel %vm1279, %v1176, 0.0
        %1356 = vadd.xlane.f32.xlu0 %v1355
        %v1357 = vpop.xlane.xlu0 %1356
        %v1358 = vsel %vm1279, %v1177, 0.0
        %1359 = vadd.xlane.f32.xlu0 %v1358
        %v1360 = vpop.xlane.xlu0 %1359
        %v1361 = vsel %vm1279, %v1178, 0.0
        %1362 = vadd.xlane.f32.xlu0 %v1361
        %v1363 = vpop.xlane.xlu0 %1362
        %v1364 = vsel %vm1279, %v1179, 0.0
        %1365 = vadd.xlane.f32.xlu0 %v1364
        %v1366 = vpop.xlane.xlu0 %1365
        %v1367 = vsel %vm1279, %v1180, 0.0
        %1368 = vadd.xlane.f32.xlu0 %v1367
        %v1369 = vpop.xlane.xlu0 %1368
        %v1370 = vsel %vm1279, %v1181, 0.0
        %1371 = vadd.xlane.f32.xlu0 %v1370
        %v1372 = vpop.xlane.xlu0 %1371
        %v1373 = vsel %vm1279, %v1182, 0.0
        %1374 = vadd.xlane.f32.xlu0 %v1373
        %v1375 = vpop.xlane.xlu0 %1374
        %v1376 = vsel %vm1279, %v1183, 0.0
        %1377 = vadd.xlane.f32.xlu0 %v1376
        %v1378 = vpop.xlane.xlu0 %1377
        %v1379 = vsel %vm1279, %v1184, 0.0
        %1380 = vadd.xlane.f32.xlu0 %v1379
        %v1381 = vpop.xlane.xlu0 %1380
        %v1382 = vsel %vm1279, %v1185, 0.0
        %1383 = vadd.xlane.f32.xlu0 %v1382
        %v1384 = vpop.xlane.xlu0 %1383
        %v1385 = vsel %vm1279, %v1186, 0.0
        %1386 = vadd.xlane.f32.xlu0 %v1385
        %v1387 = vpop.xlane.xlu0 %1386
        %v1388 = vsel %vm1279, %v1187, 0.0
        %1389 = vadd.xlane.f32.xlu0 %v1388
        %v1390 = vpop.xlane.xlu0 %1389
        %v1391 = vsel %vm1279, %v1188, 0.0
        %1392 = vadd.xlane.f32.xlu0 %v1391
        %v1393 = vpop.xlane.xlu0 %1392
        %v1394 = vsel %vm1279, %v1189, 0.0
        %1395 = vadd.xlane.f32.xlu0 %v1394
        %v1396 = vpop.xlane.xlu0 %1395
        %v1397 = vsel %vm1279, %v1190, 0.0
        %1398 = vadd.xlane.f32.xlu0 %v1397
        %v1399 = vpop.xlane.xlu0 %1398
        %v1400 = vsel %vm1279, %v1191, 0.0
        %1401 = vadd.xlane.f32.xlu0 %v1400
        %v1402 = vpop.xlane.xlu0 %1401
        %v1403 = vsel %vm1279, %v1192, 0.0
        %1404 = vadd.xlane.f32.xlu0 %v1403
        %v1405 = vpop.xlane.xlu0 %1404
        %v1406 = vsel %vm1279, %v1193, 0.0
        %1407 = vadd.xlane.f32.xlu0 %v1406
        %v1408 = vpop.xlane.xlu0 %1407
        %v1409 = vsel %vm1279, %v1194, 0.0
        %1410 = vadd.xlane.f32.xlu0 %v1409
        %v1411 = vpop.xlane.xlu0 %1410
        %v1412 = vsel %vm1279, %v1195, 0.0
        %1413 = vadd.xlane.f32.xlu0 %v1412
        %v1414 = vpop.xlane.xlu0 %1413
        %v1415 = vsel %vm1279, %v1196, 0.0
        %1416 = vadd.xlane.f32.xlu0 %v1415
        %v1417 = vpop.xlane.xlu0 %1416
        %v1418 = vsel %vm1279, %v1197, 0.0
        %1419 = vadd.xlane.f32.xlu0 %v1418
        %v1420 = vpop.xlane.xlu0 %1419
        %v1421 = vsel %vm1279, %v1198, 0.0
        %1422 = vadd.xlane.f32.xlu0 %v1421
        %v1423 = vpop.xlane.xlu0 %1422
        %v1424 = vsel %vm1279, %v1199, 0.0
        %1425 = vadd.xlane.f32.xlu0 %v1424
        %v1426 = vpop.xlane.xlu0 %1425
        %v1427 = vsel %vm1279, %v1200, 0.0
        %1428 = vadd.xlane.f32.xlu0 %v1427
        %v1429 = vpop.xlane.xlu0 %1428
        %v1430 = vsel %vm1279, %v1201, 0.0
        %1431 = vadd.xlane.f32.xlu0 %v1430
        %v1432 = vpop.xlane.xlu0 %1431
        %v1433 = vsel %vm1279, %v1202, 0.0
        %1434 = vadd.xlane.f32.xlu0 %v1433
        %v1435 = vpop.xlane.xlu0 %1434
        %v1436 = vsel %vm1279, %v1203, 0.0
        %1437 = vadd.xlane.f32.xlu0 %v1436
        %v1438 = vpop.xlane.xlu0 %1437
        %v1439 = vsel %vm1279, %v1204, 0.0
        %1440 = vadd.xlane.f32.xlu0 %v1439
        %v1441 = vpop.xlane.xlu0 %1440
        %v1442 = vsel %vm1279, %v1205, 0.0
        %1443 = vadd.xlane.f32.xlu0 %v1442
        %v1444 = vpop.xlane.xlu0 %1443
        %v1445 = vsel %vm1279, %v1206, 0.0
        %1446 = vadd.xlane.f32.xlu0 %v1445
        %v1447 = vpop.xlane.xlu0 %1446
        %v1448 = vsel %vm1279, %v1207, 0.0
        %1449 = vadd.xlane.f32.xlu0 %v1448
        %v1450 = vpop.xlane.xlu0 %1449
        %v1451 = vsel %vm1279, %v1208, 0.0
        %1452 = vadd.xlane.f32.xlu0 %v1451
        %v1453 = vpop.xlane.xlu0 %1452
        %v1454 = vsel %vm1279, %v1209, 0.0
        %1455 = vadd.xlane.f32.xlu0 %v1454
        %v1456 = vpop.xlane.xlu0 %1455
        %v1457 = vsel %vm1279, %v1210, 0.0
        %1458 = vadd.xlane.f32.xlu0 %v1457
        %v1459 = vpop.xlane.xlu0 %1458
        %v1460 = vsel %vm1279, %v1211, 0.0
        %1461 = vadd.xlane.f32.xlu0 %v1460
        %v1462 = vpop.xlane.xlu0 %1461
        %v1463 = vsel %vm1279, %v1212, 0.0
        %1464 = vadd.xlane.f32.xlu0 %v1463
        %v1465 = vpop.xlane.xlu0 %1464
        %v1466 = vsel %vm1279, %v1213, 0.0
        %1467 = vadd.xlane.f32.xlu0 %v1466
        %v1468 = vpop.xlane.xlu0 %1467
        %v1469 = vsel %vm1279, %v1214, 0.0
        %1470 = vadd.xlane.f32.xlu0 %v1469
        %v1471 = vpop.xlane.xlu0 %1470
        %v1472 = vsel %vm1279, %v1215, 0.0
        %1473 = vadd.xlane.f32.xlu0 %v1472
        %v1474 = vpop.xlane.xlu0 %1473
        %v1475 = vsel %vm1279, %v1216, 0.0
        %1476 = vadd.xlane.f32.xlu0 %v1475
        %v1477 = vpop.xlane.xlu0 %1476
        %v1478 = vsel %vm1279, %v1217, 0.0
        %1479 = vadd.xlane.f32.xlu0 %v1478
        %v1480 = vpop.xlane.xlu0 %1479
        %v1481 = vsel %vm1279, %v1218, 0.0
        %1482 = vadd.xlane.f32.xlu0 %v1481
        %v1483 = vpop.xlane.xlu0 %1482
        %v1484 = vsel %vm1279, %v1219, 0.0
        %1485 = vadd.xlane.f32.xlu0 %v1484
        %v1486 = vpop.xlane.xlu0 %1485
        %v1487 = vsel %vm1279, %v1220, 0.0
        %1488 = vadd.xlane.f32.xlu0 %v1487
        %v1489 = vpop.xlane.xlu0 %1488
        %v1490 = vsel %vm1279, %v1221, 0.0
        %1491 = vadd.xlane.f32.xlu0 %v1490
        %v1492 = vpop.xlane.xlu0 %1491
        %v1493 = vsel %vm1279, %v1222, 0.0
        %1494 = vadd.xlane.f32.xlu0 %v1493
        %v1495 = vpop.xlane.xlu0 %1494
        %v1496 = vsel %vm1279, %v1223, 0.0
        %1497 = vadd.xlane.f32.xlu0 %v1496
        %v1498 = vpop.xlane.xlu0 %1497
        %v1499 = vsel %vm1279, %v1224, 0.0
        %1500 = vadd.xlane.f32.xlu0 %v1499
        %v1501 = vpop.xlane.xlu0 %1500
        %v1502 = vsel %vm1279, %v1225, 0.0
        %1503 = vadd.xlane.f32.xlu0 %v1502
        %v1504 = vpop.xlane.xlu0 %1503
        %v1505 = vsel %vm1279, %v1226, 0.0
        %1506 = vadd.xlane.f32.xlu0 %v1505
        %v1507 = vpop.xlane.xlu0 %1506
        %v1508 = vsel %vm1279, %v1227, 0.0
        %1509 = vadd.xlane.f32.xlu0 %v1508
        %v1510 = vpop.xlane.xlu0 %1509
        %v1511 = vsel %vm1279, %v1228, 0.0
        %1512 = vadd.xlane.f32.xlu0 %v1511
        %v1513 = vpop.xlane.xlu0 %1512
        %v1514 = vsel %vm1279, %v1229, 0.0
        %1515 = vadd.xlane.f32.xlu0 %v1514
        %v1516 = vpop.xlane.xlu0 %1515
        %v1517 = vsel %vm1279, %v1230, 0.0
        %1518 = vadd.xlane.f32.xlu0 %v1517
        %v1519 = vpop.xlane.xlu0 %1518
        %v1520 = vsel %vm1279, %v1231, 0.0
        %1521 = vadd.xlane.f32.xlu0 %v1520
        %v1522 = vpop.xlane.xlu0 %1521
        %v1523 = vsel %vm1279, %v1232, 0.0
        %1524 = vadd.xlane.f32.xlu0 %v1523
        %v1525 = vpop.xlane.xlu0 %1524
        %v1526 = vsel %vm1279, %v1233, 0.0
        %1527 = vadd.xlane.f32.xlu0 %v1526
        %v1528 = vpop.xlane.xlu0 %1527
        %v1529 = vsel %vm1279, %v1234, 0.0
        %1530 = vadd.xlane.f32.xlu0 %v1529
        %v1531 = vpop.xlane.xlu0 %1530
        %v1532 = vsel %vm1279, %v1235, 0.0
        %1533 = vadd.xlane.f32.xlu0 %v1532
        %v1534 = vpop.xlane.xlu0 %1533
        %v1535 = vsel %vm1279, %v1236, 0.0
        %1536 = vadd.xlane.f32.xlu0 %v1535
        %v1537 = vpop.xlane.xlu0 %1536
        %v1538 = vsel %vm1279, %v1237, 0.0
        %1539 = vadd.xlane.f32.xlu0 %v1538
        %v1540 = vpop.xlane.xlu0 %1539
        %v1541 = vsel %vm1279, %v1238, 0.0
        %1542 = vadd.xlane.f32.xlu0 %v1541
        %v1543 = vpop.xlane.xlu0 %1542
        %v1544 = vsel %vm1279, %v1239, 0.0
        %1545 = vadd.xlane.f32.xlu0 %v1544
        %v1546 = vpop.xlane.xlu0 %1545
        %v1547 = vsel %vm1279, %v1240, 0.0
        %1548 = vadd.xlane.f32.xlu0 %v1547
        %v1549 = vpop.xlane.xlu0 %1548
        %v1550 = vsel %vm1279, %v1241, 0.0
        %1551 = vadd.xlane.f32.xlu0 %v1550
        %v1552 = vpop.xlane.xlu0 %1551
        %v1553 = vsel %vm1279, %v1242, 0.0
        %1554 = vadd.xlane.f32.xlu0 %v1553
        %v1555 = vpop.xlane.xlu0 %1554
        %v1556 = vsel %vm1279, %v1243, 0.0
        %1557 = vadd.xlane.f32.xlu0 %v1556
        %v1558 = vpop.xlane.xlu0 %1557
        %v1559 = vsel %vm1279, %v1244, 0.0
        %1560 = vadd.xlane.f32.xlu0 %v1559
        %v1561 = vpop.xlane.xlu0 %1560
        %v1562 = vsel %vm1279, %v1245, 0.0
        %1563 = vadd.xlane.f32.xlu0 %v1562
        %v1564 = vpop.xlane.xlu0 %1563
        %v1565 = vsel %vm1279, %v1246, 0.0
        %1566 = vadd.xlane.f32.xlu0 %v1565
        %v1567 = vpop.xlane.xlu0 %1566
        %v1568 = vsel %vm1279, %v1247, 0.0
        %1569 = vadd.xlane.f32.xlu0 %v1568
        %v1570 = vpop.xlane.xlu0 %1569
        %v1571 = vsel %vm1279, %v1248, 0.0
        %1572 = vadd.xlane.f32.xlu0 %v1571
        %v1573 = vpop.xlane.xlu0 %1572
        %v1574 = vsel %vm1279, %v1249, 0.0
        %1575 = vadd.xlane.f32.xlu0 %v1574
        %v1576 = vpop.xlane.xlu0 %1575
        %v1577 = vsel %vm1279, %v1250, 0.0
        %1578 = vadd.xlane.f32.xlu0 %v1577
        %v1579 = vpop.xlane.xlu0 %1578
        %v1580 = vsel %vm1279, %v1251, 0.0
        %1581 = vadd.xlane.f32.xlu0 %v1580
        %v1582 = vpop.xlane.xlu0 %1581
        %v1583 = vsel %vm1279, %v1252, 0.0
        %1584 = vadd.xlane.f32.xlu0 %v1583
        %v1585 = vpop.xlane.xlu0 %1584
        %v1586 = vsel %vm1279, %v1253, 0.0
        %1587 = vadd.xlane.f32.xlu0 %v1586
        %v1588 = vpop.xlane.xlu0 %1587
        %v1589 = vsel %vm1279, %v1254, 0.0
        %1590 = vadd.xlane.f32.xlu0 %v1589
        %v1591 = vpop.xlane.xlu0 %1590
        %v1592 = vsel %vm1279, %v1255, 0.0
        %1593 = vadd.xlane.f32.xlu0 %v1592
        %v1594 = vpop.xlane.xlu0 %1593
        %v1595 = vsel %vm1279, %v1256, 0.0
        %1596 = vadd.xlane.f32.xlu0 %v1595
        %v1597 = vpop.xlane.xlu0 %1596
        %v1598 = vsel %vm1279, %v1257, 0.0
        %1599 = vadd.xlane.f32.xlu0 %v1598
        %v1600 = vpop.xlane.xlu0 %1599
        %v1601 = vsel %vm1279, %v1258, 0.0
        %1602 = vadd.xlane.f32.xlu0 %v1601
        %v1603 = vpop.xlane.xlu0 %1602
        %v1604 = vsel %vm1279, %v1259, 0.0
        %1605 = vadd.xlane.f32.xlu0 %v1604
        %v1606 = vpop.xlane.xlu0 %1605
        %v1607 = vsel %vm1279, %v1260, 0.0
        %1608 = vadd.xlane.f32.xlu0 %v1607
        %v1609 = vpop.xlane.xlu0 %1608
        %v1610 = vsel %vm1279, %v1261, 0.0
        %1611 = vadd.xlane.f32.xlu0 %v1610
        %v1612 = vpop.xlane.xlu0 %1611
        %v1613 = vsel %vm1279, %v1262, 0.0
        %1614 = vadd.xlane.f32.xlu0 %v1613
        %v1615 = vpop.xlane.xlu0 %1614
        %v1616 = vsel %vm1279, %v1263, 0.0
        %1617 = vadd.xlane.f32.xlu0 %v1616
        %v1618 = vpop.xlane.xlu0 %1617
        %v1619 = vsel %vm1279, %v1264, 0.0
        %1620 = vadd.xlane.f32.xlu0 %v1619
        %v1621 = vpop.xlane.xlu0 %1620
        %v1622 = vsel %vm1279, %v1265, 0.0
        %1623 = vadd.xlane.f32.xlu0 %v1622
        %v1624 = vpop.xlane.xlu0 %1623
        %v1625 = vsel %vm1279, %v1266, 0.0
        %1626 = vadd.xlane.f32.xlu0 %v1625
        %v1627 = vpop.xlane.xlu0 %1626
        %v1628 = vsel %vm1279, %v1267, 0.0
        %1629 = vadd.xlane.f32.xlu0 %v1628
        %v1630 = vpop.xlane.xlu0 %1629
        %v1631 = vsel %vm1279, %v1268, 0.0
        %1632 = vadd.xlane.f32.xlu0 %v1631
        %v1633 = vpop.xlane.xlu0 %1632
        %v1634 = vsel %vm1279, %v1269, 0.0
        %1635 = vadd.xlane.f32.xlu0 %v1634
        %v1636 = vpop.xlane.xlu0 %1635
        %v1637 = vsel %vm1279, %v1270, 0.0
        %1638 = vadd.xlane.f32.xlu0 %v1637
        %v1639 = vpop.xlane.xlu0 %1638
        %v1640 = vsel %vm1279, %v1271, 0.0
        %1641 = vadd.xlane.f32.xlu0 %v1640
        %v1642 = vpop.xlane.xlu0 %1641
        %v1643 = vsel %vm1279, %v1272, 0.0
        %1644 = vadd.xlane.f32.xlu0 %v1643
        %v1645 = vpop.xlane.xlu0 %1644
        %v1646 = vsel %vm1279, %v1273, 0.0
        %1647 = vadd.xlane.f32.xlu0 %v1646
        %v1648 = vpop.xlane.xlu0 %1647
        %v1649 = vsel %vm1279, %v1274, 0.0
        %1650 = vadd.xlane.f32.xlu0 %v1649
        %v1651 = vpop.xlane.xlu0 %1650
        %v1652 = vsel %vm1279, %v1275, 0.0
        %1653 = vadd.xlane.f32.xlu0 %v1652
        %v1654 = vpop.xlane.xlu0 %1653
        %v1655 = vsel %vm1279, %v1276, 0.0
        %1656 = vadd.xlane.f32.xlu0 %v1655
        %v1657 = vpop.xlane.xlu0 %1656
        %v1658 = vsel %vm1279, %v1277, 0.0
        %1659 = vadd.xlane.f32.xlu0 %v1658
        %v1660 = vpop.xlane.xlu0 %1659
        %v1661 = vsel %vm1279, %v1278, 0.0
        %1662 = vadd.xlane.f32.xlu0 %v1661
        %v1663 = vpop.xlane.xlu0 %1662
        %p1664 = scmp.eq.s32.totalorder %s22, 0
        // Predicated region
        $region71: #{tpu_custom_call.1} parent=65 // pred_check
          %p1665 = pneg %p1664
        $region72: #{tpu_custom_call.1} parent=65 // pred_check_branch
          %1667 = sbr.rel (%p1665) target = $region74
        $region73: #{tpu_custom_call.1} parent=65 // pred_region
          %1668 = vst [vmem:[%s754] sm:$0xff] 0.0
        $region74: #{tpu_custom_call.1} parent=65 // pred_fallthru
          _
        %v1669 = vld [vmem:[%s754] sm:$0xff]
        %v1799 = vunpack.c.l.s4 269488144
        %v1800 = vunpack.c.0.s8 %v1799
        %v1801 = vlaneseq
        %v1802 = vshrl.u32 %v1801, 7
        %v1803 = vsub.s32 %v1800, %v1802
        %v1804 = vrot.slane %v1282, %v1803
        %v1806 = vunpack.c.l.s4 842150450
        %v1807 = vunpack.c.0.s8 %v1806
        %v1808 = vlaneseq
        %v1809 = vshrl.u32 %v1808, 7
        %v1810 = vsub.s32 %v1807, %v1809
        %v1811 = vrot.slane %v1282, %v1810
        %v1813 = vunpack.c.l.s4 1414812756
        %v1814 = vunpack.c.0.s8 %v1813
        %v1815 = vlaneseq
        %v1816 = vshrl.u32 %v1815, 7
        %v1817 = vsub.s32 %v1814, %v1816
        %v1818 = vrot.slane %v1282, %v1817
        %v1820 = vunpack.c.l.s4 1987475062
        %v1821 = vunpack.c.0.s8 %v1820
        %v1822 = vlaneseq
        %v1823 = vshrl.u32 %v1822, 7
        %v1824 = vsub.s32 %v1821, %v1823
        %v1825 = vrot.slane %v1282, %v1824
        %v1827 = vunpack.c.l.s4 269488144
        %v1828 = vunpack.c.0.s8 %v1827
        %v1829 = vlaneseq
        %v1830 = vshrl.u32 %v1829, 7
        %v1831 = vsub.s32 %v1828, %v1830
        %v1832 = vrot.slane %v1285, %v1831
        %v1834 = vunpack.c.l.s4 842150450
        %v1835 = vunpack.c.0.s8 %v1834
        %v1836 = vlaneseq
        %v1837 = vshrl.u32 %v1836, 7
        %v1838 = vsub.s32 %v1835, %v1837
        %v1839 = vrot.slane %v1285, %v1838
        %v1841 = vunpack.c.l.s4 1414812756
        %v1842 = vunpack.c.0.s8 %v1841
        %v1843 = vlaneseq
        %v1844 = vshrl.u32 %v1843, 7
        %v1845 = vsub.s32 %v1842, %v1844
        %v1846 = vrot.slane %v1285, %v1845
        %v1848 = vunpack.c.l.s4 1987475062
        %v1849 = vunpack.c.0.s8 %v1848
        %v1850 = vlaneseq
        %v1851 = vshrl.u32 %v1850, 7
        %v1852 = vsub.s32 %v1849, %v1851
        %v1853 = vrot.slane %v1285, %v1852
        %v1855 = vunpack.c.l.s4 269488144
        %v1856 = vunpack.c.0.s8 %v1855
        %v1857 = vlaneseq
        %v1858 = vshrl.u32 %v1857, 7
        %v1859 = vsub.s32 %v1856, %v1858
        %v1860 = vrot.slane %v1288, %v1859
        %v1862 = vunpack.c.l.s4 842150450
        %v1863 = vunpack.c.0.s8 %v1862
        %v1864 = vlaneseq
        %v1865 = vshrl.u32 %v1864, 7
        %v1866 = vsub.s32 %v1863, %v1865
        %v1867 = vrot.slane %v1288, %v1866
        %v1869 = vunpack.c.l.s4 1414812756
        %v1870 = vunpack.c.0.s8 %v1869
        %v1871 = vlaneseq
        %v1872 = vshrl.u32 %v1871, 7
        %v1873 = vsub.s32 %v1870, %v1872
        %v1874 = vrot.slane %v1288, %v1873
        %v1876 = vunpack.c.l.s4 1987475062
        %v1877 = vunpack.c.0.s8 %v1876
        %v1878 = vlaneseq
        %v1879 = vshrl.u32 %v1878, 7
        %v1880 = vsub.s32 %v1877, %v1879
        %v1881 = vrot.slane %v1288, %v1880
        %v1883 = vunpack.c.l.s4 269488144
        %v1884 = vunpack.c.0.s8 %v1883
        %v1885 = vlaneseq
        %v1886 = vshrl.u32 %v1885, 7
        %v1887 = vsub.s32 %v1884, %v1886
        %v1888 = vrot.slane %v1291, %v1887
        %v1890 = vunpack.c.l.s4 842150450
        %v1891 = vunpack.c.0.s8 %v1890
        %v1892 = vlaneseq
        %v1893 = vshrl.u32 %v1892, 7
        %v1894 = vsub.s32 %v1891, %v1893
        %v1895 = vrot.slane %v1291, %v1894
        %v1897 = vunpack.c.l.s4 1414812756
        %v1898 = vunpack.c.0.s8 %v1897
        %v1899 = vlaneseq
        %v1900 = vshrl.u32 %v1899, 7
        %v1901 = vsub.s32 %v1898, %v1900
        %v1902 = vrot.slane %v1291, %v1901
        %v1904 = vunpack.c.l.s4 1987475062
        %v1905 = vunpack.c.0.s8 %v1904
        %v1906 = vlaneseq
        %v1907 = vshrl.u32 %v1906, 7
        %v1908 = vsub.s32 %v1905, %v1907
        %v1909 = vrot.slane %v1291, %v1908
        %v1911 = vunpack.c.l.s4 269488144
        %v1912 = vunpack.c.0.s8 %v1911
        %v1913 = vlaneseq
        %v1914 = vshrl.u32 %v1913, 7
        %v1915 = vsub.s32 %v1912, %v1914
        %v1916 = vrot.slane %v1294, %v1915
        %v1918 = vunpack.c.l.s4 842150450
        %v1919 = vunpack.c.0.s8 %v1918
        %v1920 = vlaneseq
        %v1921 = vshrl.u32 %v1920, 7
        %v1922 = vsub.s32 %v1919, %v1921
        %v1923 = vrot.slane %v1294, %v1922
        %v1925 = vunpack.c.l.s4 1414812756
        %v1926 = vunpack.c.0.s8 %v1925
        %v1927 = vlaneseq
        %v1928 = vshrl.u32 %v1927, 7
        %v1929 = vsub.s32 %v1926, %v1928
        %v1930 = vrot.slane %v1294, %v1929
        %v1932 = vunpack.c.l.s4 1987475062
        %v1933 = vunpack.c.0.s8 %v1932
        %v1934 = vlaneseq
        %v1935 = vshrl.u32 %v1934, 7
        %v1936 = vsub.s32 %v1933, %v1935
        %v1937 = vrot.slane %v1294, %v1936
        %v1939 = vunpack.c.l.s4 269488144
        %v1940 = vunpack.c.0.s8 %v1939
        %v1941 = vlaneseq
        %v1942 = vshrl.u32 %v1941, 7
        %v1943 = vsub.s32 %v1940, %v1942
        %v1944 = vrot.slane %v1297, %v1943
        %v1946 = vunpack.c.l.s4 842150450
        %v1947 = vunpack.c.0.s8 %v1946
        %v1948 = vlaneseq
        %v1949 = vshrl.u32 %v1948, 7
        %v1950 = vsub.s32 %v1947, %v1949
        %v1951 = vrot.slane %v1297, %v1950
        %v1953 = vunpack.c.l.s4 1414812756
        %v1954 = vunpack.c.0.s8 %v1953
        %v1955 = vlaneseq
        %v1956 = vshrl.u32 %v1955, 7
        %v1957 = vsub.s32 %v1954, %v1956
        %v1958 = vrot.slane %v1297, %v1957
        %v1960 = vunpack.c.l.s4 1987475062
        %v1961 = vunpack.c.0.s8 %v1960
        %v1962 = vlaneseq
        %v1963 = vshrl.u32 %v1962, 7
        %v1964 = vsub.s32 %v1961, %v1963
        %v1965 = vrot.slane %v1297, %v1964
        %v1967 = vunpack.c.l.s4 269488144
        %v1968 = vunpack.c.0.s8 %v1967
        %v1969 = vlaneseq
        %v1970 = vshrl.u32 %v1969, 7
        %v1971 = vsub.s32 %v1968, %v1970
        %v1972 = vrot.slane %v1300, %v1971
        %v1974 = vunpack.c.l.s4 842150450
        %v1975 = vunpack.c.0.s8 %v1974
        %v1976 = vlaneseq
        %v1977 = vshrl.u32 %v1976, 7
        %v1978 = vsub.s32 %v1975, %v1977
        %v1979 = vrot.slane %v1300, %v1978
        %v1981 = vunpack.c.l.s4 1414812756
        %v1982 = vunpack.c.0.s8 %v1981
        %v1983 = vlaneseq
        %v1984 = vshrl.u32 %v1983, 7
        %v1985 = vsub.s32 %v1982, %v1984
        %v1986 = vrot.slane %v1300, %v1985
        %v1988 = vunpack.c.l.s4 1987475062
        %v1989 = vunpack.c.0.s8 %v1988
        %v1990 = vlaneseq
        %v1991 = vshrl.u32 %v1990, 7
        %v1992 = vsub.s32 %v1989, %v1991
        %v1993 = vrot.slane %v1300, %v1992
        %v1995 = vunpack.c.l.s4 269488144
        %v1996 = vunpack.c.0.s8 %v1995
        %v1997 = vlaneseq
        %v1998 = vshrl.u32 %v1997, 7
        %v1999 = vsub.s32 %v1996, %v1998
        %v2000 = vrot.slane %v1303, %v1999
        %v2002 = vunpack.c.l.s4 842150450
        %v2003 = vunpack.c.0.s8 %v2002
        %v2004 = vlaneseq
        %v2005 = vshrl.u32 %v2004, 7
        %v2006 = vsub.s32 %v2003, %v2005
        %v2007 = vrot.slane %v1303, %v2006
        %v2009 = vunpack.c.l.s4 1414812756
        %v2010 = vunpack.c.0.s8 %v2009
        %v2011 = vlaneseq
        %v2012 = vshrl.u32 %v2011, 7
        %v2013 = vsub.s32 %v2010, %v2012
        %v2014 = vrot.slane %v1303, %v2013
        %v2016 = vunpack.c.l.s4 1987475062
        %v2017 = vunpack.c.0.s8 %v2016
        %v2018 = vlaneseq
        %v2019 = vshrl.u32 %v2018, 7
        %v2020 = vsub.s32 %v2017, %v2019
        %v2021 = vrot.slane %v1303, %v2020
        %v2023 = vunpack.c.l.s4 269488144
        %v2024 = vunpack.c.0.s8 %v2023
        %v2025 = vlaneseq
        %v2026 = vshrl.u32 %v2025, 7
        %v2027 = vsub.s32 %v2024, %v2026
        %v2028 = vrot.slane %v1306, %v2027
        %v2030 = vunpack.c.l.s4 842150450
        %v2031 = vunpack.c.0.s8 %v2030
        %v2032 = vlaneseq
        %v2033 = vshrl.u32 %v2032, 7
        %v2034 = vsub.s32 %v2031, %v2033
        %v2035 = vrot.slane %v1306, %v2034
        %v2037 = vunpack.c.l.s4 1414812756
        %v2038 = vunpack.c.0.s8 %v2037
        %v2039 = vlaneseq
        %v2040 = vshrl.u32 %v2039, 7
        %v2041 = vsub.s32 %v2038, %v2040
        %v2042 = vrot.slane %v1306, %v2041
        %v2044 = vunpack.c.l.s4 1987475062
        %v2045 = vunpack.c.0.s8 %v2044
        %v2046 = vlaneseq
        %v2047 = vshrl.u32 %v2046, 7
        %v2048 = vsub.s32 %v2045, %v2047
        %v2049 = vrot.slane %v1306, %v2048
        %v2051 = vunpack.c.l.s4 269488144
        %v2052 = vunpack.c.0.s8 %v2051
        %v2053 = vlaneseq
        %v2054 = vshrl.u32 %v2053, 7
        %v2055 = vsub.s32 %v2052, %v2054
        %v2056 = vrot.slane %v1309, %v2055
        %v2058 = vunpack.c.l.s4 842150450
        %v2059 = vunpack.c.0.s8 %v2058
        %v2060 = vlaneseq
        %v2061 = vshrl.u32 %v2060, 7
        %v2062 = vsub.s32 %v2059, %v2061
        %v2063 = vrot.slane %v1309, %v2062
        %v2065 = vunpack.c.l.s4 1414812756
        %v2066 = vunpack.c.0.s8 %v2065
        %v2067 = vlaneseq
        %v2068 = vshrl.u32 %v2067, 7
        %v2069 = vsub.s32 %v2066, %v2068
        %v2070 = vrot.slane %v1309, %v2069
        %v2072 = vunpack.c.l.s4 1987475062
        %v2073 = vunpack.c.0.s8 %v2072
        %v2074 = vlaneseq
        %v2075 = vshrl.u32 %v2074, 7
        %v2076 = vsub.s32 %v2073, %v2075
        %v2077 = vrot.slane %v1309, %v2076
        %v2079 = vunpack.c.l.s4 269488144
        %v2080 = vunpack.c.0.s8 %v2079
        %v2081 = vlaneseq
        %v2082 = vshrl.u32 %v2081, 7
        %v2083 = vsub.s32 %v2080, %v2082
        %v2084 = vrot.slane %v1312, %v2083
        %v2086 = vunpack.c.l.s4 842150450
        %v2087 = vunpack.c.0.s8 %v2086
        %v2088 = vlaneseq
        %v2089 = vshrl.u32 %v2088, 7
        %v2090 = vsub.s32 %v2087, %v2089
        %v2091 = vrot.slane %v1312, %v2090
        %v2093 = vunpack.c.l.s4 1414812756
        %v2094 = vunpack.c.0.s8 %v2093
        %v2095 = vlaneseq
        %v2096 = vshrl.u32 %v2095, 7
        %v2097 = vsub.s32 %v2094, %v2096
        %v2098 = vrot.slane %v1312, %v2097
        %v2100 = vunpack.c.l.s4 1987475062
        %v2101 = vunpack.c.0.s8 %v2100
        %v2102 = vlaneseq
        %v2103 = vshrl.u32 %v2102, 7
        %v2104 = vsub.s32 %v2101, %v2103
        %v2105 = vrot.slane %v1312, %v2104
        %v2107 = vunpack.c.l.s4 269488144
        %v2108 = vunpack.c.0.s8 %v2107
        %v2109 = vlaneseq
        %v2110 = vshrl.u32 %v2109, 7
        %v2111 = vsub.s32 %v2108, %v2110
        %v2112 = vrot.slane %v1315, %v2111
        %v2114 = vunpack.c.l.s4 842150450
        %v2115 = vunpack.c.0.s8 %v2114
        %v2116 = vlaneseq
        %v2117 = vshrl.u32 %v2116, 7
        %v2118 = vsub.s32 %v2115, %v2117
        %v2119 = vrot.slane %v1315, %v2118
        %v2121 = vunpack.c.l.s4 1414812756
        %v2122 = vunpack.c.0.s8 %v2121
        %v2123 = vlaneseq
        %v2124 = vshrl.u32 %v2123, 7
        %v2125 = vsub.s32 %v2122, %v2124
        %v2126 = vrot.slane %v1315, %v2125
        %v2128 = vunpack.c.l.s4 1987475062
        %v2129 = vunpack.c.0.s8 %v2128
        %v2130 = vlaneseq
        %v2131 = vshrl.u32 %v2130, 7
        %v2132 = vsub.s32 %v2129, %v2131
        %v2133 = vrot.slane %v1315, %v2132
        %v2135 = vunpack.c.l.s4 269488144
        %v2136 = vunpack.c.0.s8 %v2135
        %v2137 = vlaneseq
        %v2138 = vshrl.u32 %v2137, 7
        %v2139 = vsub.s32 %v2136, %v2138
        %v2140 = vrot.slane %v1318, %v2139
        %v2142 = vunpack.c.l.s4 842150450
        %v2143 = vunpack.c.0.s8 %v2142
        %v2144 = vlaneseq
        %v2145 = vshrl.u32 %v2144, 7
        %v2146 = vsub.s32 %v2143, %v2145
        %v2147 = vrot.slane %v1318, %v2146
        %v2149 = vunpack.c.l.s4 1414812756
        %v2150 = vunpack.c.0.s8 %v2149
        %v2151 = vlaneseq
        %v2152 = vshrl.u32 %v2151, 7
        %v2153 = vsub.s32 %v2150, %v2152
        %v2154 = vrot.slane %v1318, %v2153
        %v2156 = vunpack.c.l.s4 1987475062
        %v2157 = vunpack.c.0.s8 %v2156
        %v2158 = vlaneseq
        %v2159 = vshrl.u32 %v2158, 7
        %v2160 = vsub.s32 %v2157, %v2159
        %v2161 = vrot.slane %v1318, %v2160
        %v2163 = vunpack.c.l.s4 269488144
        %v2164 = vunpack.c.0.s8 %v2163
        %v2165 = vlaneseq
        %v2166 = vshrl.u32 %v2165, 7
        %v2167 = vsub.s32 %v2164, %v2166
        %v2168 = vrot.slane %v1321, %v2167
        %v2170 = vunpack.c.l.s4 842150450
        %v2171 = vunpack.c.0.s8 %v2170
        %v2172 = vlaneseq
        %v2173 = vshrl.u32 %v2172, 7
        %v2174 = vsub.s32 %v2171, %v2173
        %v2175 = vrot.slane %v1321, %v2174
        %v2177 = vunpack.c.l.s4 1414812756
        %v2178 = vunpack.c.0.s8 %v2177
        %v2179 = vlaneseq
        %v2180 = vshrl.u32 %v2179, 7
        %v2181 = vsub.s32 %v2178, %v2180
        %v2182 = vrot.slane %v1321, %v2181
        %v2184 = vunpack.c.l.s4 1987475062
        %v2185 = vunpack.c.0.s8 %v2184
        %v2186 = vlaneseq
        %v2187 = vshrl.u32 %v2186, 7
        %v2188 = vsub.s32 %v2185, %v2187
        %v2189 = vrot.slane %v1321, %v2188
        %v2191 = vunpack.c.l.s4 269488144
        %v2192 = vunpack.c.0.s8 %v2191
        %v2193 = vlaneseq
        %v2194 = vshrl.u32 %v2193, 7
        %v2195 = vsub.s32 %v2192, %v2194
        %v2196 = vrot.slane %v1324, %v2195
        %v2198 = vunpack.c.l.s4 842150450
        %v2199 = vunpack.c.0.s8 %v2198
        %v2200 = vlaneseq
        %v2201 = vshrl.u32 %v2200, 7
        %v2202 = vsub.s32 %v2199, %v2201
        %v2203 = vrot.slane %v1324, %v2202
        %v2205 = vunpack.c.l.s4 1414812756
        %v2206 = vunpack.c.0.s8 %v2205
        %v2207 = vlaneseq
        %v2208 = vshrl.u32 %v2207, 7
        %v2209 = vsub.s32 %v2206, %v2208
        %v2210 = vrot.slane %v1324, %v2209
        %v2212 = vunpack.c.l.s4 1987475062
        %v2213 = vunpack.c.0.s8 %v2212
        %v2214 = vlaneseq
        %v2215 = vshrl.u32 %v2214, 7
        %v2216 = vsub.s32 %v2213, %v2215
        %v2217 = vrot.slane %v1324, %v2216
        %v2219 = vunpack.c.l.s4 269488144
        %v2220 = vunpack.c.0.s8 %v2219
        %v2221 = vlaneseq
        %v2222 = vshrl.u32 %v2221, 7
        %v2223 = vsub.s32 %v2220, %v2222
        %v2224 = vrot.slane %v1327, %v2223
        %v2226 = vunpack.c.l.s4 842150450
        %v2227 = vunpack.c.0.s8 %v2226
        %v2228 = vlaneseq
        %v2229 = vshrl.u32 %v2228, 7
        %v2230 = vsub.s32 %v2227, %v2229
        %v2231 = vrot.slane %v1327, %v2230
        %v2233 = vunpack.c.l.s4 1414812756
        %v2234 = vunpack.c.0.s8 %v2233
        %v2235 = vlaneseq
        %v2236 = vshrl.u32 %v2235, 7
        %v2237 = vsub.s32 %v2234, %v2236
        %v2238 = vrot.slane %v1327, %v2237
        %v2240 = vunpack.c.l.s4 1987475062
        %v2241 = vunpack.c.0.s8 %v2240
        %v2242 = vlaneseq
        %v2243 = vshrl.u32 %v2242, 7
        %v2244 = vsub.s32 %v2241, %v2243
        %v2245 = vrot.slane %v1327, %v2244
        %v2247 = vunpack.c.l.s4 269488144
        %v2248 = vunpack.c.0.s8 %v2247
        %v2249 = vlaneseq
        %v2250 = vshrl.u32 %v2249, 7
        %v2251 = vsub.s32 %v2248, %v2250
        %v2252 = vrot.slane %v1330, %v2251
        %v2254 = vunpack.c.l.s4 842150450
        %v2255 = vunpack.c.0.s8 %v2254
        %v2256 = vlaneseq
        %v2257 = vshrl.u32 %v2256, 7
        %v2258 = vsub.s32 %v2255, %v2257
        %v2259 = vrot.slane %v1330, %v2258
        %v2261 = vunpack.c.l.s4 1414812756
        %v2262 = vunpack.c.0.s8 %v2261
        %v2263 = vlaneseq
        %v2264 = vshrl.u32 %v2263, 7
        %v2265 = vsub.s32 %v2262, %v2264
        %v2266 = vrot.slane %v1330, %v2265
        %v2268 = vunpack.c.l.s4 1987475062
        %v2269 = vunpack.c.0.s8 %v2268
        %v2270 = vlaneseq
        %v2271 = vshrl.u32 %v2270, 7
        %v2272 = vsub.s32 %v2269, %v2271
        %v2273 = vrot.slane %v1330, %v2272
        %v2275 = vunpack.c.l.s4 269488144
        %v2276 = vunpack.c.0.s8 %v2275
        %v2277 = vlaneseq
        %v2278 = vshrl.u32 %v2277, 7
        %v2279 = vsub.s32 %v2276, %v2278
        %v2280 = vrot.slane %v1333, %v2279
        %v2282 = vunpack.c.l.s4 842150450
        %v2283 = vunpack.c.0.s8 %v2282
        %v2284 = vlaneseq
        %v2285 = vshrl.u32 %v2284, 7
        %v2286 = vsub.s32 %v2283, %v2285
        %v2287 = vrot.slane %v1333, %v2286
        %v2289 = vunpack.c.l.s4 1414812756
        %v2290 = vunpack.c.0.s8 %v2289
        %v2291 = vlaneseq
        %v2292 = vshrl.u32 %v2291, 7
        %v2293 = vsub.s32 %v2290, %v2292
        %v2294 = vrot.slane %v1333, %v2293
        %v2296 = vunpack.c.l.s4 1987475062
        %v2297 = vunpack.c.0.s8 %v2296
        %v2298 = vlaneseq
        %v2299 = vshrl.u32 %v2298, 7
        %v2300 = vsub.s32 %v2297, %v2299
        %v2301 = vrot.slane %v1333, %v2300
        %v2303 = vunpack.c.l.s4 269488144
        %v2304 = vunpack.c.0.s8 %v2303
        %v2305 = vlaneseq
        %v2306 = vshrl.u32 %v2305, 7
        %v2307 = vsub.s32 %v2304, %v2306
        %v2308 = vrot.slane %v1336, %v2307
        %v2310 = vunpack.c.l.s4 842150450
        %v2311 = vunpack.c.0.s8 %v2310
        %v2312 = vlaneseq
        %v2313 = vshrl.u32 %v2312, 7
        %v2314 = vsub.s32 %v2311, %v2313
        %v2315 = vrot.slane %v1336, %v2314
        %v2317 = vunpack.c.l.s4 1414812756
        %v2318 = vunpack.c.0.s8 %v2317
        %v2319 = vlaneseq
        %v2320 = vshrl.u32 %v2319, 7
        %v2321 = vsub.s32 %v2318, %v2320
        %v2322 = vrot.slane %v1336, %v2321
        %v2324 = vunpack.c.l.s4 1987475062
        %v2325 = vunpack.c.0.s8 %v2324
        %v2326 = vlaneseq
        %v2327 = vshrl.u32 %v2326, 7
        %v2328 = vsub.s32 %v2325, %v2327
        %v2329 = vrot.slane %v1336, %v2328
        %v2331 = vunpack.c.l.s4 269488144
        %v2332 = vunpack.c.0.s8 %v2331
        %v2333 = vlaneseq
        %v2334 = vshrl.u32 %v2333, 7
        %v2335 = vsub.s32 %v2332, %v2334
        %v2336 = vrot.slane %v1339, %v2335
        %v2338 = vunpack.c.l.s4 842150450
        %v2339 = vunpack.c.0.s8 %v2338
        %v2340 = vlaneseq
        %v2341 = vshrl.u32 %v2340, 7
        %v2342 = vsub.s32 %v2339, %v2341
        %v2343 = vrot.slane %v1339, %v2342
        %v2345 = vunpack.c.l.s4 1414812756
        %v2346 = vunpack.c.0.s8 %v2345
        %v2347 = vlaneseq
        %v2348 = vshrl.u32 %v2347, 7
        %v2349 = vsub.s32 %v2346, %v2348
        %v2350 = vrot.slane %v1339, %v2349
        %v2352 = vunpack.c.l.s4 1987475062
        %v2353 = vunpack.c.0.s8 %v2352
        %v2354 = vlaneseq
        %v2355 = vshrl.u32 %v2354, 7
        %v2356 = vsub.s32 %v2353, %v2355
        %v2357 = vrot.slane %v1339, %v2356
        %v2359 = vunpack.c.l.s4 269488144
        %v2360 = vunpack.c.0.s8 %v2359
        %v2361 = vlaneseq
        %v2362 = vshrl.u32 %v2361, 7
        %v2363 = vsub.s32 %v2360, %v2362
        %v2364 = vrot.slane %v1342, %v2363
        %v2366 = vunpack.c.l.s4 842150450
        %v2367 = vunpack.c.0.s8 %v2366
        %v2368 = vlaneseq
        %v2369 = vshrl.u32 %v2368, 7
        %v2370 = vsub.s32 %v2367, %v2369
        %v2371 = vrot.slane %v1342, %v2370
        %v2373 = vunpack.c.l.s4 1414812756
        %v2374 = vunpack.c.0.s8 %v2373
        %v2375 = vlaneseq
        %v2376 = vshrl.u32 %v2375, 7
        %v2377 = vsub.s32 %v2374, %v2376
        %v2378 = vrot.slane %v1342, %v2377
        %v2380 = vunpack.c.l.s4 1987475062
        %v2381 = vunpack.c.0.s8 %v2380
        %v2382 = vlaneseq
        %v2383 = vshrl.u32 %v2382, 7
        %v2384 = vsub.s32 %v2381, %v2383
        %v2385 = vrot.slane %v1342, %v2384
        %v2387 = vunpack.c.l.s4 269488144
        %v2388 = vunpack.c.0.s8 %v2387
        %v2389 = vlaneseq
        %v2390 = vshrl.u32 %v2389, 7
        %v2391 = vsub.s32 %v2388, %v2390
        %v2392 = vrot.slane %v1345, %v2391
        %v2394 = vunpack.c.l.s4 842150450
        %v2395 = vunpack.c.0.s8 %v2394
        %v2396 = vlaneseq
        %v2397 = vshrl.u32 %v2396, 7
        %v2398 = vsub.s32 %v2395, %v2397
        %v2399 = vrot.slane %v1345, %v2398
        %v2401 = vunpack.c.l.s4 1414812756
        %v2402 = vunpack.c.0.s8 %v2401
        %v2403 = vlaneseq
        %v2404 = vshrl.u32 %v2403, 7
        %v2405 = vsub.s32 %v2402, %v2404
        %v2406 = vrot.slane %v1345, %v2405
        %v2408 = vunpack.c.l.s4 1987475062
        %v2409 = vunpack.c.0.s8 %v2408
        %v2410 = vlaneseq
        %v2411 = vshrl.u32 %v2410, 7
        %v2412 = vsub.s32 %v2409, %v2411
        %v2413 = vrot.slane %v1345, %v2412
        %v2415 = vunpack.c.l.s4 269488144
        %v2416 = vunpack.c.0.s8 %v2415
        %v2417 = vlaneseq
        %v2418 = vshrl.u32 %v2417, 7
        %v2419 = vsub.s32 %v2416, %v2418
        %v2420 = vrot.slane %v1348, %v2419
        %v2422 = vunpack.c.l.s4 842150450
        %v2423 = vunpack.c.0.s8 %v2422
        %v2424 = vlaneseq
        %v2425 = vshrl.u32 %v2424, 7
        %v2426 = vsub.s32 %v2423, %v2425
        %v2427 = vrot.slane %v1348, %v2426
        %v2429 = vunpack.c.l.s4 1414812756
        %v2430 = vunpack.c.0.s8 %v2429
        %v2431 = vlaneseq
        %v2432 = vshrl.u32 %v2431, 7
        %v2433 = vsub.s32 %v2430, %v2432
        %v2434 = vrot.slane %v1348, %v2433
        %v2436 = vunpack.c.l.s4 1987475062
        %v2437 = vunpack.c.0.s8 %v2436
        %v2438 = vlaneseq
        %v2439 = vshrl.u32 %v2438, 7
        %v2440 = vsub.s32 %v2437, %v2439
        %v2441 = vrot.slane %v1348, %v2440
        %v2443 = vunpack.c.l.s4 269488144
        %v2444 = vunpack.c.0.s8 %v2443
        %v2445 = vlaneseq
        %v2446 = vshrl.u32 %v2445, 7
        %v2447 = vsub.s32 %v2444, %v2446
        %v2448 = vrot.slane %v1351, %v2447
        %v2450 = vunpack.c.l.s4 842150450
        %v2451 = vunpack.c.0.s8 %v2450
        %v2452 = vlaneseq
        %v2453 = vshrl.u32 %v2452, 7
        %v2454 = vsub.s32 %v2451, %v2453
        %v2455 = vrot.slane %v1351, %v2454
        %v2457 = vunpack.c.l.s4 1414812756
        %v2458 = vunpack.c.0.s8 %v2457
        %v2459 = vlaneseq
        %v2460 = vshrl.u32 %v2459, 7
        %v2461 = vsub.s32 %v2458, %v2460
        %v2462 = vrot.slane %v1351, %v2461
        %v2464 = vunpack.c.l.s4 1987475062
        %v2465 = vunpack.c.0.s8 %v2464
        %v2466 = vlaneseq
        %v2467 = vshrl.u32 %v2466, 7
        %v2468 = vsub.s32 %v2465, %v2467
        %v2469 = vrot.slane %v1351, %v2468
        %v2471 = vunpack.c.l.s4 269488144
        %v2472 = vunpack.c.0.s8 %v2471
        %v2473 = vlaneseq
        %v2474 = vshrl.u32 %v2473, 7
        %v2475 = vsub.s32 %v2472, %v2474
        %v2476 = vrot.slane %v1354, %v2475
        %v2478 = vunpack.c.l.s4 842150450
        %v2479 = vunpack.c.0.s8 %v2478
        %v2480 = vlaneseq
        %v2481 = vshrl.u32 %v2480, 7
        %v2482 = vsub.s32 %v2479, %v2481
        %v2483 = vrot.slane %v1354, %v2482
        %v2485 = vunpack.c.l.s4 1414812756
        %v2486 = vunpack.c.0.s8 %v2485
        %v2487 = vlaneseq
        %v2488 = vshrl.u32 %v2487, 7
        %v2489 = vsub.s32 %v2486, %v2488
        %v2490 = vrot.slane %v1354, %v2489
        %v2492 = vunpack.c.l.s4 1987475062
        %v2493 = vunpack.c.0.s8 %v2492
        %v2494 = vlaneseq
        %v2495 = vshrl.u32 %v2494, 7
        %v2496 = vsub.s32 %v2493, %v2495
        %v2497 = vrot.slane %v1354, %v2496
        %v2499 = vunpack.c.l.s4 269488144
        %v2500 = vunpack.c.0.s8 %v2499
        %v2501 = vlaneseq
        %v2502 = vshrl.u32 %v2501, 7
        %v2503 = vsub.s32 %v2500, %v2502
        %v2504 = vrot.slane %v1357, %v2503
        %v2506 = vunpack.c.l.s4 842150450
        %v2507 = vunpack.c.0.s8 %v2506
        %v2508 = vlaneseq
        %v2509 = vshrl.u32 %v2508, 7
        %v2510 = vsub.s32 %v2507, %v2509
        %v2511 = vrot.slane %v1357, %v2510
        %v2513 = vunpack.c.l.s4 1414812756
        %v2514 = vunpack.c.0.s8 %v2513
        %v2515 = vlaneseq
        %v2516 = vshrl.u32 %v2515, 7
        %v2517 = vsub.s32 %v2514, %v2516
        %v2518 = vrot.slane %v1357, %v2517
        %v2520 = vunpack.c.l.s4 1987475062
        %v2521 = vunpack.c.0.s8 %v2520
        %v2522 = vlaneseq
        %v2523 = vshrl.u32 %v2522, 7
        %v2524 = vsub.s32 %v2521, %v2523
        %v2525 = vrot.slane %v1357, %v2524
        %v2527 = vunpack.c.l.s4 269488144
        %v2528 = vunpack.c.0.s8 %v2527
        %v2529 = vlaneseq
        %v2530 = vshrl.u32 %v2529, 7
        %v2531 = vsub.s32 %v2528, %v2530
        %v2532 = vrot.slane %v1360, %v2531
        %v2534 = vunpack.c.l.s4 842150450
        %v2535 = vunpack.c.0.s8 %v2534
        %v2536 = vlaneseq
        %v2537 = vshrl.u32 %v2536, 7
        %v2538 = vsub.s32 %v2535, %v2537
        %v2539 = vrot.slane %v1360, %v2538
        %v2541 = vunpack.c.l.s4 1414812756
        %v2542 = vunpack.c.0.s8 %v2541
        %v2543 = vlaneseq
        %v2544 = vshrl.u32 %v2543, 7
        %v2545 = vsub.s32 %v2542, %v2544
        %v2546 = vrot.slane %v1360, %v2545
        %v2548 = vunpack.c.l.s4 1987475062
        %v2549 = vunpack.c.0.s8 %v2548
        %v2550 = vlaneseq
        %v2551 = vshrl.u32 %v2550, 7
        %v2552 = vsub.s32 %v2549, %v2551
        %v2553 = vrot.slane %v1360, %v2552
        %v2555 = vunpack.c.l.s4 269488144
        %v2556 = vunpack.c.0.s8 %v2555
        %v2557 = vlaneseq
        %v2558 = vshrl.u32 %v2557, 7
        %v2559 = vsub.s32 %v2556, %v2558
        %v2560 = vrot.slane %v1363, %v2559
        %v2562 = vunpack.c.l.s4 842150450
        %v2563 = vunpack.c.0.s8 %v2562
        %v2564 = vlaneseq
        %v2565 = vshrl.u32 %v2564, 7
        %v2566 = vsub.s32 %v2563, %v2565
        %v2567 = vrot.slane %v1363, %v2566
        %v2569 = vunpack.c.l.s4 1414812756
        %v2570 = vunpack.c.0.s8 %v2569
        %v2571 = vlaneseq
        %v2572 = vshrl.u32 %v2571, 7
        %v2573 = vsub.s32 %v2570, %v2572
        %v2574 = vrot.slane %v1363, %v2573
        %v2576 = vunpack.c.l.s4 1987475062
        %v2577 = vunpack.c.0.s8 %v2576
        %v2578 = vlaneseq
        %v2579 = vshrl.u32 %v2578, 7
        %v2580 = vsub.s32 %v2577, %v2579
        %v2581 = vrot.slane %v1363, %v2580
        %v2583 = vunpack.c.l.s4 269488144
        %v2584 = vunpack.c.0.s8 %v2583
        %v2585 = vlaneseq
        %v2586 = vshrl.u32 %v2585, 7
        %v2587 = vsub.s32 %v2584, %v2586
        %v2588 = vrot.slane %v1366, %v2587
        %v2590 = vunpack.c.l.s4 842150450
        %v2591 = vunpack.c.0.s8 %v2590
        %v2592 = vlaneseq
        %v2593 = vshrl.u32 %v2592, 7
        %v2594 = vsub.s32 %v2591, %v2593
        %v2595 = vrot.slane %v1366, %v2594
        %v2597 = vunpack.c.l.s4 1414812756
        %v2598 = vunpack.c.0.s8 %v2597
        %v2599 = vlaneseq
        %v2600 = vshrl.u32 %v2599, 7
        %v2601 = vsub.s32 %v2598, %v2600
        %v2602 = vrot.slane %v1366, %v2601
        %v2604 = vunpack.c.l.s4 1987475062
        %v2605 = vunpack.c.0.s8 %v2604
        %v2606 = vlaneseq
        %v2607 = vshrl.u32 %v2606, 7
        %v2608 = vsub.s32 %v2605, %v2607
        %v2609 = vrot.slane %v1366, %v2608
        %v2611 = vunpack.c.l.s4 269488144
        %v2612 = vunpack.c.0.s8 %v2611
        %v2613 = vlaneseq
        %v2614 = vshrl.u32 %v2613, 7
        %v2615 = vsub.s32 %v2612, %v2614
        %v2616 = vrot.slane %v1369, %v2615
        %v2618 = vunpack.c.l.s4 842150450
        %v2619 = vunpack.c.0.s8 %v2618
        %v2620 = vlaneseq
        %v2621 = vshrl.u32 %v2620, 7
        %v2622 = vsub.s32 %v2619, %v2621
        %v2623 = vrot.slane %v1369, %v2622
        %v2625 = vunpack.c.l.s4 1414812756
        %v2626 = vunpack.c.0.s8 %v2625
        %v2627 = vlaneseq
        %v2628 = vshrl.u32 %v2627, 7
        %v2629 = vsub.s32 %v2626, %v2628
        %v2630 = vrot.slane %v1369, %v2629
        %v2632 = vunpack.c.l.s4 1987475062
        %v2633 = vunpack.c.0.s8 %v2632
        %v2634 = vlaneseq
        %v2635 = vshrl.u32 %v2634, 7
        %v2636 = vsub.s32 %v2633, %v2635
        %v2637 = vrot.slane %v1369, %v2636
        %v2639 = vunpack.c.l.s4 269488144
        %v2640 = vunpack.c.0.s8 %v2639
        %v2641 = vlaneseq
        %v2642 = vshrl.u32 %v2641, 7
        %v2643 = vsub.s32 %v2640, %v2642
        %v2644 = vrot.slane %v1372, %v2643
        %v2646 = vunpack.c.l.s4 842150450
        %v2647 = vunpack.c.0.s8 %v2646
        %v2648 = vlaneseq
        %v2649 = vshrl.u32 %v2648, 7
        %v2650 = vsub.s32 %v2647, %v2649
        %v2651 = vrot.slane %v1372, %v2650
        %v2653 = vunpack.c.l.s4 1414812756
        %v2654 = vunpack.c.0.s8 %v2653
        %v2655 = vlaneseq
        %v2656 = vshrl.u32 %v2655, 7
        %v2657 = vsub.s32 %v2654, %v2656
        %v2658 = vrot.slane %v1372, %v2657
        %v2660 = vunpack.c.l.s4 1987475062
        %v2661 = vunpack.c.0.s8 %v2660
        %v2662 = vlaneseq
        %v2663 = vshrl.u32 %v2662, 7
        %v2664 = vsub.s32 %v2661, %v2663
        %v2665 = vrot.slane %v1372, %v2664
        %v2667 = vunpack.c.l.s4 269488144
        %v2668 = vunpack.c.0.s8 %v2667
        %v2669 = vlaneseq
        %v2670 = vshrl.u32 %v2669, 7
        %v2671 = vsub.s32 %v2668, %v2670
        %v2672 = vrot.slane %v1375, %v2671
        %v2674 = vunpack.c.l.s4 842150450
        %v2675 = vunpack.c.0.s8 %v2674
        %v2676 = vlaneseq
        %v2677 = vshrl.u32 %v2676, 7
        %v2678 = vsub.s32 %v2675, %v2677
        %v2679 = vrot.slane %v1375, %v2678
        %v2681 = vunpack.c.l.s4 1414812756
        %v2682 = vunpack.c.0.s8 %v2681
        %v2683 = vlaneseq
        %v2684 = vshrl.u32 %v2683, 7
        %v2685 = vsub.s32 %v2682, %v2684
        %v2686 = vrot.slane %v1375, %v2685
        %v2688 = vunpack.c.l.s4 1987475062
        %v2689 = vunpack.c.0.s8 %v2688
        %v2690 = vlaneseq
        %v2691 = vshrl.u32 %v2690, 7
        %v2692 = vsub.s32 %v2689, %v2691
        %v2693 = vrot.slane %v1375, %v2692
        %v2695 = vunpack.c.l.s4 269488144
        %v2696 = vunpack.c.0.s8 %v2695
        %v2697 = vlaneseq
        %v2698 = vshrl.u32 %v2697, 7
        %v2699 = vsub.s32 %v2696, %v2698
        %v2700 = vrot.slane %v1378, %v2699
        %v2702 = vunpack.c.l.s4 842150450
        %v2703 = vunpack.c.0.s8 %v2702
        %v2704 = vlaneseq
        %v2705 = vshrl.u32 %v2704, 7
        %v2706 = vsub.s32 %v2703, %v2705
        %v2707 = vrot.slane %v1378, %v2706
        %v2709 = vunpack.c.l.s4 1414812756
        %v2710 = vunpack.c.0.s8 %v2709
        %v2711 = vlaneseq
        %v2712 = vshrl.u32 %v2711, 7
        %v2713 = vsub.s32 %v2710, %v2712
        %v2714 = vrot.slane %v1378, %v2713
        %v2716 = vunpack.c.l.s4 1987475062
        %v2717 = vunpack.c.0.s8 %v2716
        %v2718 = vlaneseq
        %v2719 = vshrl.u32 %v2718, 7
        %v2720 = vsub.s32 %v2717, %v2719
        %v2721 = vrot.slane %v1378, %v2720
        %v2723 = vunpack.c.l.s4 269488144
        %v2724 = vunpack.c.0.s8 %v2723
        %v2725 = vlaneseq
        %v2726 = vshrl.u32 %v2725, 7
        %v2727 = vsub.s32 %v2724, %v2726
        %v2728 = vrot.slane %v1381, %v2727
        %v2730 = vunpack.c.l.s4 842150450
        %v2731 = vunpack.c.0.s8 %v2730
        %v2732 = vlaneseq
        %v2733 = vshrl.u32 %v2732, 7
        %v2734 = vsub.s32 %v2731, %v2733
        %v2735 = vrot.slane %v1381, %v2734
        %v2737 = vunpack.c.l.s4 1414812756
        %v2738 = vunpack.c.0.s8 %v2737
        %v2739 = vlaneseq
        %v2740 = vshrl.u32 %v2739, 7
        %v2741 = vsub.s32 %v2738, %v2740
        %v2742 = vrot.slane %v1381, %v2741
        %v2744 = vunpack.c.l.s4 1987475062
        %v2745 = vunpack.c.0.s8 %v2744
        %v2746 = vlaneseq
        %v2747 = vshrl.u32 %v2746, 7
        %v2748 = vsub.s32 %v2745, %v2747
        %v2749 = vrot.slane %v1381, %v2748
        %v2751 = vunpack.c.l.s4 269488144
        %v2752 = vunpack.c.0.s8 %v2751
        %v2753 = vlaneseq
        %v2754 = vshrl.u32 %v2753, 7
        %v2755 = vsub.s32 %v2752, %v2754
        %v2756 = vrot.slane %v1384, %v2755
        %v2758 = vunpack.c.l.s4 842150450
        %v2759 = vunpack.c.0.s8 %v2758
        %v2760 = vlaneseq
        %v2761 = vshrl.u32 %v2760, 7
        %v2762 = vsub.s32 %v2759, %v2761
        %v2763 = vrot.slane %v1384, %v2762
        %v2765 = vunpack.c.l.s4 1414812756
        %v2766 = vunpack.c.0.s8 %v2765
        %v2767 = vlaneseq
        %v2768 = vshrl.u32 %v2767, 7
        %v2769 = vsub.s32 %v2766, %v2768
        %v2770 = vrot.slane %v1384, %v2769
        %v2772 = vunpack.c.l.s4 1987475062
        %v2773 = vunpack.c.0.s8 %v2772
        %v2774 = vlaneseq
        %v2775 = vshrl.u32 %v2774, 7
        %v2776 = vsub.s32 %v2773, %v2775
        %v2777 = vrot.slane %v1384, %v2776
        %v2779 = vunpack.c.l.s4 269488144
        %v2780 = vunpack.c.0.s8 %v2779
        %v2781 = vlaneseq
        %v2782 = vshrl.u32 %v2781, 7
        %v2783 = vsub.s32 %v2780, %v2782
        %v2784 = vrot.slane %v1387, %v2783
        %v2786 = vunpack.c.l.s4 842150450
        %v2787 = vunpack.c.0.s8 %v2786
        %v2788 = vlaneseq
        %v2789 = vshrl.u32 %v2788, 7
        %v2790 = vsub.s32 %v2787, %v2789
        %v2791 = vrot.slane %v1387, %v2790
        %v2793 = vunpack.c.l.s4 1414812756
        %v2794 = vunpack.c.0.s8 %v2793
        %v2795 = vlaneseq
        %v2796 = vshrl.u32 %v2795, 7
        %v2797 = vsub.s32 %v2794, %v2796
        %v2798 = vrot.slane %v1387, %v2797
        %v2800 = vunpack.c.l.s4 1987475062
        %v2801 = vunpack.c.0.s8 %v2800
        %v2802 = vlaneseq
        %v2803 = vshrl.u32 %v2802, 7
        %v2804 = vsub.s32 %v2801, %v2803
        %v2805 = vrot.slane %v1387, %v2804
        %v2807 = vunpack.c.l.s4 269488144
        %v2808 = vunpack.c.0.s8 %v2807
        %v2809 = vlaneseq
        %v2810 = vshrl.u32 %v2809, 7
        %v2811 = vsub.s32 %v2808, %v2810
        %v2812 = vrot.slane %v1390, %v2811
        %v2814 = vunpack.c.l.s4 842150450
        %v2815 = vunpack.c.0.s8 %v2814
        %v2816 = vlaneseq
        %v2817 = vshrl.u32 %v2816, 7
        %v2818 = vsub.s32 %v2815, %v2817
        %v2819 = vrot.slane %v1390, %v2818
        %v2821 = vunpack.c.l.s4 1414812756
        %v2822 = vunpack.c.0.s8 %v2821
        %v2823 = vlaneseq
        %v2824 = vshrl.u32 %v2823, 7
        %v2825 = vsub.s32 %v2822, %v2824
        %v2826 = vrot.slane %v1390, %v2825
        %v2828 = vunpack.c.l.s4 1987475062
        %v2829 = vunpack.c.0.s8 %v2828
        %v2830 = vlaneseq
        %v2831 = vshrl.u32 %v2830, 7
        %v2832 = vsub.s32 %v2829, %v2831
        %v2833 = vrot.slane %v1390, %v2832
        %v2835 = vunpack.c.l.s4 269488144
        %v2836 = vunpack.c.0.s8 %v2835
        %v2837 = vlaneseq
        %v2838 = vshrl.u32 %v2837, 7
        %v2839 = vsub.s32 %v2836, %v2838
        %v2840 = vrot.slane %v1393, %v2839
        %v2842 = vunpack.c.l.s4 842150450
        %v2843 = vunpack.c.0.s8 %v2842
        %v2844 = vlaneseq
        %v2845 = vshrl.u32 %v2844, 7
        %v2846 = vsub.s32 %v2843, %v2845
        %v2847 = vrot.slane %v1393, %v2846
        %v2849 = vunpack.c.l.s4 1414812756
        %v2850 = vunpack.c.0.s8 %v2849
        %v2851 = vlaneseq
        %v2852 = vshrl.u32 %v2851, 7
        %v2853 = vsub.s32 %v2850, %v2852
        %v2854 = vrot.slane %v1393, %v2853
        %v2856 = vunpack.c.l.s4 1987475062
        %v2857 = vunpack.c.0.s8 %v2856
        %v2858 = vlaneseq
        %v2859 = vshrl.u32 %v2858, 7
        %v2860 = vsub.s32 %v2857, %v2859
        %v2861 = vrot.slane %v1393, %v2860
        %v2863 = vunpack.c.l.s4 269488144
        %v2864 = vunpack.c.0.s8 %v2863
        %v2865 = vlaneseq
        %v2866 = vshrl.u32 %v2865, 7
        %v2867 = vsub.s32 %v2864, %v2866
        %v2868 = vrot.slane %v1396, %v2867
        %v2870 = vunpack.c.l.s4 842150450
        %v2871 = vunpack.c.0.s8 %v2870
        %v2872 = vlaneseq
        %v2873 = vshrl.u32 %v2872, 7
        %v2874 = vsub.s32 %v2871, %v2873
        %v2875 = vrot.slane %v1396, %v2874
        %v2877 = vunpack.c.l.s4 1414812756
        %v2878 = vunpack.c.0.s8 %v2877
        %v2879 = vlaneseq
        %v2880 = vshrl.u32 %v2879, 7
        %v2881 = vsub.s32 %v2878, %v2880
        %v2882 = vrot.slane %v1396, %v2881
        %v2884 = vunpack.c.l.s4 1987475062
        %v2885 = vunpack.c.0.s8 %v2884
        %v2886 = vlaneseq
        %v2887 = vshrl.u32 %v2886, 7
        %v2888 = vsub.s32 %v2885, %v2887
        %v2889 = vrot.slane %v1396, %v2888
        %v2891 = vunpack.c.l.s4 269488144
        %v2892 = vunpack.c.0.s8 %v2891
        %v2893 = vlaneseq
        %v2894 = vshrl.u32 %v2893, 7
        %v2895 = vsub.s32 %v2892, %v2894
        %v2896 = vrot.slane %v1399, %v2895
        %v2898 = vunpack.c.l.s4 842150450
        %v2899 = vunpack.c.0.s8 %v2898
        %v2900 = vlaneseq
        %v2901 = vshrl.u32 %v2900, 7
        %v2902 = vsub.s32 %v2899, %v2901
        %v2903 = vrot.slane %v1399, %v2902
        %v2905 = vunpack.c.l.s4 1414812756
        %v2906 = vunpack.c.0.s8 %v2905
        %v2907 = vlaneseq
        %v2908 = vshrl.u32 %v2907, 7
        %v2909 = vsub.s32 %v2906, %v2908
        %v2910 = vrot.slane %v1399, %v2909
        %v2912 = vunpack.c.l.s4 1987475062
        %v2913 = vunpack.c.0.s8 %v2912
        %v2914 = vlaneseq
        %v2915 = vshrl.u32 %v2914, 7
        %v2916 = vsub.s32 %v2913, %v2915
        %v2917 = vrot.slane %v1399, %v2916
        %v2919 = vunpack.c.l.s4 269488144
        %v2920 = vunpack.c.0.s8 %v2919
        %v2921 = vlaneseq
        %v2922 = vshrl.u32 %v2921, 7
        %v2923 = vsub.s32 %v2920, %v2922
        %v2924 = vrot.slane %v1402, %v2923
        %v2926 = vunpack.c.l.s4 842150450
        %v2927 = vunpack.c.0.s8 %v2926
        %v2928 = vlaneseq
        %v2929 = vshrl.u32 %v2928, 7
        %v2930 = vsub.s32 %v2927, %v2929
        %v2931 = vrot.slane %v1402, %v2930
        %v2933 = vunpack.c.l.s4 1414812756
        %v2934 = vunpack.c.0.s8 %v2933
        %v2935 = vlaneseq
        %v2936 = vshrl.u32 %v2935, 7
        %v2937 = vsub.s32 %v2934, %v2936
        %v2938 = vrot.slane %v1402, %v2937
        %v2940 = vunpack.c.l.s4 1987475062
        %v2941 = vunpack.c.0.s8 %v2940
        %v2942 = vlaneseq
        %v2943 = vshrl.u32 %v2942, 7
        %v2944 = vsub.s32 %v2941, %v2943
        %v2945 = vrot.slane %v1402, %v2944
        %v2947 = vunpack.c.l.s4 269488144
        %v2948 = vunpack.c.0.s8 %v2947
        %v2949 = vlaneseq
        %v2950 = vshrl.u32 %v2949, 7
        %v2951 = vsub.s32 %v2948, %v2950
        %v2952 = vrot.slane %v1405, %v2951
        %v2954 = vunpack.c.l.s4 842150450
        %v2955 = vunpack.c.0.s8 %v2954
        %v2956 = vlaneseq
        %v2957 = vshrl.u32 %v2956, 7
        %v2958 = vsub.s32 %v2955, %v2957
        %v2959 = vrot.slane %v1405, %v2958
        %v2961 = vunpack.c.l.s4 1414812756
        %v2962 = vunpack.c.0.s8 %v2961
        %v2963 = vlaneseq
        %v2964 = vshrl.u32 %v2963, 7
        %v2965 = vsub.s32 %v2962, %v2964
        %v2966 = vrot.slane %v1405, %v2965
        %v2968 = vunpack.c.l.s4 1987475062
        %v2969 = vunpack.c.0.s8 %v2968
        %v2970 = vlaneseq
        %v2971 = vshrl.u32 %v2970, 7
        %v2972 = vsub.s32 %v2969, %v2971
        %v2973 = vrot.slane %v1405, %v2972
        %v2975 = vunpack.c.l.s4 269488144
        %v2976 = vunpack.c.0.s8 %v2975
        %v2977 = vlaneseq
        %v2978 = vshrl.u32 %v2977, 7
        %v2979 = vsub.s32 %v2976, %v2978
        %v2980 = vrot.slane %v1408, %v2979
        %v2982 = vunpack.c.l.s4 842150450
        %v2983 = vunpack.c.0.s8 %v2982
        %v2984 = vlaneseq
        %v2985 = vshrl.u32 %v2984, 7
        %v2986 = vsub.s32 %v2983, %v2985
        %v2987 = vrot.slane %v1408, %v2986
        %v2989 = vunpack.c.l.s4 1414812756
        %v2990 = vunpack.c.0.s8 %v2989
        %v2991 = vlaneseq
        %v2992 = vshrl.u32 %v2991, 7
        %v2993 = vsub.s32 %v2990, %v2992
        %v2994 = vrot.slane %v1408, %v2993
        %v2996 = vunpack.c.l.s4 1987475062
        %v2997 = vunpack.c.0.s8 %v2996
        %v2998 = vlaneseq
        %v2999 = vshrl.u32 %v2998, 7
        %v3000 = vsub.s32 %v2997, %v2999
        %v3001 = vrot.slane %v1408, %v3000
        %v3003 = vunpack.c.l.s4 269488144
        %v3004 = vunpack.c.0.s8 %v3003
        %v3005 = vlaneseq
        %v3006 = vshrl.u32 %v3005, 7
        %v3007 = vsub.s32 %v3004, %v3006
        %v3008 = vrot.slane %v1411, %v3007
        %v3010 = vunpack.c.l.s4 842150450
        %v3011 = vunpack.c.0.s8 %v3010
        %v3012 = vlaneseq
        %v3013 = vshrl.u32 %v3012, 7
        %v3014 = vsub.s32 %v3011, %v3013
        %v3015 = vrot.slane %v1411, %v3014
        %v3017 = vunpack.c.l.s4 1414812756
        %v3018 = vunpack.c.0.s8 %v3017
        %v3019 = vlaneseq
        %v3020 = vshrl.u32 %v3019, 7
        %v3021 = vsub.s32 %v3018, %v3020
        %v3022 = vrot.slane %v1411, %v3021
        %v3024 = vunpack.c.l.s4 1987475062
        %v3025 = vunpack.c.0.s8 %v3024
        %v3026 = vlaneseq
        %v3027 = vshrl.u32 %v3026, 7
        %v3028 = vsub.s32 %v3025, %v3027
        %v3029 = vrot.slane %v1411, %v3028
        %v3031 = vunpack.c.l.s4 269488144
        %v3032 = vunpack.c.0.s8 %v3031
        %v3033 = vlaneseq
        %v3034 = vshrl.u32 %v3033, 7
        %v3035 = vsub.s32 %v3032, %v3034
        %v3036 = vrot.slane %v1414, %v3035
        %v3038 = vunpack.c.l.s4 842150450
        %v3039 = vunpack.c.0.s8 %v3038
        %v3040 = vlaneseq
        %v3041 = vshrl.u32 %v3040, 7
        %v3042 = vsub.s32 %v3039, %v3041
        %v3043 = vrot.slane %v1414, %v3042
        %v3045 = vunpack.c.l.s4 1414812756
        %v3046 = vunpack.c.0.s8 %v3045
        %v3047 = vlaneseq
        %v3048 = vshrl.u32 %v3047, 7
        %v3049 = vsub.s32 %v3046, %v3048
        %v3050 = vrot.slane %v1414, %v3049
        %v3052 = vunpack.c.l.s4 1987475062
        %v3053 = vunpack.c.0.s8 %v3052
        %v3054 = vlaneseq
        %v3055 = vshrl.u32 %v3054, 7
        %v3056 = vsub.s32 %v3053, %v3055
        %v3057 = vrot.slane %v1414, %v3056
        %v3059 = vunpack.c.l.s4 269488144
        %v3060 = vunpack.c.0.s8 %v3059
        %v3061 = vlaneseq
        %v3062 = vshrl.u32 %v3061, 7
        %v3063 = vsub.s32 %v3060, %v3062
        %v3064 = vrot.slane %v1417, %v3063
        %v3066 = vunpack.c.l.s4 842150450
        %v3067 = vunpack.c.0.s8 %v3066
        %v3068 = vlaneseq
        %v3069 = vshrl.u32 %v3068, 7
        %v3070 = vsub.s32 %v3067, %v3069
        %v3071 = vrot.slane %v1417, %v3070
        %v3073 = vunpack.c.l.s4 1414812756
        %v3074 = vunpack.c.0.s8 %v3073
        %v3075 = vlaneseq
        %v3076 = vshrl.u32 %v3075, 7
        %v3077 = vsub.s32 %v3074, %v3076
        %v3078 = vrot.slane %v1417, %v3077
        %v3080 = vunpack.c.l.s4 1987475062
        %v3081 = vunpack.c.0.s8 %v3080
        %v3082 = vlaneseq
        %v3083 = vshrl.u32 %v3082, 7
        %v3084 = vsub.s32 %v3081, %v3083
        %v3085 = vrot.slane %v1417, %v3084
        %v3087 = vunpack.c.l.s4 269488144
        %v3088 = vunpack.c.0.s8 %v3087
        %v3089 = vlaneseq
        %v3090 = vshrl.u32 %v3089, 7
        %v3091 = vsub.s32 %v3088, %v3090
        %v3092 = vrot.slane %v1420, %v3091
        %v3094 = vunpack.c.l.s4 842150450
        %v3095 = vunpack.c.0.s8 %v3094
        %v3096 = vlaneseq
        %v3097 = vshrl.u32 %v3096, 7
        %v3098 = vsub.s32 %v3095, %v3097
        %v3099 = vrot.slane %v1420, %v3098
        %v3101 = vunpack.c.l.s4 1414812756
        %v3102 = vunpack.c.0.s8 %v3101
        %v3103 = vlaneseq
        %v3104 = vshrl.u32 %v3103, 7
        %v3105 = vsub.s32 %v3102, %v3104
        %v3106 = vrot.slane %v1420, %v3105
        %v3108 = vunpack.c.l.s4 1987475062
        %v3109 = vunpack.c.0.s8 %v3108
        %v3110 = vlaneseq
        %v3111 = vshrl.u32 %v3110, 7
        %v3112 = vsub.s32 %v3109, %v3111
        %v3113 = vrot.slane %v1420, %v3112
        %v3115 = vunpack.c.l.s4 269488144
        %v3116 = vunpack.c.0.s8 %v3115
        %v3117 = vlaneseq
        %v3118 = vshrl.u32 %v3117, 7
        %v3119 = vsub.s32 %v3116, %v3118
        %v3120 = vrot.slane %v1423, %v3119
        %v3122 = vunpack.c.l.s4 842150450
        %v3123 = vunpack.c.0.s8 %v3122
        %v3124 = vlaneseq
        %v3125 = vshrl.u32 %v3124, 7
        %v3126 = vsub.s32 %v3123, %v3125
        %v3127 = vrot.slane %v1423, %v3126
        %v3129 = vunpack.c.l.s4 1414812756
        %v3130 = vunpack.c.0.s8 %v3129
        %v3131 = vlaneseq
        %v3132 = vshrl.u32 %v3131, 7
        %v3133 = vsub.s32 %v3130, %v3132
        %v3134 = vrot.slane %v1423, %v3133
        %v3136 = vunpack.c.l.s4 1987475062
        %v3137 = vunpack.c.0.s8 %v3136
        %v3138 = vlaneseq
        %v3139 = vshrl.u32 %v3138, 7
        %v3140 = vsub.s32 %v3137, %v3139
        %v3141 = vrot.slane %v1423, %v3140
        %v3143 = vunpack.c.l.s4 269488144
        %v3144 = vunpack.c.0.s8 %v3143
        %v3145 = vlaneseq
        %v3146 = vshrl.u32 %v3145, 7
        %v3147 = vsub.s32 %v3144, %v3146
        %v3148 = vrot.slane %v1426, %v3147
        %v3150 = vunpack.c.l.s4 842150450
        %v3151 = vunpack.c.0.s8 %v3150
        %v3152 = vlaneseq
        %v3153 = vshrl.u32 %v3152, 7
        %v3154 = vsub.s32 %v3151, %v3153
        %v3155 = vrot.slane %v1426, %v3154
        %v3157 = vunpack.c.l.s4 1414812756
        %v3158 = vunpack.c.0.s8 %v3157
        %v3159 = vlaneseq
        %v3160 = vshrl.u32 %v3159, 7
        %v3161 = vsub.s32 %v3158, %v3160
        %v3162 = vrot.slane %v1426, %v3161
        %v3164 = vunpack.c.l.s4 1987475062
        %v3165 = vunpack.c.0.s8 %v3164
        %v3166 = vlaneseq
        %v3167 = vshrl.u32 %v3166, 7
        %v3168 = vsub.s32 %v3165, %v3167
        %v3169 = vrot.slane %v1426, %v3168
        %v3171 = vunpack.c.l.s4 269488144
        %v3172 = vunpack.c.0.s8 %v3171
        %v3173 = vlaneseq
        %v3174 = vshrl.u32 %v3173, 7
        %v3175 = vsub.s32 %v3172, %v3174
        %v3176 = vrot.slane %v1429, %v3175
        %v3178 = vunpack.c.l.s4 842150450
        %v3179 = vunpack.c.0.s8 %v3178
        %v3180 = vlaneseq
        %v3181 = vshrl.u32 %v3180, 7
        %v3182 = vsub.s32 %v3179, %v3181
        %v3183 = vrot.slane %v1429, %v3182
        %v3185 = vunpack.c.l.s4 1414812756
        %v3186 = vunpack.c.0.s8 %v3185
        %v3187 = vlaneseq
        %v3188 = vshrl.u32 %v3187, 7
        %v3189 = vsub.s32 %v3186, %v3188
        %v3190 = vrot.slane %v1429, %v3189
        %v3192 = vunpack.c.l.s4 1987475062
        %v3193 = vunpack.c.0.s8 %v3192
        %v3194 = vlaneseq
        %v3195 = vshrl.u32 %v3194, 7
        %v3196 = vsub.s32 %v3193, %v3195
        %v3197 = vrot.slane %v1429, %v3196
        %v3199 = vunpack.c.l.s4 269488144
        %v3200 = vunpack.c.0.s8 %v3199
        %v3201 = vlaneseq
        %v3202 = vshrl.u32 %v3201, 7
        %v3203 = vsub.s32 %v3200, %v3202
        %v3204 = vrot.slane %v1432, %v3203
        %v3206 = vunpack.c.l.s4 842150450
        %v3207 = vunpack.c.0.s8 %v3206
        %v3208 = vlaneseq
        %v3209 = vshrl.u32 %v3208, 7
        %v3210 = vsub.s32 %v3207, %v3209
        %v3211 = vrot.slane %v1432, %v3210
        %v3213 = vunpack.c.l.s4 1414812756
        %v3214 = vunpack.c.0.s8 %v3213
        %v3215 = vlaneseq
        %v3216 = vshrl.u32 %v3215, 7
        %v3217 = vsub.s32 %v3214, %v3216
        %v3218 = vrot.slane %v1432, %v3217
        %v3220 = vunpack.c.l.s4 1987475062
        %v3221 = vunpack.c.0.s8 %v3220
        %v3222 = vlaneseq
        %v3223 = vshrl.u32 %v3222, 7
        %v3224 = vsub.s32 %v3221, %v3223
        %v3225 = vrot.slane %v1432, %v3224
        %v3227 = vunpack.c.l.s4 269488144
        %v3228 = vunpack.c.0.s8 %v3227
        %v3229 = vlaneseq
        %v3230 = vshrl.u32 %v3229, 7
        %v3231 = vsub.s32 %v3228, %v3230
        %v3232 = vrot.slane %v1435, %v3231
        %v3234 = vunpack.c.l.s4 842150450
        %v3235 = vunpack.c.0.s8 %v3234
        %v3236 = vlaneseq
        %v3237 = vshrl.u32 %v3236, 7
        %v3238 = vsub.s32 %v3235, %v3237
        %v3239 = vrot.slane %v1435, %v3238
        %v3241 = vunpack.c.l.s4 1414812756
        %v3242 = vunpack.c.0.s8 %v3241
        %v3243 = vlaneseq
        %v3244 = vshrl.u32 %v3243, 7
        %v3245 = vsub.s32 %v3242, %v3244
        %v3246 = vrot.slane %v1435, %v3245
        %v3248 = vunpack.c.l.s4 1987475062
        %v3249 = vunpack.c.0.s8 %v3248
        %v3250 = vlaneseq
        %v3251 = vshrl.u32 %v3250, 7
        %v3252 = vsub.s32 %v3249, %v3251
        %v3253 = vrot.slane %v1435, %v3252
        %v3255 = vunpack.c.l.s4 269488144
        %v3256 = vunpack.c.0.s8 %v3255
        %v3257 = vlaneseq
        %v3258 = vshrl.u32 %v3257, 7
        %v3259 = vsub.s32 %v3256, %v3258
        %v3260 = vrot.slane %v1438, %v3259
        %v3262 = vunpack.c.l.s4 842150450
        %v3263 = vunpack.c.0.s8 %v3262
        %v3264 = vlaneseq
        %v3265 = vshrl.u32 %v3264, 7
        %v3266 = vsub.s32 %v3263, %v3265
        %v3267 = vrot.slane %v1438, %v3266
        %v3269 = vunpack.c.l.s4 1414812756
        %v3270 = vunpack.c.0.s8 %v3269
        %v3271 = vlaneseq
        %v3272 = vshrl.u32 %v3271, 7
        %v3273 = vsub.s32 %v3270, %v3272
        %v3274 = vrot.slane %v1438, %v3273
        %v3276 = vunpack.c.l.s4 1987475062
        %v3277 = vunpack.c.0.s8 %v3276
        %v3278 = vlaneseq
        %v3279 = vshrl.u32 %v3278, 7
        %v3280 = vsub.s32 %v3277, %v3279
        %v3281 = vrot.slane %v1438, %v3280
        %v3283 = vunpack.c.l.s4 269488144
        %v3284 = vunpack.c.0.s8 %v3283
        %v3285 = vlaneseq
        %v3286 = vshrl.u32 %v3285, 7
        %v3287 = vsub.s32 %v3284, %v3286
        %v3288 = vrot.slane %v1441, %v3287
        %v3290 = vunpack.c.l.s4 842150450
        %v3291 = vunpack.c.0.s8 %v3290
        %v3292 = vlaneseq
        %v3293 = vshrl.u32 %v3292, 7
        %v3294 = vsub.s32 %v3291, %v3293
        %v3295 = vrot.slane %v1441, %v3294
        %v3297 = vunpack.c.l.s4 1414812756
        %v3298 = vunpack.c.0.s8 %v3297
        %v3299 = vlaneseq
        %v3300 = vshrl.u32 %v3299, 7
        %v3301 = vsub.s32 %v3298, %v3300
        %v3302 = vrot.slane %v1441, %v3301
        %v3304 = vunpack.c.l.s4 1987475062
        %v3305 = vunpack.c.0.s8 %v3304
        %v3306 = vlaneseq
        %v3307 = vshrl.u32 %v3306, 7
        %v3308 = vsub.s32 %v3305, %v3307
        %v3309 = vrot.slane %v1441, %v3308
        %v3311 = vunpack.c.l.s4 269488144
        %v3312 = vunpack.c.0.s8 %v3311
        %v3313 = vlaneseq
        %v3314 = vshrl.u32 %v3313, 7
        %v3315 = vsub.s32 %v3312, %v3314
        %v3316 = vrot.slane %v1444, %v3315
        %v3318 = vunpack.c.l.s4 842150450
        %v3319 = vunpack.c.0.s8 %v3318
        %v3320 = vlaneseq
        %v3321 = vshrl.u32 %v3320, 7
        %v3322 = vsub.s32 %v3319, %v3321
        %v3323 = vrot.slane %v1444, %v3322
        %v3325 = vunpack.c.l.s4 1414812756
        %v3326 = vunpack.c.0.s8 %v3325
        %v3327 = vlaneseq
        %v3328 = vshrl.u32 %v3327, 7
        %v3329 = vsub.s32 %v3326, %v3328
        %v3330 = vrot.slane %v1444, %v3329
        %v3332 = vunpack.c.l.s4 1987475062
        %v3333 = vunpack.c.0.s8 %v3332
        %v3334 = vlaneseq
        %v3335 = vshrl.u32 %v3334, 7
        %v3336 = vsub.s32 %v3333, %v3335
        %v3337 = vrot.slane %v1444, %v3336
        %v3339 = vunpack.c.l.s4 269488144
        %v3340 = vunpack.c.0.s8 %v3339
        %v3341 = vlaneseq
        %v3342 = vshrl.u32 %v3341, 7
        %v3343 = vsub.s32 %v3340, %v3342
        %v3344 = vrot.slane %v1447, %v3343
        %v3346 = vunpack.c.l.s4 842150450
        %v3347 = vunpack.c.0.s8 %v3346
        %v3348 = vlaneseq
        %v3349 = vshrl.u32 %v3348, 7
        %v3350 = vsub.s32 %v3347, %v3349
        %v3351 = vrot.slane %v1447, %v3350
        %v3353 = vunpack.c.l.s4 1414812756
        %v3354 = vunpack.c.0.s8 %v3353
        %v3355 = vlaneseq
        %v3356 = vshrl.u32 %v3355, 7
        %v3357 = vsub.s32 %v3354, %v3356
        %v3358 = vrot.slane %v1447, %v3357
        %v3360 = vunpack.c.l.s4 1987475062
        %v3361 = vunpack.c.0.s8 %v3360
        %v3362 = vlaneseq
        %v3363 = vshrl.u32 %v3362, 7
        %v3364 = vsub.s32 %v3361, %v3363
        %v3365 = vrot.slane %v1447, %v3364
        %v3367 = vunpack.c.l.s4 269488144
        %v3368 = vunpack.c.0.s8 %v3367
        %v3369 = vlaneseq
        %v3370 = vshrl.u32 %v3369, 7
        %v3371 = vsub.s32 %v3368, %v3370
        %v3372 = vrot.slane %v1450, %v3371
        %v3374 = vunpack.c.l.s4 842150450
        %v3375 = vunpack.c.0.s8 %v3374
        %v3376 = vlaneseq
        %v3377 = vshrl.u32 %v3376, 7
        %v3378 = vsub.s32 %v3375, %v3377
        %v3379 = vrot.slane %v1450, %v3378
        %v3381 = vunpack.c.l.s4 1414812756
        %v3382 = vunpack.c.0.s8 %v3381
        %v3383 = vlaneseq
        %v3384 = vshrl.u32 %v3383, 7
        %v3385 = vsub.s32 %v3382, %v3384
        %v3386 = vrot.slane %v1450, %v3385
        %v3388 = vunpack.c.l.s4 1987475062
        %v3389 = vunpack.c.0.s8 %v3388
        %v3390 = vlaneseq
        %v3391 = vshrl.u32 %v3390, 7
        %v3392 = vsub.s32 %v3389, %v3391
        %v3393 = vrot.slane %v1450, %v3392
        %v3395 = vunpack.c.l.s4 269488144
        %v3396 = vunpack.c.0.s8 %v3395
        %v3397 = vlaneseq
        %v3398 = vshrl.u32 %v3397, 7
        %v3399 = vsub.s32 %v3396, %v3398
        %v3400 = vrot.slane %v1453, %v3399
        %v3402 = vunpack.c.l.s4 842150450
        %v3403 = vunpack.c.0.s8 %v3402
        %v3404 = vlaneseq
        %v3405 = vshrl.u32 %v3404, 7
        %v3406 = vsub.s32 %v3403, %v3405
        %v3407 = vrot.slane %v1453, %v3406
        %v3409 = vunpack.c.l.s4 1414812756
        %v3410 = vunpack.c.0.s8 %v3409
        %v3411 = vlaneseq
        %v3412 = vshrl.u32 %v3411, 7
        %v3413 = vsub.s32 %v3410, %v3412
        %v3414 = vrot.slane %v1453, %v3413
        %v3416 = vunpack.c.l.s4 1987475062
        %v3417 = vunpack.c.0.s8 %v3416
        %v3418 = vlaneseq
        %v3419 = vshrl.u32 %v3418, 7
        %v3420 = vsub.s32 %v3417, %v3419
        %v3421 = vrot.slane %v1453, %v3420
        %v3423 = vunpack.c.l.s4 269488144
        %v3424 = vunpack.c.0.s8 %v3423
        %v3425 = vlaneseq
        %v3426 = vshrl.u32 %v3425, 7
        %v3427 = vsub.s32 %v3424, %v3426
        %v3428 = vrot.slane %v1456, %v3427
        %v3430 = vunpack.c.l.s4 842150450
        %v3431 = vunpack.c.0.s8 %v3430
        %v3432 = vlaneseq
        %v3433 = vshrl.u32 %v3432, 7
        %v3434 = vsub.s32 %v3431, %v3433
        %v3435 = vrot.slane %v1456, %v3434
        %v3437 = vunpack.c.l.s4 1414812756
        %v3438 = vunpack.c.0.s8 %v3437
        %v3439 = vlaneseq
        %v3440 = vshrl.u32 %v3439, 7
        %v3441 = vsub.s32 %v3438, %v3440
        %v3442 = vrot.slane %v1456, %v3441
        %v3444 = vunpack.c.l.s4 1987475062
        %v3445 = vunpack.c.0.s8 %v3444
        %v3446 = vlaneseq
        %v3447 = vshrl.u32 %v3446, 7
        %v3448 = vsub.s32 %v3445, %v3447
        %v3449 = vrot.slane %v1456, %v3448
        %v3451 = vunpack.c.l.s4 269488144
        %v3452 = vunpack.c.0.s8 %v3451
        %v3453 = vlaneseq
        %v3454 = vshrl.u32 %v3453, 7
        %v3455 = vsub.s32 %v3452, %v3454
        %v3456 = vrot.slane %v1459, %v3455
        %v3458 = vunpack.c.l.s4 842150450
        %v3459 = vunpack.c.0.s8 %v3458
        %v3460 = vlaneseq
        %v3461 = vshrl.u32 %v3460, 7
        %v3462 = vsub.s32 %v3459, %v3461
        %v3463 = vrot.slane %v1459, %v3462
        %v3465 = vunpack.c.l.s4 1414812756
        %v3466 = vunpack.c.0.s8 %v3465
        %v3467 = vlaneseq
        %v3468 = vshrl.u32 %v3467, 7
        %v3469 = vsub.s32 %v3466, %v3468
        %v3470 = vrot.slane %v1459, %v3469
        %v3472 = vunpack.c.l.s4 1987475062
        %v3473 = vunpack.c.0.s8 %v3472
        %v3474 = vlaneseq
        %v3475 = vshrl.u32 %v3474, 7
        %v3476 = vsub.s32 %v3473, %v3475
        %v3477 = vrot.slane %v1459, %v3476
        %v3479 = vunpack.c.l.s4 269488144
        %v3480 = vunpack.c.0.s8 %v3479
        %v3481 = vlaneseq
        %v3482 = vshrl.u32 %v3481, 7
        %v3483 = vsub.s32 %v3480, %v3482
        %v3484 = vrot.slane %v1462, %v3483
        %v3486 = vunpack.c.l.s4 842150450
        %v3487 = vunpack.c.0.s8 %v3486
        %v3488 = vlaneseq
        %v3489 = vshrl.u32 %v3488, 7
        %v3490 = vsub.s32 %v3487, %v3489
        %v3491 = vrot.slane %v1462, %v3490
        %v3493 = vunpack.c.l.s4 1414812756
        %v3494 = vunpack.c.0.s8 %v3493
        %v3495 = vlaneseq
        %v3496 = vshrl.u32 %v3495, 7
        %v3497 = vsub.s32 %v3494, %v3496
        %v3498 = vrot.slane %v1462, %v3497
        %v3500 = vunpack.c.l.s4 1987475062
        %v3501 = vunpack.c.0.s8 %v3500
        %v3502 = vlaneseq
        %v3503 = vshrl.u32 %v3502, 7
        %v3504 = vsub.s32 %v3501, %v3503
        %v3505 = vrot.slane %v1462, %v3504
        %v3507 = vunpack.c.l.s4 269488144
        %v3508 = vunpack.c.0.s8 %v3507
        %v3509 = vlaneseq
        %v3510 = vshrl.u32 %v3509, 7
        %v3511 = vsub.s32 %v3508, %v3510
        %v3512 = vrot.slane %v1465, %v3511
        %v3514 = vunpack.c.l.s4 842150450
        %v3515 = vunpack.c.0.s8 %v3514
        %v3516 = vlaneseq
        %v3517 = vshrl.u32 %v3516, 7
        %v3518 = vsub.s32 %v3515, %v3517
        %v3519 = vrot.slane %v1465, %v3518
        %v3521 = vunpack.c.l.s4 1414812756
        %v3522 = vunpack.c.0.s8 %v3521
        %v3523 = vlaneseq
        %v3524 = vshrl.u32 %v3523, 7
        %v3525 = vsub.s32 %v3522, %v3524
        %v3526 = vrot.slane %v1465, %v3525
        %v3528 = vunpack.c.l.s4 1987475062
        %v3529 = vunpack.c.0.s8 %v3528
        %v3530 = vlaneseq
        %v3531 = vshrl.u32 %v3530, 7
        %v3532 = vsub.s32 %v3529, %v3531
        %v3533 = vrot.slane %v1465, %v3532
        %v3535 = vunpack.c.l.s4 269488144
        %v3536 = vunpack.c.0.s8 %v3535
        %v3537 = vlaneseq
        %v3538 = vshrl.u32 %v3537, 7
        %v3539 = vsub.s32 %v3536, %v3538
        %v3540 = vrot.slane %v1468, %v3539
        %v3542 = vunpack.c.l.s4 842150450
        %v3543 = vunpack.c.0.s8 %v3542
        %v3544 = vlaneseq
        %v3545 = vshrl.u32 %v3544, 7
        %v3546 = vsub.s32 %v3543, %v3545
        %v3547 = vrot.slane %v1468, %v3546
        %v3549 = vunpack.c.l.s4 1414812756
        %v3550 = vunpack.c.0.s8 %v3549
        %v3551 = vlaneseq
        %v3552 = vshrl.u32 %v3551, 7
        %v3553 = vsub.s32 %v3550, %v3552
        %v3554 = vrot.slane %v1468, %v3553
        %v3556 = vunpack.c.l.s4 1987475062
        %v3557 = vunpack.c.0.s8 %v3556
        %v3558 = vlaneseq
        %v3559 = vshrl.u32 %v3558, 7
        %v3560 = vsub.s32 %v3557, %v3559
        %v3561 = vrot.slane %v1468, %v3560
        %v3563 = vunpack.c.l.s4 269488144
        %v3564 = vunpack.c.0.s8 %v3563
        %v3565 = vlaneseq
        %v3566 = vshrl.u32 %v3565, 7
        %v3567 = vsub.s32 %v3564, %v3566
        %v3568 = vrot.slane %v1471, %v3567
        %v3570 = vunpack.c.l.s4 842150450
        %v3571 = vunpack.c.0.s8 %v3570
        %v3572 = vlaneseq
        %v3573 = vshrl.u32 %v3572, 7
        %v3574 = vsub.s32 %v3571, %v3573
        %v3575 = vrot.slane %v1471, %v3574
        %v3577 = vunpack.c.l.s4 1414812756
        %v3578 = vunpack.c.0.s8 %v3577
        %v3579 = vlaneseq
        %v3580 = vshrl.u32 %v3579, 7
        %v3581 = vsub.s32 %v3578, %v3580
        %v3582 = vrot.slane %v1471, %v3581
        %v3584 = vunpack.c.l.s4 1987475062
        %v3585 = vunpack.c.0.s8 %v3584
        %v3586 = vlaneseq
        %v3587 = vshrl.u32 %v3586, 7
        %v3588 = vsub.s32 %v3585, %v3587
        %v3589 = vrot.slane %v1471, %v3588
        %v3591 = vunpack.c.l.s4 269488144
        %v3592 = vunpack.c.0.s8 %v3591
        %v3593 = vlaneseq
        %v3594 = vshrl.u32 %v3593, 7
        %v3595 = vsub.s32 %v3592, %v3594
        %v3596 = vrot.slane %v1474, %v3595
        %v3598 = vunpack.c.l.s4 842150450
        %v3599 = vunpack.c.0.s8 %v3598
        %v3600 = vlaneseq
        %v3601 = vshrl.u32 %v3600, 7
        %v3602 = vsub.s32 %v3599, %v3601
        %v3603 = vrot.slane %v1474, %v3602
        %v3605 = vunpack.c.l.s4 1414812756
        %v3606 = vunpack.c.0.s8 %v3605
        %v3607 = vlaneseq
        %v3608 = vshrl.u32 %v3607, 7
        %v3609 = vsub.s32 %v3606, %v3608
        %v3610 = vrot.slane %v1474, %v3609
        %v3612 = vunpack.c.l.s4 1987475062
        %v3613 = vunpack.c.0.s8 %v3612
        %v3614 = vlaneseq
        %v3615 = vshrl.u32 %v3614, 7
        %v3616 = vsub.s32 %v3613, %v3615
        %v3617 = vrot.slane %v1474, %v3616
        %v3619 = vunpack.c.l.s4 269488144
        %v3620 = vunpack.c.0.s8 %v3619
        %v3621 = vlaneseq
        %v3622 = vshrl.u32 %v3621, 7
        %v3623 = vsub.s32 %v3620, %v3622
        %v3624 = vrot.slane %v1477, %v3623
        %v3626 = vunpack.c.l.s4 842150450
        %v3627 = vunpack.c.0.s8 %v3626
        %v3628 = vlaneseq
        %v3629 = vshrl.u32 %v3628, 7
        %v3630 = vsub.s32 %v3627, %v3629
        %v3631 = vrot.slane %v1477, %v3630
        %v3633 = vunpack.c.l.s4 1414812756
        %v3634 = vunpack.c.0.s8 %v3633
        %v3635 = vlaneseq
        %v3636 = vshrl.u32 %v3635, 7
        %v3637 = vsub.s32 %v3634, %v3636
        %v3638 = vrot.slane %v1477, %v3637
        %v3640 = vunpack.c.l.s4 1987475062
        %v3641 = vunpack.c.0.s8 %v3640
        %v3642 = vlaneseq
        %v3643 = vshrl.u32 %v3642, 7
        %v3644 = vsub.s32 %v3641, %v3643
        %v3645 = vrot.slane %v1477, %v3644
        %v3647 = vunpack.c.l.s4 269488144
        %v3648 = vunpack.c.0.s8 %v3647
        %v3649 = vlaneseq
        %v3650 = vshrl.u32 %v3649, 7
        %v3651 = vsub.s32 %v3648, %v3650
        %v3652 = vrot.slane %v1480, %v3651
        %v3654 = vunpack.c.l.s4 842150450
        %v3655 = vunpack.c.0.s8 %v3654
        %v3656 = vlaneseq
        %v3657 = vshrl.u32 %v3656, 7
        %v3658 = vsub.s32 %v3655, %v3657
        %v3659 = vrot.slane %v1480, %v3658
        %v3661 = vunpack.c.l.s4 1414812756
        %v3662 = vunpack.c.0.s8 %v3661
        %v3663 = vlaneseq
        %v3664 = vshrl.u32 %v3663, 7
        %v3665 = vsub.s32 %v3662, %v3664
        %v3666 = vrot.slane %v1480, %v3665
        %v3668 = vunpack.c.l.s4 1987475062
        %v3669 = vunpack.c.0.s8 %v3668
        %v3670 = vlaneseq
        %v3671 = vshrl.u32 %v3670, 7
        %v3672 = vsub.s32 %v3669, %v3671
        %v3673 = vrot.slane %v1480, %v3672
        %v3675 = vunpack.c.l.s4 269488144
        %v3676 = vunpack.c.0.s8 %v3675
        %v3677 = vlaneseq
        %v3678 = vshrl.u32 %v3677, 7
        %v3679 = vsub.s32 %v3676, %v3678
        %v3680 = vrot.slane %v1483, %v3679
        %v3682 = vunpack.c.l.s4 842150450
        %v3683 = vunpack.c.0.s8 %v3682
        %v3684 = vlaneseq
        %v3685 = vshrl.u32 %v3684, 7
        %v3686 = vsub.s32 %v3683, %v3685
        %v3687 = vrot.slane %v1483, %v3686
        %v3689 = vunpack.c.l.s4 1414812756
        %v3690 = vunpack.c.0.s8 %v3689
        %v3691 = vlaneseq
        %v3692 = vshrl.u32 %v3691, 7
        %v3693 = vsub.s32 %v3690, %v3692
        %v3694 = vrot.slane %v1483, %v3693
        %v3696 = vunpack.c.l.s4 1987475062
        %v3697 = vunpack.c.0.s8 %v3696
        %v3698 = vlaneseq
        %v3699 = vshrl.u32 %v3698, 7
        %v3700 = vsub.s32 %v3697, %v3699
        %v3701 = vrot.slane %v1483, %v3700
        %v3703 = vunpack.c.l.s4 269488144
        %v3704 = vunpack.c.0.s8 %v3703
        %v3705 = vlaneseq
        %v3706 = vshrl.u32 %v3705, 7
        %v3707 = vsub.s32 %v3704, %v3706
        %v3708 = vrot.slane %v1486, %v3707
        %v3710 = vunpack.c.l.s4 842150450
        %v3711 = vunpack.c.0.s8 %v3710
        %v3712 = vlaneseq
        %v3713 = vshrl.u32 %v3712, 7
        %v3714 = vsub.s32 %v3711, %v3713
        %v3715 = vrot.slane %v1486, %v3714
        %v3717 = vunpack.c.l.s4 1414812756
        %v3718 = vunpack.c.0.s8 %v3717
        %v3719 = vlaneseq
        %v3720 = vshrl.u32 %v3719, 7
        %v3721 = vsub.s32 %v3718, %v3720
        %v3722 = vrot.slane %v1486, %v3721
        %v3724 = vunpack.c.l.s4 1987475062
        %v3725 = vunpack.c.0.s8 %v3724
        %v3726 = vlaneseq
        %v3727 = vshrl.u32 %v3726, 7
        %v3728 = vsub.s32 %v3725, %v3727
        %v3729 = vrot.slane %v1486, %v3728
        %v3731 = vunpack.c.l.s4 269488144
        %v3732 = vunpack.c.0.s8 %v3731
        %v3733 = vlaneseq
        %v3734 = vshrl.u32 %v3733, 7
        %v3735 = vsub.s32 %v3732, %v3734
        %v3736 = vrot.slane %v1489, %v3735
        %v3738 = vunpack.c.l.s4 842150450
        %v3739 = vunpack.c.0.s8 %v3738
        %v3740 = vlaneseq
        %v3741 = vshrl.u32 %v3740, 7
        %v3742 = vsub.s32 %v3739, %v3741
        %v3743 = vrot.slane %v1489, %v3742
        %v3745 = vunpack.c.l.s4 1414812756
        %v3746 = vunpack.c.0.s8 %v3745
        %v3747 = vlaneseq
        %v3748 = vshrl.u32 %v3747, 7
        %v3749 = vsub.s32 %v3746, %v3748
        %v3750 = vrot.slane %v1489, %v3749
        %v3752 = vunpack.c.l.s4 1987475062
        %v3753 = vunpack.c.0.s8 %v3752
        %v3754 = vlaneseq
        %v3755 = vshrl.u32 %v3754, 7
        %v3756 = vsub.s32 %v3753, %v3755
        %v3757 = vrot.slane %v1489, %v3756
        %v3759 = vunpack.c.l.s4 269488144
        %v3760 = vunpack.c.0.s8 %v3759
        %v3761 = vlaneseq
        %v3762 = vshrl.u32 %v3761, 7
        %v3763 = vsub.s32 %v3760, %v3762
        %v3764 = vrot.slane %v1492, %v3763
        %v3766 = vunpack.c.l.s4 842150450
        %v3767 = vunpack.c.0.s8 %v3766
        %v3768 = vlaneseq
        %v3769 = vshrl.u32 %v3768, 7
        %v3770 = vsub.s32 %v3767, %v3769
        %v3771 = vrot.slane %v1492, %v3770
        %v3773 = vunpack.c.l.s4 1414812756
        %v3774 = vunpack.c.0.s8 %v3773
        %v3775 = vlaneseq
        %v3776 = vshrl.u32 %v3775, 7
        %v3777 = vsub.s32 %v3774, %v3776
        %v3778 = vrot.slane %v1492, %v3777
        %v3780 = vunpack.c.l.s4 1987475062
        %v3781 = vunpack.c.0.s8 %v3780
        %v3782 = vlaneseq
        %v3783 = vshrl.u32 %v3782, 7
        %v3784 = vsub.s32 %v3781, %v3783
        %v3785 = vrot.slane %v1492, %v3784
        %v3787 = vunpack.c.l.s4 269488144
        %v3788 = vunpack.c.0.s8 %v3787
        %v3789 = vlaneseq
        %v3790 = vshrl.u32 %v3789, 7
        %v3791 = vsub.s32 %v3788, %v3790
        %v3792 = vrot.slane %v1495, %v3791
        %v3794 = vunpack.c.l.s4 842150450
        %v3795 = vunpack.c.0.s8 %v3794
        %v3796 = vlaneseq
        %v3797 = vshrl.u32 %v3796, 7
        %v3798 = vsub.s32 %v3795, %v3797
        %v3799 = vrot.slane %v1495, %v3798
        %v3801 = vunpack.c.l.s4 1414812756
        %v3802 = vunpack.c.0.s8 %v3801
        %v3803 = vlaneseq
        %v3804 = vshrl.u32 %v3803, 7
        %v3805 = vsub.s32 %v3802, %v3804
        %v3806 = vrot.slane %v1495, %v3805
        %v3808 = vunpack.c.l.s4 1987475062
        %v3809 = vunpack.c.0.s8 %v3808
        %v3810 = vlaneseq
        %v3811 = vshrl.u32 %v3810, 7
        %v3812 = vsub.s32 %v3809, %v3811
        %v3813 = vrot.slane %v1495, %v3812
        %v3815 = vunpack.c.l.s4 269488144
        %v3816 = vunpack.c.0.s8 %v3815
        %v3817 = vlaneseq
        %v3818 = vshrl.u32 %v3817, 7
        %v3819 = vsub.s32 %v3816, %v3818
        %v3820 = vrot.slane %v1498, %v3819
        %v3822 = vunpack.c.l.s4 842150450
        %v3823 = vunpack.c.0.s8 %v3822
        %v3824 = vlaneseq
        %v3825 = vshrl.u32 %v3824, 7
        %v3826 = vsub.s32 %v3823, %v3825
        %v3827 = vrot.slane %v1498, %v3826
        %v3829 = vunpack.c.l.s4 1414812756
        %v3830 = vunpack.c.0.s8 %v3829
        %v3831 = vlaneseq
        %v3832 = vshrl.u32 %v3831, 7
        %v3833 = vsub.s32 %v3830, %v3832
        %v3834 = vrot.slane %v1498, %v3833
        %v3836 = vunpack.c.l.s4 1987475062
        %v3837 = vunpack.c.0.s8 %v3836
        %v3838 = vlaneseq
        %v3839 = vshrl.u32 %v3838, 7
        %v3840 = vsub.s32 %v3837, %v3839
        %v3841 = vrot.slane %v1498, %v3840
        %v3843 = vunpack.c.l.s4 269488144
        %v3844 = vunpack.c.0.s8 %v3843
        %v3845 = vlaneseq
        %v3846 = vshrl.u32 %v3845, 7
        %v3847 = vsub.s32 %v3844, %v3846
        %v3848 = vrot.slane %v1501, %v3847
        %v3850 = vunpack.c.l.s4 842150450
        %v3851 = vunpack.c.0.s8 %v3850
        %v3852 = vlaneseq
        %v3853 = vshrl.u32 %v3852, 7
        %v3854 = vsub.s32 %v3851, %v3853
        %v3855 = vrot.slane %v1501, %v3854
        %v3857 = vunpack.c.l.s4 1414812756
        %v3858 = vunpack.c.0.s8 %v3857
        %v3859 = vlaneseq
        %v3860 = vshrl.u32 %v3859, 7
        %v3861 = vsub.s32 %v3858, %v3860
        %v3862 = vrot.slane %v1501, %v3861
        %v3864 = vunpack.c.l.s4 1987475062
        %v3865 = vunpack.c.0.s8 %v3864
        %v3866 = vlaneseq
        %v3867 = vshrl.u32 %v3866, 7
        %v3868 = vsub.s32 %v3865, %v3867
        %v3869 = vrot.slane %v1501, %v3868
        %v3871 = vunpack.c.l.s4 269488144
        %v3872 = vunpack.c.0.s8 %v3871
        %v3873 = vlaneseq
        %v3874 = vshrl.u32 %v3873, 7
        %v3875 = vsub.s32 %v3872, %v3874
        %v3876 = vrot.slane %v1504, %v3875
        %v3878 = vunpack.c.l.s4 842150450
        %v3879 = vunpack.c.0.s8 %v3878
        %v3880 = vlaneseq
        %v3881 = vshrl.u32 %v3880, 7
        %v3882 = vsub.s32 %v3879, %v3881
        %v3883 = vrot.slane %v1504, %v3882
        %v3885 = vunpack.c.l.s4 1414812756
        %v3886 = vunpack.c.0.s8 %v3885
        %v3887 = vlaneseq
        %v3888 = vshrl.u32 %v3887, 7
        %v3889 = vsub.s32 %v3886, %v3888
        %v3890 = vrot.slane %v1504, %v3889
        %v3892 = vunpack.c.l.s4 1987475062
        %v3893 = vunpack.c.0.s8 %v3892
        %v3894 = vlaneseq
        %v3895 = vshrl.u32 %v3894, 7
        %v3896 = vsub.s32 %v3893, %v3895
        %v3897 = vrot.slane %v1504, %v3896
        %v3899 = vunpack.c.l.s4 269488144
        %v3900 = vunpack.c.0.s8 %v3899
        %v3901 = vlaneseq
        %v3902 = vshrl.u32 %v3901, 7
        %v3903 = vsub.s32 %v3900, %v3902
        %v3904 = vrot.slane %v1507, %v3903
        %v3906 = vunpack.c.l.s4 842150450
        %v3907 = vunpack.c.0.s8 %v3906
        %v3908 = vlaneseq
        %v3909 = vshrl.u32 %v3908, 7
        %v3910 = vsub.s32 %v3907, %v3909
        %v3911 = vrot.slane %v1507, %v3910
        %v3913 = vunpack.c.l.s4 1414812756
        %v3914 = vunpack.c.0.s8 %v3913
        %v3915 = vlaneseq
        %v3916 = vshrl.u32 %v3915, 7
        %v3917 = vsub.s32 %v3914, %v3916
        %v3918 = vrot.slane %v1507, %v3917
        %v3920 = vunpack.c.l.s4 1987475062
        %v3921 = vunpack.c.0.s8 %v3920
        %v3922 = vlaneseq
        %v3923 = vshrl.u32 %v3922, 7
        %v3924 = vsub.s32 %v3921, %v3923
        %v3925 = vrot.slane %v1507, %v3924
        %v3927 = vunpack.c.l.s4 269488144
        %v3928 = vunpack.c.0.s8 %v3927
        %v3929 = vlaneseq
        %v3930 = vshrl.u32 %v3929, 7
        %v3931 = vsub.s32 %v3928, %v3930
        %v3932 = vrot.slane %v1510, %v3931
        %v3934 = vunpack.c.l.s4 842150450
        %v3935 = vunpack.c.0.s8 %v3934
        %v3936 = vlaneseq
        %v3937 = vshrl.u32 %v3936, 7
        %v3938 = vsub.s32 %v3935, %v3937
        %v3939 = vrot.slane %v1510, %v3938
        %v3941 = vunpack.c.l.s4 1414812756
        %v3942 = vunpack.c.0.s8 %v3941
        %v3943 = vlaneseq
        %v3944 = vshrl.u32 %v3943, 7
        %v3945 = vsub.s32 %v3942, %v3944
        %v3946 = vrot.slane %v1510, %v3945
        %v3948 = vunpack.c.l.s4 1987475062
        %v3949 = vunpack.c.0.s8 %v3948
        %v3950 = vlaneseq
        %v3951 = vshrl.u32 %v3950, 7
        %v3952 = vsub.s32 %v3949, %v3951
        %v3953 = vrot.slane %v1510, %v3952
        %v3955 = vunpack.c.l.s4 269488144
        %v3956 = vunpack.c.0.s8 %v3955
        %v3957 = vlaneseq
        %v3958 = vshrl.u32 %v3957, 7
        %v3959 = vsub.s32 %v3956, %v3958
        %v3960 = vrot.slane %v1513, %v3959
        %v3962 = vunpack.c.l.s4 842150450
        %v3963 = vunpack.c.0.s8 %v3962
        %v3964 = vlaneseq
        %v3965 = vshrl.u32 %v3964, 7
        %v3966 = vsub.s32 %v3963, %v3965
        %v3967 = vrot.slane %v1513, %v3966
        %v3969 = vunpack.c.l.s4 1414812756
        %v3970 = vunpack.c.0.s8 %v3969
        %v3971 = vlaneseq
        %v3972 = vshrl.u32 %v3971, 7
        %v3973 = vsub.s32 %v3970, %v3972
        %v3974 = vrot.slane %v1513, %v3973
        %v3976 = vunpack.c.l.s4 1987475062
        %v3977 = vunpack.c.0.s8 %v3976
        %v3978 = vlaneseq
        %v3979 = vshrl.u32 %v3978, 7
        %v3980 = vsub.s32 %v3977, %v3979
        %v3981 = vrot.slane %v1513, %v3980
        %v3983 = vunpack.c.l.s4 269488144
        %v3984 = vunpack.c.0.s8 %v3983
        %v3985 = vlaneseq
        %v3986 = vshrl.u32 %v3985, 7
        %v3987 = vsub.s32 %v3984, %v3986
        %v3988 = vrot.slane %v1516, %v3987
        %v3990 = vunpack.c.l.s4 842150450
        %v3991 = vunpack.c.0.s8 %v3990
        %v3992 = vlaneseq
        %v3993 = vshrl.u32 %v3992, 7
        %v3994 = vsub.s32 %v3991, %v3993
        %v3995 = vrot.slane %v1516, %v3994
        %v3997 = vunpack.c.l.s4 1414812756
        %v3998 = vunpack.c.0.s8 %v3997
        %v3999 = vlaneseq
        %v4000 = vshrl.u32 %v3999, 7
        %v4001 = vsub.s32 %v3998, %v4000
        %v4002 = vrot.slane %v1516, %v4001
        %v4004 = vunpack.c.l.s4 1987475062
        %v4005 = vunpack.c.0.s8 %v4004
        %v4006 = vlaneseq
        %v4007 = vshrl.u32 %v4006, 7
        %v4008 = vsub.s32 %v4005, %v4007
        %v4009 = vrot.slane %v1516, %v4008
        %v4011 = vunpack.c.l.s4 269488144
        %v4012 = vunpack.c.0.s8 %v4011
        %v4013 = vlaneseq
        %v4014 = vshrl.u32 %v4013, 7
        %v4015 = vsub.s32 %v4012, %v4014
        %v4016 = vrot.slane %v1519, %v4015
        %v4018 = vunpack.c.l.s4 842150450
        %v4019 = vunpack.c.0.s8 %v4018
        %v4020 = vlaneseq
        %v4021 = vshrl.u32 %v4020, 7
        %v4022 = vsub.s32 %v4019, %v4021
        %v4023 = vrot.slane %v1519, %v4022
        %v4025 = vunpack.c.l.s4 1414812756
        %v4026 = vunpack.c.0.s8 %v4025
        %v4027 = vlaneseq
        %v4028 = vshrl.u32 %v4027, 7
        %v4029 = vsub.s32 %v4026, %v4028
        %v4030 = vrot.slane %v1519, %v4029
        %v4032 = vunpack.c.l.s4 1987475062
        %v4033 = vunpack.c.0.s8 %v4032
        %v4034 = vlaneseq
        %v4035 = vshrl.u32 %v4034, 7
        %v4036 = vsub.s32 %v4033, %v4035
        %v4037 = vrot.slane %v1519, %v4036
        %v4039 = vunpack.c.l.s4 269488144
        %v4040 = vunpack.c.0.s8 %v4039
        %v4041 = vlaneseq
        %v4042 = vshrl.u32 %v4041, 7
        %v4043 = vsub.s32 %v4040, %v4042
        %v4044 = vrot.slane %v1522, %v4043
        %v4046 = vunpack.c.l.s4 842150450
        %v4047 = vunpack.c.0.s8 %v4046
        %v4048 = vlaneseq
        %v4049 = vshrl.u32 %v4048, 7
        %v4050 = vsub.s32 %v4047, %v4049
        %v4051 = vrot.slane %v1522, %v4050
        %v4053 = vunpack.c.l.s4 1414812756
        %v4054 = vunpack.c.0.s8 %v4053
        %v4055 = vlaneseq
        %v4056 = vshrl.u32 %v4055, 7
        %v4057 = vsub.s32 %v4054, %v4056
        %v4058 = vrot.slane %v1522, %v4057
        %v4060 = vunpack.c.l.s4 1987475062
        %v4061 = vunpack.c.0.s8 %v4060
        %v4062 = vlaneseq
        %v4063 = vshrl.u32 %v4062, 7
        %v4064 = vsub.s32 %v4061, %v4063
        %v4065 = vrot.slane %v1522, %v4064
        %v4067 = vunpack.c.l.s4 269488144
        %v4068 = vunpack.c.0.s8 %v4067
        %v4069 = vlaneseq
        %v4070 = vshrl.u32 %v4069, 7
        %v4071 = vsub.s32 %v4068, %v4070
        %v4072 = vrot.slane %v1525, %v4071
        %v4074 = vunpack.c.l.s4 842150450
        %v4075 = vunpack.c.0.s8 %v4074
        %v4076 = vlaneseq
        %v4077 = vshrl.u32 %v4076, 7
        %v4078 = vsub.s32 %v4075, %v4077
        %v4079 = vrot.slane %v1525, %v4078
        %v4081 = vunpack.c.l.s4 1414812756
        %v4082 = vunpack.c.0.s8 %v4081
        %v4083 = vlaneseq
        %v4084 = vshrl.u32 %v4083, 7
        %v4085 = vsub.s32 %v4082, %v4084
        %v4086 = vrot.slane %v1525, %v4085
        %v4088 = vunpack.c.l.s4 1987475062
        %v4089 = vunpack.c.0.s8 %v4088
        %v4090 = vlaneseq
        %v4091 = vshrl.u32 %v4090, 7
        %v4092 = vsub.s32 %v4089, %v4091
        %v4093 = vrot.slane %v1525, %v4092
        %v4095 = vunpack.c.l.s4 269488144
        %v4096 = vunpack.c.0.s8 %v4095
        %v4097 = vlaneseq
        %v4098 = vshrl.u32 %v4097, 7
        %v4099 = vsub.s32 %v4096, %v4098
        %v4100 = vrot.slane %v1528, %v4099
        %v4102 = vunpack.c.l.s4 842150450
        %v4103 = vunpack.c.0.s8 %v4102
        %v4104 = vlaneseq
        %v4105 = vshrl.u32 %v4104, 7
        %v4106 = vsub.s32 %v4103, %v4105
        %v4107 = vrot.slane %v1528, %v4106
        %v4109 = vunpack.c.l.s4 1414812756
        %v4110 = vunpack.c.0.s8 %v4109
        %v4111 = vlaneseq
        %v4112 = vshrl.u32 %v4111, 7
        %v4113 = vsub.s32 %v4110, %v4112
        %v4114 = vrot.slane %v1528, %v4113
        %v4116 = vunpack.c.l.s4 1987475062
        %v4117 = vunpack.c.0.s8 %v4116
        %v4118 = vlaneseq
        %v4119 = vshrl.u32 %v4118, 7
        %v4120 = vsub.s32 %v4117, %v4119
        %v4121 = vrot.slane %v1528, %v4120
        %v4123 = vunpack.c.l.s4 269488144
        %v4124 = vunpack.c.0.s8 %v4123
        %v4125 = vlaneseq
        %v4126 = vshrl.u32 %v4125, 7
        %v4127 = vsub.s32 %v4124, %v4126
        %v4128 = vrot.slane %v1531, %v4127
        %v4130 = vunpack.c.l.s4 842150450
        %v4131 = vunpack.c.0.s8 %v4130
        %v4132 = vlaneseq
        %v4133 = vshrl.u32 %v4132, 7
        %v4134 = vsub.s32 %v4131, %v4133
        %v4135 = vrot.slane %v1531, %v4134
        %v4137 = vunpack.c.l.s4 1414812756
        %v4138 = vunpack.c.0.s8 %v4137
        %v4139 = vlaneseq
        %v4140 = vshrl.u32 %v4139, 7
        %v4141 = vsub.s32 %v4138, %v4140
        %v4142 = vrot.slane %v1531, %v4141
        %v4144 = vunpack.c.l.s4 1987475062
        %v4145 = vunpack.c.0.s8 %v4144
        %v4146 = vlaneseq
        %v4147 = vshrl.u32 %v4146, 7
        %v4148 = vsub.s32 %v4145, %v4147
        %v4149 = vrot.slane %v1531, %v4148
        %v4151 = vunpack.c.l.s4 269488144
        %v4152 = vunpack.c.0.s8 %v4151
        %v4153 = vlaneseq
        %v4154 = vshrl.u32 %v4153, 7
        %v4155 = vsub.s32 %v4152, %v4154
        %v4156 = vrot.slane %v1534, %v4155
        %v4158 = vunpack.c.l.s4 842150450
        %v4159 = vunpack.c.0.s8 %v4158
        %v4160 = vlaneseq
        %v4161 = vshrl.u32 %v4160, 7
        %v4162 = vsub.s32 %v4159, %v4161
        %v4163 = vrot.slane %v1534, %v4162
        %v4165 = vunpack.c.l.s4 1414812756
        %v4166 = vunpack.c.0.s8 %v4165
        %v4167 = vlaneseq
        %v4168 = vshrl.u32 %v4167, 7
        %v4169 = vsub.s32 %v4166, %v4168
        %v4170 = vrot.slane %v1534, %v4169
        %v4172 = vunpack.c.l.s4 1987475062
        %v4173 = vunpack.c.0.s8 %v4172
        %v4174 = vlaneseq
        %v4175 = vshrl.u32 %v4174, 7
        %v4176 = vsub.s32 %v4173, %v4175
        %v4177 = vrot.slane %v1534, %v4176
        %v4179 = vunpack.c.l.s4 269488144
        %v4180 = vunpack.c.0.s8 %v4179
        %v4181 = vlaneseq
        %v4182 = vshrl.u32 %v4181, 7
        %v4183 = vsub.s32 %v4180, %v4182
        %v4184 = vrot.slane %v1537, %v4183
        %v4186 = vunpack.c.l.s4 842150450
        %v4187 = vunpack.c.0.s8 %v4186
        %v4188 = vlaneseq
        %v4189 = vshrl.u32 %v4188, 7
        %v4190 = vsub.s32 %v4187, %v4189
        %v4191 = vrot.slane %v1537, %v4190
        %v4193 = vunpack.c.l.s4 1414812756
        %v4194 = vunpack.c.0.s8 %v4193
        %v4195 = vlaneseq
        %v4196 = vshrl.u32 %v4195, 7
        %v4197 = vsub.s32 %v4194, %v4196
        %v4198 = vrot.slane %v1537, %v4197
        %v4200 = vunpack.c.l.s4 1987475062
        %v4201 = vunpack.c.0.s8 %v4200
        %v4202 = vlaneseq
        %v4203 = vshrl.u32 %v4202, 7
        %v4204 = vsub.s32 %v4201, %v4203
        %v4205 = vrot.slane %v1537, %v4204
        %v4207 = vunpack.c.l.s4 269488144
        %v4208 = vunpack.c.0.s8 %v4207
        %v4209 = vlaneseq
        %v4210 = vshrl.u32 %v4209, 7
        %v4211 = vsub.s32 %v4208, %v4210
        %v4212 = vrot.slane %v1540, %v4211
        %v4214 = vunpack.c.l.s4 842150450
        %v4215 = vunpack.c.0.s8 %v4214
        %v4216 = vlaneseq
        %v4217 = vshrl.u32 %v4216, 7
        %v4218 = vsub.s32 %v4215, %v4217
        %v4219 = vrot.slane %v1540, %v4218
        %v4221 = vunpack.c.l.s4 1414812756
        %v4222 = vunpack.c.0.s8 %v4221
        %v4223 = vlaneseq
        %v4224 = vshrl.u32 %v4223, 7
        %v4225 = vsub.s32 %v4222, %v4224
        %v4226 = vrot.slane %v1540, %v4225
        %v4228 = vunpack.c.l.s4 1987475062
        %v4229 = vunpack.c.0.s8 %v4228
        %v4230 = vlaneseq
        %v4231 = vshrl.u32 %v4230, 7
        %v4232 = vsub.s32 %v4229, %v4231
        %v4233 = vrot.slane %v1540, %v4232
        %v4235 = vunpack.c.l.s4 269488144
        %v4236 = vunpack.c.0.s8 %v4235
        %v4237 = vlaneseq
        %v4238 = vshrl.u32 %v4237, 7
        %v4239 = vsub.s32 %v4236, %v4238
        %v4240 = vrot.slane %v1543, %v4239
        %v4242 = vunpack.c.l.s4 842150450
        %v4243 = vunpack.c.0.s8 %v4242
        %v4244 = vlaneseq
        %v4245 = vshrl.u32 %v4244, 7
        %v4246 = vsub.s32 %v4243, %v4245
        %v4247 = vrot.slane %v1543, %v4246
        %v4249 = vunpack.c.l.s4 1414812756
        %v4250 = vunpack.c.0.s8 %v4249
        %v4251 = vlaneseq
        %v4252 = vshrl.u32 %v4251, 7
        %v4253 = vsub.s32 %v4250, %v4252
        %v4254 = vrot.slane %v1543, %v4253
        %v4256 = vunpack.c.l.s4 1987475062
        %v4257 = vunpack.c.0.s8 %v4256
        %v4258 = vlaneseq
        %v4259 = vshrl.u32 %v4258, 7
        %v4260 = vsub.s32 %v4257, %v4259
        %v4261 = vrot.slane %v1543, %v4260
        %v4263 = vunpack.c.l.s4 269488144
        %v4264 = vunpack.c.0.s8 %v4263
        %v4265 = vlaneseq
        %v4266 = vshrl.u32 %v4265, 7
        %v4267 = vsub.s32 %v4264, %v4266
        %v4268 = vrot.slane %v1546, %v4267
        %v4270 = vunpack.c.l.s4 842150450
        %v4271 = vunpack.c.0.s8 %v4270
        %v4272 = vlaneseq
        %v4273 = vshrl.u32 %v4272, 7
        %v4274 = vsub.s32 %v4271, %v4273
        %v4275 = vrot.slane %v1546, %v4274
        %v4277 = vunpack.c.l.s4 1414812756
        %v4278 = vunpack.c.0.s8 %v4277
        %v4279 = vlaneseq
        %v4280 = vshrl.u32 %v4279, 7
        %v4281 = vsub.s32 %v4278, %v4280
        %v4282 = vrot.slane %v1546, %v4281
        %v4284 = vunpack.c.l.s4 1987475062
        %v4285 = vunpack.c.0.s8 %v4284
        %v4286 = vlaneseq
        %v4287 = vshrl.u32 %v4286, 7
        %v4288 = vsub.s32 %v4285, %v4287
        %v4289 = vrot.slane %v1546, %v4288
        %v4291 = vunpack.c.l.s4 269488144
        %v4292 = vunpack.c.0.s8 %v4291
        %v4293 = vlaneseq
        %v4294 = vshrl.u32 %v4293, 7
        %v4295 = vsub.s32 %v4292, %v4294
        %v4296 = vrot.slane %v1549, %v4295
        %v4298 = vunpack.c.l.s4 842150450
        %v4299 = vunpack.c.0.s8 %v4298
        %v4300 = vlaneseq
        %v4301 = vshrl.u32 %v4300, 7
        %v4302 = vsub.s32 %v4299, %v4301
        %v4303 = vrot.slane %v1549, %v4302
        %v4305 = vunpack.c.l.s4 1414812756
        %v4306 = vunpack.c.0.s8 %v4305
        %v4307 = vlaneseq
        %v4308 = vshrl.u32 %v4307, 7
        %v4309 = vsub.s32 %v4306, %v4308
        %v4310 = vrot.slane %v1549, %v4309
        %v4312 = vunpack.c.l.s4 1987475062
        %v4313 = vunpack.c.0.s8 %v4312
        %v4314 = vlaneseq
        %v4315 = vshrl.u32 %v4314, 7
        %v4316 = vsub.s32 %v4313, %v4315
        %v4317 = vrot.slane %v1549, %v4316
        %v4319 = vunpack.c.l.s4 269488144
        %v4320 = vunpack.c.0.s8 %v4319
        %v4321 = vlaneseq
        %v4322 = vshrl.u32 %v4321, 7
        %v4323 = vsub.s32 %v4320, %v4322
        %v4324 = vrot.slane %v1552, %v4323
        %v4326 = vunpack.c.l.s4 842150450
        %v4327 = vunpack.c.0.s8 %v4326
        %v4328 = vlaneseq
        %v4329 = vshrl.u32 %v4328, 7
        %v4330 = vsub.s32 %v4327, %v4329
        %v4331 = vrot.slane %v1552, %v4330
        %v4333 = vunpack.c.l.s4 1414812756
        %v4334 = vunpack.c.0.s8 %v4333
        %v4335 = vlaneseq
        %v4336 = vshrl.u32 %v4335, 7
        %v4337 = vsub.s32 %v4334, %v4336
        %v4338 = vrot.slane %v1552, %v4337
        %v4340 = vunpack.c.l.s4 1987475062
        %v4341 = vunpack.c.0.s8 %v4340
        %v4342 = vlaneseq
        %v4343 = vshrl.u32 %v4342, 7
        %v4344 = vsub.s32 %v4341, %v4343
        %v4345 = vrot.slane %v1552, %v4344
        %v4347 = vunpack.c.l.s4 269488144
        %v4348 = vunpack.c.0.s8 %v4347
        %v4349 = vlaneseq
        %v4350 = vshrl.u32 %v4349, 7
        %v4351 = vsub.s32 %v4348, %v4350
        %v4352 = vrot.slane %v1555, %v4351
        %v4354 = vunpack.c.l.s4 842150450
        %v4355 = vunpack.c.0.s8 %v4354
        %v4356 = vlaneseq
        %v4357 = vshrl.u32 %v4356, 7
        %v4358 = vsub.s32 %v4355, %v4357
        %v4359 = vrot.slane %v1555, %v4358
        %v4361 = vunpack.c.l.s4 1414812756
        %v4362 = vunpack.c.0.s8 %v4361
        %v4363 = vlaneseq
        %v4364 = vshrl.u32 %v4363, 7
        %v4365 = vsub.s32 %v4362, %v4364
        %v4366 = vrot.slane %v1555, %v4365
        %v4368 = vunpack.c.l.s4 1987475062
        %v4369 = vunpack.c.0.s8 %v4368
        %v4370 = vlaneseq
        %v4371 = vshrl.u32 %v4370, 7
        %v4372 = vsub.s32 %v4369, %v4371
        %v4373 = vrot.slane %v1555, %v4372
        %v4375 = vunpack.c.l.s4 269488144
        %v4376 = vunpack.c.0.s8 %v4375
        %v4377 = vlaneseq
        %v4378 = vshrl.u32 %v4377, 7
        %v4379 = vsub.s32 %v4376, %v4378
        %v4380 = vrot.slane %v1558, %v4379
        %v4382 = vunpack.c.l.s4 842150450
        %v4383 = vunpack.c.0.s8 %v4382
        %v4384 = vlaneseq
        %v4385 = vshrl.u32 %v4384, 7
        %v4386 = vsub.s32 %v4383, %v4385
        %v4387 = vrot.slane %v1558, %v4386
        %v4389 = vunpack.c.l.s4 1414812756
        %v4390 = vunpack.c.0.s8 %v4389
        %v4391 = vlaneseq
        %v4392 = vshrl.u32 %v4391, 7
        %v4393 = vsub.s32 %v4390, %v4392
        %v4394 = vrot.slane %v1558, %v4393
        %v4396 = vunpack.c.l.s4 1987475062
        %v4397 = vunpack.c.0.s8 %v4396
        %v4398 = vlaneseq
        %v4399 = vshrl.u32 %v4398, 7
        %v4400 = vsub.s32 %v4397, %v4399
        %v4401 = vrot.slane %v1558, %v4400
        %v4403 = vunpack.c.l.s4 269488144
        %v4404 = vunpack.c.0.s8 %v4403
        %v4405 = vlaneseq
        %v4406 = vshrl.u32 %v4405, 7
        %v4407 = vsub.s32 %v4404, %v4406
        %v4408 = vrot.slane %v1561, %v4407
        %v4410 = vunpack.c.l.s4 842150450
        %v4411 = vunpack.c.0.s8 %v4410
        %v4412 = vlaneseq
        %v4413 = vshrl.u32 %v4412, 7
        %v4414 = vsub.s32 %v4411, %v4413
        %v4415 = vrot.slane %v1561, %v4414
        %v4417 = vunpack.c.l.s4 1414812756
        %v4418 = vunpack.c.0.s8 %v4417
        %v4419 = vlaneseq
        %v4420 = vshrl.u32 %v4419, 7
        %v4421 = vsub.s32 %v4418, %v4420
        %v4422 = vrot.slane %v1561, %v4421
        %v4424 = vunpack.c.l.s4 1987475062
        %v4425 = vunpack.c.0.s8 %v4424
        %v4426 = vlaneseq
        %v4427 = vshrl.u32 %v4426, 7
        %v4428 = vsub.s32 %v4425, %v4427
        %v4429 = vrot.slane %v1561, %v4428
        %v4431 = vunpack.c.l.s4 269488144
        %v4432 = vunpack.c.0.s8 %v4431
        %v4433 = vlaneseq
        %v4434 = vshrl.u32 %v4433, 7
        %v4435 = vsub.s32 %v4432, %v4434
        %v4436 = vrot.slane %v1564, %v4435
        %v4438 = vunpack.c.l.s4 842150450
        %v4439 = vunpack.c.0.s8 %v4438
        %v4440 = vlaneseq
        %v4441 = vshrl.u32 %v4440, 7
        %v4442 = vsub.s32 %v4439, %v4441
        %v4443 = vrot.slane %v1564, %v4442
        %v4445 = vunpack.c.l.s4 1414812756
        %v4446 = vunpack.c.0.s8 %v4445
        %v4447 = vlaneseq
        %v4448 = vshrl.u32 %v4447, 7
        %v4449 = vsub.s32 %v4446, %v4448
        %v4450 = vrot.slane %v1564, %v4449
        %v4452 = vunpack.c.l.s4 1987475062
        %v4453 = vunpack.c.0.s8 %v4452
        %v4454 = vlaneseq
        %v4455 = vshrl.u32 %v4454, 7
        %v4456 = vsub.s32 %v4453, %v4455
        %v4457 = vrot.slane %v1564, %v4456
        %v4459 = vunpack.c.l.s4 269488144
        %v4460 = vunpack.c.0.s8 %v4459
        %v4461 = vlaneseq
        %v4462 = vshrl.u32 %v4461, 7
        %v4463 = vsub.s32 %v4460, %v4462
        %v4464 = vrot.slane %v1567, %v4463
        %v4466 = vunpack.c.l.s4 842150450
        %v4467 = vunpack.c.0.s8 %v4466
        %v4468 = vlaneseq
        %v4469 = vshrl.u32 %v4468, 7
        %v4470 = vsub.s32 %v4467, %v4469
        %v4471 = vrot.slane %v1567, %v4470
        %v4473 = vunpack.c.l.s4 1414812756
        %v4474 = vunpack.c.0.s8 %v4473
        %v4475 = vlaneseq
        %v4476 = vshrl.u32 %v4475, 7
        %v4477 = vsub.s32 %v4474, %v4476
        %v4478 = vrot.slane %v1567, %v4477
        %v4480 = vunpack.c.l.s4 1987475062
        %v4481 = vunpack.c.0.s8 %v4480
        %v4482 = vlaneseq
        %v4483 = vshrl.u32 %v4482, 7
        %v4484 = vsub.s32 %v4481, %v4483
        %v4485 = vrot.slane %v1567, %v4484
        %v4487 = vunpack.c.l.s4 269488144
        %v4488 = vunpack.c.0.s8 %v4487
        %v4489 = vlaneseq
        %v4490 = vshrl.u32 %v4489, 7
        %v4491 = vsub.s32 %v4488, %v4490
        %v4492 = vrot.slane %v1570, %v4491
        %v4494 = vunpack.c.l.s4 842150450
        %v4495 = vunpack.c.0.s8 %v4494
        %v4496 = vlaneseq
        %v4497 = vshrl.u32 %v4496, 7
        %v4498 = vsub.s32 %v4495, %v4497
        %v4499 = vrot.slane %v1570, %v4498
        %v4501 = vunpack.c.l.s4 1414812756
        %v4502 = vunpack.c.0.s8 %v4501
        %v4503 = vlaneseq
        %v4504 = vshrl.u32 %v4503, 7
        %v4505 = vsub.s32 %v4502, %v4504
        %v4506 = vrot.slane %v1570, %v4505
        %v4508 = vunpack.c.l.s4 1987475062
        %v4509 = vunpack.c.0.s8 %v4508
        %v4510 = vlaneseq
        %v4511 = vshrl.u32 %v4510, 7
        %v4512 = vsub.s32 %v4509, %v4511
        %v4513 = vrot.slane %v1570, %v4512
        %v4515 = vunpack.c.l.s4 269488144
        %v4516 = vunpack.c.0.s8 %v4515
        %v4517 = vlaneseq
        %v4518 = vshrl.u32 %v4517, 7
        %v4519 = vsub.s32 %v4516, %v4518
        %v4520 = vrot.slane %v1573, %v4519
        %v4522 = vunpack.c.l.s4 842150450
        %v4523 = vunpack.c.0.s8 %v4522
        %v4524 = vlaneseq
        %v4525 = vshrl.u32 %v4524, 7
        %v4526 = vsub.s32 %v4523, %v4525
        %v4527 = vrot.slane %v1573, %v4526
        %v4529 = vunpack.c.l.s4 1414812756
        %v4530 = vunpack.c.0.s8 %v4529
        %v4531 = vlaneseq
        %v4532 = vshrl.u32 %v4531, 7
        %v4533 = vsub.s32 %v4530, %v4532
        %v4534 = vrot.slane %v1573, %v4533
        %v4536 = vunpack.c.l.s4 1987475062
        %v4537 = vunpack.c.0.s8 %v4536
        %v4538 = vlaneseq
        %v4539 = vshrl.u32 %v4538, 7
        %v4540 = vsub.s32 %v4537, %v4539
        %v4541 = vrot.slane %v1573, %v4540
        %v4543 = vunpack.c.l.s4 269488144
        %v4544 = vunpack.c.0.s8 %v4543
        %v4545 = vlaneseq
        %v4546 = vshrl.u32 %v4545, 7
        %v4547 = vsub.s32 %v4544, %v4546
        %v4548 = vrot.slane %v1576, %v4547
        %v4550 = vunpack.c.l.s4 842150450
        %v4551 = vunpack.c.0.s8 %v4550
        %v4552 = vlaneseq
        %v4553 = vshrl.u32 %v4552, 7
        %v4554 = vsub.s32 %v4551, %v4553
        %v4555 = vrot.slane %v1576, %v4554
        %v4557 = vunpack.c.l.s4 1414812756
        %v4558 = vunpack.c.0.s8 %v4557
        %v4559 = vlaneseq
        %v4560 = vshrl.u32 %v4559, 7
        %v4561 = vsub.s32 %v4558, %v4560
        %v4562 = vrot.slane %v1576, %v4561
        %v4564 = vunpack.c.l.s4 1987475062
        %v4565 = vunpack.c.0.s8 %v4564
        %v4566 = vlaneseq
        %v4567 = vshrl.u32 %v4566, 7
        %v4568 = vsub.s32 %v4565, %v4567
        %v4569 = vrot.slane %v1576, %v4568
        %v4571 = vunpack.c.l.s4 269488144
        %v4572 = vunpack.c.0.s8 %v4571
        %v4573 = vlaneseq
        %v4574 = vshrl.u32 %v4573, 7
        %v4575 = vsub.s32 %v4572, %v4574
        %v4576 = vrot.slane %v1579, %v4575
        %v4578 = vunpack.c.l.s4 842150450
        %v4579 = vunpack.c.0.s8 %v4578
        %v4580 = vlaneseq
        %v4581 = vshrl.u32 %v4580, 7
        %v4582 = vsub.s32 %v4579, %v4581
        %v4583 = vrot.slane %v1579, %v4582
        %v4585 = vunpack.c.l.s4 1414812756
        %v4586 = vunpack.c.0.s8 %v4585
        %v4587 = vlaneseq
        %v4588 = vshrl.u32 %v4587, 7
        %v4589 = vsub.s32 %v4586, %v4588
        %v4590 = vrot.slane %v1579, %v4589
        %v4592 = vunpack.c.l.s4 1987475062
        %v4593 = vunpack.c.0.s8 %v4592
        %v4594 = vlaneseq
        %v4595 = vshrl.u32 %v4594, 7
        %v4596 = vsub.s32 %v4593, %v4595
        %v4597 = vrot.slane %v1579, %v4596
        %v4599 = vunpack.c.l.s4 269488144
        %v4600 = vunpack.c.0.s8 %v4599
        %v4601 = vlaneseq
        %v4602 = vshrl.u32 %v4601, 7
        %v4603 = vsub.s32 %v4600, %v4602
        %v4604 = vrot.slane %v1582, %v4603
        %v4606 = vunpack.c.l.s4 842150450
        %v4607 = vunpack.c.0.s8 %v4606
        %v4608 = vlaneseq
        %v4609 = vshrl.u32 %v4608, 7
        %v4610 = vsub.s32 %v4607, %v4609
        %v4611 = vrot.slane %v1582, %v4610
        %v4613 = vunpack.c.l.s4 1414812756
        %v4614 = vunpack.c.0.s8 %v4613
        %v4615 = vlaneseq
        %v4616 = vshrl.u32 %v4615, 7
        %v4617 = vsub.s32 %v4614, %v4616
        %v4618 = vrot.slane %v1582, %v4617
        %v4620 = vunpack.c.l.s4 1987475062
        %v4621 = vunpack.c.0.s8 %v4620
        %v4622 = vlaneseq
        %v4623 = vshrl.u32 %v4622, 7
        %v4624 = vsub.s32 %v4621, %v4623
        %v4625 = vrot.slane %v1582, %v4624
        %v4627 = vunpack.c.l.s4 269488144
        %v4628 = vunpack.c.0.s8 %v4627
        %v4629 = vlaneseq
        %v4630 = vshrl.u32 %v4629, 7
        %v4631 = vsub.s32 %v4628, %v4630
        %v4632 = vrot.slane %v1585, %v4631
        %v4634 = vunpack.c.l.s4 842150450
        %v4635 = vunpack.c.0.s8 %v4634
        %v4636 = vlaneseq
        %v4637 = vshrl.u32 %v4636, 7
        %v4638 = vsub.s32 %v4635, %v4637
        %v4639 = vrot.slane %v1585, %v4638
        %v4641 = vunpack.c.l.s4 1414812756
        %v4642 = vunpack.c.0.s8 %v4641
        %v4643 = vlaneseq
        %v4644 = vshrl.u32 %v4643, 7
        %v4645 = vsub.s32 %v4642, %v4644
        %v4646 = vrot.slane %v1585, %v4645
        %v4648 = vunpack.c.l.s4 1987475062
        %v4649 = vunpack.c.0.s8 %v4648
        %v4650 = vlaneseq
        %v4651 = vshrl.u32 %v4650, 7
        %v4652 = vsub.s32 %v4649, %v4651
        %v4653 = vrot.slane %v1585, %v4652
        %v4655 = vunpack.c.l.s4 269488144
        %v4656 = vunpack.c.0.s8 %v4655
        %v4657 = vlaneseq
        %v4658 = vshrl.u32 %v4657, 7
        %v4659 = vsub.s32 %v4656, %v4658
        %v4660 = vrot.slane %v1588, %v4659
        %v4662 = vunpack.c.l.s4 842150450
        %v4663 = vunpack.c.0.s8 %v4662
        %v4664 = vlaneseq
        %v4665 = vshrl.u32 %v4664, 7
        %v4666 = vsub.s32 %v4663, %v4665
        %v4667 = vrot.slane %v1588, %v4666
        %v4669 = vunpack.c.l.s4 1414812756
        %v4670 = vunpack.c.0.s8 %v4669
        %v4671 = vlaneseq
        %v4672 = vshrl.u32 %v4671, 7
        %v4673 = vsub.s32 %v4670, %v4672
        %v4674 = vrot.slane %v1588, %v4673
        %v4676 = vunpack.c.l.s4 1987475062
        %v4677 = vunpack.c.0.s8 %v4676
        %v4678 = vlaneseq
        %v4679 = vshrl.u32 %v4678, 7
        %v4680 = vsub.s32 %v4677, %v4679
        %v4681 = vrot.slane %v1588, %v4680
        %v4683 = vunpack.c.l.s4 269488144
        %v4684 = vunpack.c.0.s8 %v4683
        %v4685 = vlaneseq
        %v4686 = vshrl.u32 %v4685, 7
        %v4687 = vsub.s32 %v4684, %v4686
        %v4688 = vrot.slane %v1591, %v4687
        %v4690 = vunpack.c.l.s4 842150450
        %v4691 = vunpack.c.0.s8 %v4690
        %v4692 = vlaneseq
        %v4693 = vshrl.u32 %v4692, 7
        %v4694 = vsub.s32 %v4691, %v4693
        %v4695 = vrot.slane %v1591, %v4694
        %v4697 = vunpack.c.l.s4 1414812756
        %v4698 = vunpack.c.0.s8 %v4697
        %v4699 = vlaneseq
        %v4700 = vshrl.u32 %v4699, 7
        %v4701 = vsub.s32 %v4698, %v4700
        %v4702 = vrot.slane %v1591, %v4701
        %v4704 = vunpack.c.l.s4 1987475062
        %v4705 = vunpack.c.0.s8 %v4704
        %v4706 = vlaneseq
        %v4707 = vshrl.u32 %v4706, 7
        %v4708 = vsub.s32 %v4705, %v4707
        %v4709 = vrot.slane %v1591, %v4708
        %v4711 = vunpack.c.l.s4 269488144
        %v4712 = vunpack.c.0.s8 %v4711
        %v4713 = vlaneseq
        %v4714 = vshrl.u32 %v4713, 7
        %v4715 = vsub.s32 %v4712, %v4714
        %v4716 = vrot.slane %v1594, %v4715
        %v4718 = vunpack.c.l.s4 842150450
        %v4719 = vunpack.c.0.s8 %v4718
        %v4720 = vlaneseq
        %v4721 = vshrl.u32 %v4720, 7
        %v4722 = vsub.s32 %v4719, %v4721
        %v4723 = vrot.slane %v1594, %v4722
        %v4725 = vunpack.c.l.s4 1414812756
        %v4726 = vunpack.c.0.s8 %v4725
        %v4727 = vlaneseq
        %v4728 = vshrl.u32 %v4727, 7
        %v4729 = vsub.s32 %v4726, %v4728
        %v4730 = vrot.slane %v1594, %v4729
        %v4732 = vunpack.c.l.s4 1987475062
        %v4733 = vunpack.c.0.s8 %v4732
        %v4734 = vlaneseq
        %v4735 = vshrl.u32 %v4734, 7
        %v4736 = vsub.s32 %v4733, %v4735
        %v4737 = vrot.slane %v1594, %v4736
        %v4739 = vunpack.c.l.s4 269488144
        %v4740 = vunpack.c.0.s8 %v4739
        %v4741 = vlaneseq
        %v4742 = vshrl.u32 %v4741, 7
        %v4743 = vsub.s32 %v4740, %v4742
        %v4744 = vrot.slane %v1597, %v4743
        %v4746 = vunpack.c.l.s4 842150450
        %v4747 = vunpack.c.0.s8 %v4746
        %v4748 = vlaneseq
        %v4749 = vshrl.u32 %v4748, 7
        %v4750 = vsub.s32 %v4747, %v4749
        %v4751 = vrot.slane %v1597, %v4750
        %v4753 = vunpack.c.l.s4 1414812756
        %v4754 = vunpack.c.0.s8 %v4753
        %v4755 = vlaneseq
        %v4756 = vshrl.u32 %v4755, 7
        %v4757 = vsub.s32 %v4754, %v4756
        %v4758 = vrot.slane %v1597, %v4757
        %v4760 = vunpack.c.l.s4 1987475062
        %v4761 = vunpack.c.0.s8 %v4760
        %v4762 = vlaneseq
        %v4763 = vshrl.u32 %v4762, 7
        %v4764 = vsub.s32 %v4761, %v4763
        %v4765 = vrot.slane %v1597, %v4764
        %v4767 = vunpack.c.l.s4 269488144
        %v4768 = vunpack.c.0.s8 %v4767
        %v4769 = vlaneseq
        %v4770 = vshrl.u32 %v4769, 7
        %v4771 = vsub.s32 %v4768, %v4770
        %v4772 = vrot.slane %v1600, %v4771
        %v4774 = vunpack.c.l.s4 842150450
        %v4775 = vunpack.c.0.s8 %v4774
        %v4776 = vlaneseq
        %v4777 = vshrl.u32 %v4776, 7
        %v4778 = vsub.s32 %v4775, %v4777
        %v4779 = vrot.slane %v1600, %v4778
        %v4781 = vunpack.c.l.s4 1414812756
        %v4782 = vunpack.c.0.s8 %v4781
        %v4783 = vlaneseq
        %v4784 = vshrl.u32 %v4783, 7
        %v4785 = vsub.s32 %v4782, %v4784
        %v4786 = vrot.slane %v1600, %v4785
        %v4788 = vunpack.c.l.s4 1987475062
        %v4789 = vunpack.c.0.s8 %v4788
        %v4790 = vlaneseq
        %v4791 = vshrl.u32 %v4790, 7
        %v4792 = vsub.s32 %v4789, %v4791
        %v4793 = vrot.slane %v1600, %v4792
        %v4795 = vunpack.c.l.s4 269488144
        %v4796 = vunpack.c.0.s8 %v4795
        %v4797 = vlaneseq
        %v4798 = vshrl.u32 %v4797, 7
        %v4799 = vsub.s32 %v4796, %v4798
        %v4800 = vrot.slane %v1603, %v4799
        %v4802 = vunpack.c.l.s4 842150450
        %v4803 = vunpack.c.0.s8 %v4802
        %v4804 = vlaneseq
        %v4805 = vshrl.u32 %v4804, 7
        %v4806 = vsub.s32 %v4803, %v4805
        %v4807 = vrot.slane %v1603, %v4806
        %v4809 = vunpack.c.l.s4 1414812756
        %v4810 = vunpack.c.0.s8 %v4809
        %v4811 = vlaneseq
        %v4812 = vshrl.u32 %v4811, 7
        %v4813 = vsub.s32 %v4810, %v4812
        %v4814 = vrot.slane %v1603, %v4813
        %v4816 = vunpack.c.l.s4 1987475062
        %v4817 = vunpack.c.0.s8 %v4816
        %v4818 = vlaneseq
        %v4819 = vshrl.u32 %v4818, 7
        %v4820 = vsub.s32 %v4817, %v4819
        %v4821 = vrot.slane %v1603, %v4820
        %v4823 = vunpack.c.l.s4 269488144
        %v4824 = vunpack.c.0.s8 %v4823
        %v4825 = vlaneseq
        %v4826 = vshrl.u32 %v4825, 7
        %v4827 = vsub.s32 %v4824, %v4826
        %v4828 = vrot.slane %v1606, %v4827
        %v4830 = vunpack.c.l.s4 842150450
        %v4831 = vunpack.c.0.s8 %v4830
        %v4832 = vlaneseq
        %v4833 = vshrl.u32 %v4832, 7
        %v4834 = vsub.s32 %v4831, %v4833
        %v4835 = vrot.slane %v1606, %v4834
        %v4837 = vunpack.c.l.s4 1414812756
        %v4838 = vunpack.c.0.s8 %v4837
        %v4839 = vlaneseq
        %v4840 = vshrl.u32 %v4839, 7
        %v4841 = vsub.s32 %v4838, %v4840
        %v4842 = vrot.slane %v1606, %v4841
        %v4844 = vunpack.c.l.s4 1987475062
        %v4845 = vunpack.c.0.s8 %v4844
        %v4846 = vlaneseq
        %v4847 = vshrl.u32 %v4846, 7
        %v4848 = vsub.s32 %v4845, %v4847
        %v4849 = vrot.slane %v1606, %v4848
        %v4851 = vunpack.c.l.s4 269488144
        %v4852 = vunpack.c.0.s8 %v4851
        %v4853 = vlaneseq
        %v4854 = vshrl.u32 %v4853, 7
        %v4855 = vsub.s32 %v4852, %v4854
        %v4856 = vrot.slane %v1609, %v4855
        %v4858 = vunpack.c.l.s4 842150450
        %v4859 = vunpack.c.0.s8 %v4858
        %v4860 = vlaneseq
        %v4861 = vshrl.u32 %v4860, 7
        %v4862 = vsub.s32 %v4859, %v4861
        %v4863 = vrot.slane %v1609, %v4862
        %v4865 = vunpack.c.l.s4 1414812756
        %v4866 = vunpack.c.0.s8 %v4865
        %v4867 = vlaneseq
        %v4868 = vshrl.u32 %v4867, 7
        %v4869 = vsub.s32 %v4866, %v4868
        %v4870 = vrot.slane %v1609, %v4869
        %v4872 = vunpack.c.l.s4 1987475062
        %v4873 = vunpack.c.0.s8 %v4872
        %v4874 = vlaneseq
        %v4875 = vshrl.u32 %v4874, 7
        %v4876 = vsub.s32 %v4873, %v4875
        %v4877 = vrot.slane %v1609, %v4876
        %v4879 = vunpack.c.l.s4 269488144
        %v4880 = vunpack.c.0.s8 %v4879
        %v4881 = vlaneseq
        %v4882 = vshrl.u32 %v4881, 7
        %v4883 = vsub.s32 %v4880, %v4882
        %v4884 = vrot.slane %v1612, %v4883
        %v4886 = vunpack.c.l.s4 842150450
        %v4887 = vunpack.c.0.s8 %v4886
        %v4888 = vlaneseq
        %v4889 = vshrl.u32 %v4888, 7
        %v4890 = vsub.s32 %v4887, %v4889
        %v4891 = vrot.slane %v1612, %v4890
        %v4893 = vunpack.c.l.s4 1414812756
        %v4894 = vunpack.c.0.s8 %v4893
        %v4895 = vlaneseq
        %v4896 = vshrl.u32 %v4895, 7
        %v4897 = vsub.s32 %v4894, %v4896
        %v4898 = vrot.slane %v1612, %v4897
        %v4900 = vunpack.c.l.s4 1987475062
        %v4901 = vunpack.c.0.s8 %v4900
        %v4902 = vlaneseq
        %v4903 = vshrl.u32 %v4902, 7
        %v4904 = vsub.s32 %v4901, %v4903
        %v4905 = vrot.slane %v1612, %v4904
        %v4907 = vunpack.c.l.s4 269488144
        %v4908 = vunpack.c.0.s8 %v4907
        %v4909 = vlaneseq
        %v4910 = vshrl.u32 %v4909, 7
        %v4911 = vsub.s32 %v4908, %v4910
        %v4912 = vrot.slane %v1615, %v4911
        %v4914 = vunpack.c.l.s4 842150450
        %v4915 = vunpack.c.0.s8 %v4914
        %v4916 = vlaneseq
        %v4917 = vshrl.u32 %v4916, 7
        %v4918 = vsub.s32 %v4915, %v4917
        %v4919 = vrot.slane %v1615, %v4918
        %v4921 = vunpack.c.l.s4 1414812756
        %v4922 = vunpack.c.0.s8 %v4921
        %v4923 = vlaneseq
        %v4924 = vshrl.u32 %v4923, 7
        %v4925 = vsub.s32 %v4922, %v4924
        %v4926 = vrot.slane %v1615, %v4925
        %v4928 = vunpack.c.l.s4 1987475062
        %v4929 = vunpack.c.0.s8 %v4928
        %v4930 = vlaneseq
        %v4931 = vshrl.u32 %v4930, 7
        %v4932 = vsub.s32 %v4929, %v4931
        %v4933 = vrot.slane %v1615, %v4932
        %v4935 = vunpack.c.l.s4 269488144
        %v4936 = vunpack.c.0.s8 %v4935
        %v4937 = vlaneseq
        %v4938 = vshrl.u32 %v4937, 7
        %v4939 = vsub.s32 %v4936, %v4938
        %v4940 = vrot.slane %v1618, %v4939
        %v4942 = vunpack.c.l.s4 842150450
        %v4943 = vunpack.c.0.s8 %v4942
        %v4944 = vlaneseq
        %v4945 = vshrl.u32 %v4944, 7
        %v4946 = vsub.s32 %v4943, %v4945
        %v4947 = vrot.slane %v1618, %v4946
        %v4949 = vunpack.c.l.s4 1414812756
        %v4950 = vunpack.c.0.s8 %v4949
        %v4951 = vlaneseq
        %v4952 = vshrl.u32 %v4951, 7
        %v4953 = vsub.s32 %v4950, %v4952
        %v4954 = vrot.slane %v1618, %v4953
        %v4956 = vunpack.c.l.s4 1987475062
        %v4957 = vunpack.c.0.s8 %v4956
        %v4958 = vlaneseq
        %v4959 = vshrl.u32 %v4958, 7
        %v4960 = vsub.s32 %v4957, %v4959
        %v4961 = vrot.slane %v1618, %v4960
        %v4963 = vunpack.c.l.s4 269488144
        %v4964 = vunpack.c.0.s8 %v4963
        %v4965 = vlaneseq
        %v4966 = vshrl.u32 %v4965, 7
        %v4967 = vsub.s32 %v4964, %v4966
        %v4968 = vrot.slane %v1621, %v4967
        %v4970 = vunpack.c.l.s4 842150450
        %v4971 = vunpack.c.0.s8 %v4970
        %v4972 = vlaneseq
        %v4973 = vshrl.u32 %v4972, 7
        %v4974 = vsub.s32 %v4971, %v4973
        %v4975 = vrot.slane %v1621, %v4974
        %v4977 = vunpack.c.l.s4 1414812756
        %v4978 = vunpack.c.0.s8 %v4977
        %v4979 = vlaneseq
        %v4980 = vshrl.u32 %v4979, 7
        %v4981 = vsub.s32 %v4978, %v4980
        %v4982 = vrot.slane %v1621, %v4981
        %v4984 = vunpack.c.l.s4 1987475062
        %v4985 = vunpack.c.0.s8 %v4984
        %v4986 = vlaneseq
        %v4987 = vshrl.u32 %v4986, 7
        %v4988 = vsub.s32 %v4985, %v4987
        %v4989 = vrot.slane %v1621, %v4988
        %v4991 = vunpack.c.l.s4 269488144
        %v4992 = vunpack.c.0.s8 %v4991
        %v4993 = vlaneseq
        %v4994 = vshrl.u32 %v4993, 7
        %v4995 = vsub.s32 %v4992, %v4994
        %v4996 = vrot.slane %v1624, %v4995
        %v4998 = vunpack.c.l.s4 842150450
        %v4999 = vunpack.c.0.s8 %v4998
        %v5000 = vlaneseq
        %v5001 = vshrl.u32 %v5000, 7
        %v5002 = vsub.s32 %v4999, %v5001
        %v5003 = vrot.slane %v1624, %v5002
        %v5005 = vunpack.c.l.s4 1414812756
        %v5006 = vunpack.c.0.s8 %v5005
        %v5007 = vlaneseq
        %v5008 = vshrl.u32 %v5007, 7
        %v5009 = vsub.s32 %v5006, %v5008
        %v5010 = vrot.slane %v1624, %v5009
        %v5012 = vunpack.c.l.s4 1987475062
        %v5013 = vunpack.c.0.s8 %v5012
        %v5014 = vlaneseq
        %v5015 = vshrl.u32 %v5014, 7
        %v5016 = vsub.s32 %v5013, %v5015
        %v5017 = vrot.slane %v1624, %v5016
        %v5019 = vunpack.c.l.s4 269488144
        %v5020 = vunpack.c.0.s8 %v5019
        %v5021 = vlaneseq
        %v5022 = vshrl.u32 %v5021, 7
        %v5023 = vsub.s32 %v5020, %v5022
        %v5024 = vrot.slane %v1627, %v5023
        %v5026 = vunpack.c.l.s4 842150450
        %v5027 = vunpack.c.0.s8 %v5026
        %v5028 = vlaneseq
        %v5029 = vshrl.u32 %v5028, 7
        %v5030 = vsub.s32 %v5027, %v5029
        %v5031 = vrot.slane %v1627, %v5030
        %v5033 = vunpack.c.l.s4 1414812756
        %v5034 = vunpack.c.0.s8 %v5033
        %v5035 = vlaneseq
        %v5036 = vshrl.u32 %v5035, 7
        %v5037 = vsub.s32 %v5034, %v5036
        %v5038 = vrot.slane %v1627, %v5037
        %v5040 = vunpack.c.l.s4 1987475062
        %v5041 = vunpack.c.0.s8 %v5040
        %v5042 = vlaneseq
        %v5043 = vshrl.u32 %v5042, 7
        %v5044 = vsub.s32 %v5041, %v5043
        %v5045 = vrot.slane %v1627, %v5044
        %v5047 = vunpack.c.l.s4 269488144
        %v5048 = vunpack.c.0.s8 %v5047
        %v5049 = vlaneseq
        %v5050 = vshrl.u32 %v5049, 7
        %v5051 = vsub.s32 %v5048, %v5050
        %v5052 = vrot.slane %v1630, %v5051
        %v5054 = vunpack.c.l.s4 842150450
        %v5055 = vunpack.c.0.s8 %v5054
        %v5056 = vlaneseq
        %v5057 = vshrl.u32 %v5056, 7
        %v5058 = vsub.s32 %v5055, %v5057
        %v5059 = vrot.slane %v1630, %v5058
        %v5061 = vunpack.c.l.s4 1414812756
        %v5062 = vunpack.c.0.s8 %v5061
        %v5063 = vlaneseq
        %v5064 = vshrl.u32 %v5063, 7
        %v5065 = vsub.s32 %v5062, %v5064
        %v5066 = vrot.slane %v1630, %v5065
        %v5068 = vunpack.c.l.s4 1987475062
        %v5069 = vunpack.c.0.s8 %v5068
        %v5070 = vlaneseq
        %v5071 = vshrl.u32 %v5070, 7
        %v5072 = vsub.s32 %v5069, %v5071
        %v5073 = vrot.slane %v1630, %v5072
        %v5075 = vunpack.c.l.s4 269488144
        %v5076 = vunpack.c.0.s8 %v5075
        %v5077 = vlaneseq
        %v5078 = vshrl.u32 %v5077, 7
        %v5079 = vsub.s32 %v5076, %v5078
        %v5080 = vrot.slane %v1633, %v5079
        %v5082 = vunpack.c.l.s4 842150450
        %v5083 = vunpack.c.0.s8 %v5082
        %v5084 = vlaneseq
        %v5085 = vshrl.u32 %v5084, 7
        %v5086 = vsub.s32 %v5083, %v5085
        %v5087 = vrot.slane %v1633, %v5086
        %v5089 = vunpack.c.l.s4 1414812756
        %v5090 = vunpack.c.0.s8 %v5089
        %v5091 = vlaneseq
        %v5092 = vshrl.u32 %v5091, 7
        %v5093 = vsub.s32 %v5090, %v5092
        %v5094 = vrot.slane %v1633, %v5093
        %v5096 = vunpack.c.l.s4 1987475062
        %v5097 = vunpack.c.0.s8 %v5096
        %v5098 = vlaneseq
        %v5099 = vshrl.u32 %v5098, 7
        %v5100 = vsub.s32 %v5097, %v5099
        %v5101 = vrot.slane %v1633, %v5100
        %v5103 = vunpack.c.l.s4 269488144
        %v5104 = vunpack.c.0.s8 %v5103
        %v5105 = vlaneseq
        %v5106 = vshrl.u32 %v5105, 7
        %v5107 = vsub.s32 %v5104, %v5106
        %v5108 = vrot.slane %v1636, %v5107
        %v5110 = vunpack.c.l.s4 842150450
        %v5111 = vunpack.c.0.s8 %v5110
        %v5112 = vlaneseq
        %v5113 = vshrl.u32 %v5112, 7
        %v5114 = vsub.s32 %v5111, %v5113
        %v5115 = vrot.slane %v1636, %v5114
        %v5117 = vunpack.c.l.s4 1414812756
        %v5118 = vunpack.c.0.s8 %v5117
        %v5119 = vlaneseq
        %v5120 = vshrl.u32 %v5119, 7
        %v5121 = vsub.s32 %v5118, %v5120
        %v5122 = vrot.slane %v1636, %v5121
        %v5124 = vunpack.c.l.s4 1987475062
        %v5125 = vunpack.c.0.s8 %v5124
        %v5126 = vlaneseq
        %v5127 = vshrl.u32 %v5126, 7
        %v5128 = vsub.s32 %v5125, %v5127
        %v5129 = vrot.slane %v1636, %v5128
        %v5131 = vunpack.c.l.s4 269488144
        %v5132 = vunpack.c.0.s8 %v5131
        %v5133 = vlaneseq
        %v5134 = vshrl.u32 %v5133, 7
        %v5135 = vsub.s32 %v5132, %v5134
        %v5136 = vrot.slane %v1639, %v5135
        %v5138 = vunpack.c.l.s4 842150450
        %v5139 = vunpack.c.0.s8 %v5138
        %v5140 = vlaneseq
        %v5141 = vshrl.u32 %v5140, 7
        %v5142 = vsub.s32 %v5139, %v5141
        %v5143 = vrot.slane %v1639, %v5142
        %v5145 = vunpack.c.l.s4 1414812756
        %v5146 = vunpack.c.0.s8 %v5145
        %v5147 = vlaneseq
        %v5148 = vshrl.u32 %v5147, 7
        %v5149 = vsub.s32 %v5146, %v5148
        %v5150 = vrot.slane %v1639, %v5149
        %v5152 = vunpack.c.l.s4 1987475062
        %v5153 = vunpack.c.0.s8 %v5152
        %v5154 = vlaneseq
        %v5155 = vshrl.u32 %v5154, 7
        %v5156 = vsub.s32 %v5153, %v5155
        %v5157 = vrot.slane %v1639, %v5156
        %v5159 = vunpack.c.l.s4 269488144
        %v5160 = vunpack.c.0.s8 %v5159
        %v5161 = vlaneseq
        %v5162 = vshrl.u32 %v5161, 7
        %v5163 = vsub.s32 %v5160, %v5162
        %v5164 = vrot.slane %v1642, %v5163
        %v5166 = vunpack.c.l.s4 842150450
        %v5167 = vunpack.c.0.s8 %v5166
        %v5168 = vlaneseq
        %v5169 = vshrl.u32 %v5168, 7
        %v5170 = vsub.s32 %v5167, %v5169
        %v5171 = vrot.slane %v1642, %v5170
        %v5173 = vunpack.c.l.s4 1414812756
        %v5174 = vunpack.c.0.s8 %v5173
        %v5175 = vlaneseq
        %v5176 = vshrl.u32 %v5175, 7
        %v5177 = vsub.s32 %v5174, %v5176
        %v5178 = vrot.slane %v1642, %v5177
        %v5180 = vunpack.c.l.s4 1987475062
        %v5181 = vunpack.c.0.s8 %v5180
        %v5182 = vlaneseq
        %v5183 = vshrl.u32 %v5182, 7
        %v5184 = vsub.s32 %v5181, %v5183
        %v5185 = vrot.slane %v1642, %v5184
        %v5187 = vunpack.c.l.s4 269488144
        %v5188 = vunpack.c.0.s8 %v5187
        %v5189 = vlaneseq
        %v5190 = vshrl.u32 %v5189, 7
        %v5191 = vsub.s32 %v5188, %v5190
        %v5192 = vrot.slane %v1645, %v5191
        %v5194 = vunpack.c.l.s4 842150450
        %v5195 = vunpack.c.0.s8 %v5194
        %v5196 = vlaneseq
        %v5197 = vshrl.u32 %v5196, 7
        %v5198 = vsub.s32 %v5195, %v5197
        %v5199 = vrot.slane %v1645, %v5198
        %v5201 = vunpack.c.l.s4 1414812756
        %v5202 = vunpack.c.0.s8 %v5201
        %v5203 = vlaneseq
        %v5204 = vshrl.u32 %v5203, 7
        %v5205 = vsub.s32 %v5202, %v5204
        %v5206 = vrot.slane %v1645, %v5205
        %v5208 = vunpack.c.l.s4 1987475062
        %v5209 = vunpack.c.0.s8 %v5208
        %v5210 = vlaneseq
        %v5211 = vshrl.u32 %v5210, 7
        %v5212 = vsub.s32 %v5209, %v5211
        %v5213 = vrot.slane %v1645, %v5212
        %v5215 = vunpack.c.l.s4 269488144
        %v5216 = vunpack.c.0.s8 %v5215
        %v5217 = vlaneseq
        %v5218 = vshrl.u32 %v5217, 7
        %v5219 = vsub.s32 %v5216, %v5218
        %v5220 = vrot.slane %v1648, %v5219
        %v5222 = vunpack.c.l.s4 842150450
        %v5223 = vunpack.c.0.s8 %v5222
        %v5224 = vlaneseq
        %v5225 = vshrl.u32 %v5224, 7
        %v5226 = vsub.s32 %v5223, %v5225
        %v5227 = vrot.slane %v1648, %v5226
        %v5229 = vunpack.c.l.s4 1414812756
        %v5230 = vunpack.c.0.s8 %v5229
        %v5231 = vlaneseq
        %v5232 = vshrl.u32 %v5231, 7
        %v5233 = vsub.s32 %v5230, %v5232
        %v5234 = vrot.slane %v1648, %v5233
        %v5236 = vunpack.c.l.s4 1987475062
        %v5237 = vunpack.c.0.s8 %v5236
        %v5238 = vlaneseq
        %v5239 = vshrl.u32 %v5238, 7
        %v5240 = vsub.s32 %v5237, %v5239
        %v5241 = vrot.slane %v1648, %v5240
        %v5243 = vunpack.c.l.s4 269488144
        %v5244 = vunpack.c.0.s8 %v5243
        %v5245 = vlaneseq
        %v5246 = vshrl.u32 %v5245, 7
        %v5247 = vsub.s32 %v5244, %v5246
        %v5248 = vrot.slane %v1651, %v5247
        %v5250 = vunpack.c.l.s4 842150450
        %v5251 = vunpack.c.0.s8 %v5250
        %v5252 = vlaneseq
        %v5253 = vshrl.u32 %v5252, 7
        %v5254 = vsub.s32 %v5251, %v5253
        %v5255 = vrot.slane %v1651, %v5254
        %v5257 = vunpack.c.l.s4 1414812756
        %v5258 = vunpack.c.0.s8 %v5257
        %v5259 = vlaneseq
        %v5260 = vshrl.u32 %v5259, 7
        %v5261 = vsub.s32 %v5258, %v5260
        %v5262 = vrot.slane %v1651, %v5261
        %v5264 = vunpack.c.l.s4 1987475062
        %v5265 = vunpack.c.0.s8 %v5264
        %v5266 = vlaneseq
        %v5267 = vshrl.u32 %v5266, 7
        %v5268 = vsub.s32 %v5265, %v5267
        %v5269 = vrot.slane %v1651, %v5268
        %v5271 = vunpack.c.l.s4 269488144
        %v5272 = vunpack.c.0.s8 %v5271
        %v5273 = vlaneseq
        %v5274 = vshrl.u32 %v5273, 7
        %v5275 = vsub.s32 %v5272, %v5274
        %v5276 = vrot.slane %v1654, %v5275
        %v5278 = vunpack.c.l.s4 842150450
        %v5279 = vunpack.c.0.s8 %v5278
        %v5280 = vlaneseq
        %v5281 = vshrl.u32 %v5280, 7
        %v5282 = vsub.s32 %v5279, %v5281
        %v5283 = vrot.slane %v1654, %v5282
        %v5285 = vunpack.c.l.s4 1414812756
        %v5286 = vunpack.c.0.s8 %v5285
        %v5287 = vlaneseq
        %v5288 = vshrl.u32 %v5287, 7
        %v5289 = vsub.s32 %v5286, %v5288
        %v5290 = vrot.slane %v1654, %v5289
        %v5292 = vunpack.c.l.s4 1987475062
        %v5293 = vunpack.c.0.s8 %v5292
        %v5294 = vlaneseq
        %v5295 = vshrl.u32 %v5294, 7
        %v5296 = vsub.s32 %v5293, %v5295
        %v5297 = vrot.slane %v1654, %v5296
        %v5299 = vunpack.c.l.s4 269488144
        %v5300 = vunpack.c.0.s8 %v5299
        %v5301 = vlaneseq
        %v5302 = vshrl.u32 %v5301, 7
        %v5303 = vsub.s32 %v5300, %v5302
        %v5304 = vrot.slane %v1657, %v5303
        %v5306 = vunpack.c.l.s4 842150450
        %v5307 = vunpack.c.0.s8 %v5306
        %v5308 = vlaneseq
        %v5309 = vshrl.u32 %v5308, 7
        %v5310 = vsub.s32 %v5307, %v5309
        %v5311 = vrot.slane %v1657, %v5310
        %v5313 = vunpack.c.l.s4 1414812756
        %v5314 = vunpack.c.0.s8 %v5313
        %v5315 = vlaneseq
        %v5316 = vshrl.u32 %v5315, 7
        %v5317 = vsub.s32 %v5314, %v5316
        %v5318 = vrot.slane %v1657, %v5317
        %v5320 = vunpack.c.l.s4 1987475062
        %v5321 = vunpack.c.0.s8 %v5320
        %v5322 = vlaneseq
        %v5323 = vshrl.u32 %v5322, 7
        %v5324 = vsub.s32 %v5321, %v5323
        %v5325 = vrot.slane %v1657, %v5324
        %v5327 = vunpack.c.l.s4 269488144
        %v5328 = vunpack.c.0.s8 %v5327
        %v5329 = vlaneseq
        %v5330 = vshrl.u32 %v5329, 7
        %v5331 = vsub.s32 %v5328, %v5330
        %v5332 = vrot.slane %v1660, %v5331
        %v5334 = vunpack.c.l.s4 842150450
        %v5335 = vunpack.c.0.s8 %v5334
        %v5336 = vlaneseq
        %v5337 = vshrl.u32 %v5336, 7
        %v5338 = vsub.s32 %v5335, %v5337
        %v5339 = vrot.slane %v1660, %v5338
        %v5341 = vunpack.c.l.s4 1414812756
        %v5342 = vunpack.c.0.s8 %v5341
        %v5343 = vlaneseq
        %v5344 = vshrl.u32 %v5343, 7
        %v5345 = vsub.s32 %v5342, %v5344
        %v5346 = vrot.slane %v1660, %v5345
        %v5348 = vunpack.c.l.s4 1987475062
        %v5349 = vunpack.c.0.s8 %v5348
        %v5350 = vlaneseq
        %v5351 = vshrl.u32 %v5350, 7
        %v5352 = vsub.s32 %v5349, %v5351
        %v5353 = vrot.slane %v1660, %v5352
        %v5355 = vunpack.c.l.s4 269488144
        %v5356 = vunpack.c.0.s8 %v5355
        %v5357 = vlaneseq
        %v5358 = vshrl.u32 %v5357, 7
        %v5359 = vsub.s32 %v5356, %v5358
        %v5360 = vrot.slane %v1663, %v5359
        %v5362 = vunpack.c.l.s4 842150450
        %v5363 = vunpack.c.0.s8 %v5362
        %v5364 = vlaneseq
        %v5365 = vshrl.u32 %v5364, 7
        %v5366 = vsub.s32 %v5363, %v5365
        %v5367 = vrot.slane %v1663, %v5366
        %v5369 = vunpack.c.l.s4 1414812756
        %v5370 = vunpack.c.0.s8 %v5369
        %v5371 = vlaneseq
        %v5372 = vshrl.u32 %v5371, 7
        %v5373 = vsub.s32 %v5370, %v5372
        %v5374 = vrot.slane %v1663, %v5373
        %v5376 = vunpack.c.l.s4 1987475062
        %v5377 = vunpack.c.0.s8 %v5376
        %v5378 = vlaneseq
        %v5379 = vshrl.u32 %v5378, 7
        %v5380 = vsub.s32 %v5377, %v5379
        %v5381 = vrot.slane %v1663, %v5380
        %v5382 = vcombine.low %v1804, %v1811
        %v5383 = vcombine.low %v1818, %v1825
        %v5385 = vunpack.c.l.s4 1983009808
        %v5386 = vunpack.c.0.s8 %v5385
        %v5387 = vlaneseq
        %v5388 = vshrl.u32 %v5387, 7
        %v5389 = vsub.s32 %v5386, %v5388
        %v5390 = vrot.slane %v5382, %v5389
        %v5392 = vunpack.c.l.s4 1983009808
        %v5393 = vunpack.c.0.s8 %v5392
        %v5394 = vlaneseq
        %v5395 = vshrl.u32 %v5394, 7
        %v5396 = vsub.s32 %v5393, %v5395
        %v5397 = vrot.slane %v5383, %v5396
        %v5398 = vcombine.low %v5390, %v5397
        %v5399 = vcombine.low %v1832, %v1839
        %v5400 = vcombine.low %v1846, %v1853
        %v5402 = vunpack.c.l.s4 1983009808
        %v5403 = vunpack.c.0.s8 %v5402
        %v5404 = vlaneseq
        %v5405 = vshrl.u32 %v5404, 7
        %v5406 = vsub.s32 %v5403, %v5405
        %v5407 = vrot.slane %v5399, %v5406
        %v5409 = vunpack.c.l.s4 1983009808
        %v5410 = vunpack.c.0.s8 %v5409
        %v5411 = vlaneseq
        %v5412 = vshrl.u32 %v5411, 7
        %v5413 = vsub.s32 %v5410, %v5412
        %v5414 = vrot.slane %v5400, %v5413
        %v5415 = vcombine.low %v5407, %v5414
        %v5416 = vcombine.low %v1860, %v1867
        %v5417 = vcombine.low %v1874, %v1881
        %v5419 = vunpack.c.l.s4 1983009808
        %v5420 = vunpack.c.0.s8 %v5419
        %v5421 = vlaneseq
        %v5422 = vshrl.u32 %v5421, 7
        %v5423 = vsub.s32 %v5420, %v5422
        %v5424 = vrot.slane %v5416, %v5423
        %v5426 = vunpack.c.l.s4 1983009808
        %v5427 = vunpack.c.0.s8 %v5426
        %v5428 = vlaneseq
        %v5429 = vshrl.u32 %v5428, 7
        %v5430 = vsub.s32 %v5427, %v5429
        %v5431 = vrot.slane %v5417, %v5430
        %v5432 = vcombine.low %v5424, %v5431
        %v5433 = vcombine.low %v1888, %v1895
        %v5434 = vcombine.low %v1902, %v1909
        %v5436 = vunpack.c.l.s4 1983009808
        %v5437 = vunpack.c.0.s8 %v5436
        %v5438 = vlaneseq
        %v5439 = vshrl.u32 %v5438, 7
        %v5440 = vsub.s32 %v5437, %v5439
        %v5441 = vrot.slane %v5433, %v5440
        %v5443 = vunpack.c.l.s4 1983009808
        %v5444 = vunpack.c.0.s8 %v5443
        %v5445 = vlaneseq
        %v5446 = vshrl.u32 %v5445, 7
        %v5447 = vsub.s32 %v5444, %v5446
        %v5448 = vrot.slane %v5434, %v5447
        %v5449 = vcombine.low %v5441, %v5448
        %v5450 = vcombine.low %v1916, %v1923
        %v5451 = vcombine.low %v1930, %v1937
        %v5453 = vunpack.c.l.s4 1983009808
        %v5454 = vunpack.c.0.s8 %v5453
        %v5455 = vlaneseq
        %v5456 = vshrl.u32 %v5455, 7
        %v5457 = vsub.s32 %v5454, %v5456
        %v5458 = vrot.slane %v5450, %v5457
        %v5460 = vunpack.c.l.s4 1983009808
        %v5461 = vunpack.c.0.s8 %v5460
        %v5462 = vlaneseq
        %v5463 = vshrl.u32 %v5462, 7
        %v5464 = vsub.s32 %v5461, %v5463
        %v5465 = vrot.slane %v5451, %v5464
        %v5466 = vcombine.low %v5458, %v5465
        %v5467 = vcombine.low %v1944, %v1951
        %v5468 = vcombine.low %v1958, %v1965
        %v5470 = vunpack.c.l.s4 1983009808
        %v5471 = vunpack.c.0.s8 %v5470
        %v5472 = vlaneseq
        %v5473 = vshrl.u32 %v5472, 7
        %v5474 = vsub.s32 %v5471, %v5473
        %v5475 = vrot.slane %v5467, %v5474
        %v5477 = vunpack.c.l.s4 1983009808
        %v5478 = vunpack.c.0.s8 %v5477
        %v5479 = vlaneseq
        %v5480 = vshrl.u32 %v5479, 7
        %v5481 = vsub.s32 %v5478, %v5480
        %v5482 = vrot.slane %v5468, %v5481
        %v5483 = vcombine.low %v5475, %v5482
        %v5484 = vcombine.low %v1972, %v1979
        %v5485 = vcombine.low %v1986, %v1993
        %v5487 = vunpack.c.l.s4 1983009808
        %v5488 = vunpack.c.0.s8 %v5487
        %v5489 = vlaneseq
        %v5490 = vshrl.u32 %v5489, 7
        %v5491 = vsub.s32 %v5488, %v5490
        %v5492 = vrot.slane %v5484, %v5491
        %v5494 = vunpack.c.l.s4 1983009808
        %v5495 = vunpack.c.0.s8 %v5494
        %v5496 = vlaneseq
        %v5497 = vshrl.u32 %v5496, 7
        %v5498 = vsub.s32 %v5495, %v5497
        %v5499 = vrot.slane %v5485, %v5498
        %v5500 = vcombine.low %v5492, %v5499
        %v5501 = vcombine.low %v2000, %v2007
        %v5502 = vcombine.low %v2014, %v2021
        %v5504 = vunpack.c.l.s4 1983009808
        %v5505 = vunpack.c.0.s8 %v5504
        %v5506 = vlaneseq
        %v5507 = vshrl.u32 %v5506, 7
        %v5508 = vsub.s32 %v5505, %v5507
        %v5509 = vrot.slane %v5501, %v5508
        %v5511 = vunpack.c.l.s4 1983009808
        %v5512 = vunpack.c.0.s8 %v5511
        %v5513 = vlaneseq
        %v5514 = vshrl.u32 %v5513, 7
        %v5515 = vsub.s32 %v5512, %v5514
        %v5516 = vrot.slane %v5502, %v5515
        %v5517 = vcombine.low %v5509, %v5516
        %v5518 = vcombine.low %v2028, %v2035
        %v5519 = vcombine.low %v2042, %v2049
        %v5521 = vunpack.c.l.s4 1983009808
        %v5522 = vunpack.c.0.s8 %v5521
        %v5523 = vlaneseq
        %v5524 = vshrl.u32 %v5523, 7
        %v5525 = vsub.s32 %v5522, %v5524
        %v5526 = vrot.slane %v5518, %v5525
        %v5528 = vunpack.c.l.s4 1983009808
        %v5529 = vunpack.c.0.s8 %v5528
        %v5530 = vlaneseq
        %v5531 = vshrl.u32 %v5530, 7
        %v5532 = vsub.s32 %v5529, %v5531
        %v5533 = vrot.slane %v5519, %v5532
        %v5534 = vcombine.low %v5526, %v5533
        %v5535 = vcombine.low %v2056, %v2063
        %v5536 = vcombine.low %v2070, %v2077
        %v5538 = vunpack.c.l.s4 1983009808
        %v5539 = vunpack.c.0.s8 %v5538
        %v5540 = vlaneseq
        %v5541 = vshrl.u32 %v5540, 7
        %v5542 = vsub.s32 %v5539, %v5541
        %v5543 = vrot.slane %v5535, %v5542
        %v5545 = vunpack.c.l.s4 1983009808
        %v5546 = vunpack.c.0.s8 %v5545
        %v5547 = vlaneseq
        %v5548 = vshrl.u32 %v5547, 7
        %v5549 = vsub.s32 %v5546, %v5548
        %v5550 = vrot.slane %v5536, %v5549
        %v5551 = vcombine.low %v5543, %v5550
        %v5552 = vcombine.low %v2084, %v2091
        %v5553 = vcombine.low %v2098, %v2105
        %v5555 = vunpack.c.l.s4 1983009808
        %v5556 = vunpack.c.0.s8 %v5555
        %v5557 = vlaneseq
        %v5558 = vshrl.u32 %v5557, 7
        %v5559 = vsub.s32 %v5556, %v5558
        %v5560 = vrot.slane %v5552, %v5559
        %v5562 = vunpack.c.l.s4 1983009808
        %v5563 = vunpack.c.0.s8 %v5562
        %v5564 = vlaneseq
        %v5565 = vshrl.u32 %v5564, 7
        %v5566 = vsub.s32 %v5563, %v5565
        %v5567 = vrot.slane %v5553, %v5566
        %v5568 = vcombine.low %v5560, %v5567
        %v5569 = vcombine.low %v2112, %v2119
        %v5570 = vcombine.low %v2126, %v2133
        %v5572 = vunpack.c.l.s4 1983009808
        %v5573 = vunpack.c.0.s8 %v5572
        %v5574 = vlaneseq
        %v5575 = vshrl.u32 %v5574, 7
        %v5576 = vsub.s32 %v5573, %v5575
        %v5577 = vrot.slane %v5569, %v5576
        %v5579 = vunpack.c.l.s4 1983009808
        %v5580 = vunpack.c.0.s8 %v5579
        %v5581 = vlaneseq
        %v5582 = vshrl.u32 %v5581, 7
        %v5583 = vsub.s32 %v5580, %v5582
        %v5584 = vrot.slane %v5570, %v5583
        %v5585 = vcombine.low %v5577, %v5584
        %v5586 = vcombine.low %v2140, %v2147
        %v5587 = vcombine.low %v2154, %v2161
        %v5589 = vunpack.c.l.s4 1983009808
        %v5590 = vunpack.c.0.s8 %v5589
        %v5591 = vlaneseq
        %v5592 = vshrl.u32 %v5591, 7
        %v5593 = vsub.s32 %v5590, %v5592
        %v5594 = vrot.slane %v5586, %v5593
        %v5596 = vunpack.c.l.s4 1983009808
        %v5597 = vunpack.c.0.s8 %v5596
        %v5598 = vlaneseq
        %v5599 = vshrl.u32 %v5598, 7
        %v5600 = vsub.s32 %v5597, %v5599
        %v5601 = vrot.slane %v5587, %v5600
        %v5602 = vcombine.low %v5594, %v5601
        %v5603 = vcombine.low %v2168, %v2175
        %v5604 = vcombine.low %v2182, %v2189
        %v5606 = vunpack.c.l.s4 1983009808
        %v5607 = vunpack.c.0.s8 %v5606
        %v5608 = vlaneseq
        %v5609 = vshrl.u32 %v5608, 7
        %v5610 = vsub.s32 %v5607, %v5609
        %v5611 = vrot.slane %v5603, %v5610
        %v5613 = vunpack.c.l.s4 1983009808
        %v5614 = vunpack.c.0.s8 %v5613
        %v5615 = vlaneseq
        %v5616 = vshrl.u32 %v5615, 7
        %v5617 = vsub.s32 %v5614, %v5616
        %v5618 = vrot.slane %v5604, %v5617
        %v5619 = vcombine.low %v5611, %v5618
        %v5620 = vcombine.low %v2196, %v2203
        %v5621 = vcombine.low %v2210, %v2217
        %v5623 = vunpack.c.l.s4 1983009808
        %v5624 = vunpack.c.0.s8 %v5623
        %v5625 = vlaneseq
        %v5626 = vshrl.u32 %v5625, 7
        %v5627 = vsub.s32 %v5624, %v5626
        %v5628 = vrot.slane %v5620, %v5627
        %v5630 = vunpack.c.l.s4 1983009808
        %v5631 = vunpack.c.0.s8 %v5630
        %v5632 = vlaneseq
        %v5633 = vshrl.u32 %v5632, 7
        %v5634 = vsub.s32 %v5631, %v5633
        %v5635 = vrot.slane %v5621, %v5634
        %v5636 = vcombine.low %v5628, %v5635
        %v5637 = vcombine.low %v2224, %v2231
        %v5638 = vcombine.low %v2238, %v2245
        %v5640 = vunpack.c.l.s4 1983009808
        %v5641 = vunpack.c.0.s8 %v5640
        %v5642 = vlaneseq
        %v5643 = vshrl.u32 %v5642, 7
        %v5644 = vsub.s32 %v5641, %v5643
        %v5645 = vrot.slane %v5637, %v5644
        %v5647 = vunpack.c.l.s4 1983009808
        %v5648 = vunpack.c.0.s8 %v5647
        %v5649 = vlaneseq
        %v5650 = vshrl.u32 %v5649, 7
        %v5651 = vsub.s32 %v5648, %v5650
        %v5652 = vrot.slane %v5638, %v5651
        %v5653 = vcombine.low %v5645, %v5652
        %v5654 = vcombine.low %v2252, %v2259
        %v5655 = vcombine.low %v2266, %v2273
        %v5657 = vunpack.c.l.s4 1983009808
        %v5658 = vunpack.c.0.s8 %v5657
        %v5659 = vlaneseq
        %v5660 = vshrl.u32 %v5659, 7
        %v5661 = vsub.s32 %v5658, %v5660
        %v5662 = vrot.slane %v5654, %v5661
        %v5664 = vunpack.c.l.s4 1983009808
        %v5665 = vunpack.c.0.s8 %v5664
        %v5666 = vlaneseq
        %v5667 = vshrl.u32 %v5666, 7
        %v5668 = vsub.s32 %v5665, %v5667
        %v5669 = vrot.slane %v5655, %v5668
        %v5670 = vcombine.low %v5662, %v5669
        %v5671 = vcombine.low %v2280, %v2287
        %v5672 = vcombine.low %v2294, %v2301
        %v5674 = vunpack.c.l.s4 1983009808
        %v5675 = vunpack.c.0.s8 %v5674
        %v5676 = vlaneseq
        %v5677 = vshrl.u32 %v5676, 7
        %v5678 = vsub.s32 %v5675, %v5677
        %v5679 = vrot.slane %v5671, %v5678
        %v5681 = vunpack.c.l.s4 1983009808
        %v5682 = vunpack.c.0.s8 %v5681
        %v5683 = vlaneseq
        %v5684 = vshrl.u32 %v5683, 7
        %v5685 = vsub.s32 %v5682, %v5684
        %v5686 = vrot.slane %v5672, %v5685
        %v5687 = vcombine.low %v5679, %v5686
        %v5688 = vcombine.low %v2308, %v2315
        %v5689 = vcombine.low %v2322, %v2329
        %v5691 = vunpack.c.l.s4 1983009808
        %v5692 = vunpack.c.0.s8 %v5691
        %v5693 = vlaneseq
        %v5694 = vshrl.u32 %v5693, 7
        %v5695 = vsub.s32 %v5692, %v5694
        %v5696 = vrot.slane %v5688, %v5695
        %v5698 = vunpack.c.l.s4 1983009808
        %v5699 = vunpack.c.0.s8 %v5698
        %v5700 = vlaneseq
        %v5701 = vshrl.u32 %v5700, 7
        %v5702 = vsub.s32 %v5699, %v5701
        %v5703 = vrot.slane %v5689, %v5702
        %v5704 = vcombine.low %v5696, %v5703
        %v5705 = vcombine.low %v2336, %v2343
        %v5706 = vcombine.low %v2350, %v2357
        %v5708 = vunpack.c.l.s4 1983009808
        %v5709 = vunpack.c.0.s8 %v5708
        %v5710 = vlaneseq
        %v5711 = vshrl.u32 %v5710, 7
        %v5712 = vsub.s32 %v5709, %v5711
        %v5713 = vrot.slane %v5705, %v5712
        %v5715 = vunpack.c.l.s4 1983009808
        %v5716 = vunpack.c.0.s8 %v5715
        %v5717 = vlaneseq
        %v5718 = vshrl.u32 %v5717, 7
        %v5719 = vsub.s32 %v5716, %v5718
        %v5720 = vrot.slane %v5706, %v5719
        %v5721 = vcombine.low %v5713, %v5720
        %v5722 = vcombine.low %v2364, %v2371
        %v5723 = vcombine.low %v2378, %v2385
        %v5725 = vunpack.c.l.s4 1983009808
        %v5726 = vunpack.c.0.s8 %v5725
        %v5727 = vlaneseq
        %v5728 = vshrl.u32 %v5727, 7
        %v5729 = vsub.s32 %v5726, %v5728
        %v5730 = vrot.slane %v5722, %v5729
        %v5732 = vunpack.c.l.s4 1983009808
        %v5733 = vunpack.c.0.s8 %v5732
        %v5734 = vlaneseq
        %v5735 = vshrl.u32 %v5734, 7
        %v5736 = vsub.s32 %v5733, %v5735
        %v5737 = vrot.slane %v5723, %v5736
        %v5738 = vcombine.low %v5730, %v5737
        %v5739 = vcombine.low %v2392, %v2399
        %v5740 = vcombine.low %v2406, %v2413
        %v5742 = vunpack.c.l.s4 1983009808
        %v5743 = vunpack.c.0.s8 %v5742
        %v5744 = vlaneseq
        %v5745 = vshrl.u32 %v5744, 7
        %v5746 = vsub.s32 %v5743, %v5745
        %v5747 = vrot.slane %v5739, %v5746
        %v5749 = vunpack.c.l.s4 1983009808
        %v5750 = vunpack.c.0.s8 %v5749
        %v5751 = vlaneseq
        %v5752 = vshrl.u32 %v5751, 7
        %v5753 = vsub.s32 %v5750, %v5752
        %v5754 = vrot.slane %v5740, %v5753
        %v5755 = vcombine.low %v5747, %v5754
        %v5756 = vcombine.low %v2420, %v2427
        %v5757 = vcombine.low %v2434, %v2441
        %v5759 = vunpack.c.l.s4 1983009808
        %v5760 = vunpack.c.0.s8 %v5759
        %v5761 = vlaneseq
        %v5762 = vshrl.u32 %v5761, 7
        %v5763 = vsub.s32 %v5760, %v5762
        %v5764 = vrot.slane %v5756, %v5763
        %v5766 = vunpack.c.l.s4 1983009808
        %v5767 = vunpack.c.0.s8 %v5766
        %v5768 = vlaneseq
        %v5769 = vshrl.u32 %v5768, 7
        %v5770 = vsub.s32 %v5767, %v5769
        %v5771 = vrot.slane %v5757, %v5770
        %v5772 = vcombine.low %v5764, %v5771
        %v5773 = vcombine.low %v2448, %v2455
        %v5774 = vcombine.low %v2462, %v2469
        %v5776 = vunpack.c.l.s4 1983009808
        %v5777 = vunpack.c.0.s8 %v5776
        %v5778 = vlaneseq
        %v5779 = vshrl.u32 %v5778, 7
        %v5780 = vsub.s32 %v5777, %v5779
        %v5781 = vrot.slane %v5773, %v5780
        %v5783 = vunpack.c.l.s4 1983009808
        %v5784 = vunpack.c.0.s8 %v5783
        %v5785 = vlaneseq
        %v5786 = vshrl.u32 %v5785, 7
        %v5787 = vsub.s32 %v5784, %v5786
        %v5788 = vrot.slane %v5774, %v5787
        %v5789 = vcombine.low %v5781, %v5788
        %v5790 = vcombine.low %v2476, %v2483
        %v5791 = vcombine.low %v2490, %v2497
        %v5793 = vunpack.c.l.s4 1983009808
        %v5794 = vunpack.c.0.s8 %v5793
        %v5795 = vlaneseq
        %v5796 = vshrl.u32 %v5795, 7
        %v5797 = vsub.s32 %v5794, %v5796
        %v5798 = vrot.slane %v5790, %v5797
        %v5800 = vunpack.c.l.s4 1983009808
        %v5801 = vunpack.c.0.s8 %v5800
        %v5802 = vlaneseq
        %v5803 = vshrl.u32 %v5802, 7
        %v5804 = vsub.s32 %v5801, %v5803
        %v5805 = vrot.slane %v5791, %v5804
        %v5806 = vcombine.low %v5798, %v5805
        %v5807 = vcombine.low %v2504, %v2511
        %v5808 = vcombine.low %v2518, %v2525
        %v5810 = vunpack.c.l.s4 1983009808
        %v5811 = vunpack.c.0.s8 %v5810
        %v5812 = vlaneseq
        %v5813 = vshrl.u32 %v5812, 7
        %v5814 = vsub.s32 %v5811, %v5813
        %v5815 = vrot.slane %v5807, %v5814
        %v5817 = vunpack.c.l.s4 1983009808
        %v5818 = vunpack.c.0.s8 %v5817
        %v5819 = vlaneseq
        %v5820 = vshrl.u32 %v5819, 7
        %v5821 = vsub.s32 %v5818, %v5820
        %v5822 = vrot.slane %v5808, %v5821
        %v5823 = vcombine.low %v5815, %v5822
        %v5824 = vcombine.low %v2532, %v2539
        %v5825 = vcombine.low %v2546, %v2553
        %v5827 = vunpack.c.l.s4 1983009808
        %v5828 = vunpack.c.0.s8 %v5827
        %v5829 = vlaneseq
        %v5830 = vshrl.u32 %v5829, 7
        %v5831 = vsub.s32 %v5828, %v5830
        %v5832 = vrot.slane %v5824, %v5831
        %v5834 = vunpack.c.l.s4 1983009808
        %v5835 = vunpack.c.0.s8 %v5834
        %v5836 = vlaneseq
        %v5837 = vshrl.u32 %v5836, 7
        %v5838 = vsub.s32 %v5835, %v5837
        %v5839 = vrot.slane %v5825, %v5838
        %v5840 = vcombine.low %v5832, %v5839
        %v5841 = vcombine.low %v2560, %v2567
        %v5842 = vcombine.low %v2574, %v2581
        %v5844 = vunpack.c.l.s4 1983009808
        %v5845 = vunpack.c.0.s8 %v5844
        %v5846 = vlaneseq
        %v5847 = vshrl.u32 %v5846, 7
        %v5848 = vsub.s32 %v5845, %v5847
        %v5849 = vrot.slane %v5841, %v5848
        %v5851 = vunpack.c.l.s4 1983009808
        %v5852 = vunpack.c.0.s8 %v5851
        %v5853 = vlaneseq
        %v5854 = vshrl.u32 %v5853, 7
        %v5855 = vsub.s32 %v5852, %v5854
        %v5856 = vrot.slane %v5842, %v5855
        %v5857 = vcombine.low %v5849, %v5856
        %v5858 = vcombine.low %v2588, %v2595
        %v5859 = vcombine.low %v2602, %v2609
        %v5861 = vunpack.c.l.s4 1983009808
        %v5862 = vunpack.c.0.s8 %v5861
        %v5863 = vlaneseq
        %v5864 = vshrl.u32 %v5863, 7
        %v5865 = vsub.s32 %v5862, %v5864
        %v5866 = vrot.slane %v5858, %v5865
        %v5868 = vunpack.c.l.s4 1983009808
        %v5869 = vunpack.c.0.s8 %v5868
        %v5870 = vlaneseq
        %v5871 = vshrl.u32 %v5870, 7
        %v5872 = vsub.s32 %v5869, %v5871
        %v5873 = vrot.slane %v5859, %v5872
        %v5874 = vcombine.low %v5866, %v5873
        %v5875 = vcombine.low %v2616, %v2623
        %v5876 = vcombine.low %v2630, %v2637
        %v5878 = vunpack.c.l.s4 1983009808
        %v5879 = vunpack.c.0.s8 %v5878
        %v5880 = vlaneseq
        %v5881 = vshrl.u32 %v5880, 7
        %v5882 = vsub.s32 %v5879, %v5881
        %v5883 = vrot.slane %v5875, %v5882
        %v5885 = vunpack.c.l.s4 1983009808
        %v5886 = vunpack.c.0.s8 %v5885
        %v5887 = vlaneseq
        %v5888 = vshrl.u32 %v5887, 7
        %v5889 = vsub.s32 %v5886, %v5888
        %v5890 = vrot.slane %v5876, %v5889
        %v5891 = vcombine.low %v5883, %v5890
        %v5892 = vcombine.low %v2644, %v2651
        %v5893 = vcombine.low %v2658, %v2665
        %v5895 = vunpack.c.l.s4 1983009808
        %v5896 = vunpack.c.0.s8 %v5895
        %v5897 = vlaneseq
        %v5898 = vshrl.u32 %v5897, 7
        %v5899 = vsub.s32 %v5896, %v5898
        %v5900 = vrot.slane %v5892, %v5899
        %v5902 = vunpack.c.l.s4 1983009808
        %v5903 = vunpack.c.0.s8 %v5902
        %v5904 = vlaneseq
        %v5905 = vshrl.u32 %v5904, 7
        %v5906 = vsub.s32 %v5903, %v5905
        %v5907 = vrot.slane %v5893, %v5906
        %v5908 = vcombine.low %v5900, %v5907
        %v5909 = vcombine.low %v2672, %v2679
        %v5910 = vcombine.low %v2686, %v2693
        %v5912 = vunpack.c.l.s4 1983009808
        %v5913 = vunpack.c.0.s8 %v5912
        %v5914 = vlaneseq
        %v5915 = vshrl.u32 %v5914, 7
        %v5916 = vsub.s32 %v5913, %v5915
        %v5917 = vrot.slane %v5909, %v5916
        %v5919 = vunpack.c.l.s4 1983009808
        %v5920 = vunpack.c.0.s8 %v5919
        %v5921 = vlaneseq
        %v5922 = vshrl.u32 %v5921, 7
        %v5923 = vsub.s32 %v5920, %v5922
        %v5924 = vrot.slane %v5910, %v5923
        %v5925 = vcombine.low %v5917, %v5924
        %v5926 = vcombine.low %v2700, %v2707
        %v5927 = vcombine.low %v2714, %v2721
        %v5929 = vunpack.c.l.s4 1983009808
        %v5930 = vunpack.c.0.s8 %v5929
        %v5931 = vlaneseq
        %v5932 = vshrl.u32 %v5931, 7
        %v5933 = vsub.s32 %v5930, %v5932
        %v5934 = vrot.slane %v5926, %v5933
        %v5936 = vunpack.c.l.s4 1983009808
        %v5937 = vunpack.c.0.s8 %v5936
        %v5938 = vlaneseq
        %v5939 = vshrl.u32 %v5938, 7
        %v5940 = vsub.s32 %v5937, %v5939
        %v5941 = vrot.slane %v5927, %v5940
        %v5942 = vcombine.low %v5934, %v5941
        %v5943 = vcombine.low %v2728, %v2735
        %v5944 = vcombine.low %v2742, %v2749
        %v5946 = vunpack.c.l.s4 1983009808
        %v5947 = vunpack.c.0.s8 %v5946
        %v5948 = vlaneseq
        %v5949 = vshrl.u32 %v5948, 7
        %v5950 = vsub.s32 %v5947, %v5949
        %v5951 = vrot.slane %v5943, %v5950
        %v5953 = vunpack.c.l.s4 1983009808
        %v5954 = vunpack.c.0.s8 %v5953
        %v5955 = vlaneseq
        %v5956 = vshrl.u32 %v5955, 7
        %v5957 = vsub.s32 %v5954, %v5956
        %v5958 = vrot.slane %v5944, %v5957
        %v5959 = vcombine.low %v5951, %v5958
        %v5960 = vcombine.low %v2756, %v2763
        %v5961 = vcombine.low %v2770, %v2777
        %v5963 = vunpack.c.l.s4 1983009808
        %v5964 = vunpack.c.0.s8 %v5963
        %v5965 = vlaneseq
        %v5966 = vshrl.u32 %v5965, 7
        %v5967 = vsub.s32 %v5964, %v5966
        %v5968 = vrot.slane %v5960, %v5967
        %v5970 = vunpack.c.l.s4 1983009808
        %v5971 = vunpack.c.0.s8 %v5970
        %v5972 = vlaneseq
        %v5973 = vshrl.u32 %v5972, 7
        %v5974 = vsub.s32 %v5971, %v5973
        %v5975 = vrot.slane %v5961, %v5974
        %v5976 = vcombine.low %v5968, %v5975
        %v5977 = vcombine.low %v2784, %v2791
        %v5978 = vcombine.low %v2798, %v2805
        %v5980 = vunpack.c.l.s4 1983009808
        %v5981 = vunpack.c.0.s8 %v5980
        %v5982 = vlaneseq
        %v5983 = vshrl.u32 %v5982, 7
        %v5984 = vsub.s32 %v5981, %v5983
        %v5985 = vrot.slane %v5977, %v5984
        %v5987 = vunpack.c.l.s4 1983009808
        %v5988 = vunpack.c.0.s8 %v5987
        %v5989 = vlaneseq
        %v5990 = vshrl.u32 %v5989, 7
        %v5991 = vsub.s32 %v5988, %v5990
        %v5992 = vrot.slane %v5978, %v5991
        %v5993 = vcombine.low %v5985, %v5992
        %v5994 = vcombine.low %v2812, %v2819
        %v5995 = vcombine.low %v2826, %v2833
        %v5997 = vunpack.c.l.s4 1983009808
        %v5998 = vunpack.c.0.s8 %v5997
        %v5999 = vlaneseq
        %v6000 = vshrl.u32 %v5999, 7
        %v6001 = vsub.s32 %v5998, %v6000
        %v6002 = vrot.slane %v5994, %v6001
        %v6004 = vunpack.c.l.s4 1983009808
        %v6005 = vunpack.c.0.s8 %v6004
        %v6006 = vlaneseq
        %v6007 = vshrl.u32 %v6006, 7
        %v6008 = vsub.s32 %v6005, %v6007
        %v6009 = vrot.slane %v5995, %v6008
        %v6010 = vcombine.low %v6002, %v6009
        %v6011 = vcombine.low %v2840, %v2847
        %v6012 = vcombine.low %v2854, %v2861
        %v6014 = vunpack.c.l.s4 1983009808
        %v6015 = vunpack.c.0.s8 %v6014
        %v6016 = vlaneseq
        %v6017 = vshrl.u32 %v6016, 7
        %v6018 = vsub.s32 %v6015, %v6017
        %v6019 = vrot.slane %v6011, %v6018
        %v6021 = vunpack.c.l.s4 1983009808
        %v6022 = vunpack.c.0.s8 %v6021
        %v6023 = vlaneseq
        %v6024 = vshrl.u32 %v6023, 7
        %v6025 = vsub.s32 %v6022, %v6024
        %v6026 = vrot.slane %v6012, %v6025
        %v6027 = vcombine.low %v6019, %v6026
        %v6028 = vcombine.low %v2868, %v2875
        %v6029 = vcombine.low %v2882, %v2889
        %v6031 = vunpack.c.l.s4 1983009808
        %v6032 = vunpack.c.0.s8 %v6031
        %v6033 = vlaneseq
        %v6034 = vshrl.u32 %v6033, 7
        %v6035 = vsub.s32 %v6032, %v6034
        %v6036 = vrot.slane %v6028, %v6035
        %v6038 = vunpack.c.l.s4 1983009808
        %v6039 = vunpack.c.0.s8 %v6038
        %v6040 = vlaneseq
        %v6041 = vshrl.u32 %v6040, 7
        %v6042 = vsub.s32 %v6039, %v6041
        %v6043 = vrot.slane %v6029, %v6042
        %v6044 = vcombine.low %v6036, %v6043
        %v6045 = vcombine.low %v2896, %v2903
        %v6046 = vcombine.low %v2910, %v2917
        %v6048 = vunpack.c.l.s4 1983009808
        %v6049 = vunpack.c.0.s8 %v6048
        %v6050 = vlaneseq
        %v6051 = vshrl.u32 %v6050, 7
        %v6052 = vsub.s32 %v6049, %v6051
        %v6053 = vrot.slane %v6045, %v6052
        %v6055 = vunpack.c.l.s4 1983009808
        %v6056 = vunpack.c.0.s8 %v6055
        %v6057 = vlaneseq
        %v6058 = vshrl.u32 %v6057, 7
        %v6059 = vsub.s32 %v6056, %v6058
        %v6060 = vrot.slane %v6046, %v6059
        %v6061 = vcombine.low %v6053, %v6060
        %v6062 = vcombine.low %v2924, %v2931
        %v6063 = vcombine.low %v2938, %v2945
        %v6065 = vunpack.c.l.s4 1983009808
        %v6066 = vunpack.c.0.s8 %v6065
        %v6067 = vlaneseq
        %v6068 = vshrl.u32 %v6067, 7
        %v6069 = vsub.s32 %v6066, %v6068
        %v6070 = vrot.slane %v6062, %v6069
        %v6072 = vunpack.c.l.s4 1983009808
        %v6073 = vunpack.c.0.s8 %v6072
        %v6074 = vlaneseq
        %v6075 = vshrl.u32 %v6074, 7
        %v6076 = vsub.s32 %v6073, %v6075
        %v6077 = vrot.slane %v6063, %v6076
        %v6078 = vcombine.low %v6070, %v6077
        %v6079 = vcombine.low %v2952, %v2959
        %v6080 = vcombine.low %v2966, %v2973
        %v6082 = vunpack.c.l.s4 1983009808
        %v6083 = vunpack.c.0.s8 %v6082
        %v6084 = vlaneseq
        %v6085 = vshrl.u32 %v6084, 7
        %v6086 = vsub.s32 %v6083, %v6085
        %v6087 = vrot.slane %v6079, %v6086
        %v6089 = vunpack.c.l.s4 1983009808
        %v6090 = vunpack.c.0.s8 %v6089
        %v6091 = vlaneseq
        %v6092 = vshrl.u32 %v6091, 7
        %v6093 = vsub.s32 %v6090, %v6092
        %v6094 = vrot.slane %v6080, %v6093
        %v6095 = vcombine.low %v6087, %v6094
        %v6096 = vcombine.low %v2980, %v2987
        %v6097 = vcombine.low %v2994, %v3001
        %v6099 = vunpack.c.l.s4 1983009808
        %v6100 = vunpack.c.0.s8 %v6099
        %v6101 = vlaneseq
        %v6102 = vshrl.u32 %v6101, 7
        %v6103 = vsub.s32 %v6100, %v6102
        %v6104 = vrot.slane %v6096, %v6103
        %v6106 = vunpack.c.l.s4 1983009808
        %v6107 = vunpack.c.0.s8 %v6106
        %v6108 = vlaneseq
        %v6109 = vshrl.u32 %v6108, 7
        %v6110 = vsub.s32 %v6107, %v6109
        %v6111 = vrot.slane %v6097, %v6110
        %v6112 = vcombine.low %v6104, %v6111
        %v6113 = vcombine.low %v3008, %v3015
        %v6114 = vcombine.low %v3022, %v3029
        %v6116 = vunpack.c.l.s4 1983009808
        %v6117 = vunpack.c.0.s8 %v6116
        %v6118 = vlaneseq
        %v6119 = vshrl.u32 %v6118, 7
        %v6120 = vsub.s32 %v6117, %v6119
        %v6121 = vrot.slane %v6113, %v6120
        %v6123 = vunpack.c.l.s4 1983009808
        %v6124 = vunpack.c.0.s8 %v6123
        %v6125 = vlaneseq
        %v6126 = vshrl.u32 %v6125, 7
        %v6127 = vsub.s32 %v6124, %v6126
        %v6128 = vrot.slane %v6114, %v6127
        %v6129 = vcombine.low %v6121, %v6128
        %v6130 = vcombine.low %v3036, %v3043
        %v6131 = vcombine.low %v3050, %v3057
        %v6133 = vunpack.c.l.s4 1983009808
        %v6134 = vunpack.c.0.s8 %v6133
        %v6135 = vlaneseq
        %v6136 = vshrl.u32 %v6135, 7
        %v6137 = vsub.s32 %v6134, %v6136
        %v6138 = vrot.slane %v6130, %v6137
        %v6140 = vunpack.c.l.s4 1983009808
        %v6141 = vunpack.c.0.s8 %v6140
        %v6142 = vlaneseq
        %v6143 = vshrl.u32 %v6142, 7
        %v6144 = vsub.s32 %v6141, %v6143
        %v6145 = vrot.slane %v6131, %v6144
        %v6146 = vcombine.low %v6138, %v6145
        %v6147 = vcombine.low %v3064, %v3071
        %v6148 = vcombine.low %v3078, %v3085
        %v6150 = vunpack.c.l.s4 1983009808
        %v6151 = vunpack.c.0.s8 %v6150
        %v6152 = vlaneseq
        %v6153 = vshrl.u32 %v6152, 7
        %v6154 = vsub.s32 %v6151, %v6153
        %v6155 = vrot.slane %v6147, %v6154
        %v6157 = vunpack.c.l.s4 1983009808
        %v6158 = vunpack.c.0.s8 %v6157
        %v6159 = vlaneseq
        %v6160 = vshrl.u32 %v6159, 7
        %v6161 = vsub.s32 %v6158, %v6160
        %v6162 = vrot.slane %v6148, %v6161
        %v6163 = vcombine.low %v6155, %v6162
        %v6164 = vcombine.low %v3092, %v3099
        %v6165 = vcombine.low %v3106, %v3113
        %v6167 = vunpack.c.l.s4 1983009808
        %v6168 = vunpack.c.0.s8 %v6167
        %v6169 = vlaneseq
        %v6170 = vshrl.u32 %v6169, 7
        %v6171 = vsub.s32 %v6168, %v6170
        %v6172 = vrot.slane %v6164, %v6171
        %v6174 = vunpack.c.l.s4 1983009808
        %v6175 = vunpack.c.0.s8 %v6174
        %v6176 = vlaneseq
        %v6177 = vshrl.u32 %v6176, 7
        %v6178 = vsub.s32 %v6175, %v6177
        %v6179 = vrot.slane %v6165, %v6178
        %v6180 = vcombine.low %v6172, %v6179
        %v6181 = vcombine.low %v3120, %v3127
        %v6182 = vcombine.low %v3134, %v3141
        %v6184 = vunpack.c.l.s4 1983009808
        %v6185 = vunpack.c.0.s8 %v6184
        %v6186 = vlaneseq
        %v6187 = vshrl.u32 %v6186, 7
        %v6188 = vsub.s32 %v6185, %v6187
        %v6189 = vrot.slane %v6181, %v6188
        %v6191 = vunpack.c.l.s4 1983009808
        %v6192 = vunpack.c.0.s8 %v6191
        %v6193 = vlaneseq
        %v6194 = vshrl.u32 %v6193, 7
        %v6195 = vsub.s32 %v6192, %v6194
        %v6196 = vrot.slane %v6182, %v6195
        %v6197 = vcombine.low %v6189, %v6196
        %v6198 = vcombine.low %v3148, %v3155
        %v6199 = vcombine.low %v3162, %v3169
        %v6201 = vunpack.c.l.s4 1983009808
        %v6202 = vunpack.c.0.s8 %v6201
        %v6203 = vlaneseq
        %v6204 = vshrl.u32 %v6203, 7
        %v6205 = vsub.s32 %v6202, %v6204
        %v6206 = vrot.slane %v6198, %v6205
        %v6208 = vunpack.c.l.s4 1983009808
        %v6209 = vunpack.c.0.s8 %v6208
        %v6210 = vlaneseq
        %v6211 = vshrl.u32 %v6210, 7
        %v6212 = vsub.s32 %v6209, %v6211
        %v6213 = vrot.slane %v6199, %v6212
        %v6214 = vcombine.low %v6206, %v6213
        %v6215 = vcombine.low %v3176, %v3183
        %v6216 = vcombine.low %v3190, %v3197
        %v6218 = vunpack.c.l.s4 1983009808
        %v6219 = vunpack.c.0.s8 %v6218
        %v6220 = vlaneseq
        %v6221 = vshrl.u32 %v6220, 7
        %v6222 = vsub.s32 %v6219, %v6221
        %v6223 = vrot.slane %v6215, %v6222
        %v6225 = vunpack.c.l.s4 1983009808
        %v6226 = vunpack.c.0.s8 %v6225
        %v6227 = vlaneseq
        %v6228 = vshrl.u32 %v6227, 7
        %v6229 = vsub.s32 %v6226, %v6228
        %v6230 = vrot.slane %v6216, %v6229
        %v6231 = vcombine.low %v6223, %v6230
        %v6232 = vcombine.low %v3204, %v3211
        %v6233 = vcombine.low %v3218, %v3225
        %v6235 = vunpack.c.l.s4 1983009808
        %v6236 = vunpack.c.0.s8 %v6235
        %v6237 = vlaneseq
        %v6238 = vshrl.u32 %v6237, 7
        %v6239 = vsub.s32 %v6236, %v6238
        %v6240 = vrot.slane %v6232, %v6239
        %v6242 = vunpack.c.l.s4 1983009808
        %v6243 = vunpack.c.0.s8 %v6242
        %v6244 = vlaneseq
        %v6245 = vshrl.u32 %v6244, 7
        %v6246 = vsub.s32 %v6243, %v6245
        %v6247 = vrot.slane %v6233, %v6246
        %v6248 = vcombine.low %v6240, %v6247
        %v6249 = vcombine.low %v3232, %v3239
        %v6250 = vcombine.low %v3246, %v3253
        %v6252 = vunpack.c.l.s4 1983009808
        %v6253 = vunpack.c.0.s8 %v6252
        %v6254 = vlaneseq
        %v6255 = vshrl.u32 %v6254, 7
        %v6256 = vsub.s32 %v6253, %v6255
        %v6257 = vrot.slane %v6249, %v6256
        %v6259 = vunpack.c.l.s4 1983009808
        %v6260 = vunpack.c.0.s8 %v6259
        %v6261 = vlaneseq
        %v6262 = vshrl.u32 %v6261, 7
        %v6263 = vsub.s32 %v6260, %v6262
        %v6264 = vrot.slane %v6250, %v6263
        %v6265 = vcombine.low %v6257, %v6264
        %v6266 = vcombine.low %v3260, %v3267
        %v6267 = vcombine.low %v3274, %v3281
        %v6269 = vunpack.c.l.s4 1983009808
        %v6270 = vunpack.c.0.s8 %v6269
        %v6271 = vlaneseq
        %v6272 = vshrl.u32 %v6271, 7
        %v6273 = vsub.s32 %v6270, %v6272
        %v6274 = vrot.slane %v6266, %v6273
        %v6276 = vunpack.c.l.s4 1983009808
        %v6277 = vunpack.c.0.s8 %v6276
        %v6278 = vlaneseq
        %v6279 = vshrl.u32 %v6278, 7
        %v6280 = vsub.s32 %v6277, %v6279
        %v6281 = vrot.slane %v6267, %v6280
        %v6282 = vcombine.low %v6274, %v6281
        %v6283 = vcombine.low %v3288, %v3295
        %v6284 = vcombine.low %v3302, %v3309
        %v6286 = vunpack.c.l.s4 1983009808
        %v6287 = vunpack.c.0.s8 %v6286
        %v6288 = vlaneseq
        %v6289 = vshrl.u32 %v6288, 7
        %v6290 = vsub.s32 %v6287, %v6289
        %v6291 = vrot.slane %v6283, %v6290
        %v6293 = vunpack.c.l.s4 1983009808
        %v6294 = vunpack.c.0.s8 %v6293
        %v6295 = vlaneseq
        %v6296 = vshrl.u32 %v6295, 7
        %v6297 = vsub.s32 %v6294, %v6296
        %v6298 = vrot.slane %v6284, %v6297
        %v6299 = vcombine.low %v6291, %v6298
        %v6300 = vcombine.low %v3316, %v3323
        %v6301 = vcombine.low %v3330, %v3337
        %v6303 = vunpack.c.l.s4 1983009808
        %v6304 = vunpack.c.0.s8 %v6303
        %v6305 = vlaneseq
        %v6306 = vshrl.u32 %v6305, 7
        %v6307 = vsub.s32 %v6304, %v6306
        %v6308 = vrot.slane %v6300, %v6307
        %v6310 = vunpack.c.l.s4 1983009808
        %v6311 = vunpack.c.0.s8 %v6310
        %v6312 = vlaneseq
        %v6313 = vshrl.u32 %v6312, 7
        %v6314 = vsub.s32 %v6311, %v6313
        %v6315 = vrot.slane %v6301, %v6314
        %v6316 = vcombine.low %v6308, %v6315
        %v6317 = vcombine.low %v3344, %v3351
        %v6318 = vcombine.low %v3358, %v3365
        %v6320 = vunpack.c.l.s4 1983009808
        %v6321 = vunpack.c.0.s8 %v6320
        %v6322 = vlaneseq
        %v6323 = vshrl.u32 %v6322, 7
        %v6324 = vsub.s32 %v6321, %v6323
        %v6325 = vrot.slane %v6317, %v6324
        %v6327 = vunpack.c.l.s4 1983009808
        %v6328 = vunpack.c.0.s8 %v6327
        %v6329 = vlaneseq
        %v6330 = vshrl.u32 %v6329, 7
        %v6331 = vsub.s32 %v6328, %v6330
        %v6332 = vrot.slane %v6318, %v6331
        %v6333 = vcombine.low %v6325, %v6332
        %v6334 = vcombine.low %v3372, %v3379
        %v6335 = vcombine.low %v3386, %v3393
        %v6337 = vunpack.c.l.s4 1983009808
        %v6338 = vunpack.c.0.s8 %v6337
        %v6339 = vlaneseq
        %v6340 = vshrl.u32 %v6339, 7
        %v6341 = vsub.s32 %v6338, %v6340
        %v6342 = vrot.slane %v6334, %v6341
        %v6344 = vunpack.c.l.s4 1983009808
        %v6345 = vunpack.c.0.s8 %v6344
        %v6346 = vlaneseq
        %v6347 = vshrl.u32 %v6346, 7
        %v6348 = vsub.s32 %v6345, %v6347
        %v6349 = vrot.slane %v6335, %v6348
        %v6350 = vcombine.low %v6342, %v6349
        %v6351 = vcombine.low %v3400, %v3407
        %v6352 = vcombine.low %v3414, %v3421
        %v6354 = vunpack.c.l.s4 1983009808
        %v6355 = vunpack.c.0.s8 %v6354
        %v6356 = vlaneseq
        %v6357 = vshrl.u32 %v6356, 7
        %v6358 = vsub.s32 %v6355, %v6357
        %v6359 = vrot.slane %v6351, %v6358
        %v6361 = vunpack.c.l.s4 1983009808
        %v6362 = vunpack.c.0.s8 %v6361
        %v6363 = vlaneseq
        %v6364 = vshrl.u32 %v6363, 7
        %v6365 = vsub.s32 %v6362, %v6364
        %v6366 = vrot.slane %v6352, %v6365
        %v6367 = vcombine.low %v6359, %v6366
        %v6368 = vcombine.low %v3428, %v3435
        %v6369 = vcombine.low %v3442, %v3449
        %v6371 = vunpack.c.l.s4 1983009808
        %v6372 = vunpack.c.0.s8 %v6371
        %v6373 = vlaneseq
        %v6374 = vshrl.u32 %v6373, 7
        %v6375 = vsub.s32 %v6372, %v6374
        %v6376 = vrot.slane %v6368, %v6375
        %v6378 = vunpack.c.l.s4 1983009808
        %v6379 = vunpack.c.0.s8 %v6378
        %v6380 = vlaneseq
        %v6381 = vshrl.u32 %v6380, 7
        %v6382 = vsub.s32 %v6379, %v6381
        %v6383 = vrot.slane %v6369, %v6382
        %v6384 = vcombine.low %v6376, %v6383
        %v6385 = vcombine.low %v3456, %v3463
        %v6386 = vcombine.low %v3470, %v3477
        %v6388 = vunpack.c.l.s4 1983009808
        %v6389 = vunpack.c.0.s8 %v6388
        %v6390 = vlaneseq
        %v6391 = vshrl.u32 %v6390, 7
        %v6392 = vsub.s32 %v6389, %v6391
        %v6393 = vrot.slane %v6385, %v6392
        %v6395 = vunpack.c.l.s4 1983009808
        %v6396 = vunpack.c.0.s8 %v6395
        %v6397 = vlaneseq
        %v6398 = vshrl.u32 %v6397, 7
        %v6399 = vsub.s32 %v6396, %v6398
        %v6400 = vrot.slane %v6386, %v6399
        %v6401 = vcombine.low %v6393, %v6400
        %v6402 = vcombine.low %v3484, %v3491
        %v6403 = vcombine.low %v3498, %v3505
        %v6405 = vunpack.c.l.s4 1983009808
        %v6406 = vunpack.c.0.s8 %v6405
        %v6407 = vlaneseq
        %v6408 = vshrl.u32 %v6407, 7
        %v6409 = vsub.s32 %v6406, %v6408
        %v6410 = vrot.slane %v6402, %v6409
        %v6412 = vunpack.c.l.s4 1983009808
        %v6413 = vunpack.c.0.s8 %v6412
        %v6414 = vlaneseq
        %v6415 = vshrl.u32 %v6414, 7
        %v6416 = vsub.s32 %v6413, %v6415
        %v6417 = vrot.slane %v6403, %v6416
        %v6418 = vcombine.low %v6410, %v6417
        %v6419 = vcombine.low %v3512, %v3519
        %v6420 = vcombine.low %v3526, %v3533
        %v6422 = vunpack.c.l.s4 1983009808
        %v6423 = vunpack.c.0.s8 %v6422
        %v6424 = vlaneseq
        %v6425 = vshrl.u32 %v6424, 7
        %v6426 = vsub.s32 %v6423, %v6425
        %v6427 = vrot.slane %v6419, %v6426
        %v6429 = vunpack.c.l.s4 1983009808
        %v6430 = vunpack.c.0.s8 %v6429
        %v6431 = vlaneseq
        %v6432 = vshrl.u32 %v6431, 7
        %v6433 = vsub.s32 %v6430, %v6432
        %v6434 = vrot.slane %v6420, %v6433
        %v6435 = vcombine.low %v6427, %v6434
        %v6436 = vcombine.low %v3540, %v3547
        %v6437 = vcombine.low %v3554, %v3561
        %v6439 = vunpack.c.l.s4 1983009808
        %v6440 = vunpack.c.0.s8 %v6439
        %v6441 = vlaneseq
        %v6442 = vshrl.u32 %v6441, 7
        %v6443 = vsub.s32 %v6440, %v6442
        %v6444 = vrot.slane %v6436, %v6443
        %v6446 = vunpack.c.l.s4 1983009808
        %v6447 = vunpack.c.0.s8 %v6446
        %v6448 = vlaneseq
        %v6449 = vshrl.u32 %v6448, 7
        %v6450 = vsub.s32 %v6447, %v6449
        %v6451 = vrot.slane %v6437, %v6450
        %v6452 = vcombine.low %v6444, %v6451
        %v6453 = vcombine.low %v3568, %v3575
        %v6454 = vcombine.low %v3582, %v3589
        %v6456 = vunpack.c.l.s4 1983009808
        %v6457 = vunpack.c.0.s8 %v6456
        %v6458 = vlaneseq
        %v6459 = vshrl.u32 %v6458, 7
        %v6460 = vsub.s32 %v6457, %v6459
        %v6461 = vrot.slane %v6453, %v6460
        %v6463 = vunpack.c.l.s4 1983009808
        %v6464 = vunpack.c.0.s8 %v6463
        %v6465 = vlaneseq
        %v6466 = vshrl.u32 %v6465, 7
        %v6467 = vsub.s32 %v6464, %v6466
        %v6468 = vrot.slane %v6454, %v6467
        %v6469 = vcombine.low %v6461, %v6468
        %v6470 = vcombine.low %v3596, %v3603
        %v6471 = vcombine.low %v3610, %v3617
        %v6473 = vunpack.c.l.s4 1983009808
        %v6474 = vunpack.c.0.s8 %v6473
        %v6475 = vlaneseq
        %v6476 = vshrl.u32 %v6475, 7
        %v6477 = vsub.s32 %v6474, %v6476
        %v6478 = vrot.slane %v6470, %v6477
        %v6480 = vunpack.c.l.s4 1983009808
        %v6481 = vunpack.c.0.s8 %v6480
        %v6482 = vlaneseq
        %v6483 = vshrl.u32 %v6482, 7
        %v6484 = vsub.s32 %v6481, %v6483
        %v6485 = vrot.slane %v6471, %v6484
        %v6486 = vcombine.low %v6478, %v6485
        %v6487 = vcombine.low %v3624, %v3631
        %v6488 = vcombine.low %v3638, %v3645
        %v6490 = vunpack.c.l.s4 1983009808
        %v6491 = vunpack.c.0.s8 %v6490
        %v6492 = vlaneseq
        %v6493 = vshrl.u32 %v6492, 7
        %v6494 = vsub.s32 %v6491, %v6493
        %v6495 = vrot.slane %v6487, %v6494
        %v6497 = vunpack.c.l.s4 1983009808
        %v6498 = vunpack.c.0.s8 %v6497
        %v6499 = vlaneseq
        %v6500 = vshrl.u32 %v6499, 7
        %v6501 = vsub.s32 %v6498, %v6500
        %v6502 = vrot.slane %v6488, %v6501
        %v6503 = vcombine.low %v6495, %v6502
        %v6504 = vcombine.low %v3652, %v3659
        %v6505 = vcombine.low %v3666, %v3673
        %v6507 = vunpack.c.l.s4 1983009808
        %v6508 = vunpack.c.0.s8 %v6507
        %v6509 = vlaneseq
        %v6510 = vshrl.u32 %v6509, 7
        %v6511 = vsub.s32 %v6508, %v6510
        %v6512 = vrot.slane %v6504, %v6511
        %v6514 = vunpack.c.l.s4 1983009808
        %v6515 = vunpack.c.0.s8 %v6514
        %v6516 = vlaneseq
        %v6517 = vshrl.u32 %v6516, 7
        %v6518 = vsub.s32 %v6515, %v6517
        %v6519 = vrot.slane %v6505, %v6518
        %v6520 = vcombine.low %v6512, %v6519
        %v6521 = vcombine.low %v3680, %v3687
        %v6522 = vcombine.low %v3694, %v3701
        %v6524 = vunpack.c.l.s4 1983009808
        %v6525 = vunpack.c.0.s8 %v6524
        %v6526 = vlaneseq
        %v6527 = vshrl.u32 %v6526, 7
        %v6528 = vsub.s32 %v6525, %v6527
        %v6529 = vrot.slane %v6521, %v6528
        %v6531 = vunpack.c.l.s4 1983009808
        %v6532 = vunpack.c.0.s8 %v6531
        %v6533 = vlaneseq
        %v6534 = vshrl.u32 %v6533, 7
        %v6535 = vsub.s32 %v6532, %v6534
        %v6536 = vrot.slane %v6522, %v6535
        %v6537 = vcombine.low %v6529, %v6536
        %v6538 = vcombine.low %v3708, %v3715
        %v6539 = vcombine.low %v3722, %v3729
        %v6541 = vunpack.c.l.s4 1983009808
        %v6542 = vunpack.c.0.s8 %v6541
        %v6543 = vlaneseq
        %v6544 = vshrl.u32 %v6543, 7
        %v6545 = vsub.s32 %v6542, %v6544
        %v6546 = vrot.slane %v6538, %v6545
        %v6548 = vunpack.c.l.s4 1983009808
        %v6549 = vunpack.c.0.s8 %v6548
        %v6550 = vlaneseq
        %v6551 = vshrl.u32 %v6550, 7
        %v6552 = vsub.s32 %v6549, %v6551
        %v6553 = vrot.slane %v6539, %v6552
        %v6554 = vcombine.low %v6546, %v6553
        %v6555 = vcombine.low %v3736, %v3743
        %v6556 = vcombine.low %v3750, %v3757
        %v6558 = vunpack.c.l.s4 1983009808
        %v6559 = vunpack.c.0.s8 %v6558
        %v6560 = vlaneseq
        %v6561 = vshrl.u32 %v6560, 7
        %v6562 = vsub.s32 %v6559, %v6561
        %v6563 = vrot.slane %v6555, %v6562
        %v6565 = vunpack.c.l.s4 1983009808
        %v6566 = vunpack.c.0.s8 %v6565
        %v6567 = vlaneseq
        %v6568 = vshrl.u32 %v6567, 7
        %v6569 = vsub.s32 %v6566, %v6568
        %v6570 = vrot.slane %v6556, %v6569
        %v6571 = vcombine.low %v6563, %v6570
        %v6572 = vcombine.low %v3764, %v3771
        %v6573 = vcombine.low %v3778, %v3785
        %v6575 = vunpack.c.l.s4 1983009808
        %v6576 = vunpack.c.0.s8 %v6575
        %v6577 = vlaneseq
        %v6578 = vshrl.u32 %v6577, 7
        %v6579 = vsub.s32 %v6576, %v6578
        %v6580 = vrot.slane %v6572, %v6579
        %v6582 = vunpack.c.l.s4 1983009808
        %v6583 = vunpack.c.0.s8 %v6582
        %v6584 = vlaneseq
        %v6585 = vshrl.u32 %v6584, 7
        %v6586 = vsub.s32 %v6583, %v6585
        %v6587 = vrot.slane %v6573, %v6586
        %v6588 = vcombine.low %v6580, %v6587
        %v6589 = vcombine.low %v3792, %v3799
        %v6590 = vcombine.low %v3806, %v3813
        %v6592 = vunpack.c.l.s4 1983009808
        %v6593 = vunpack.c.0.s8 %v6592
        %v6594 = vlaneseq
        %v6595 = vshrl.u32 %v6594, 7
        %v6596 = vsub.s32 %v6593, %v6595
        %v6597 = vrot.slane %v6589, %v6596
        %v6599 = vunpack.c.l.s4 1983009808
        %v6600 = vunpack.c.0.s8 %v6599
        %v6601 = vlaneseq
        %v6602 = vshrl.u32 %v6601, 7
        %v6603 = vsub.s32 %v6600, %v6602
        %v6604 = vrot.slane %v6590, %v6603
        %v6605 = vcombine.low %v6597, %v6604
        %v6606 = vcombine.low %v3820, %v3827
        %v6607 = vcombine.low %v3834, %v3841
        %v6609 = vunpack.c.l.s4 1983009808
        %v6610 = vunpack.c.0.s8 %v6609
        %v6611 = vlaneseq
        %v6612 = vshrl.u32 %v6611, 7
        %v6613 = vsub.s32 %v6610, %v6612
        %v6614 = vrot.slane %v6606, %v6613
        %v6616 = vunpack.c.l.s4 1983009808
        %v6617 = vunpack.c.0.s8 %v6616
        %v6618 = vlaneseq
        %v6619 = vshrl.u32 %v6618, 7
        %v6620 = vsub.s32 %v6617, %v6619
        %v6621 = vrot.slane %v6607, %v6620
        %v6622 = vcombine.low %v6614, %v6621
        %v6623 = vcombine.low %v3848, %v3855
        %v6624 = vcombine.low %v3862, %v3869
        %v6626 = vunpack.c.l.s4 1983009808
        %v6627 = vunpack.c.0.s8 %v6626
        %v6628 = vlaneseq
        %v6629 = vshrl.u32 %v6628, 7
        %v6630 = vsub.s32 %v6627, %v6629
        %v6631 = vrot.slane %v6623, %v6630
        %v6633 = vunpack.c.l.s4 1983009808
        %v6634 = vunpack.c.0.s8 %v6633
        %v6635 = vlaneseq
        %v6636 = vshrl.u32 %v6635, 7
        %v6637 = vsub.s32 %v6634, %v6636
        %v6638 = vrot.slane %v6624, %v6637
        %v6639 = vcombine.low %v6631, %v6638
        %v6640 = vcombine.low %v3876, %v3883
        %v6641 = vcombine.low %v3890, %v3897
        %v6643 = vunpack.c.l.s4 1983009808
        %v6644 = vunpack.c.0.s8 %v6643
        %v6645 = vlaneseq
        %v6646 = vshrl.u32 %v6645, 7
        %v6647 = vsub.s32 %v6644, %v6646
        %v6648 = vrot.slane %v6640, %v6647
        %v6650 = vunpack.c.l.s4 1983009808
        %v6651 = vunpack.c.0.s8 %v6650
        %v6652 = vlaneseq
        %v6653 = vshrl.u32 %v6652, 7
        %v6654 = vsub.s32 %v6651, %v6653
        %v6655 = vrot.slane %v6641, %v6654
        %v6656 = vcombine.low %v6648, %v6655
        %v6657 = vcombine.low %v3904, %v3911
        %v6658 = vcombine.low %v3918, %v3925
        %v6660 = vunpack.c.l.s4 1983009808
        %v6661 = vunpack.c.0.s8 %v6660
        %v6662 = vlaneseq
        %v6663 = vshrl.u32 %v6662, 7
        %v6664 = vsub.s32 %v6661, %v6663
        %v6665 = vrot.slane %v6657, %v6664
        %v6667 = vunpack.c.l.s4 1983009808
        %v6668 = vunpack.c.0.s8 %v6667
        %v6669 = vlaneseq
        %v6670 = vshrl.u32 %v6669, 7
        %v6671 = vsub.s32 %v6668, %v6670
        %v6672 = vrot.slane %v6658, %v6671
        %v6673 = vcombine.low %v6665, %v6672
        %v6674 = vcombine.low %v3932, %v3939
        %v6675 = vcombine.low %v3946, %v3953
        %v6677 = vunpack.c.l.s4 1983009808
        %v6678 = vunpack.c.0.s8 %v6677
        %v6679 = vlaneseq
        %v6680 = vshrl.u32 %v6679, 7
        %v6681 = vsub.s32 %v6678, %v6680
        %v6682 = vrot.slane %v6674, %v6681
        %v6684 = vunpack.c.l.s4 1983009808
        %v6685 = vunpack.c.0.s8 %v6684
        %v6686 = vlaneseq
        %v6687 = vshrl.u32 %v6686, 7
        %v6688 = vsub.s32 %v6685, %v6687
        %v6689 = vrot.slane %v6675, %v6688
        %v6690 = vcombine.low %v6682, %v6689
        %v6691 = vcombine.low %v3960, %v3967
        %v6692 = vcombine.low %v3974, %v3981
        %v6694 = vunpack.c.l.s4 1983009808
        %v6695 = vunpack.c.0.s8 %v6694
        %v6696 = vlaneseq
        %v6697 = vshrl.u32 %v6696, 7
        %v6698 = vsub.s32 %v6695, %v6697
        %v6699 = vrot.slane %v6691, %v6698
        %v6701 = vunpack.c.l.s4 1983009808
        %v6702 = vunpack.c.0.s8 %v6701
        %v6703 = vlaneseq
        %v6704 = vshrl.u32 %v6703, 7
        %v6705 = vsub.s32 %v6702, %v6704
        %v6706 = vrot.slane %v6692, %v6705
        %v6707 = vcombine.low %v6699, %v6706
        %v6708 = vcombine.low %v3988, %v3995
        %v6709 = vcombine.low %v4002, %v4009
        %v6711 = vunpack.c.l.s4 1983009808
        %v6712 = vunpack.c.0.s8 %v6711
        %v6713 = vlaneseq
        %v6714 = vshrl.u32 %v6713, 7
        %v6715 = vsub.s32 %v6712, %v6714
        %v6716 = vrot.slane %v6708, %v6715
        %v6718 = vunpack.c.l.s4 1983009808
        %v6719 = vunpack.c.0.s8 %v6718
        %v6720 = vlaneseq
        %v6721 = vshrl.u32 %v6720, 7
        %v6722 = vsub.s32 %v6719, %v6721
        %v6723 = vrot.slane %v6709, %v6722
        %v6724 = vcombine.low %v6716, %v6723
        %v6725 = vcombine.low %v4016, %v4023
        %v6726 = vcombine.low %v4030, %v4037
        %v6728 = vunpack.c.l.s4 1983009808
        %v6729 = vunpack.c.0.s8 %v6728
        %v6730 = vlaneseq
        %v6731 = vshrl.u32 %v6730, 7
        %v6732 = vsub.s32 %v6729, %v6731
        %v6733 = vrot.slane %v6725, %v6732
        %v6735 = vunpack.c.l.s4 1983009808
        %v6736 = vunpack.c.0.s8 %v6735
        %v6737 = vlaneseq
        %v6738 = vshrl.u32 %v6737, 7
        %v6739 = vsub.s32 %v6736, %v6738
        %v6740 = vrot.slane %v6726, %v6739
        %v6741 = vcombine.low %v6733, %v6740
        %v6742 = vcombine.low %v4044, %v4051
        %v6743 = vcombine.low %v4058, %v4065
        %v6745 = vunpack.c.l.s4 1983009808
        %v6746 = vunpack.c.0.s8 %v6745
        %v6747 = vlaneseq
        %v6748 = vshrl.u32 %v6747, 7
        %v6749 = vsub.s32 %v6746, %v6748
        %v6750 = vrot.slane %v6742, %v6749
        %v6752 = vunpack.c.l.s4 1983009808
        %v6753 = vunpack.c.0.s8 %v6752
        %v6754 = vlaneseq
        %v6755 = vshrl.u32 %v6754, 7
        %v6756 = vsub.s32 %v6753, %v6755
        %v6757 = vrot.slane %v6743, %v6756
        %v6758 = vcombine.low %v6750, %v6757
        %v6759 = vcombine.low %v4072, %v4079
        %v6760 = vcombine.low %v4086, %v4093
        %v6762 = vunpack.c.l.s4 1983009808
        %v6763 = vunpack.c.0.s8 %v6762
        %v6764 = vlaneseq
        %v6765 = vshrl.u32 %v6764, 7
        %v6766 = vsub.s32 %v6763, %v6765
        %v6767 = vrot.slane %v6759, %v6766
        %v6769 = vunpack.c.l.s4 1983009808
        %v6770 = vunpack.c.0.s8 %v6769
        %v6771 = vlaneseq
        %v6772 = vshrl.u32 %v6771, 7
        %v6773 = vsub.s32 %v6770, %v6772
        %v6774 = vrot.slane %v6760, %v6773
        %v6775 = vcombine.low %v6767, %v6774
        %v6776 = vcombine.low %v4100, %v4107
        %v6777 = vcombine.low %v4114, %v4121
        %v6779 = vunpack.c.l.s4 1983009808
        %v6780 = vunpack.c.0.s8 %v6779
        %v6781 = vlaneseq
        %v6782 = vshrl.u32 %v6781, 7
        %v6783 = vsub.s32 %v6780, %v6782
        %v6784 = vrot.slane %v6776, %v6783
        %v6786 = vunpack.c.l.s4 1983009808
        %v6787 = vunpack.c.0.s8 %v6786
        %v6788 = vlaneseq
        %v6789 = vshrl.u32 %v6788, 7
        %v6790 = vsub.s32 %v6787, %v6789
        %v6791 = vrot.slane %v6777, %v6790
        %v6792 = vcombine.low %v6784, %v6791
        %v6793 = vcombine.low %v4128, %v4135
        %v6794 = vcombine.low %v4142, %v4149
        %v6796 = vunpack.c.l.s4 1983009808
        %v6797 = vunpack.c.0.s8 %v6796
        %v6798 = vlaneseq
        %v6799 = vshrl.u32 %v6798, 7
        %v6800 = vsub.s32 %v6797, %v6799
        %v6801 = vrot.slane %v6793, %v6800
        %v6803 = vunpack.c.l.s4 1983009808
        %v6804 = vunpack.c.0.s8 %v6803
        %v6805 = vlaneseq
        %v6806 = vshrl.u32 %v6805, 7
        %v6807 = vsub.s32 %v6804, %v6806
        %v6808 = vrot.slane %v6794, %v6807
        %v6809 = vcombine.low %v6801, %v6808
        %v6810 = vcombine.low %v4156, %v4163
        %v6811 = vcombine.low %v4170, %v4177
        %v6813 = vunpack.c.l.s4 1983009808
        %v6814 = vunpack.c.0.s8 %v6813
        %v6815 = vlaneseq
        %v6816 = vshrl.u32 %v6815, 7
        %v6817 = vsub.s32 %v6814, %v6816
        %v6818 = vrot.slane %v6810, %v6817
        %v6820 = vunpack.c.l.s4 1983009808
        %v6821 = vunpack.c.0.s8 %v6820
        %v6822 = vlaneseq
        %v6823 = vshrl.u32 %v6822, 7
        %v6824 = vsub.s32 %v6821, %v6823
        %v6825 = vrot.slane %v6811, %v6824
        %v6826 = vcombine.low %v6818, %v6825
        %v6827 = vcombine.low %v4184, %v4191
        %v6828 = vcombine.low %v4198, %v4205
        %v6830 = vunpack.c.l.s4 1983009808
        %v6831 = vunpack.c.0.s8 %v6830
        %v6832 = vlaneseq
        %v6833 = vshrl.u32 %v6832, 7
        %v6834 = vsub.s32 %v6831, %v6833
        %v6835 = vrot.slane %v6827, %v6834
        %v6837 = vunpack.c.l.s4 1983009808
        %v6838 = vunpack.c.0.s8 %v6837
        %v6839 = vlaneseq
        %v6840 = vshrl.u32 %v6839, 7
        %v6841 = vsub.s32 %v6838, %v6840
        %v6842 = vrot.slane %v6828, %v6841
        %v6843 = vcombine.low %v6835, %v6842
        %v6844 = vcombine.low %v4212, %v4219
        %v6845 = vcombine.low %v4226, %v4233
        %v6847 = vunpack.c.l.s4 1983009808
        %v6848 = vunpack.c.0.s8 %v6847
        %v6849 = vlaneseq
        %v6850 = vshrl.u32 %v6849, 7
        %v6851 = vsub.s32 %v6848, %v6850
        %v6852 = vrot.slane %v6844, %v6851
        %v6854 = vunpack.c.l.s4 1983009808
        %v6855 = vunpack.c.0.s8 %v6854
        %v6856 = vlaneseq
        %v6857 = vshrl.u32 %v6856, 7
        %v6858 = vsub.s32 %v6855, %v6857
        %v6859 = vrot.slane %v6845, %v6858
        %v6860 = vcombine.low %v6852, %v6859
        %v6861 = vcombine.low %v4240, %v4247
        %v6862 = vcombine.low %v4254, %v4261
        %v6864 = vunpack.c.l.s4 1983009808
        %v6865 = vunpack.c.0.s8 %v6864
        %v6866 = vlaneseq
        %v6867 = vshrl.u32 %v6866, 7
        %v6868 = vsub.s32 %v6865, %v6867
        %v6869 = vrot.slane %v6861, %v6868
        %v6871 = vunpack.c.l.s4 1983009808
        %v6872 = vunpack.c.0.s8 %v6871
        %v6873 = vlaneseq
        %v6874 = vshrl.u32 %v6873, 7
        %v6875 = vsub.s32 %v6872, %v6874
        %v6876 = vrot.slane %v6862, %v6875
        %v6877 = vcombine.low %v6869, %v6876
        %v6878 = vcombine.low %v4268, %v4275
        %v6879 = vcombine.low %v4282, %v4289
        %v6881 = vunpack.c.l.s4 1983009808
        %v6882 = vunpack.c.0.s8 %v6881
        %v6883 = vlaneseq
        %v6884 = vshrl.u32 %v6883, 7
        %v6885 = vsub.s32 %v6882, %v6884
        %v6886 = vrot.slane %v6878, %v6885
        %v6888 = vunpack.c.l.s4 1983009808
        %v6889 = vunpack.c.0.s8 %v6888
        %v6890 = vlaneseq
        %v6891 = vshrl.u32 %v6890, 7
        %v6892 = vsub.s32 %v6889, %v6891
        %v6893 = vrot.slane %v6879, %v6892
        %v6894 = vcombine.low %v6886, %v6893
        %v6895 = vcombine.low %v4296, %v4303
        %v6896 = vcombine.low %v4310, %v4317
        %v6898 = vunpack.c.l.s4 1983009808
        %v6899 = vunpack.c.0.s8 %v6898
        %v6900 = vlaneseq
        %v6901 = vshrl.u32 %v6900, 7
        %v6902 = vsub.s32 %v6899, %v6901
        %v6903 = vrot.slane %v6895, %v6902
        %v6905 = vunpack.c.l.s4 1983009808
        %v6906 = vunpack.c.0.s8 %v6905
        %v6907 = vlaneseq
        %v6908 = vshrl.u32 %v6907, 7
        %v6909 = vsub.s32 %v6906, %v6908
        %v6910 = vrot.slane %v6896, %v6909
        %v6911 = vcombine.low %v6903, %v6910
        %v6912 = vcombine.low %v4324, %v4331
        %v6913 = vcombine.low %v4338, %v4345
        %v6915 = vunpack.c.l.s4 1983009808
        %v6916 = vunpack.c.0.s8 %v6915
        %v6917 = vlaneseq
        %v6918 = vshrl.u32 %v6917, 7
        %v6919 = vsub.s32 %v6916, %v6918
        %v6920 = vrot.slane %v6912, %v6919
        %v6922 = vunpack.c.l.s4 1983009808
        %v6923 = vunpack.c.0.s8 %v6922
        %v6924 = vlaneseq
        %v6925 = vshrl.u32 %v6924, 7
        %v6926 = vsub.s32 %v6923, %v6925
        %v6927 = vrot.slane %v6913, %v6926
        %v6928 = vcombine.low %v6920, %v6927
        %v6929 = vcombine.low %v4352, %v4359
        %v6930 = vcombine.low %v4366, %v4373
        %v6932 = vunpack.c.l.s4 1983009808
        %v6933 = vunpack.c.0.s8 %v6932
        %v6934 = vlaneseq
        %v6935 = vshrl.u32 %v6934, 7
        %v6936 = vsub.s32 %v6933, %v6935
        %v6937 = vrot.slane %v6929, %v6936
        %v6939 = vunpack.c.l.s4 1983009808
        %v6940 = vunpack.c.0.s8 %v6939
        %v6941 = vlaneseq
        %v6942 = vshrl.u32 %v6941, 7
        %v6943 = vsub.s32 %v6940, %v6942
        %v6944 = vrot.slane %v6930, %v6943
        %v6945 = vcombine.low %v6937, %v6944
        %v6946 = vcombine.low %v4380, %v4387
        %v6947 = vcombine.low %v4394, %v4401
        %v6949 = vunpack.c.l.s4 1983009808
        %v6950 = vunpack.c.0.s8 %v6949
        %v6951 = vlaneseq
        %v6952 = vshrl.u32 %v6951, 7
        %v6953 = vsub.s32 %v6950, %v6952
        %v6954 = vrot.slane %v6946, %v6953
        %v6956 = vunpack.c.l.s4 1983009808
        %v6957 = vunpack.c.0.s8 %v6956
        %v6958 = vlaneseq
        %v6959 = vshrl.u32 %v6958, 7
        %v6960 = vsub.s32 %v6957, %v6959
        %v6961 = vrot.slane %v6947, %v6960
        %v6962 = vcombine.low %v6954, %v6961
        %v6963 = vcombine.low %v4408, %v4415
        %v6964 = vcombine.low %v4422, %v4429
        %v6966 = vunpack.c.l.s4 1983009808
        %v6967 = vunpack.c.0.s8 %v6966
        %v6968 = vlaneseq
        %v6969 = vshrl.u32 %v6968, 7
        %v6970 = vsub.s32 %v6967, %v6969
        %v6971 = vrot.slane %v6963, %v6970
        %v6973 = vunpack.c.l.s4 1983009808
        %v6974 = vunpack.c.0.s8 %v6973
        %v6975 = vlaneseq
        %v6976 = vshrl.u32 %v6975, 7
        %v6977 = vsub.s32 %v6974, %v6976
        %v6978 = vrot.slane %v6964, %v6977
        %v6979 = vcombine.low %v6971, %v6978
        %v6980 = vcombine.low %v4436, %v4443
        %v6981 = vcombine.low %v4450, %v4457
        %v6983 = vunpack.c.l.s4 1983009808
        %v6984 = vunpack.c.0.s8 %v6983
        %v6985 = vlaneseq
        %v6986 = vshrl.u32 %v6985, 7
        %v6987 = vsub.s32 %v6984, %v6986
        %v6988 = vrot.slane %v6980, %v6987
        %v6990 = vunpack.c.l.s4 1983009808
        %v6991 = vunpack.c.0.s8 %v6990
        %v6992 = vlaneseq
        %v6993 = vshrl.u32 %v6992, 7
        %v6994 = vsub.s32 %v6991, %v6993
        %v6995 = vrot.slane %v6981, %v6994
        %v6996 = vcombine.low %v6988, %v6995
        %v6997 = vcombine.low %v4464, %v4471
        %v6998 = vcombine.low %v4478, %v4485
        %v7000 = vunpack.c.l.s4 1983009808
        %v7001 = vunpack.c.0.s8 %v7000
        %v7002 = vlaneseq
        %v7003 = vshrl.u32 %v7002, 7
        %v7004 = vsub.s32 %v7001, %v7003
        %v7005 = vrot.slane %v6997, %v7004
        %v7007 = vunpack.c.l.s4 1983009808
        %v7008 = vunpack.c.0.s8 %v7007
        %v7009 = vlaneseq
        %v7010 = vshrl.u32 %v7009, 7
        %v7011 = vsub.s32 %v7008, %v7010
        %v7012 = vrot.slane %v6998, %v7011
        %v7013 = vcombine.low %v7005, %v7012
        %v7014 = vcombine.low %v4492, %v4499
        %v7015 = vcombine.low %v4506, %v4513
        %v7017 = vunpack.c.l.s4 1983009808
        %v7018 = vunpack.c.0.s8 %v7017
        %v7019 = vlaneseq
        %v7020 = vshrl.u32 %v7019, 7
        %v7021 = vsub.s32 %v7018, %v7020
        %v7022 = vrot.slane %v7014, %v7021
        %v7024 = vunpack.c.l.s4 1983009808
        %v7025 = vunpack.c.0.s8 %v7024
        %v7026 = vlaneseq
        %v7027 = vshrl.u32 %v7026, 7
        %v7028 = vsub.s32 %v7025, %v7027
        %v7029 = vrot.slane %v7015, %v7028
        %v7030 = vcombine.low %v7022, %v7029
        %v7031 = vcombine.low %v4520, %v4527
        %v7032 = vcombine.low %v4534, %v4541
        %v7034 = vunpack.c.l.s4 1983009808
        %v7035 = vunpack.c.0.s8 %v7034
        %v7036 = vlaneseq
        %v7037 = vshrl.u32 %v7036, 7
        %v7038 = vsub.s32 %v7035, %v7037
        %v7039 = vrot.slane %v7031, %v7038
        %v7041 = vunpack.c.l.s4 1983009808
        %v7042 = vunpack.c.0.s8 %v7041
        %v7043 = vlaneseq
        %v7044 = vshrl.u32 %v7043, 7
        %v7045 = vsub.s32 %v7042, %v7044
        %v7046 = vrot.slane %v7032, %v7045
        %v7047 = vcombine.low %v7039, %v7046
        %v7048 = vcombine.low %v4548, %v4555
        %v7049 = vcombine.low %v4562, %v4569
        %v7051 = vunpack.c.l.s4 1983009808
        %v7052 = vunpack.c.0.s8 %v7051
        %v7053 = vlaneseq
        %v7054 = vshrl.u32 %v7053, 7
        %v7055 = vsub.s32 %v7052, %v7054
        %v7056 = vrot.slane %v7048, %v7055
        %v7058 = vunpack.c.l.s4 1983009808
        %v7059 = vunpack.c.0.s8 %v7058
        %v7060 = vlaneseq
        %v7061 = vshrl.u32 %v7060, 7
        %v7062 = vsub.s32 %v7059, %v7061
        %v7063 = vrot.slane %v7049, %v7062
        %v7064 = vcombine.low %v7056, %v7063
        %v7065 = vcombine.low %v4576, %v4583
        %v7066 = vcombine.low %v4590, %v4597
        %v7068 = vunpack.c.l.s4 1983009808
        %v7069 = vunpack.c.0.s8 %v7068
        %v7070 = vlaneseq
        %v7071 = vshrl.u32 %v7070, 7
        %v7072 = vsub.s32 %v7069, %v7071
        %v7073 = vrot.slane %v7065, %v7072
        %v7075 = vunpack.c.l.s4 1983009808
        %v7076 = vunpack.c.0.s8 %v7075
        %v7077 = vlaneseq
        %v7078 = vshrl.u32 %v7077, 7
        %v7079 = vsub.s32 %v7076, %v7078
        %v7080 = vrot.slane %v7066, %v7079
        %v7081 = vcombine.low %v7073, %v7080
        %v7082 = vcombine.low %v4604, %v4611
        %v7083 = vcombine.low %v4618, %v4625
        %v7085 = vunpack.c.l.s4 1983009808
        %v7086 = vunpack.c.0.s8 %v7085
        %v7087 = vlaneseq
        %v7088 = vshrl.u32 %v7087, 7
        %v7089 = vsub.s32 %v7086, %v7088
        %v7090 = vrot.slane %v7082, %v7089
        %v7092 = vunpack.c.l.s4 1983009808
        %v7093 = vunpack.c.0.s8 %v7092
        %v7094 = vlaneseq
        %v7095 = vshrl.u32 %v7094, 7
        %v7096 = vsub.s32 %v7093, %v7095
        %v7097 = vrot.slane %v7083, %v7096
        %v7098 = vcombine.low %v7090, %v7097
        %v7099 = vcombine.low %v4632, %v4639
        %v7100 = vcombine.low %v4646, %v4653
        %v7102 = vunpack.c.l.s4 1983009808
        %v7103 = vunpack.c.0.s8 %v7102
        %v7104 = vlaneseq
        %v7105 = vshrl.u32 %v7104, 7
        %v7106 = vsub.s32 %v7103, %v7105
        %v7107 = vrot.slane %v7099, %v7106
        %v7109 = vunpack.c.l.s4 1983009808
        %v7110 = vunpack.c.0.s8 %v7109
        %v7111 = vlaneseq
        %v7112 = vshrl.u32 %v7111, 7
        %v7113 = vsub.s32 %v7110, %v7112
        %v7114 = vrot.slane %v7100, %v7113
        %v7115 = vcombine.low %v7107, %v7114
        %v7116 = vcombine.low %v4660, %v4667
        %v7117 = vcombine.low %v4674, %v4681
        %v7119 = vunpack.c.l.s4 1983009808
        %v7120 = vunpack.c.0.s8 %v7119
        %v7121 = vlaneseq
        %v7122 = vshrl.u32 %v7121, 7
        %v7123 = vsub.s32 %v7120, %v7122
        %v7124 = vrot.slane %v7116, %v7123
        %v7126 = vunpack.c.l.s4 1983009808
        %v7127 = vunpack.c.0.s8 %v7126
        %v7128 = vlaneseq
        %v7129 = vshrl.u32 %v7128, 7
        %v7130 = vsub.s32 %v7127, %v7129
        %v7131 = vrot.slane %v7117, %v7130
        %v7132 = vcombine.low %v7124, %v7131
        %v7133 = vcombine.low %v4688, %v4695
        %v7134 = vcombine.low %v4702, %v4709
        %v7136 = vunpack.c.l.s4 1983009808
        %v7137 = vunpack.c.0.s8 %v7136
        %v7138 = vlaneseq
        %v7139 = vshrl.u32 %v7138, 7
        %v7140 = vsub.s32 %v7137, %v7139
        %v7141 = vrot.slane %v7133, %v7140
        %v7143 = vunpack.c.l.s4 1983009808
        %v7144 = vunpack.c.0.s8 %v7143
        %v7145 = vlaneseq
        %v7146 = vshrl.u32 %v7145, 7
        %v7147 = vsub.s32 %v7144, %v7146
        %v7148 = vrot.slane %v7134, %v7147
        %v7149 = vcombine.low %v7141, %v7148
        %v7150 = vcombine.low %v4716, %v4723
        %v7151 = vcombine.low %v4730, %v4737
        %v7153 = vunpack.c.l.s4 1983009808
        %v7154 = vunpack.c.0.s8 %v7153
        %v7155 = vlaneseq
        %v7156 = vshrl.u32 %v7155, 7
        %v7157 = vsub.s32 %v7154, %v7156
        %v7158 = vrot.slane %v7150, %v7157
        %v7160 = vunpack.c.l.s4 1983009808
        %v7161 = vunpack.c.0.s8 %v7160
        %v7162 = vlaneseq
        %v7163 = vshrl.u32 %v7162, 7
        %v7164 = vsub.s32 %v7161, %v7163
        %v7165 = vrot.slane %v7151, %v7164
        %v7166 = vcombine.low %v7158, %v7165
        %v7167 = vcombine.low %v4744, %v4751
        %v7168 = vcombine.low %v4758, %v4765
        %v7170 = vunpack.c.l.s4 1983009808
        %v7171 = vunpack.c.0.s8 %v7170
        %v7172 = vlaneseq
        %v7173 = vshrl.u32 %v7172, 7
        %v7174 = vsub.s32 %v7171, %v7173
        %v7175 = vrot.slane %v7167, %v7174
        %v7177 = vunpack.c.l.s4 1983009808
        %v7178 = vunpack.c.0.s8 %v7177
        %v7179 = vlaneseq
        %v7180 = vshrl.u32 %v7179, 7
        %v7181 = vsub.s32 %v7178, %v7180
        %v7182 = vrot.slane %v7168, %v7181
        %v7183 = vcombine.low %v7175, %v7182
        %v7184 = vcombine.low %v4772, %v4779
        %v7185 = vcombine.low %v4786, %v4793
        %v7187 = vunpack.c.l.s4 1983009808
        %v7188 = vunpack.c.0.s8 %v7187
        %v7189 = vlaneseq
        %v7190 = vshrl.u32 %v7189, 7
        %v7191 = vsub.s32 %v7188, %v7190
        %v7192 = vrot.slane %v7184, %v7191
        %v7194 = vunpack.c.l.s4 1983009808
        %v7195 = vunpack.c.0.s8 %v7194
        %v7196 = vlaneseq
        %v7197 = vshrl.u32 %v7196, 7
        %v7198 = vsub.s32 %v7195, %v7197
        %v7199 = vrot.slane %v7185, %v7198
        %v7200 = vcombine.low %v7192, %v7199
        %v7201 = vcombine.low %v4800, %v4807
        %v7202 = vcombine.low %v4814, %v4821
        %v7204 = vunpack.c.l.s4 1983009808
        %v7205 = vunpack.c.0.s8 %v7204
        %v7206 = vlaneseq
        %v7207 = vshrl.u32 %v7206, 7
        %v7208 = vsub.s32 %v7205, %v7207
        %v7209 = vrot.slane %v7201, %v7208
        %v7211 = vunpack.c.l.s4 1983009808
        %v7212 = vunpack.c.0.s8 %v7211
        %v7213 = vlaneseq
        %v7214 = vshrl.u32 %v7213, 7
        %v7215 = vsub.s32 %v7212, %v7214
        %v7216 = vrot.slane %v7202, %v7215
        %v7217 = vcombine.low %v7209, %v7216
        %v7218 = vcombine.low %v4828, %v4835
        %v7219 = vcombine.low %v4842, %v4849
        %v7221 = vunpack.c.l.s4 1983009808
        %v7222 = vunpack.c.0.s8 %v7221
        %v7223 = vlaneseq
        %v7224 = vshrl.u32 %v7223, 7
        %v7225 = vsub.s32 %v7222, %v7224
        %v7226 = vrot.slane %v7218, %v7225
        %v7228 = vunpack.c.l.s4 1983009808
        %v7229 = vunpack.c.0.s8 %v7228
        %v7230 = vlaneseq
        %v7231 = vshrl.u32 %v7230, 7
        %v7232 = vsub.s32 %v7229, %v7231
        %v7233 = vrot.slane %v7219, %v7232
        %v7234 = vcombine.low %v7226, %v7233
        %v7235 = vcombine.low %v4856, %v4863
        %v7236 = vcombine.low %v4870, %v4877
        %v7238 = vunpack.c.l.s4 1983009808
        %v7239 = vunpack.c.0.s8 %v7238
        %v7240 = vlaneseq
        %v7241 = vshrl.u32 %v7240, 7
        %v7242 = vsub.s32 %v7239, %v7241
        %v7243 = vrot.slane %v7235, %v7242
        %v7245 = vunpack.c.l.s4 1983009808
        %v7246 = vunpack.c.0.s8 %v7245
        %v7247 = vlaneseq
        %v7248 = vshrl.u32 %v7247, 7
        %v7249 = vsub.s32 %v7246, %v7248
        %v7250 = vrot.slane %v7236, %v7249
        %v7251 = vcombine.low %v7243, %v7250
        %v7252 = vcombine.low %v4884, %v4891
        %v7253 = vcombine.low %v4898, %v4905
        %v7255 = vunpack.c.l.s4 1983009808
        %v7256 = vunpack.c.0.s8 %v7255
        %v7257 = vlaneseq
        %v7258 = vshrl.u32 %v7257, 7
        %v7259 = vsub.s32 %v7256, %v7258
        %v7260 = vrot.slane %v7252, %v7259
        %v7262 = vunpack.c.l.s4 1983009808
        %v7263 = vunpack.c.0.s8 %v7262
        %v7264 = vlaneseq
        %v7265 = vshrl.u32 %v7264, 7
        %v7266 = vsub.s32 %v7263, %v7265
        %v7267 = vrot.slane %v7253, %v7266
        %v7268 = vcombine.low %v7260, %v7267
        %v7269 = vcombine.low %v4912, %v4919
        %v7270 = vcombine.low %v4926, %v4933
        %v7272 = vunpack.c.l.s4 1983009808
        %v7273 = vunpack.c.0.s8 %v7272
        %v7274 = vlaneseq
        %v7275 = vshrl.u32 %v7274, 7
        %v7276 = vsub.s32 %v7273, %v7275
        %v7277 = vrot.slane %v7269, %v7276
        %v7279 = vunpack.c.l.s4 1983009808
        %v7280 = vunpack.c.0.s8 %v7279
        %v7281 = vlaneseq
        %v7282 = vshrl.u32 %v7281, 7
        %v7283 = vsub.s32 %v7280, %v7282
        %v7284 = vrot.slane %v7270, %v7283
        %v7285 = vcombine.low %v7277, %v7284
        %v7286 = vcombine.low %v4940, %v4947
        %v7287 = vcombine.low %v4954, %v4961
        %v7289 = vunpack.c.l.s4 1983009808
        %v7290 = vunpack.c.0.s8 %v7289
        %v7291 = vlaneseq
        %v7292 = vshrl.u32 %v7291, 7
        %v7293 = vsub.s32 %v7290, %v7292
        %v7294 = vrot.slane %v7286, %v7293
        %v7296 = vunpack.c.l.s4 1983009808
        %v7297 = vunpack.c.0.s8 %v7296
        %v7298 = vlaneseq
        %v7299 = vshrl.u32 %v7298, 7
        %v7300 = vsub.s32 %v7297, %v7299
        %v7301 = vrot.slane %v7287, %v7300
        %v7302 = vcombine.low %v7294, %v7301
        %v7303 = vcombine.low %v4968, %v4975
        %v7304 = vcombine.low %v4982, %v4989
        %v7306 = vunpack.c.l.s4 1983009808
        %v7307 = vunpack.c.0.s8 %v7306
        %v7308 = vlaneseq
        %v7309 = vshrl.u32 %v7308, 7
        %v7310 = vsub.s32 %v7307, %v7309
        %v7311 = vrot.slane %v7303, %v7310
        %v7313 = vunpack.c.l.s4 1983009808
        %v7314 = vunpack.c.0.s8 %v7313
        %v7315 = vlaneseq
        %v7316 = vshrl.u32 %v7315, 7
        %v7317 = vsub.s32 %v7314, %v7316
        %v7318 = vrot.slane %v7304, %v7317
        %v7319 = vcombine.low %v7311, %v7318
        %v7320 = vcombine.low %v4996, %v5003
        %v7321 = vcombine.low %v5010, %v5017
        %v7323 = vunpack.c.l.s4 1983009808
        %v7324 = vunpack.c.0.s8 %v7323
        %v7325 = vlaneseq
        %v7326 = vshrl.u32 %v7325, 7
        %v7327 = vsub.s32 %v7324, %v7326
        %v7328 = vrot.slane %v7320, %v7327
        %v7330 = vunpack.c.l.s4 1983009808
        %v7331 = vunpack.c.0.s8 %v7330
        %v7332 = vlaneseq
        %v7333 = vshrl.u32 %v7332, 7
        %v7334 = vsub.s32 %v7331, %v7333
        %v7335 = vrot.slane %v7321, %v7334
        %v7336 = vcombine.low %v7328, %v7335
        %v7337 = vcombine.low %v5024, %v5031
        %v7338 = vcombine.low %v5038, %v5045
        %v7340 = vunpack.c.l.s4 1983009808
        %v7341 = vunpack.c.0.s8 %v7340
        %v7342 = vlaneseq
        %v7343 = vshrl.u32 %v7342, 7
        %v7344 = vsub.s32 %v7341, %v7343
        %v7345 = vrot.slane %v7337, %v7344
        %v7347 = vunpack.c.l.s4 1983009808
        %v7348 = vunpack.c.0.s8 %v7347
        %v7349 = vlaneseq
        %v7350 = vshrl.u32 %v7349, 7
        %v7351 = vsub.s32 %v7348, %v7350
        %v7352 = vrot.slane %v7338, %v7351
        %v7353 = vcombine.low %v7345, %v7352
        %v7354 = vcombine.low %v5052, %v5059
        %v7355 = vcombine.low %v5066, %v5073
        %v7357 = vunpack.c.l.s4 1983009808
        %v7358 = vunpack.c.0.s8 %v7357
        %v7359 = vlaneseq
        %v7360 = vshrl.u32 %v7359, 7
        %v7361 = vsub.s32 %v7358, %v7360
        %v7362 = vrot.slane %v7354, %v7361
        %v7364 = vunpack.c.l.s4 1983009808
        %v7365 = vunpack.c.0.s8 %v7364
        %v7366 = vlaneseq
        %v7367 = vshrl.u32 %v7366, 7
        %v7368 = vsub.s32 %v7365, %v7367
        %v7369 = vrot.slane %v7355, %v7368
        %v7370 = vcombine.low %v7362, %v7369
        %v7371 = vcombine.low %v5080, %v5087
        %v7372 = vcombine.low %v5094, %v5101
        %v7374 = vunpack.c.l.s4 1983009808
        %v7375 = vunpack.c.0.s8 %v7374
        %v7376 = vlaneseq
        %v7377 = vshrl.u32 %v7376, 7
        %v7378 = vsub.s32 %v7375, %v7377
        %v7379 = vrot.slane %v7371, %v7378
        %v7381 = vunpack.c.l.s4 1983009808
        %v7382 = vunpack.c.0.s8 %v7381
        %v7383 = vlaneseq
        %v7384 = vshrl.u32 %v7383, 7
        %v7385 = vsub.s32 %v7382, %v7384
        %v7386 = vrot.slane %v7372, %v7385
        %v7387 = vcombine.low %v7379, %v7386
        %v7388 = vcombine.low %v5108, %v5115
        %v7389 = vcombine.low %v5122, %v5129
        %v7391 = vunpack.c.l.s4 1983009808
        %v7392 = vunpack.c.0.s8 %v7391
        %v7393 = vlaneseq
        %v7394 = vshrl.u32 %v7393, 7
        %v7395 = vsub.s32 %v7392, %v7394
        %v7396 = vrot.slane %v7388, %v7395
        %v7398 = vunpack.c.l.s4 1983009808
        %v7399 = vunpack.c.0.s8 %v7398
        %v7400 = vlaneseq
        %v7401 = vshrl.u32 %v7400, 7
        %v7402 = vsub.s32 %v7399, %v7401
        %v7403 = vrot.slane %v7389, %v7402
        %v7404 = vcombine.low %v7396, %v7403
        %v7405 = vcombine.low %v5136, %v5143
        %v7406 = vcombine.low %v5150, %v5157
        %v7408 = vunpack.c.l.s4 1983009808
        %v7409 = vunpack.c.0.s8 %v7408
        %v7410 = vlaneseq
        %v7411 = vshrl.u32 %v7410, 7
        %v7412 = vsub.s32 %v7409, %v7411
        %v7413 = vrot.slane %v7405, %v7412
        %v7415 = vunpack.c.l.s4 1983009808
        %v7416 = vunpack.c.0.s8 %v7415
        %v7417 = vlaneseq
        %v7418 = vshrl.u32 %v7417, 7
        %v7419 = vsub.s32 %v7416, %v7418
        %v7420 = vrot.slane %v7406, %v7419
        %v7421 = vcombine.low %v7413, %v7420
        %v7422 = vcombine.low %v5164, %v5171
        %v7423 = vcombine.low %v5178, %v5185
        %v7425 = vunpack.c.l.s4 1983009808
        %v7426 = vunpack.c.0.s8 %v7425
        %v7427 = vlaneseq
        %v7428 = vshrl.u32 %v7427, 7
        %v7429 = vsub.s32 %v7426, %v7428
        %v7430 = vrot.slane %v7422, %v7429
        %v7432 = vunpack.c.l.s4 1983009808
        %v7433 = vunpack.c.0.s8 %v7432
        %v7434 = vlaneseq
        %v7435 = vshrl.u32 %v7434, 7
        %v7436 = vsub.s32 %v7433, %v7435
        %v7437 = vrot.slane %v7423, %v7436
        %v7438 = vcombine.low %v7430, %v7437
        %v7439 = vcombine.low %v5192, %v5199
        %v7440 = vcombine.low %v5206, %v5213
        %v7442 = vunpack.c.l.s4 1983009808
        %v7443 = vunpack.c.0.s8 %v7442
        %v7444 = vlaneseq
        %v7445 = vshrl.u32 %v7444, 7
        %v7446 = vsub.s32 %v7443, %v7445
        %v7447 = vrot.slane %v7439, %v7446
        %v7449 = vunpack.c.l.s4 1983009808
        %v7450 = vunpack.c.0.s8 %v7449
        %v7451 = vlaneseq
        %v7452 = vshrl.u32 %v7451, 7
        %v7453 = vsub.s32 %v7450, %v7452
        %v7454 = vrot.slane %v7440, %v7453
        %v7455 = vcombine.low %v7447, %v7454
        %v7456 = vcombine.low %v5220, %v5227
        %v7457 = vcombine.low %v5234, %v5241
        %v7459 = vunpack.c.l.s4 1983009808
        %v7460 = vunpack.c.0.s8 %v7459
        %v7461 = vlaneseq
        %v7462 = vshrl.u32 %v7461, 7
        %v7463 = vsub.s32 %v7460, %v7462
        %v7464 = vrot.slane %v7456, %v7463
        %v7466 = vunpack.c.l.s4 1983009808
        %v7467 = vunpack.c.0.s8 %v7466
        %v7468 = vlaneseq
        %v7469 = vshrl.u32 %v7468, 7
        %v7470 = vsub.s32 %v7467, %v7469
        %v7471 = vrot.slane %v7457, %v7470
        %v7472 = vcombine.low %v7464, %v7471
        %v7473 = vcombine.low %v5248, %v5255
        %v7474 = vcombine.low %v5262, %v5269
        %v7476 = vunpack.c.l.s4 1983009808
        %v7477 = vunpack.c.0.s8 %v7476
        %v7478 = vlaneseq
        %v7479 = vshrl.u32 %v7478, 7
        %v7480 = vsub.s32 %v7477, %v7479
        %v7481 = vrot.slane %v7473, %v7480
        %v7483 = vunpack.c.l.s4 1983009808
        %v7484 = vunpack.c.0.s8 %v7483
        %v7485 = vlaneseq
        %v7486 = vshrl.u32 %v7485, 7
        %v7487 = vsub.s32 %v7484, %v7486
        %v7488 = vrot.slane %v7474, %v7487
        %v7489 = vcombine.low %v7481, %v7488
        %v7490 = vcombine.low %v5276, %v5283
        %v7491 = vcombine.low %v5290, %v5297
        %v7493 = vunpack.c.l.s4 1983009808
        %v7494 = vunpack.c.0.s8 %v7493
        %v7495 = vlaneseq
        %v7496 = vshrl.u32 %v7495, 7
        %v7497 = vsub.s32 %v7494, %v7496
        %v7498 = vrot.slane %v7490, %v7497
        %v7500 = vunpack.c.l.s4 1983009808
        %v7501 = vunpack.c.0.s8 %v7500
        %v7502 = vlaneseq
        %v7503 = vshrl.u32 %v7502, 7
        %v7504 = vsub.s32 %v7501, %v7503
        %v7505 = vrot.slane %v7491, %v7504
        %v7506 = vcombine.low %v7498, %v7505
        %v7507 = vcombine.low %v5304, %v5311
        %v7508 = vcombine.low %v5318, %v5325
        %v7510 = vunpack.c.l.s4 1983009808
        %v7511 = vunpack.c.0.s8 %v7510
        %v7512 = vlaneseq
        %v7513 = vshrl.u32 %v7512, 7
        %v7514 = vsub.s32 %v7511, %v7513
        %v7515 = vrot.slane %v7507, %v7514
        %v7517 = vunpack.c.l.s4 1983009808
        %v7518 = vunpack.c.0.s8 %v7517
        %v7519 = vlaneseq
        %v7520 = vshrl.u32 %v7519, 7
        %v7521 = vsub.s32 %v7518, %v7520
        %v7522 = vrot.slane %v7508, %v7521
        %v7523 = vcombine.low %v7515, %v7522
        %v7524 = vcombine.low %v5332, %v5339
        %v7525 = vcombine.low %v5346, %v5353
        %v7527 = vunpack.c.l.s4 1983009808
        %v7528 = vunpack.c.0.s8 %v7527
        %v7529 = vlaneseq
        %v7530 = vshrl.u32 %v7529, 7
        %v7531 = vsub.s32 %v7528, %v7530
        %v7532 = vrot.slane %v7524, %v7531
        %v7534 = vunpack.c.l.s4 1983009808
        %v7535 = vunpack.c.0.s8 %v7534
        %v7536 = vlaneseq
        %v7537 = vshrl.u32 %v7536, 7
        %v7538 = vsub.s32 %v7535, %v7537
        %v7539 = vrot.slane %v7525, %v7538
        %v7540 = vcombine.low %v7532, %v7539
        %v7541 = vcombine.low %v5360, %v5367
        %v7542 = vcombine.low %v5374, %v5381
        %v7544 = vunpack.c.l.s4 1983009808
        %v7545 = vunpack.c.0.s8 %v7544
        %v7546 = vlaneseq
        %v7547 = vshrl.u32 %v7546, 7
        %v7548 = vsub.s32 %v7545, %v7547
        %v7549 = vrot.slane %v7541, %v7548
        %v7551 = vunpack.c.l.s4 1983009808
        %v7552 = vunpack.c.0.s8 %v7551
        %v7553 = vlaneseq
        %v7554 = vshrl.u32 %v7553, 7
        %v7555 = vsub.s32 %v7552, %v7554
        %v7556 = vrot.slane %v7542, %v7555
        %v7557 = vcombine.low %v7549, %v7556
        %7558 = vset.pattern.permute.xlu0 0
        %7559 = vperm.xlu0 %7558, %v5398
        %v7560 = vpop.permute.xlu0 %7559
        %7561 = vset.pattern.permute.xlu0 0
        %7562 = vperm.xlu0 %7561, %v5415
        %v7563 = vpop.permute.xlu0 %7562
        %7564 = vset.pattern.permute.xlu0 0
        %7565 = vperm.xlu0 %7564, %v5432
        %v7566 = vpop.permute.xlu0 %7565
        %7567 = vset.pattern.permute.xlu0 0
        %7568 = vperm.xlu0 %7567, %v5449
        %v7569 = vpop.permute.xlu0 %7568
        %7570 = vset.pattern.permute.xlu0 0
        %7571 = vperm.xlu0 %7570, %v5466
        %v7572 = vpop.permute.xlu0 %7571
        %7573 = vset.pattern.permute.xlu0 0
        %7574 = vperm.xlu0 %7573, %v5483
        %v7575 = vpop.permute.xlu0 %7574
        %7576 = vset.pattern.permute.xlu0 0
        %7577 = vperm.xlu0 %7576, %v5500
        %v7578 = vpop.permute.xlu0 %7577
        %7579 = vset.pattern.permute.xlu0 0
        %7580 = vperm.xlu0 %7579, %v5517
        %v7581 = vpop.permute.xlu0 %7580
        %7582 = vset.pattern.permute.xlu0 0
        %7583 = vperm.xlu0 %7582, %v5534
        %v7584 = vpop.permute.xlu0 %7583
        %7585 = vset.pattern.permute.xlu0 0
        %7586 = vperm.xlu0 %7585, %v5551
        %v7587 = vpop.permute.xlu0 %7586
        %7588 = vset.pattern.permute.xlu0 0
        %7589 = vperm.xlu0 %7588, %v5568
        %v7590 = vpop.permute.xlu0 %7589
        %7591 = vset.pattern.permute.xlu0 0
        %7592 = vperm.xlu0 %7591, %v5585
        %v7593 = vpop.permute.xlu0 %7592
        %7594 = vset.pattern.permute.xlu0 0
        %7595 = vperm.xlu0 %7594, %v5602
        %v7596 = vpop.permute.xlu0 %7595
        %7597 = vset.pattern.permute.xlu0 0
        %7598 = vperm.xlu0 %7597, %v5619
        %v7599 = vpop.permute.xlu0 %7598
        %7600 = vset.pattern.permute.xlu0 0
        %7601 = vperm.xlu0 %7600, %v5636
        %v7602 = vpop.permute.xlu0 %7601
        %7603 = vset.pattern.permute.xlu0 0
        %7604 = vperm.xlu0 %7603, %v5653
        %v7605 = vpop.permute.xlu0 %7604
        %7606 = vset.pattern.permute.xlu0 0
        %7607 = vperm.xlu0 %7606, %v5670
        %v7608 = vpop.permute.xlu0 %7607
        %7609 = vset.pattern.permute.xlu0 0
        %7610 = vperm.xlu0 %7609, %v5687
        %v7611 = vpop.permute.xlu0 %7610
        %7612 = vset.pattern.permute.xlu0 0
        %7613 = vperm.xlu0 %7612, %v5704
        %v7614 = vpop.permute.xlu0 %7613
        %7615 = vset.pattern.permute.xlu0 0
        %7616 = vperm.xlu0 %7615, %v5721
        %v7617 = vpop.permute.xlu0 %7616
        %7618 = vset.pattern.permute.xlu0 0
        %7619 = vperm.xlu0 %7618, %v5738
        %v7620 = vpop.permute.xlu0 %7619
        %7621 = vset.pattern.permute.xlu0 0
        %7622 = vperm.xlu0 %7621, %v5755
        %v7623 = vpop.permute.xlu0 %7622
        %7624 = vset.pattern.permute.xlu0 0
        %7625 = vperm.xlu0 %7624, %v5772
        %v7626 = vpop.permute.xlu0 %7625
        %7627 = vset.pattern.permute.xlu0 0
        %7628 = vperm.xlu0 %7627, %v5789
        %v7629 = vpop.permute.xlu0 %7628
        %7630 = vset.pattern.permute.xlu0 0
        %7631 = vperm.xlu0 %7630, %v5806
        %v7632 = vpop.permute.xlu0 %7631
        %7633 = vset.pattern.permute.xlu0 0
        %7634 = vperm.xlu0 %7633, %v5823
        %v7635 = vpop.permute.xlu0 %7634
        %7636 = vset.pattern.permute.xlu0 0
        %7637 = vperm.xlu0 %7636, %v5840
        %v7638 = vpop.permute.xlu0 %7637
        %7639 = vset.pattern.permute.xlu0 0
        %7640 = vperm.xlu0 %7639, %v5857
        %v7641 = vpop.permute.xlu0 %7640
        %7642 = vset.pattern.permute.xlu0 0
        %7643 = vperm.xlu0 %7642, %v5874
        %v7644 = vpop.permute.xlu0 %7643
        %7645 = vset.pattern.permute.xlu0 0
        %7646 = vperm.xlu0 %7645, %v5891
        %v7647 = vpop.permute.xlu0 %7646
        %7648 = vset.pattern.permute.xlu0 0
        %7649 = vperm.xlu0 %7648, %v5908
        %v7650 = vpop.permute.xlu0 %7649
        %7651 = vset.pattern.permute.xlu0 0
        %7652 = vperm.xlu0 %7651, %v5925
        %v7653 = vpop.permute.xlu0 %7652
        %7654 = vset.pattern.permute.xlu0 0
        %7655 = vperm.xlu0 %7654, %v5942
        %v7656 = vpop.permute.xlu0 %7655
        %7657 = vset.pattern.permute.xlu0 0
        %7658 = vperm.xlu0 %7657, %v5959
        %v7659 = vpop.permute.xlu0 %7658
        %7660 = vset.pattern.permute.xlu0 0
        %7661 = vperm.xlu0 %7660, %v5976
        %v7662 = vpop.permute.xlu0 %7661
        %7663 = vset.pattern.permute.xlu0 0
        %7664 = vperm.xlu0 %7663, %v5993
        %v7665 = vpop.permute.xlu0 %7664
        %7666 = vset.pattern.permute.xlu0 0
        %7667 = vperm.xlu0 %7666, %v6010
        %v7668 = vpop.permute.xlu0 %7667
        %7669 = vset.pattern.permute.xlu0 0
        %7670 = vperm.xlu0 %7669, %v6027
        %v7671 = vpop.permute.xlu0 %7670
        %7672 = vset.pattern.permute.xlu0 0
        %7673 = vperm.xlu0 %7672, %v6044
        %v7674 = vpop.permute.xlu0 %7673
        %7675 = vset.pattern.permute.xlu0 0
        %7676 = vperm.xlu0 %7675, %v6061
        %v7677 = vpop.permute.xlu0 %7676
        %7678 = vset.pattern.permute.xlu0 0
        %7679 = vperm.xlu0 %7678, %v6078
        %v7680 = vpop.permute.xlu0 %7679
        %7681 = vset.pattern.permute.xlu0 0
        %7682 = vperm.xlu0 %7681, %v6095
        %v7683 = vpop.permute.xlu0 %7682
        %7684 = vset.pattern.permute.xlu0 0
        %7685 = vperm.xlu0 %7684, %v6112
        %v7686 = vpop.permute.xlu0 %7685
        %7687 = vset.pattern.permute.xlu0 0
        %7688 = vperm.xlu0 %7687, %v6129
        %v7689 = vpop.permute.xlu0 %7688
        %7690 = vset.pattern.permute.xlu0 0
        %7691 = vperm.xlu0 %7690, %v6146
        %v7692 = vpop.permute.xlu0 %7691
        %7693 = vset.pattern.permute.xlu0 0
        %7694 = vperm.xlu0 %7693, %v6163
        %v7695 = vpop.permute.xlu0 %7694
        %7696 = vset.pattern.permute.xlu0 0
        %7697 = vperm.xlu0 %7696, %v6180
        %v7698 = vpop.permute.xlu0 %7697
        %7699 = vset.pattern.permute.xlu0 0
        %7700 = vperm.xlu0 %7699, %v6197
        %v7701 = vpop.permute.xlu0 %7700
        %7702 = vset.pattern.permute.xlu0 0
        %7703 = vperm.xlu0 %7702, %v6214
        %v7704 = vpop.permute.xlu0 %7703
        %7705 = vset.pattern.permute.xlu0 0
        %7706 = vperm.xlu0 %7705, %v6231
        %v7707 = vpop.permute.xlu0 %7706
        %7708 = vset.pattern.permute.xlu0 0
        %7709 = vperm.xlu0 %7708, %v6248
        %v7710 = vpop.permute.xlu0 %7709
        %7711 = vset.pattern.permute.xlu0 0
        %7712 = vperm.xlu0 %7711, %v6265
        %v7713 = vpop.permute.xlu0 %7712
        %7714 = vset.pattern.permute.xlu0 0
        %7715 = vperm.xlu0 %7714, %v6282
        %v7716 = vpop.permute.xlu0 %7715
        %7717 = vset.pattern.permute.xlu0 0
        %7718 = vperm.xlu0 %7717, %v6299
        %v7719 = vpop.permute.xlu0 %7718
        %7720 = vset.pattern.permute.xlu0 0
        %7721 = vperm.xlu0 %7720, %v6316
        %v7722 = vpop.permute.xlu0 %7721
        %7723 = vset.pattern.permute.xlu0 0
        %7724 = vperm.xlu0 %7723, %v6333
        %v7725 = vpop.permute.xlu0 %7724
        %7726 = vset.pattern.permute.xlu0 0
        %7727 = vperm.xlu0 %7726, %v6350
        %v7728 = vpop.permute.xlu0 %7727
        %7729 = vset.pattern.permute.xlu0 0
        %7730 = vperm.xlu0 %7729, %v6367
        %v7731 = vpop.permute.xlu0 %7730
        %7732 = vset.pattern.permute.xlu0 0
        %7733 = vperm.xlu0 %7732, %v6384
        %v7734 = vpop.permute.xlu0 %7733
        %7735 = vset.pattern.permute.xlu0 0
        %7736 = vperm.xlu0 %7735, %v6401
        %v7737 = vpop.permute.xlu0 %7736
        %7738 = vset.pattern.permute.xlu0 0
        %7739 = vperm.xlu0 %7738, %v6418
        %v7740 = vpop.permute.xlu0 %7739
        %7741 = vset.pattern.permute.xlu0 0
        %7742 = vperm.xlu0 %7741, %v6435
        %v7743 = vpop.permute.xlu0 %7742
        %7744 = vset.pattern.permute.xlu0 0
        %7745 = vperm.xlu0 %7744, %v6452
        %v7746 = vpop.permute.xlu0 %7745
        %7747 = vset.pattern.permute.xlu0 0
        %7748 = vperm.xlu0 %7747, %v6469
        %v7749 = vpop.permute.xlu0 %7748
        %7750 = vset.pattern.permute.xlu0 0
        %7751 = vperm.xlu0 %7750, %v6486
        %v7752 = vpop.permute.xlu0 %7751
        %7753 = vset.pattern.permute.xlu0 0
        %7754 = vperm.xlu0 %7753, %v6503
        %v7755 = vpop.permute.xlu0 %7754
        %7756 = vset.pattern.permute.xlu0 0
        %7757 = vperm.xlu0 %7756, %v6520
        %v7758 = vpop.permute.xlu0 %7757
        %7759 = vset.pattern.permute.xlu0 0
        %7760 = vperm.xlu0 %7759, %v6537
        %v7761 = vpop.permute.xlu0 %7760
        %7762 = vset.pattern.permute.xlu0 0
        %7763 = vperm.xlu0 %7762, %v6554
        %v7764 = vpop.permute.xlu0 %7763
        %7765 = vset.pattern.permute.xlu0 0
        %7766 = vperm.xlu0 %7765, %v6571
        %v7767 = vpop.permute.xlu0 %7766
        %7768 = vset.pattern.permute.xlu0 0
        %7769 = vperm.xlu0 %7768, %v6588
        %v7770 = vpop.permute.xlu0 %7769
        %7771 = vset.pattern.permute.xlu0 0
        %7772 = vperm.xlu0 %7771, %v6605
        %v7773 = vpop.permute.xlu0 %7772
        %7774 = vset.pattern.permute.xlu0 0
        %7775 = vperm.xlu0 %7774, %v6622
        %v7776 = vpop.permute.xlu0 %7775
        %7777 = vset.pattern.permute.xlu0 0
        %7778 = vperm.xlu0 %7777, %v6639
        %v7779 = vpop.permute.xlu0 %7778
        %7780 = vset.pattern.permute.xlu0 0
        %7781 = vperm.xlu0 %7780, %v6656
        %v7782 = vpop.permute.xlu0 %7781
        %7783 = vset.pattern.permute.xlu0 0
        %7784 = vperm.xlu0 %7783, %v6673
        %v7785 = vpop.permute.xlu0 %7784
        %7786 = vset.pattern.permute.xlu0 0
        %7787 = vperm.xlu0 %7786, %v6690
        %v7788 = vpop.permute.xlu0 %7787
        %7789 = vset.pattern.permute.xlu0 0
        %7790 = vperm.xlu0 %7789, %v6707
        %v7791 = vpop.permute.xlu0 %7790
        %7792 = vset.pattern.permute.xlu0 0
        %7793 = vperm.xlu0 %7792, %v6724
        %v7794 = vpop.permute.xlu0 %7793
        %7795 = vset.pattern.permute.xlu0 0
        %7796 = vperm.xlu0 %7795, %v6741
        %v7797 = vpop.permute.xlu0 %7796
        %7798 = vset.pattern.permute.xlu0 0
        %7799 = vperm.xlu0 %7798, %v6758
        %v7800 = vpop.permute.xlu0 %7799
        %7801 = vset.pattern.permute.xlu0 0
        %7802 = vperm.xlu0 %7801, %v6775
        %v7803 = vpop.permute.xlu0 %7802
        %7804 = vset.pattern.permute.xlu0 0
        %7805 = vperm.xlu0 %7804, %v6792
        %v7806 = vpop.permute.xlu0 %7805
        %7807 = vset.pattern.permute.xlu0 0
        %7808 = vperm.xlu0 %7807, %v6809
        %v7809 = vpop.permute.xlu0 %7808
        %7810 = vset.pattern.permute.xlu0 0
        %7811 = vperm.xlu0 %7810, %v6826
        %v7812 = vpop.permute.xlu0 %7811
        %7813 = vset.pattern.permute.xlu0 0
        %7814 = vperm.xlu0 %7813, %v6843
        %v7815 = vpop.permute.xlu0 %7814
        %7816 = vset.pattern.permute.xlu0 0
        %7817 = vperm.xlu0 %7816, %v6860
        %v7818 = vpop.permute.xlu0 %7817
        %7819 = vset.pattern.permute.xlu0 0
        %7820 = vperm.xlu0 %7819, %v6877
        %v7821 = vpop.permute.xlu0 %7820
        %7822 = vset.pattern.permute.xlu0 0
        %7823 = vperm.xlu0 %7822, %v6894
        %v7824 = vpop.permute.xlu0 %7823
        %7825 = vset.pattern.permute.xlu0 0
        %7826 = vperm.xlu0 %7825, %v6911
        %v7827 = vpop.permute.xlu0 %7826
        %7828 = vset.pattern.permute.xlu0 0
        %7829 = vperm.xlu0 %7828, %v6928
        %v7830 = vpop.permute.xlu0 %7829
        %7831 = vset.pattern.permute.xlu0 0
        %7832 = vperm.xlu0 %7831, %v6945
        %v7833 = vpop.permute.xlu0 %7832
        %7834 = vset.pattern.permute.xlu0 0
        %7835 = vperm.xlu0 %7834, %v6962
        %v7836 = vpop.permute.xlu0 %7835
        %7837 = vset.pattern.permute.xlu0 0
        %7838 = vperm.xlu0 %7837, %v6979
        %v7839 = vpop.permute.xlu0 %7838
        %7840 = vset.pattern.permute.xlu0 0
        %7841 = vperm.xlu0 %7840, %v6996
        %v7842 = vpop.permute.xlu0 %7841
        %7843 = vset.pattern.permute.xlu0 0
        %7844 = vperm.xlu0 %7843, %v7013
        %v7845 = vpop.permute.xlu0 %7844
        %7846 = vset.pattern.permute.xlu0 0
        %7847 = vperm.xlu0 %7846, %v7030
        %v7848 = vpop.permute.xlu0 %7847
        %7849 = vset.pattern.permute.xlu0 0
        %7850 = vperm.xlu0 %7849, %v7047
        %v7851 = vpop.permute.xlu0 %7850
        %7852 = vset.pattern.permute.xlu0 0
        %7853 = vperm.xlu0 %7852, %v7064
        %v7854 = vpop.permute.xlu0 %7853
        %7855 = vset.pattern.permute.xlu0 0
        %7856 = vperm.xlu0 %7855, %v7081
        %v7857 = vpop.permute.xlu0 %7856
        %7858 = vset.pattern.permute.xlu0 0
        %7859 = vperm.xlu0 %7858, %v7098
        %v7860 = vpop.permute.xlu0 %7859
        %7861 = vset.pattern.permute.xlu0 0
        %7862 = vperm.xlu0 %7861, %v7115
        %v7863 = vpop.permute.xlu0 %7862
        %7864 = vset.pattern.permute.xlu0 0
        %7865 = vperm.xlu0 %7864, %v7132
        %v7866 = vpop.permute.xlu0 %7865
        %7867 = vset.pattern.permute.xlu0 0
        %7868 = vperm.xlu0 %7867, %v7149
        %v7869 = vpop.permute.xlu0 %7868
        %7870 = vset.pattern.permute.xlu0 0
        %7871 = vperm.xlu0 %7870, %v7166
        %v7872 = vpop.permute.xlu0 %7871
        %7873 = vset.pattern.permute.xlu0 0
        %7874 = vperm.xlu0 %7873, %v7183
        %v7875 = vpop.permute.xlu0 %7874
        %7876 = vset.pattern.permute.xlu0 0
        %7877 = vperm.xlu0 %7876, %v7200
        %v7878 = vpop.permute.xlu0 %7877
        %7879 = vset.pattern.permute.xlu0 0
        %7880 = vperm.xlu0 %7879, %v7217
        %v7881 = vpop.permute.xlu0 %7880
        %7882 = vset.pattern.permute.xlu0 0
        %7883 = vperm.xlu0 %7882, %v7234
        %v7884 = vpop.permute.xlu0 %7883
        %7885 = vset.pattern.permute.xlu0 0
        %7886 = vperm.xlu0 %7885, %v7251
        %v7887 = vpop.permute.xlu0 %7886
        %7888 = vset.pattern.permute.xlu0 0
        %7889 = vperm.xlu0 %7888, %v7268
        %v7890 = vpop.permute.xlu0 %7889
        %7891 = vset.pattern.permute.xlu0 0
        %7892 = vperm.xlu0 %7891, %v7285
        %v7893 = vpop.permute.xlu0 %7892
        %7894 = vset.pattern.permute.xlu0 0
        %7895 = vperm.xlu0 %7894, %v7302
        %v7896 = vpop.permute.xlu0 %7895
        %7897 = vset.pattern.permute.xlu0 0
        %7898 = vperm.xlu0 %7897, %v7319
        %v7899 = vpop.permute.xlu0 %7898
        %7900 = vset.pattern.permute.xlu0 0
        %7901 = vperm.xlu0 %7900, %v7336
        %v7902 = vpop.permute.xlu0 %7901
        %7903 = vset.pattern.permute.xlu0 0
        %7904 = vperm.xlu0 %7903, %v7353
        %v7905 = vpop.permute.xlu0 %7904
        %7906 = vset.pattern.permute.xlu0 0
        %7907 = vperm.xlu0 %7906, %v7370
        %v7908 = vpop.permute.xlu0 %7907
        %7909 = vset.pattern.permute.xlu0 0
        %7910 = vperm.xlu0 %7909, %v7387
        %v7911 = vpop.permute.xlu0 %7910
        %7912 = vset.pattern.permute.xlu0 0
        %7913 = vperm.xlu0 %7912, %v7404
        %v7914 = vpop.permute.xlu0 %7913
        %7915 = vset.pattern.permute.xlu0 0
        %7916 = vperm.xlu0 %7915, %v7421
        %v7917 = vpop.permute.xlu0 %7916
        %7918 = vset.pattern.permute.xlu0 0
        %7919 = vperm.xlu0 %7918, %v7438
        %v7920 = vpop.permute.xlu0 %7919
        %7921 = vset.pattern.permute.xlu0 0
        %7922 = vperm.xlu0 %7921, %v7455
        %v7923 = vpop.permute.xlu0 %7922
        %7924 = vset.pattern.permute.xlu0 0
        %7925 = vperm.xlu0 %7924, %v7472
        %v7926 = vpop.permute.xlu0 %7925
        %7927 = vset.pattern.permute.xlu0 0
        %7928 = vperm.xlu0 %7927, %v7489
        %v7929 = vpop.permute.xlu0 %7928
        %7930 = vset.pattern.permute.xlu0 0
        %7931 = vperm.xlu0 %7930, %v7506
        %v7932 = vpop.permute.xlu0 %7931
        %7933 = vset.pattern.permute.xlu0 0
        %7934 = vperm.xlu0 %7933, %v7523
        %v7935 = vpop.permute.xlu0 %7934
        %7936 = vset.pattern.permute.xlu0 0
        %7937 = vperm.xlu0 %7936, %v7540
        %v7938 = vpop.permute.xlu0 %7937
        %7939 = vset.pattern.permute.xlu0 0
        %7940 = vperm.xlu0 %7939, %v7557
        %v7941 = vpop.permute.xlu0 %7940
        %v7942 = vlaneseq
        %v7943 = vand.u32 %v7942, 127
        %v7944 = vlaneseq
        %v7945 = vshrl.u32 %v7944, 7
        %v7946 = vsub.s32 %v7943, %v7945
        %v7947 = vrot.slane %v7560, %v7946
        %v7948 = vadd.s32 %v7943, 4294967288
        %v7949 = vlaneseq
        %v7950 = vshrl.u32 %v7949, 7
        %v7951 = vsub.s32 %v7948, %v7950
        %v7952 = vrot.slane %v7563, %v7951
        %vm7953 = vcmask 130112
        %v7954 = vsel %vm7953, %v7952, %v7947
        %v7955 = vadd.s32 %v7943, 4294967280
        %v7956 = vlaneseq
        %v7957 = vshrl.u32 %v7956, 7
        %v7958 = vsub.s32 %v7955, %v7957
        %v7959 = vrot.slane %v7566, %v7958
        %vm7960 = vcmask 195712
        %v7961 = vsel %vm7960, %v7959, %v7954
        %v7962 = vadd.s32 %v7943, 4294967272
        %v7963 = vlaneseq
        %v7964 = vshrl.u32 %v7963, 7
        %v7965 = vsub.s32 %v7962, %v7964
        %v7966 = vrot.slane %v7569, %v7965
        %vm7967 = vcmask 261312
        %v7968 = vsel %vm7967, %v7966, %v7961
        %v7969 = vadd.s32 %v7943, 4294967264
        %v7970 = vlaneseq
        %v7971 = vshrl.u32 %v7970, 7
        %v7972 = vsub.s32 %v7969, %v7971
        %v7973 = vrot.slane %v7572, %v7972
        %vm7974 = vcmask 326912
        %v7975 = vsel %vm7974, %v7973, %v7968
        %v7976 = vadd.s32 %v7943, 4294967256
        %v7977 = vlaneseq
        %v7978 = vshrl.u32 %v7977, 7
        %v7979 = vsub.s32 %v7976, %v7978
        %v7980 = vrot.slane %v7575, %v7979
        %vm7981 = vcmask 392512
        %v7982 = vsel %vm7981, %v7980, %v7975
        %v7983 = vadd.s32 %v7943, 4294967248
        %v7984 = vlaneseq
        %v7985 = vshrl.u32 %v7984, 7
        %v7986 = vsub.s32 %v7983, %v7985
        %v7987 = vrot.slane %v7578, %v7986
        %vm7988 = vcmask 458112
        %v7989 = vsel %vm7988, %v7987, %v7982
        %v7990 = vadd.s32 %v7943, 4294967240
        %v7991 = vlaneseq
        %v7992 = vshrl.u32 %v7991, 7
        %v7993 = vsub.s32 %v7990, %v7992
        %v7994 = vrot.slane %v7581, %v7993
        %vm7995 = vcmask 523712
        %v7996 = vsel %vm7995, %v7994, %v7989
        %v7997 = vadd.s32 %v7943, 4294967232
        %v7998 = vlaneseq
        %v7999 = vshrl.u32 %v7998, 7
        %v8000 = vsub.s32 %v7997, %v7999
        %v8001 = vrot.slane %v7584, %v8000
        %vm8002 = vcmask 589312
        %v8003 = vsel %vm8002, %v8001, %v7996
        %v8004 = vadd.s32 %v7943, 4294967224
        %v8005 = vlaneseq
        %v8006 = vshrl.u32 %v8005, 7
        %v8007 = vsub.s32 %v8004, %v8006
        %v8008 = vrot.slane %v7587, %v8007
        %vm8009 = vcmask 654912
        %v8010 = vsel %vm8009, %v8008, %v8003
        %v8011 = vadd.s32 %v7943, 4294967216
        %v8012 = vlaneseq
        %v8013 = vshrl.u32 %v8012, 7
        %v8014 = vsub.s32 %v8011, %v8013
        %v8015 = vrot.slane %v7590, %v8014
        %vm8016 = vcmask 720512
        %v8017 = vsel %vm8016, %v8015, %v8010
        %v8018 = vadd.s32 %v7943, 4294967208
        %v8019 = vlaneseq
        %v8020 = vshrl.u32 %v8019, 7
        %v8021 = vsub.s32 %v8018, %v8020
        %v8022 = vrot.slane %v7593, %v8021
        %vm8023 = vcmask 786112
        %v8024 = vsel %vm8023, %v8022, %v8017
        %v8025 = vadd.s32 %v7943, 4294967200
        %v8026 = vlaneseq
        %v8027 = vshrl.u32 %v8026, 7
        %v8028 = vsub.s32 %v8025, %v8027
        %v8029 = vrot.slane %v7596, %v8028
        %vm8030 = vcmask 851712
        %v8031 = vsel %vm8030, %v8029, %v8024
        %v8032 = vadd.s32 %v7943, 4294967192
        %v8033 = vlaneseq
        %v8034 = vshrl.u32 %v8033, 7
        %v8035 = vsub.s32 %v8032, %v8034
        %v8036 = vrot.slane %v7599, %v8035
        %vm8037 = vcmask 917312
        %v8038 = vsel %vm8037, %v8036, %v8031
        %v8039 = vadd.s32 %v7943, 4294967184
        %v8040 = vlaneseq
        %v8041 = vshrl.u32 %v8040, 7
        %v8042 = vsub.s32 %v8039, %v8041
        %v8043 = vrot.slane %v7602, %v8042
        %vm8044 = vcmask 982912
        %v8045 = vsel %vm8044, %v8043, %v8038
        %v8046 = vadd.s32 %v7943, 4294967176
        %v8047 = vlaneseq
        %v8048 = vshrl.u32 %v8047, 7
        %v8049 = vsub.s32 %v8046, %v8048
        %v8050 = vrot.slane %v7605, %v8049
        %vm8051 = vcmask 1048512
        %v8052 = vsel %vm8051, %v8050, %v8045
        %v8053 = vlaneseq
        %v8054 = vshrl.u32 %v8053, 7
        %v8055 = vsub.s32 %v7943, %v8054
        %v8056 = vrot.slane %v7608, %v8055
        %v8057 = vlaneseq
        %v8058 = vshrl.u32 %v8057, 7
        %v8059 = vsub.s32 %v7948, %v8058
        %v8060 = vrot.slane %v7611, %v8059
        %v8061 = vsel %vm7953, %v8060, %v8056
        %v8062 = vlaneseq
        %v8063 = vshrl.u32 %v8062, 7
        %v8064 = vsub.s32 %v7955, %v8063
        %v8065 = vrot.slane %v7614, %v8064
        %v8066 = vsel %vm7960, %v8065, %v8061
        %v8067 = vlaneseq
        %v8068 = vshrl.u32 %v8067, 7
        %v8069 = vsub.s32 %v7962, %v8068
        %v8070 = vrot.slane %v7617, %v8069
        %v8071 = vsel %vm7967, %v8070, %v8066
        %v8072 = vlaneseq
        %v8073 = vshrl.u32 %v8072, 7
        %v8074 = vsub.s32 %v7969, %v8073
        %v8075 = vrot.slane %v7620, %v8074
        %v8076 = vsel %vm7974, %v8075, %v8071
        %v8077 = vlaneseq
        %v8078 = vshrl.u32 %v8077, 7
        %v8079 = vsub.s32 %v7976, %v8078
        %v8080 = vrot.slane %v7623, %v8079
        %v8081 = vsel %vm7981, %v8080, %v8076
        %v8082 = vlaneseq
        %v8083 = vshrl.u32 %v8082, 7
        %v8084 = vsub.s32 %v7983, %v8083
        %v8085 = vrot.slane %v7626, %v8084
        %v8086 = vsel %vm7988, %v8085, %v8081
        %v8087 = vlaneseq
        %v8088 = vshrl.u32 %v8087, 7
        %v8089 = vsub.s32 %v7990, %v8088
        %v8090 = vrot.slane %v7629, %v8089
        %v8091 = vsel %vm7995, %v8090, %v8086
        %v8092 = vlaneseq
        %v8093 = vshrl.u32 %v8092, 7
        %v8094 = vsub.s32 %v7997, %v8093
        %v8095 = vrot.slane %v7632, %v8094
        %v8096 = vsel %vm8002, %v8095, %v8091
        %v8097 = vlaneseq
        %v8098 = vshrl.u32 %v8097, 7
        %v8099 = vsub.s32 %v8004, %v8098
        %v8100 = vrot.slane %v7635, %v8099
        %v8101 = vsel %vm8009, %v8100, %v8096
        %v8102 = vlaneseq
        %v8103 = vshrl.u32 %v8102, 7
        %v8104 = vsub.s32 %v8011, %v8103
        %v8105 = vrot.slane %v7638, %v8104
        %v8106 = vsel %vm8016, %v8105, %v8101
        %v8107 = vlaneseq
        %v8108 = vshrl.u32 %v8107, 7
        %v8109 = vsub.s32 %v8018, %v8108
        %v8110 = vrot.slane %v7641, %v8109
        %v8111 = vsel %vm8023, %v8110, %v8106
        %v8112 = vlaneseq
        %v8113 = vshrl.u32 %v8112, 7
        %v8114 = vsub.s32 %v8025, %v8113
        %v8115 = vrot.slane %v7644, %v8114
        %v8116 = vsel %vm8030, %v8115, %v8111
        %v8117 = vlaneseq
        %v8118 = vshrl.u32 %v8117, 7
        %v8119 = vsub.s32 %v8032, %v8118
        %v8120 = vrot.slane %v7647, %v8119
        %v8121 = vsel %vm8037, %v8120, %v8116
        %v8122 = vlaneseq
        %v8123 = vshrl.u32 %v8122, 7
        %v8124 = vsub.s32 %v8039, %v8123
        %v8125 = vrot.slane %v7650, %v8124
        %v8126 = vsel %vm8044, %v8125, %v8121
        %v8127 = vlaneseq
        %v8128 = vshrl.u32 %v8127, 7
        %v8129 = vsub.s32 %v8046, %v8128
        %v8130 = vrot.slane %v7653, %v8129
        %v8131 = vsel %vm8051, %v8130, %v8126
        %v8132 = vlaneseq
        %v8133 = vshrl.u32 %v8132, 7
        %v8134 = vsub.s32 %v7943, %v8133
        %v8135 = vrot.slane %v7656, %v8134
        %v8136 = vlaneseq
        %v8137 = vshrl.u32 %v8136, 7
        %v8138 = vsub.s32 %v7948, %v8137
        %v8139 = vrot.slane %v7659, %v8138
        %v8140 = vsel %vm7953, %v8139, %v8135
        %v8141 = vlaneseq
        %v8142 = vshrl.u32 %v8141, 7
        %v8143 = vsub.s32 %v7955, %v8142
        %v8144 = vrot.slane %v7662, %v8143
        %v8145 = vsel %vm7960, %v8144, %v8140
        %v8146 = vlaneseq
        %v8147 = vshrl.u32 %v8146, 7
        %v8148 = vsub.s32 %v7962, %v8147
        %v8149 = vrot.slane %v7665, %v8148
        %v8150 = vsel %vm7967, %v8149, %v8145
        %v8151 = vlaneseq
        %v8152 = vshrl.u32 %v8151, 7
        %v8153 = vsub.s32 %v7969, %v8152
        %v8154 = vrot.slane %v7668, %v8153
        %v8155 = vsel %vm7974, %v8154, %v8150
        %v8156 = vlaneseq
        %v8157 = vshrl.u32 %v8156, 7
        %v8158 = vsub.s32 %v7976, %v8157
        %v8159 = vrot.slane %v7671, %v8158
        %v8160 = vsel %vm7981, %v8159, %v8155
        %v8161 = vlaneseq
        %v8162 = vshrl.u32 %v8161, 7
        %v8163 = vsub.s32 %v7983, %v8162
        %v8164 = vrot.slane %v7674, %v8163
        %v8165 = vsel %vm7988, %v8164, %v8160
        %v8166 = vlaneseq
        %v8167 = vshrl.u32 %v8166, 7
        %v8168 = vsub.s32 %v7990, %v8167
        %v8169 = vrot.slane %v7677, %v8168
        %v8170 = vsel %vm7995, %v8169, %v8165
        %v8171 = vlaneseq
        %v8172 = vshrl.u32 %v8171, 7
        %v8173 = vsub.s32 %v7997, %v8172
        %v8174 = vrot.slane %v7680, %v8173
        %v8175 = vsel %vm8002, %v8174, %v8170
        %v8176 = vlaneseq
        %v8177 = vshrl.u32 %v8176, 7
        %v8178 = vsub.s32 %v8004, %v8177
        %v8179 = vrot.slane %v7683, %v8178
        %v8180 = vsel %vm8009, %v8179, %v8175
        %v8181 = vlaneseq
        %v8182 = vshrl.u32 %v8181, 7
        %v8183 = vsub.s32 %v8011, %v8182
        %v8184 = vrot.slane %v7686, %v8183
        %v8185 = vsel %vm8016, %v8184, %v8180
        %v8186 = vlaneseq
        %v8187 = vshrl.u32 %v8186, 7
        %v8188 = vsub.s32 %v8018, %v8187
        %v8189 = vrot.slane %v7689, %v8188
        %v8190 = vsel %vm8023, %v8189, %v8185
        %v8191 = vlaneseq
        %v8192 = vshrl.u32 %v8191, 7
        %v8193 = vsub.s32 %v8025, %v8192
        %v8194 = vrot.slane %v7692, %v8193
        %v8195 = vsel %vm8030, %v8194, %v8190
        %v8196 = vlaneseq
        %v8197 = vshrl.u32 %v8196, 7
        %v8198 = vsub.s32 %v8032, %v8197
        %v8199 = vrot.slane %v7695, %v8198
        %v8200 = vsel %vm8037, %v8199, %v8195
        %v8201 = vlaneseq
        %v8202 = vshrl.u32 %v8201, 7
        %v8203 = vsub.s32 %v8039, %v8202
        %v8204 = vrot.slane %v7698, %v8203
        %v8205 = vsel %vm8044, %v8204, %v8200
        %v8206 = vlaneseq
        %v8207 = vshrl.u32 %v8206, 7
        %v8208 = vsub.s32 %v8046, %v8207
        %v8209 = vrot.slane %v7701, %v8208
        %v8210 = vsel %vm8051, %v8209, %v8205
        %v8211 = vlaneseq
        %v8212 = vshrl.u32 %v8211, 7
        %v8213 = vsub.s32 %v7943, %v8212
        %v8214 = vrot.slane %v7704, %v8213
        %v8215 = vlaneseq
        %v8216 = vshrl.u32 %v8215, 7
        %v8217 = vsub.s32 %v7948, %v8216
        %v8218 = vrot.slane %v7707, %v8217
        %v8219 = vsel %vm7953, %v8218, %v8214
        %v8220 = vlaneseq
        %v8221 = vshrl.u32 %v8220, 7
        %v8222 = vsub.s32 %v7955, %v8221
        %v8223 = vrot.slane %v7710, %v8222
        %v8224 = vsel %vm7960, %v8223, %v8219
        %v8225 = vlaneseq
        %v8226 = vshrl.u32 %v8225, 7
        %v8227 = vsub.s32 %v7962, %v8226
        %v8228 = vrot.slane %v7713, %v8227
        %v8229 = vsel %vm7967, %v8228, %v8224
        %v8230 = vlaneseq
        %v8231 = vshrl.u32 %v8230, 7
        %v8232 = vsub.s32 %v7969, %v8231
        %v8233 = vrot.slane %v7716, %v8232
        %v8234 = vsel %vm7974, %v8233, %v8229
        %v8235 = vlaneseq
        %v8236 = vshrl.u32 %v8235, 7
        %v8237 = vsub.s32 %v7976, %v8236
        %v8238 = vrot.slane %v7719, %v8237
        %v8239 = vsel %vm7981, %v8238, %v8234
        %v8240 = vlaneseq
        %v8241 = vshrl.u32 %v8240, 7
        %v8242 = vsub.s32 %v7983, %v8241
        %v8243 = vrot.slane %v7722, %v8242
        %v8244 = vsel %vm7988, %v8243, %v8239
        %v8245 = vlaneseq
        %v8246 = vshrl.u32 %v8245, 7
        %v8247 = vsub.s32 %v7990, %v8246
        %v8248 = vrot.slane %v7725, %v8247
        %v8249 = vsel %vm7995, %v8248, %v8244
        %v8250 = vlaneseq
        %v8251 = vshrl.u32 %v8250, 7
        %v8252 = vsub.s32 %v7997, %v8251
        %v8253 = vrot.slane %v7728, %v8252
        %v8254 = vsel %vm8002, %v8253, %v8249
        %v8255 = vlaneseq
        %v8256 = vshrl.u32 %v8255, 7
        %v8257 = vsub.s32 %v8004, %v8256
        %v8258 = vrot.slane %v7731, %v8257
        %v8259 = vsel %vm8009, %v8258, %v8254
        %v8260 = vlaneseq
        %v8261 = vshrl.u32 %v8260, 7
        %v8262 = vsub.s32 %v8011, %v8261
        %v8263 = vrot.slane %v7734, %v8262
        %v8264 = vsel %vm8016, %v8263, %v8259
        %v8265 = vlaneseq
        %v8266 = vshrl.u32 %v8265, 7
        %v8267 = vsub.s32 %v8018, %v8266
        %v8268 = vrot.slane %v7737, %v8267
        %v8269 = vsel %vm8023, %v8268, %v8264
        %v8270 = vlaneseq
        %v8271 = vshrl.u32 %v8270, 7
        %v8272 = vsub.s32 %v8025, %v8271
        %v8273 = vrot.slane %v7740, %v8272
        %v8274 = vsel %vm8030, %v8273, %v8269
        %v8275 = vlaneseq
        %v8276 = vshrl.u32 %v8275, 7
        %v8277 = vsub.s32 %v8032, %v8276
        %v8278 = vrot.slane %v7743, %v8277
        %v8279 = vsel %vm8037, %v8278, %v8274
        %v8280 = vlaneseq
        %v8281 = vshrl.u32 %v8280, 7
        %v8282 = vsub.s32 %v8039, %v8281
        %v8283 = vrot.slane %v7746, %v8282
        %v8284 = vsel %vm8044, %v8283, %v8279
        %v8285 = vlaneseq
        %v8286 = vshrl.u32 %v8285, 7
        %v8287 = vsub.s32 %v8046, %v8286
        %v8288 = vrot.slane %v7749, %v8287
        %v8289 = vsel %vm8051, %v8288, %v8284
        %v8290 = vlaneseq
        %v8291 = vshrl.u32 %v8290, 7
        %v8292 = vsub.s32 %v7943, %v8291
        %v8293 = vrot.slane %v7752, %v8292
        %v8294 = vlaneseq
        %v8295 = vshrl.u32 %v8294, 7
        %v8296 = vsub.s32 %v7948, %v8295
        %v8297 = vrot.slane %v7755, %v8296
        %v8298 = vsel %vm7953, %v8297, %v8293
        %v8299 = vlaneseq
        %v8300 = vshrl.u32 %v8299, 7
        %v8301 = vsub.s32 %v7955, %v8300
        %v8302 = vrot.slane %v7758, %v8301
        %v8303 = vsel %vm7960, %v8302, %v8298
        %v8304 = vlaneseq
        %v8305 = vshrl.u32 %v8304, 7
        %v8306 = vsub.s32 %v7962, %v8305
        %v8307 = vrot.slane %v7761, %v8306
        %v8308 = vsel %vm7967, %v8307, %v8303
        %v8309 = vlaneseq
        %v8310 = vshrl.u32 %v8309, 7
        %v8311 = vsub.s32 %v7969, %v8310
        %v8312 = vrot.slane %v7764, %v8311
        %v8313 = vsel %vm7974, %v8312, %v8308
        %v8314 = vlaneseq
        %v8315 = vshrl.u32 %v8314, 7
        %v8316 = vsub.s32 %v7976, %v8315
        %v8317 = vrot.slane %v7767, %v8316
        %v8318 = vsel %vm7981, %v8317, %v8313
        %v8319 = vlaneseq
        %v8320 = vshrl.u32 %v8319, 7
        %v8321 = vsub.s32 %v7983, %v8320
        %v8322 = vrot.slane %v7770, %v8321
        %v8323 = vsel %vm7988, %v8322, %v8318
        %v8324 = vlaneseq
        %v8325 = vshrl.u32 %v8324, 7
        %v8326 = vsub.s32 %v7990, %v8325
        %v8327 = vrot.slane %v7773, %v8326
        %v8328 = vsel %vm7995, %v8327, %v8323
        %v8329 = vlaneseq
        %v8330 = vshrl.u32 %v8329, 7
        %v8331 = vsub.s32 %v7997, %v8330
        %v8332 = vrot.slane %v7776, %v8331
        %v8333 = vsel %vm8002, %v8332, %v8328
        %v8334 = vlaneseq
        %v8335 = vshrl.u32 %v8334, 7
        %v8336 = vsub.s32 %v8004, %v8335
        %v8337 = vrot.slane %v7779, %v8336
        %v8338 = vsel %vm8009, %v8337, %v8333
        %v8339 = vlaneseq
        %v8340 = vshrl.u32 %v8339, 7
        %v8341 = vsub.s32 %v8011, %v8340
        %v8342 = vrot.slane %v7782, %v8341
        %v8343 = vsel %vm8016, %v8342, %v8338
        %v8344 = vlaneseq
        %v8345 = vshrl.u32 %v8344, 7
        %v8346 = vsub.s32 %v8018, %v8345
        %v8347 = vrot.slane %v7785, %v8346
        %v8348 = vsel %vm8023, %v8347, %v8343
        %v8349 = vlaneseq
        %v8350 = vshrl.u32 %v8349, 7
        %v8351 = vsub.s32 %v8025, %v8350
        %v8352 = vrot.slane %v7788, %v8351
        %v8353 = vsel %vm8030, %v8352, %v8348
        %v8354 = vlaneseq
        %v8355 = vshrl.u32 %v8354, 7
        %v8356 = vsub.s32 %v8032, %v8355
        %v8357 = vrot.slane %v7791, %v8356
        %v8358 = vsel %vm8037, %v8357, %v8353
        %v8359 = vlaneseq
        %v8360 = vshrl.u32 %v8359, 7
        %v8361 = vsub.s32 %v8039, %v8360
        %v8362 = vrot.slane %v7794, %v8361
        %v8363 = vsel %vm8044, %v8362, %v8358
        %v8364 = vlaneseq
        %v8365 = vshrl.u32 %v8364, 7
        %v8366 = vsub.s32 %v8046, %v8365
        %v8367 = vrot.slane %v7797, %v8366
        %v8368 = vsel %vm8051, %v8367, %v8363
        %v8369 = vlaneseq
        %v8370 = vshrl.u32 %v8369, 7
        %v8371 = vsub.s32 %v7943, %v8370
        %v8372 = vrot.slane %v7800, %v8371
        %v8373 = vlaneseq
        %v8374 = vshrl.u32 %v8373, 7
        %v8375 = vsub.s32 %v7948, %v8374
        %v8376 = vrot.slane %v7803, %v8375
        %v8377 = vsel %vm7953, %v8376, %v8372
        %v8378 = vlaneseq
        %v8379 = vshrl.u32 %v8378, 7
        %v8380 = vsub.s32 %v7955, %v8379
        %v8381 = vrot.slane %v7806, %v8380
        %v8382 = vsel %vm7960, %v8381, %v8377
        %v8383 = vlaneseq
        %v8384 = vshrl.u32 %v8383, 7
        %v8385 = vsub.s32 %v7962, %v8384
        %v8386 = vrot.slane %v7809, %v8385
        %v8387 = vsel %vm7967, %v8386, %v8382
        %v8388 = vlaneseq
        %v8389 = vshrl.u32 %v8388, 7
        %v8390 = vsub.s32 %v7969, %v8389
        %v8391 = vrot.slane %v7812, %v8390
        %v8392 = vsel %vm7974, %v8391, %v8387
        %v8393 = vlaneseq
        %v8394 = vshrl.u32 %v8393, 7
        %v8395 = vsub.s32 %v7976, %v8394
        %v8396 = vrot.slane %v7815, %v8395
        %v8397 = vsel %vm7981, %v8396, %v8392
        %v8398 = vlaneseq
        %v8399 = vshrl.u32 %v8398, 7
        %v8400 = vsub.s32 %v7983, %v8399
        %v8401 = vrot.slane %v7818, %v8400
        %v8402 = vsel %vm7988, %v8401, %v8397
        %v8403 = vlaneseq
        %v8404 = vshrl.u32 %v8403, 7
        %v8405 = vsub.s32 %v7990, %v8404
        %v8406 = vrot.slane %v7821, %v8405
        %v8407 = vsel %vm7995, %v8406, %v8402
        %v8408 = vlaneseq
        %v8409 = vshrl.u32 %v8408, 7
        %v8410 = vsub.s32 %v7997, %v8409
        %v8411 = vrot.slane %v7824, %v8410
        %v8412 = vsel %vm8002, %v8411, %v8407
        %v8413 = vlaneseq
        %v8414 = vshrl.u32 %v8413, 7
        %v8415 = vsub.s32 %v8004, %v8414
        %v8416 = vrot.slane %v7827, %v8415
        %v8417 = vsel %vm8009, %v8416, %v8412
        %v8418 = vlaneseq
        %v8419 = vshrl.u32 %v8418, 7
        %v8420 = vsub.s32 %v8011, %v8419
        %v8421 = vrot.slane %v7830, %v8420
        %v8422 = vsel %vm8016, %v8421, %v8417
        %v8423 = vlaneseq
        %v8424 = vshrl.u32 %v8423, 7
        %v8425 = vsub.s32 %v8018, %v8424
        %v8426 = vrot.slane %v7833, %v8425
        %v8427 = vsel %vm8023, %v8426, %v8422
        %v8428 = vlaneseq
        %v8429 = vshrl.u32 %v8428, 7
        %v8430 = vsub.s32 %v8025, %v8429
        %v8431 = vrot.slane %v7836, %v8430
        %v8432 = vsel %vm8030, %v8431, %v8427
        %v8433 = vlaneseq
        %v8434 = vshrl.u32 %v8433, 7
        %v8435 = vsub.s32 %v8032, %v8434
        %v8436 = vrot.slane %v7839, %v8435
        %v8437 = vsel %vm8037, %v8436, %v8432
        %v8438 = vlaneseq
        %v8439 = vshrl.u32 %v8438, 7
        %v8440 = vsub.s32 %v8039, %v8439
        %v8441 = vrot.slane %v7842, %v8440
        %v8442 = vsel %vm8044, %v8441, %v8437
        %v8443 = vlaneseq
        %v8444 = vshrl.u32 %v8443, 7
        %v8445 = vsub.s32 %v8046, %v8444
        %v8446 = vrot.slane %v7845, %v8445
        %v8447 = vsel %vm8051, %v8446, %v8442
        %v8448 = vlaneseq
        %v8449 = vshrl.u32 %v8448, 7
        %v8450 = vsub.s32 %v7943, %v8449
        %v8451 = vrot.slane %v7848, %v8450
        %v8452 = vlaneseq
        %v8453 = vshrl.u32 %v8452, 7
        %v8454 = vsub.s32 %v7948, %v8453
        %v8455 = vrot.slane %v7851, %v8454
        %v8456 = vsel %vm7953, %v8455, %v8451
        %v8457 = vlaneseq
        %v8458 = vshrl.u32 %v8457, 7
        %v8459 = vsub.s32 %v7955, %v8458
        %v8460 = vrot.slane %v7854, %v8459
        %v8461 = vsel %vm7960, %v8460, %v8456
        %v8462 = vlaneseq
        %v8463 = vshrl.u32 %v8462, 7
        %v8464 = vsub.s32 %v7962, %v8463
        %v8465 = vrot.slane %v7857, %v8464
        %v8466 = vsel %vm7967, %v8465, %v8461
        %v8467 = vlaneseq
        %v8468 = vshrl.u32 %v8467, 7
        %v8469 = vsub.s32 %v7969, %v8468
        %v8470 = vrot.slane %v7860, %v8469
        %v8471 = vsel %vm7974, %v8470, %v8466
        %v8472 = vlaneseq
        %v8473 = vshrl.u32 %v8472, 7
        %v8474 = vsub.s32 %v7976, %v8473
        %v8475 = vrot.slane %v7863, %v8474
        %v8476 = vsel %vm7981, %v8475, %v8471
        %v8477 = vlaneseq
        %v8478 = vshrl.u32 %v8477, 7
        %v8479 = vsub.s32 %v7983, %v8478
        %v8480 = vrot.slane %v7866, %v8479
        %v8481 = vsel %vm7988, %v8480, %v8476
        %v8482 = vlaneseq
        %v8483 = vshrl.u32 %v8482, 7
        %v8484 = vsub.s32 %v7990, %v8483
        %v8485 = vrot.slane %v7869, %v8484
        %v8486 = vsel %vm7995, %v8485, %v8481
        %v8487 = vlaneseq
        %v8488 = vshrl.u32 %v8487, 7
        %v8489 = vsub.s32 %v7997, %v8488
        %v8490 = vrot.slane %v7872, %v8489
        %v8491 = vsel %vm8002, %v8490, %v8486
        %v8492 = vlaneseq
        %v8493 = vshrl.u32 %v8492, 7
        %v8494 = vsub.s32 %v8004, %v8493
        %v8495 = vrot.slane %v7875, %v8494
        %v8496 = vsel %vm8009, %v8495, %v8491
        %v8497 = vlaneseq
        %v8498 = vshrl.u32 %v8497, 7
        %v8499 = vsub.s32 %v8011, %v8498
        %v8500 = vrot.slane %v7878, %v8499
        %v8501 = vsel %vm8016, %v8500, %v8496
        %v8502 = vlaneseq
        %v8503 = vshrl.u32 %v8502, 7
        %v8504 = vsub.s32 %v8018, %v8503
        %v8505 = vrot.slane %v7881, %v8504
        %v8506 = vsel %vm8023, %v8505, %v8501
        %v8507 = vlaneseq
        %v8508 = vshrl.u32 %v8507, 7
        %v8509 = vsub.s32 %v8025, %v8508
        %v8510 = vrot.slane %v7884, %v8509
        %v8511 = vsel %vm8030, %v8510, %v8506
        %v8512 = vlaneseq
        %v8513 = vshrl.u32 %v8512, 7
        %v8514 = vsub.s32 %v8032, %v8513
        %v8515 = vrot.slane %v7887, %v8514
        %v8516 = vsel %vm8037, %v8515, %v8511
        %v8517 = vlaneseq
        %v8518 = vshrl.u32 %v8517, 7
        %v8519 = vsub.s32 %v8039, %v8518
        %v8520 = vrot.slane %v7890, %v8519
        %v8521 = vsel %vm8044, %v8520, %v8516
        %v8522 = vlaneseq
        %v8523 = vshrl.u32 %v8522, 7
        %v8524 = vsub.s32 %v8046, %v8523
        %v8525 = vrot.slane %v7893, %v8524
        %v8526 = vsel %vm8051, %v8525, %v8521
        %v8527 = vlaneseq
        %v8528 = vshrl.u32 %v8527, 7
        %v8529 = vsub.s32 %v7943, %v8528
        %v8530 = vrot.slane %v7896, %v8529
        %v8531 = vlaneseq
        %v8532 = vshrl.u32 %v8531, 7
        %v8533 = vsub.s32 %v7948, %v8532
        %v8534 = vrot.slane %v7899, %v8533
        %v8535 = vsel %vm7953, %v8534, %v8530
        %v8536 = vlaneseq
        %v8537 = vshrl.u32 %v8536, 7
        %v8538 = vsub.s32 %v7955, %v8537
        %v8539 = vrot.slane %v7902, %v8538
        %v8540 = vsel %vm7960, %v8539, %v8535
        %v8541 = vlaneseq
        %v8542 = vshrl.u32 %v8541, 7
        %v8543 = vsub.s32 %v7962, %v8542
        %v8544 = vrot.slane %v7905, %v8543
        %v8545 = vsel %vm7967, %v8544, %v8540
        %v8546 = vlaneseq
        %v8547 = vshrl.u32 %v8546, 7
        %v8548 = vsub.s32 %v7969, %v8547
        %v8549 = vrot.slane %v7908, %v8548
        %v8550 = vsel %vm7974, %v8549, %v8545
        %v8551 = vlaneseq
        %v8552 = vshrl.u32 %v8551, 7
        %v8553 = vsub.s32 %v7976, %v8552
        %v8554 = vrot.slane %v7911, %v8553
        %v8555 = vsel %vm7981, %v8554, %v8550
        %v8556 = vlaneseq
        %v8557 = vshrl.u32 %v8556, 7
        %v8558 = vsub.s32 %v7983, %v8557
        %v8559 = vrot.slane %v7914, %v8558
        %v8560 = vsel %vm7988, %v8559, %v8555
        %v8561 = vlaneseq
        %v8562 = vshrl.u32 %v8561, 7
        %v8563 = vsub.s32 %v7990, %v8562
        %v8564 = vrot.slane %v7917, %v8563
        %v8565 = vsel %vm7995, %v8564, %v8560
        %v8566 = vlaneseq
        %v8567 = vshrl.u32 %v8566, 7
        %v8568 = vsub.s32 %v7997, %v8567
        %v8569 = vrot.slane %v7920, %v8568
        %v8570 = vsel %vm8002, %v8569, %v8565
        %v8571 = vlaneseq
        %v8572 = vshrl.u32 %v8571, 7
        %v8573 = vsub.s32 %v8004, %v8572
        %v8574 = vrot.slane %v7923, %v8573
        %v8575 = vsel %vm8009, %v8574, %v8570
        %v8576 = vlaneseq
        %v8577 = vshrl.u32 %v8576, 7
        %v8578 = vsub.s32 %v8011, %v8577
        %v8579 = vrot.slane %v7926, %v8578
        %v8580 = vsel %vm8016, %v8579, %v8575
        %v8581 = vlaneseq
        %v8582 = vshrl.u32 %v8581, 7
        %v8583 = vsub.s32 %v8018, %v8582
        %v8584 = vrot.slane %v7929, %v8583
        %v8585 = vsel %vm8023, %v8584, %v8580
        %v8586 = vlaneseq
        %v8587 = vshrl.u32 %v8586, 7
        %v8588 = vsub.s32 %v8025, %v8587
        %v8589 = vrot.slane %v7932, %v8588
        %v8590 = vsel %vm8030, %v8589, %v8585
        %v8591 = vlaneseq
        %v8592 = vshrl.u32 %v8591, 7
        %v8593 = vsub.s32 %v8032, %v8592
        %v8594 = vrot.slane %v7935, %v8593
        %v8595 = vsel %vm8037, %v8594, %v8590
        %v8596 = vlaneseq
        %v8597 = vshrl.u32 %v8596, 7
        %v8598 = vsub.s32 %v8039, %v8597
        %v8599 = vrot.slane %v7938, %v8598
        %v8600 = vsel %vm8044, %v8599, %v8595
        %v8601 = vlaneseq
        %v8602 = vshrl.u32 %v8601, 7
        %v8603 = vsub.s32 %v8046, %v8602
        %v8604 = vrot.slane %v7941, %v8603
        %v8605 = vsel %vm8051, %v8604, %v8600
        %vm8606 = vcmask 1041409
        %v8607 = vsel %vm8606, %v8368, %v8052
        %v8608 = vsel %vm8606, %v8447, %v8131
        %v8609 = vsel %vm8606, %v8526, %v8210
        %v8610 = vsel %vm8606, %v8605, %v8289
        %v8611 = vcombine.low %v8607, %v8608
        %v8612 = vcombine.low %v8609, %v8610
        %v8614 = vunpack.c.l.s4 1983009808
        %v8615 = vunpack.c.0.s8 %v8614
        %v8616 = vlaneseq
        %v8617 = vshrl.u32 %v8616, 7
        %v8618 = vsub.s32 %v8615, %v8617
        %v8619 = vrot.slane %v8611, %v8618
        %v8621 = vunpack.c.l.s4 1983009808
        %v8622 = vunpack.c.0.s8 %v8621
        %v8623 = vlaneseq
        %v8624 = vshrl.u32 %v8623, 7
        %v8625 = vsub.s32 %v8622, %v8624
        %v8626 = vrot.slane %v8612, %v8625
        %v8627 = vcombine.low %v8619, %v8626
        %v8629 = vadd.f32 %v1669, %v8627
        %8630 = vst [vmem:[%s754] sm:$0xff] %v8629
        // Predicated region
        $region75: #{tpu_custom_call.1} parent=65 // pred_check
          %p8631 = pneg %p1664
        $region76: #{tpu_custom_call.1} parent=65 // pred_check_branch
          %8633 = sbr.rel (%p8631) target = $region78
        $region77: #{tpu_custom_call.1} parent=65 // pred_region
          %v8634 = vld [vmem:[%s754] sm:$0xff]
          %v8635 = vmul.f32 %v8634, 0.015625
          %v8636 = vlog2.pop %v8635
          %v8637 = vmul.f32 %v8636, 0.6931472
          %v8638 = vmul.f32 %v8637, 0.33333334
          %v8639 = vmul.f32 %v8638, 1.442695
          %v8640 = vpow.pop %v8639
          %v8641 = vld [vmem:[%s759] sm:$0xf]
          %v8643 = vlaneseq
          %v8644 = vshrl.u32 %v8643, 7
          %v8645 = vsub.s32 0, %v8644
          %v8646 = vrot.slane %v8641, %v8645
          %v8647 = vlaneseq
          %v8648 = vshrl.u32 %v8647, 7
          %v8649 = vsub.s32 1, %v8648
          %v8650 = vrot.slane %v8641, %v8649
          %v8651 = vlaneseq
          %v8652 = vshrl.u32 %v8651, 7
          %v8653 = vsub.s32 2, %v8652
          %v8654 = vrot.slane %v8641, %v8653
          %v8655 = vlaneseq
          %v8656 = vshrl.u32 %v8655, 7
          %v8657 = vsub.s32 3, %v8656
          %v8658 = vrot.slane %v8641, %v8657
          %v8659 = vcombine.low %v8646, %v8650
          %v8660 = vcombine.low %v8654, %v8658
          %v8662 = vunpack.c.l.s4 1983009808
          %v8663 = vunpack.c.0.s8 %v8662
          %v8664 = vlaneseq
          %v8665 = vshrl.u32 %v8664, 7
          %v8666 = vsub.s32 %v8663, %v8665
          %v8667 = vrot.slane %v8659, %v8666
          %v8669 = vunpack.c.l.s4 1983009808
          %v8670 = vunpack.c.0.s8 %v8669
          %v8671 = vlaneseq
          %v8672 = vshrl.u32 %v8671, 7
          %v8673 = vsub.s32 %v8670, %v8672
          %v8674 = vrot.slane %v8660, %v8673
          %v8675 = vcombine.low %v8667, %v8674
          %v8677 = vmul.f32 %v8640, %v8675
          %v8678 = vld [vmem:[%s764] sm:$0xf]
          %v8680 = vlaneseq
          %v8681 = vshrl.u32 %v8680, 7
          %v8682 = vsub.s32 0, %v8681
          %v8683 = vrot.slane %v8678, %v8682
          %v8684 = vlaneseq
          %v8685 = vshrl.u32 %v8684, 7
          %v8686 = vsub.s32 1, %v8685
          %v8687 = vrot.slane %v8678, %v8686
          %v8688 = vlaneseq
          %v8689 = vshrl.u32 %v8688, 7
          %v8690 = vsub.s32 2, %v8689
          %v8691 = vrot.slane %v8678, %v8690
          %v8692 = vlaneseq
          %v8693 = vshrl.u32 %v8692, 7
          %v8694 = vsub.s32 3, %v8693
          %v8695 = vrot.slane %v8678, %v8694
          %v8696 = vcombine.low %v8683, %v8687
          %v8697 = vcombine.low %v8691, %v8695
          %v8699 = vunpack.c.l.s4 1983009808
          %v8700 = vunpack.c.0.s8 %v8699
          %v8701 = vlaneseq
          %v8702 = vshrl.u32 %v8701, 7
          %v8703 = vsub.s32 %v8700, %v8702
          %v8704 = vrot.slane %v8696, %v8703
          %v8706 = vunpack.c.l.s4 1983009808
          %v8707 = vunpack.c.0.s8 %v8706
          %v8708 = vlaneseq
          %v8709 = vshrl.u32 %v8708, 7
          %v8710 = vsub.s32 %v8707, %v8709
          %v8711 = vrot.slane %v8697, %v8710
          %v8712 = vcombine.low %v8704, %v8711
          %v8714 = vadd.f32 %v8677, %v8712
          %8715 = vst [vmem:[%s754] sm:$0xff] %v8714
        $region78: #{tpu_custom_call.1} parent=65 // pred_fallthru
          _
        %s8716 = sand.u32 %s117, 1
        %s8717 = scalar_lea.sflag [#allocation4], %s8716
        %s8718 = sand.u32 %s117, 1
        %s8719 = smul.addr %s8718, 8
        %s8720 = scalar_lea.vmem [#allocation3], %s8719
        // Predicated region
        $region79: #{tpu_custom_call.1} parent=65 // pred_check
          %p8721 = pneg %p127
        $region80: #{tpu_custom_call.1} parent=65 // pred_check_branch
          %8723 = sbr.rel (%p8721) target = $region82
        $region81: #{tpu_custom_call.1} parent=65 // pred_region
          %s8724 = smul.u32 4, %s21
          %s8726 = ssub.s32 128, 128
          %8727 = vsyncadd %s8717, %s8726
          %s8728 = smul.addr %s8724, 32
          %s8729 = scalar_lea.hbm %s3, %s8728
          %s8731 = sshll.u32 %s8720, 4
          %s8732 = int_to_ptr.vmem [resolvable:$true] %s8731
          %8734 = dma.vmem_to_hbm [thread:$0]  %s8732, 128, %s8729, %s8717
        $region82: #{tpu_custom_call.1} parent=65 // pred_fallthru
          _
      $region66: #{tpu_custom_call.1} parent=5 // pred_fallthru
        _
      %p8735 = scmp.le.s32.totalorder 2, %s12
      // Predicated region
      $region83: #{tpu_custom_call.1} parent=5 // pred_check
        %p8736 = pneg %p8735
      $region84: #{tpu_custom_call.1} parent=5 // pred_check_branch
        %8738 = sbr.rel (%p8736) target = $region86
      $region85: #{tpu_custom_call.1} parent=5 // pred_region
        %s8739 = ssub.s32 %s12, 2
        // Predicated region
        $region87: #{tpu_custom_call.1} parent=85 // pred_check
          %p8740 = pneg %p133
        $region88: #{tpu_custom_call.1} parent=85 // pred_check_branch
          %8742 = sbr.rel (%p8740) target = $region90
        $region89: #{tpu_custom_call.1} parent=85 // pred_region
          %s8743 = sand.u32 %s118, 1
          %s8744 = scalar_lea.sflag [#allocation4], %s8743
          %s8745 = sand.u32 %s118, 1
          %s8746 = smul.addr %s8745, 8
          %s8747 = scalar_lea.vmem [#allocation3], %s8746
          %8748 = dma.done %s8744, 128
        $region90: #{tpu_custom_call.1} parent=85 // pred_fallthru
          _
      $region86: #{tpu_custom_call.1} parent=5 // pred_fallthru
        _
    $region6: #{tpu_custom_call.1} parent=1 // loop_footer
      %s16 = sadd.s32 1, %s12
    $region7: #{tpu_custom_call.1} parent=1 // loop_footer_branch
      %11 = sbr.rel target = $region3
    $region8: #{tpu_custom_call.1} parent=1 // loop_exit
      _
    %8749 = vsyncpa [#allocation4], 1
    %s8750 = scalar_lea.sflag [#allocation4], 1
    %8751 = vsyncpa %s8750, 1

</llo_original>
